<compile_context>
chip_gen: v6e
topology: v6e:2x2x1
jax: 0.10.0
libtpu: 0.0.40
codegen_flags: <defaults>
</compile_context>

<pallas_src>
import functools

import jax
import jax.numpy as jnp
from jax import lax
from jax.experimental import pallas as pl
from jax.experimental.pallas import tpu as pltpu

# ---------------- config (TTTArgs) ----------------
DIM = 32
N_HEADS = 4
HEAD_DIM = DIM // N_HEADS
MINI_BATCH = 8
NORM_EPS = 1e-6
BASE_LR = 1.0
FFN_HIDDEN = 64  # TODO(synk): FeedForward / RMSNorm / apply_rope are not defined in the
#                  reference; assumed LLaMA-style SwiGLU FFN, RMSNorm, interleaved RoPE.


# ---------------- LN helpers (used inside the kernel) ----------------
def _ln_fused_l2_bwd(x, tgt, gamma, beta, eps):
    D = x.shape[-1]
    mu = jnp.mean(x, axis=-1, keepdims=True)
    var = jnp.mean((x - mu) ** 2, axis=-1, keepdims=True)
    inv_std = lax.rsqrt(var + eps)
    x_hat = (x - mu) * inv_std
    y = gamma * x_hat + beta
    grad_out = y - tgt
    gxh = grad_out * gamma
    z = (D * gxh
         - jnp.sum(gxh, axis=-1, keepdims=True)
         - x_hat * jnp.sum(gxh * x_hat, axis=-1, keepdims=True)) * (inv_std / D)
    return z


def _ln_fwd(x, gamma, beta, eps):
    mu = jnp.mean(x, axis=-1, keepdims=True)
    var = jnp.mean((x - mu) ** 2, axis=-1, keepdims=True)
    return gamma * (x - mu) * lax.rsqrt(var + eps) + beta


# ---------------- fused TTTBlock kernel ----------------
def _ttt_block_kernel(
        x_ref, cos_ref, sin_ref,
        inw_ref, wqkv_ref, lrw_ref, lrb_ref, gs_ref,
        gamma_ref, beta_ref, w0_ref, b0_ref,
        pnw_ref, pnb_ref, wo_ref,
        fnw_ref, w1_ref, w3_ref, w2_ref,
        o_ref,
        q_scr, k_scr, v_scr, lr_scr, hid_scr,
        *, eps, base_lr, mbs, hd, H, Bb, N, dim, seq):
    f32 = jnp.float32
    G = Bb * H

    # ---------- prologue: input RMSNorm + fused QKV + RoPE + inner lr ----------
    x = x_ref[...].astype(f32)                       # (Bb, SEQ, dim)
    xf = x.reshape(Bb * seq, dim)
    ms = jnp.mean(xf * xf, axis=-1, keepdims=True)
    hf = xf * lax.rsqrt(ms + eps) * inw_ref[...]     # input_norm(x)

    qkv = jnp.dot(hf, wqkv_ref[...], preferred_element_type=f32)   # (Bb*SEQ, 3*dim)

    cos = cos_ref[...]                               # (SEQ, dim)  cos repeated per pair/head
    sin = sin_ref[...]                               # (SEQ, dim)  [-s, +s] interleaved

    def pair_swap(t):                                # swap even/odd lanes of last dim
        left = jnp.concatenate([t[..., 1:], t[..., :1]], axis=-1)
        right = jnp.concatenate([t[..., -1:], t[..., :-1]], axis=-1)
        lane = lax.broadcasted_iota(jnp.int32, t.shape, t.ndim - 1)
        return jnp.where((lane & 1) == 0, left, right)

    def rope(t):                                     # t: (Bb, SEQ, dim)
        return t * cos + pair_swap(t) * sin

    q3 = rope(qkv[:, :dim].reshape(Bb, seq, dim))
    k3 = rope(qkv[:, dim:2 * dim].reshape(Bb, seq, dim))
    # NOTE: the reference forward applies RoPE to V as well as Q/K.
    v3 = rope(qkv[:, 2 * dim:].reshape(Bb, seq, dim))

    logit = jnp.dot(hf, lrw_ref[...], preferred_element_type=f32) + lrb_ref[...]
    lr_all = (base_lr / hd) * jax.nn.sigmoid(logit)  # (Bb*SEQ, H)
    lr3 = lr_all.reshape(Bb, seq, H)

    # split heads into VMEM scratch; g = h * Bb + b
    for h in range(H):
        sl = slice(h * Bb, (h + 1) * Bb)
        q_scr[sl, :, :] = q3[:, :, h * hd:(h + 1) * hd]
        k_scr[sl, :, :] = k3[:, :, h * hd:(h + 1) * hd]
        v_scr[sl, :, :] = v3[:, :, h * hd:(h + 1) * hd]
        lr_scr[sl, :, :] = lr3[:, :, h:h + 1]

    gamma = gamma_ref[...]                           # (G, 1, hd)
    beta = beta_ref[...]                             # (G, 1, hd)
    gs = gs_ref[...].reshape(1, mbs, 1)              # per-step gradient scale
    gs_last = gs[:, mbs - 1:mbs, :]                  # (1, 1, 1)

    # grid-invariant triangular masks, hoisted out of the loop
    rr = lax.broadcasted_iota(jnp.int32, (mbs, mbs), 0)
    cc = lax.broadcasted_iota(jnp.int32, (mbs, mbs), 1)
    le_mask = jnp.broadcast_to((cc <= rr).astype(f32), (G, mbs, mbs))
    ge_mask = jnp.broadcast_to((cc >= rr).astype(f32), (G, mbs, mbs))

    # ---------- TTT-linear recurrence over mini-batches ----------
    def mini_batch_step(n, carry):
        W, b, Wg, bg = carry                         # (G,hd,hd) (G,1,hd) (G,hd,hd) (G,1,hd)
        s0 = pl.multiple_of(n * mbs, mbs)
        Qn = q_scr[:, pl.ds(s0, mbs), :]             # (G, mbs, hd)
        Kn = k_scr[:, pl.ds(s0, mbs), :]
        Vn = v_scr[:, pl.ds(s0, mbs), :]
        lrn = lr_scr[:, pl.ds(s0, mbs), :]           # (G, mbs, 1)

        Z0 = jnp.einsum('gki,gij->gkj', Kn, W, preferred_element_type=f32) + b
        grad_l = _ln_fused_l2_bwd(Z0, Vn - Kn, gamma, beta, eps)      # (G, mbs, hd)
        gl = lrn * grad_l                                             # lr-scaled grad

        # bias grad: grad_b[g,r,:] = lr[g,r] * sum_{k>=r} grad_l[g,k,:] + carry
        grad_b = lrn * jnp.einsum('grk,gki->gri', ge_mask, grad_l,
                                  preferred_element_type=f32) + bg
        b_per = b - gs * grad_b                                       # per-step bias

        # dual-form per-step weight update applied to Q
        attn = jnp.einsum('gri,gki->grk', Qn, Kn, preferred_element_type=f32)
        q_gradw = jnp.einsum('grk,gkj->grj', le_mask * attn, gl,
                             preferred_element_type=f32)
        z1 = (jnp.einsum('gri,gij->grj', Qn, W, preferred_element_type=f32)
              - gs * (q_gradw + jnp.einsum('gri,gij->grj', Qn, Wg,
                                           preferred_element_type=f32))
              + b_per)
        out_n = Qn + _ln_fwd(z1, gamma, beta, eps)                    # (G, mbs, hd)

        # write hidden state lane-dense in (Bb, SEQ, dim) layout
        out_r = out_n.reshape(H, Bb, mbs, hd)
        hid_n = jnp.concatenate([out_r[h] for h in range(H)], axis=-1)  # (Bb, mbs, dim)
        hid_scr[:, pl.ds(s0, mbs), :] = hid_n

        # carry state to next mini-batch
        Wg_new = jnp.einsum('gki,gkj->gij', Kn, gl, preferred_element_type=f32) + Wg
        W_new = W - gs_last * Wg_new
        bg_new = grad_b[:, mbs - 1:mbs, :]
        b_new = b_per[:, mbs - 1:mbs, :]
        return (W_new, b_new, Wg_new, bg_new)

    W0v = w0_ref[...]
    b0v = b0_ref[...]
    lax.fori_loop(0, N, mini_batch_step,
                  (W0v, b0v, jnp.zeros_like(W0v), jnp.zeros_like(b0v)),
                  unroll=(N <= 8))

    # ---------- epilogue: post-LN + o-proj + residual + FFN ----------
    x_res = x_ref[...].astype(f32).reshape(Bb * seq, dim)
    hid = hid_scr[...].reshape(Bb * seq, dim)
    mu = jnp.mean(hid, axis=-1, keepdims=True)
    var = jnp.mean((hid - mu) ** 2, axis=-1, keepdims=True)
    ln_h = (hid - mu) * lax.rsqrt(var + eps) * pnw_ref[...] + pnb_ref[...]
    attn_out = jnp.dot(ln_h, wo_ref[...], preferred_element_type=f32)
    x1 = x_res + attn_out

    ms2 = jnp.mean(x1 * x1, axis=-1, keepdims=True)
    h3 = x1 * lax.rsqrt(ms2 + eps) * fnw_ref[...]
    gate = jax.nn.silu(jnp.dot(h3, w1_ref[...], preferred_element_type=f32))
    up = jnp.dot(h3, w3_ref[...], preferred_element_type=f32)
    ffn_out = jnp.dot(gate * up, w2_ref[...], preferred_element_type=f32)
    o_ref[...] = (x1 + ffn_out).reshape(Bb, seq, dim).astype(o_ref.dtype)


# ---------------- wrapper ----------------
def _largest_divisor_leq(n, cap):
    d = 1
    for c in range(1, min(n, cap) + 1):
        if n % c == 0:
            d = c
    return d


def ttt_block_forward(p, x, pos_frequencies):
    B, SEQ, dim = x.shape
    H, hd, mbs = N_HEADS, HEAD_DIM, MINI_BATCH
    assert dim == DIM
    # TODO(synk): the sequence-remainder path (SEQ % mini_batch_size != 0) is omitted.
    assert SEQ % mbs == 0
    N = SEQ // mbs

    Bb = _largest_divisor_leq(B, 8)   # batch rows per kernel block
    G = Bb * H

    # --- parameter-sized preprocessing (pure JAX, negligible) ---
    wqkv = jnp.concatenate([p["wq"], p["wk"], p["wv"]], axis=1)          # (dim, 3*dim)
    lrw = p["lr_W"].reshape(H, dim).T                                    # (dim, H)
    lrb = p["lr_b"].reshape(1, H)
    gs = jnp.maximum(p["grad_scale_buf"] + p["learnable_grad_scale"],
                     0.0)[:mbs].reshape(mbs, 1)
    gamma_g = jnp.repeat(p["ttt_norm_w"], Bb, axis=0).reshape(G, 1, hd)  # g = h*Bb + b
    beta_g = jnp.repeat(p["ttt_norm_b"], Bb, axis=0).reshape(G, 1, hd)
    w0_g = jnp.repeat(p["W0"], Bb, axis=0)                               # (G, hd, hd)
    b0_g = jnp.repeat(p["b0"], Bb, axis=0)                               # (G, 1, hd)

    # interleaved RoPE tables replicated to full feature width
    cos = pos_frequencies[..., 0]                                        # (SEQ, hd//2)
    sin = pos_frequencies[..., 1]
    cosd = jnp.tile(jnp.repeat(cos, 2, axis=-1), (1, H))                 # (SEQ, dim)
    sind = jnp.tile(jnp.stack([-sin, sin], axis=-1).reshape(SEQ, hd), (1, H))

    inw = p["input_norm_w"].reshape(1, dim)
    pnw = p["post_norm_w"].reshape(1, dim)
    pnb = p["post_norm_b"].reshape(1, dim)
    fnw = p["ffn_norm_w"].reshape(1, dim)

    kernel = functools.partial(
        _ttt_block_kernel, eps=NORM_EPS, base_lr=BASE_LR,
        mbs=mbs, hd=hd, H=H, Bb=Bb, N=N, dim=dim, seq=SEQ)

    xspec = pl.BlockSpec((Bb, SEQ, dim), lambda i: (i, 0, 0))

    def cspec(arr):
        nd = arr.ndim
        return pl.BlockSpec(arr.shape, lambda i, _n=nd: (0,) * _n)

    operands = (x, cosd, sind, inw, wqkv, lrw, lrb, gs, gamma_g, beta_g,
                w0_g, b0_g, pnw, pnb, p["wo"], fnw,
                p["ffn_w1"], p["ffn_w3"], p["ffn_w2"])
    in_specs = [xspec] + [cspec(a) for a in operands[1:]]

    return pl.pallas_call(
        kernel,
        out_shape=jax.ShapeDtypeStruct((B, SEQ, dim), x.dtype),
        grid=(B // Bb,),
        in_specs=in_specs,
        out_specs=xspec,
        scratch_shapes=[
            pltpu.VMEM((G, SEQ, hd), jnp.float32),    # Q (per head)
            pltpu.VMEM((G, SEQ, hd), jnp.float32),    # K
            pltpu.VMEM((G, SEQ, hd), jnp.float32),    # V
            pltpu.VMEM((G, SEQ, 1), jnp.float32),     # inner-loop lr
            pltpu.VMEM((Bb, SEQ, dim), jnp.float32),  # hidden (lane-dense)
        ],
        compiler_params=pltpu.CompilerParams(dimension_semantics=("parallel",)),
    )(*operands)


# ---------------- deterministic parameter init ----------------
def init_params(key):
    ks = jax.random.split(key, 9)

    def nrm(k, shape, std=0.02):
        return (std * jax.random.normal(k, shape)).astype(jnp.float32)

    return {
        "wq": nrm(ks[0], (DIM, DIM)),
        "wk": nrm(ks[1], (DIM, DIM)),
        "wv": nrm(ks[2], (DIM, DIM)),
        "wo": nrm(ks[3], (DIM, DIM)),
        "lr_W": nrm(ks[4], (N_HEADS, 1, DIM)),
        "lr_b": jnp.zeros((N_HEADS, 1), jnp.float32),
        "grad_scale_buf": 1.0 / jnp.arange(1, MINI_BATCH + 1, dtype=jnp.float32),
        "learnable_grad_scale": jnp.zeros((MINI_BATCH,), jnp.float32),
        "ttt_norm_w": jnp.ones((N_HEADS, HEAD_DIM), jnp.float32),
        "ttt_norm_b": jnp.zeros((N_HEADS, HEAD_DIM), jnp.float32),
        "W0": nrm(ks[5], (N_HEADS, HEAD_DIM, HEAD_DIM)),
        "b0": jnp.zeros((N_HEADS, 1, HEAD_DIM), jnp.float32),
        "post_norm_w": jnp.ones((DIM,), jnp.float32),
        "post_norm_b": jnp.zeros((DIM,), jnp.float32),
        "input_norm_w": jnp.ones((DIM,), jnp.float32),
        "ffn_norm_w": jnp.ones((DIM,), jnp.float32),
        "ffn_w1": nrm(ks[6], (DIM, FFN_HIDDEN)),
        "ffn_w3": nrm(ks[7], (DIM, FFN_HIDDEN)),
        "ffn_w2": nrm(ks[8], (FFN_HIDDEN, DIM)),
    }


if __name__ == "__main__":
    key = jax.random.PRNGKey(0)
    pkey, xkey = jax.random.split(key)
    params = init_params(pkey)

    B, SEQ = 2, 16
    x = jax.random.normal(xkey, (B, SEQ, DIM), dtype=jnp.float32)

    t = jnp.arange(SEQ, dtype=jnp.float32)
    inv_freq = 1.0 / (10000.0 ** (jnp.arange(0, HEAD_DIM, 2, dtype=jnp.float32) / HEAD_DIM))
    ang = jnp.outer(t, inv_freq)                                   # (SEQ, HEAD_DIM//2)
    pos_frequencies = jnp.stack([jnp.cos(ang), jnp.sin(ang)], axis=-1)

    out = jax.jit(ttt_block_forward)(params, x, pos_frequencies)
    jax.block_until_ready(out)
    assert out.shape == (B, SEQ, DIM) and out.dtype == jnp.float32
    print("KERNEL_OK")
</pallas_src>

<mosaic_0001>
module attributes {stable_mosaic.version = 11 : i64} {
  func.func @_ttt_block_kernel(%arg0: i32, %arg1: memref<2x16x32xf32, #tpu.memory_space<vmem>>, %arg2: memref<16x32xf32, #tpu.memory_space<vmem>>, %arg3: memref<16x32xf32, #tpu.memory_space<vmem>>, %arg4: memref<1x32xf32, #tpu.memory_space<vmem>>, %arg5: memref<32x96xf32, #tpu.memory_space<vmem>>, %arg6: memref<32x4xf32, #tpu.memory_space<vmem>>, %arg7: memref<1x4xf32, #tpu.memory_space<vmem>>, %arg8: memref<8x1xf32, #tpu.memory_space<vmem>>, %arg9: memref<8x1x8xf32, #tpu.memory_space<vmem>>, %arg10: memref<8x1x8xf32, #tpu.memory_space<vmem>>, %arg11: memref<8x8x8xf32, #tpu.memory_space<vmem>>, %arg12: memref<8x1x8xf32, #tpu.memory_space<vmem>>, %arg13: memref<1x32xf32, #tpu.memory_space<vmem>>, %arg14: memref<1x32xf32, #tpu.memory_space<vmem>>, %arg15: memref<32x32xf32, #tpu.memory_space<vmem>>, %arg16: memref<1x32xf32, #tpu.memory_space<vmem>>, %arg17: memref<32x64xf32, #tpu.memory_space<vmem>>, %arg18: memref<32x64xf32, #tpu.memory_space<vmem>>, %arg19: memref<64x32xf32, #tpu.memory_space<vmem>>, %arg20: memref<2x16x32xf32, #tpu.memory_space<vmem>>, %arg21: memref<8x16x8xf32, #tpu.memory_space<vmem>>, %arg22: memref<8x16x8xf32, #tpu.memory_space<vmem>>, %arg23: memref<8x16x8xf32, #tpu.memory_space<vmem>>, %arg24: memref<8x16x1xf32, #tpu.memory_space<vmem>>, %arg25: memref<2x16x32xf32, #tpu.memory_space<vmem>>) attributes {dimension_semantics = [#tpu.dimension_semantics<parallel>], iteration_bounds = array<i64: 1>, scalar_prefetch = 0 : i64, scratch_operands = 5 : i64, tpu.core_type = #tpu.core_type<tc>, window_params = [{transform_indices = @transform_0, window_bounds = array<i64: 2, 16, 32>}, {pipeline_mode = #tpu.pipeline_mode<synchronous>, transform_indices = @transform_1, window_bounds = array<i64: 16, 32>}, {pipeline_mode = #tpu.pipeline_mode<synchronous>, transform_indices = @transform_2, window_bounds = array<i64: 16, 32>}, {pipeline_mode = #tpu.pipeline_mode<synchronous>, transform_indices = @transform_3, window_bounds = array<i64: 1, 32>}, {pipeline_mode = #tpu.pipeline_mode<synchronous>, transform_indices = @transform_4, window_bounds = array<i64: 32, 96>}, {pipeline_mode = #tpu.pipeline_mode<synchronous>, transform_indices = @transform_5, window_bounds = array<i64: 32, 4>}, {pipeline_mode = #tpu.pipeline_mode<synchronous>, transform_indices = @transform_6, window_bounds = array<i64: 1, 4>}, {pipeline_mode = #tpu.pipeline_mode<synchronous>, transform_indices = @transform_7, window_bounds = array<i64: 8, 1>}, {pipeline_mode = #tpu.pipeline_mode<synchronous>, transform_indices = @transform_8, window_bounds = array<i64: 8, 1, 8>}, {pipeline_mode = #tpu.pipeline_mode<synchronous>, transform_indices = @transform_9, window_bounds = array<i64: 8, 1, 8>}, {pipeline_mode = #tpu.pipeline_mode<synchronous>, transform_indices = @transform_10, window_bounds = array<i64: 8, 8, 8>}, {pipeline_mode = #tpu.pipeline_mode<synchronous>, transform_indices = @transform_11, window_bounds = array<i64: 8, 1, 8>}, {pipeline_mode = #tpu.pipeline_mode<synchronous>, transform_indices = @transform_12, window_bounds = array<i64: 1, 32>}, {pipeline_mode = #tpu.pipeline_mode<synchronous>, transform_indices = @transform_13, window_bounds = array<i64: 1, 32>}, {pipeline_mode = #tpu.pipeline_mode<synchronous>, transform_indices = @transform_14, window_bounds = array<i64: 32, 32>}, {pipeline_mode = #tpu.pipeline_mode<synchronous>, transform_indices = @transform_15, window_bounds = array<i64: 1, 32>}, {pipeline_mode = #tpu.pipeline_mode<synchronous>, transform_indices = @transform_16, window_bounds = array<i64: 32, 64>}, {pipeline_mode = #tpu.pipeline_mode<synchronous>, transform_indices = @transform_17, window_bounds = array<i64: 32, 64>}, {pipeline_mode = #tpu.pipeline_mode<synchronous>, transform_indices = @transform_18, window_bounds = array<i64: 64, 32>}, {transform_indices = @transform_19, window_bounds = array<i64: 2, 16, 32>}]} {
    %c0 = arith.constant 0 : index
    %c0_0 = arith.constant 0 : index
    %c0_1 = arith.constant 0 : index
    %0 = vector.load %arg1[%c0, %c0_0, %c0_1] : memref<2x16x32xf32, #tpu.memory_space<vmem>>, vector<2x16x32xf32>
    %1 = vector.shape_cast %0 : vector<2x16x32xf32> to vector<32x32xf32>
    %2 = arith.mulf %1, %1 : vector<32x32xf32>
    %cst = arith.constant dense<0.000000e+00> : vector<32xf32>
    %3 = vector.multi_reduction <add>, %2, %cst [1] : vector<32x32xf32> to vector<32xf32>
    %4 = vector.shape_cast %3 : vector<32xf32> to vector<32x1xf32>
    %cst_2 = arith.constant 3.200000e+01 : f32
    %5 = vector.broadcast %cst_2 : f32 to vector<32x1xf32>
    %6 = arith.divf %4, %5 : vector<32x1xf32>
    %cst_3 = arith.constant 9.99999997E-7 : f32
    %7 = vector.broadcast %cst_3 : f32 to vector<32x1xf32>
    %8 = arith.addf %6, %7 : vector<32x1xf32>
    %9 = math.rsqrt %8 : vector<32x1xf32>
    %10 = vector.broadcast %9 : vector<32x1xf32> to vector<32x32xf32>
    %11 = arith.mulf %1, %10 : vector<32x32xf32>
    %c0_4 = arith.constant 0 : index
    %c0_5 = arith.constant 0 : index
    %12 = vector.load %arg4[%c0_4, %c0_5] : memref<1x32xf32, #tpu.memory_space<vmem>>, vector<1x32xf32>
    %13 = vector.broadcast %12 : vector<1x32xf32> to vector<32x32xf32>
    %14 = arith.mulf %11, %13 : vector<32x32xf32>
    %c0_6 = arith.constant 0 : index
    %c0_7 = arith.constant 0 : index
    %15 = vector.load %arg5[%c0_6, %c0_7] : memref<32x96xf32, #tpu.memory_space<vmem>>, vector<32x96xf32>
    %cst_8 = arith.constant dense<0.000000e+00> : vector<32x96xf32>
    %16 = tpu.matmul %14, %15, %cst_8 {dimension_numbers = #tpu.dot_dimension_numbers<[1], [0], [0], [1], [0, 0, 1, 1], [], []>} : vector<32x32xf32>, vector<32x96xf32>, vector<32x96xf32> -> vector<32x96xf32>
    %c0_9 = arith.constant 0 : index
    %c0_10 = arith.constant 0 : index
    %17 = vector.load %arg2[%c0_9, %c0_10] : memref<16x32xf32, #tpu.memory_space<vmem>>, vector<16x32xf32>
    %c0_11 = arith.constant 0 : index
    %c0_12 = arith.constant 0 : index
    %18 = vector.load %arg3[%c0_11, %c0_12] : memref<16x32xf32, #tpu.memory_space<vmem>>, vector<16x32xf32>
    %19 = vector.extract_strided_slice %16 {offsets = [0, 0], sizes = [32, 32], strides = [1, 1]} : vector<32x96xf32> to vector<32x32xf32>
    %20 = vector.shape_cast %19 : vector<32x32xf32> to vector<2x16x32xf32>
    %21 = vector.shape_cast %17 : vector<16x32xf32> to vector<1x16x32xf32>
    %22 = vector.broadcast %21 : vector<1x16x32xf32> to vector<2x16x32xf32>
    %23 = arith.mulf %20, %22 : vector<2x16x32xf32>
    %24 = vector.extract_strided_slice %20 {offsets = [0, 0, 1], sizes = [2, 16, 31], strides = [1, 1, 1]} : vector<2x16x32xf32> to vector<2x16x31xf32>
    %25 = vector.extract_strided_slice %20 {offsets = [0, 0, 0], sizes = [2, 16, 1], strides = [1, 1, 1]} : vector<2x16x32xf32> to vector<2x16x1xf32>
    %26 = tpu.concatenate %24, %25 in 2 : vector<2x16x31xf32>, vector<2x16x1xf32> -> vector<2x16x32xf32>
    %27 = vector.extract_strided_slice %20 {offsets = [0, 0, 31], sizes = [2, 16, 1], strides = [1, 1, 1]} : vector<2x16x32xf32> to vector<2x16x1xf32>
    %28 = vector.extract_strided_slice %20 {offsets = [0, 0, 0], sizes = [2, 16, 31], strides = [1, 1, 1]} : vector<2x16x32xf32> to vector<2x16x31xf32>
    %29 = tpu.concatenate %27, %28 in 2 : vector<2x16x1xf32>, vector<2x16x31xf32> -> vector<2x16x32xf32>
    %30 = tpu.iota {dimensions = array<i32: 2>} : vector<2x16x32xi32>
    %c1_i32 = arith.constant 1 : i32
    %31 = vector.broadcast %c1_i32 : i32 to vector<2x16x32xi32>
    %32 = arith.andi %30, %31 : vector<2x16x32xi32>
    %c0_i32 = arith.constant 0 : i32
    %33 = vector.broadcast %c0_i32 : i32 to vector<2x16x32xi32>
    %34 = arith.cmpi eq, %32, %33 : vector<2x16x32xi32>
    %35 = arith.select %34, %26, %29 : vector<2x16x32xi1>, vector<2x16x32xf32>
    %36 = vector.shape_cast %18 : vector<16x32xf32> to vector<1x16x32xf32>
    %37 = vector.broadcast %36 : vector<1x16x32xf32> to vector<2x16x32xf32>
    %38 = arith.mulf %35, %37 : vector<2x16x32xf32>
    %39 = arith.addf %23, %38 : vector<2x16x32xf32>
    %40 = vector.extract_strided_slice %16 {offsets = [0, 32], sizes = [32, 32], strides = [1, 1]} : vector<32x96xf32> to vector<32x32xf32>
    %41 = vector.shape_cast %40 : vector<32x32xf32> to vector<2x16x32xf32>
    %42 = vector.shape_cast %17 : vector<16x32xf32> to vector<1x16x32xf32>
    %43 = vector.broadcast %42 : vector<1x16x32xf32> to vector<2x16x32xf32>
    %44 = arith.mulf %41, %43 : vector<2x16x32xf32>
    %45 = vector.extract_strided_slice %41 {offsets = [0, 0, 1], sizes = [2, 16, 31], strides = [1, 1, 1]} : vector<2x16x32xf32> to vector<2x16x31xf32>
    %46 = vector.extract_strided_slice %41 {offsets = [0, 0, 0], sizes = [2, 16, 1], strides = [1, 1, 1]} : vector<2x16x32xf32> to vector<2x16x1xf32>
    %47 = tpu.concatenate %45, %46 in 2 : vector<2x16x31xf32>, vector<2x16x1xf32> -> vector<2x16x32xf32>
    %48 = vector.extract_strided_slice %41 {offsets = [0, 0, 31], sizes = [2, 16, 1], strides = [1, 1, 1]} : vector<2x16x32xf32> to vector<2x16x1xf32>
    %49 = vector.extract_strided_slice %41 {offsets = [0, 0, 0], sizes = [2, 16, 31], strides = [1, 1, 1]} : vector<2x16x32xf32> to vector<2x16x31xf32>
    %50 = tpu.concatenate %48, %49 in 2 : vector<2x16x1xf32>, vector<2x16x31xf32> -> vector<2x16x32xf32>
    %51 = tpu.iota {dimensions = array<i32: 2>} : vector<2x16x32xi32>
    %c1_i32_13 = arith.constant 1 : i32
    %52 = vector.broadcast %c1_i32_13 : i32 to vector<2x16x32xi32>
    %53 = arith.andi %51, %52 : vector<2x16x32xi32>
    %c0_i32_14 = arith.constant 0 : i32
    %54 = vector.broadcast %c0_i32_14 : i32 to vector<2x16x32xi32>
    %55 = arith.cmpi eq, %53, %54 : vector<2x16x32xi32>
    %56 = arith.select %55, %47, %50 : vector<2x16x32xi1>, vector<2x16x32xf32>
    %57 = vector.shape_cast %18 : vector<16x32xf32> to vector<1x16x32xf32>
    %58 = vector.broadcast %57 : vector<1x16x32xf32> to vector<2x16x32xf32>
    %59 = arith.mulf %56, %58 : vector<2x16x32xf32>
    %60 = arith.addf %44, %59 : vector<2x16x32xf32>
    %61 = vector.extract_strided_slice %16 {offsets = [0, 64], sizes = [32, 32], strides = [1, 1]} : vector<32x96xf32> to vector<32x32xf32>
    %62 = vector.shape_cast %61 : vector<32x32xf32> to vector<2x16x32xf32>
    %63 = vector.shape_cast %17 : vector<16x32xf32> to vector<1x16x32xf32>
    %64 = vector.broadcast %63 : vector<1x16x32xf32> to vector<2x16x32xf32>
    %65 = arith.mulf %62, %64 : vector<2x16x32xf32>
    %66 = vector.extract_strided_slice %62 {offsets = [0, 0, 1], sizes = [2, 16, 31], strides = [1, 1, 1]} : vector<2x16x32xf32> to vector<2x16x31xf32>
    %67 = vector.extract_strided_slice %62 {offsets = [0, 0, 0], sizes = [2, 16, 1], strides = [1, 1, 1]} : vector<2x16x32xf32> to vector<2x16x1xf32>
    %68 = tpu.concatenate %66, %67 in 2 : vector<2x16x31xf32>, vector<2x16x1xf32> -> vector<2x16x32xf32>
    %69 = vector.extract_strided_slice %62 {offsets = [0, 0, 31], sizes = [2, 16, 1], strides = [1, 1, 1]} : vector<2x16x32xf32> to vector<2x16x1xf32>
    %70 = vector.extract_strided_slice %62 {offsets = [0, 0, 0], sizes = [2, 16, 31], strides = [1, 1, 1]} : vector<2x16x32xf32> to vector<2x16x31xf32>
    %71 = tpu.concatenate %69, %70 in 2 : vector<2x16x1xf32>, vector<2x16x31xf32> -> vector<2x16x32xf32>
    %72 = tpu.iota {dimensions = array<i32: 2>} : vector<2x16x32xi32>
    %c1_i32_15 = arith.constant 1 : i32
    %73 = vector.broadcast %c1_i32_15 : i32 to vector<2x16x32xi32>
    %74 = arith.andi %72, %73 : vector<2x16x32xi32>
    %c0_i32_16 = arith.constant 0 : i32
    %75 = vector.broadcast %c0_i32_16 : i32 to vector<2x16x32xi32>
    %76 = arith.cmpi eq, %74, %75 : vector<2x16x32xi32>
    %77 = arith.select %76, %68, %71 : vector<2x16x32xi1>, vector<2x16x32xf32>
    %78 = vector.shape_cast %18 : vector<16x32xf32> to vector<1x16x32xf32>
    %79 = vector.broadcast %78 : vector<1x16x32xf32> to vector<2x16x32xf32>
    %80 = arith.mulf %77, %79 : vector<2x16x32xf32>
    %81 = arith.addf %65, %80 : vector<2x16x32xf32>
    %c0_17 = arith.constant 0 : index
    %c0_18 = arith.constant 0 : index
    %82 = vector.load %arg6[%c0_17, %c0_18] : memref<32x4xf32, #tpu.memory_space<vmem>>, vector<32x4xf32>
    %cst_19 = arith.constant dense<0.000000e+00> : vector<32x4xf32>
    %83 = tpu.matmul %14, %82, %cst_19 {dimension_numbers = #tpu.dot_dimension_numbers<[1], [0], [0], [1], [0, 0, 1, 1], [], []>} : vector<32x32xf32>, vector<32x4xf32>, vector<32x4xf32> -> vector<32x4xf32>
    %c0_20 = arith.constant 0 : index
    %c0_21 = arith.constant 0 : index
    %84 = vector.load %arg7[%c0_20, %c0_21] : memref<1x4xf32, #tpu.memory_space<vmem>>, vector<1x4xf32>
    %85 = vector.broadcast %84 : vector<1x4xf32> to vector<32x4xf32>
    %86 = arith.addf %83, %85 : vector<32x4xf32>
    %87 = arith.negf %86 : vector<32x4xf32>
    %88 = math.exp %87 : vector<32x4xf32>
    %cst_22 = arith.constant 1.000000e+00 : f32
    %89 = vector.broadcast %cst_22 : f32 to vector<32x4xf32>
    %90 = arith.addf %89, %88 : vector<32x4xf32>
    %91 = arith.divf %89, %90 : vector<32x4xf32>
    %cst_23 = arith.constant 1.250000e-01 : f32
    %92 = vector.broadcast %cst_23 : f32 to vector<32x4xf32>
    %93 = arith.mulf %92, %91 : vector<32x4xf32>
    %94 = vector.shape_cast %93 : vector<32x4xf32> to vector<2x16x4xf32>
    %95 = vector.extract_strided_slice %39 {offsets = [0, 0, 0], sizes = [2, 16, 8], strides = [1, 1, 1]} : vector<2x16x32xf32> to vector<2x16x8xf32>
    %c0_24 = arith.constant 0 : index
    %c0_25 = arith.constant 0 : index
    %c0_26 = arith.constant 0 : index
    %96 = vector.load %arg21[%c0_24, %c0_25, %c0_26] : memref<8x16x8xf32, #tpu.memory_space<vmem>>, vector<2x16x8xf32>
    tpu.vector_store %arg21[%c0_24, %c0_25, %c0_26], %95 {strides = array<i32>} : memref<8x16x8xf32, #tpu.memory_space<vmem>>, vector<2x16x8xf32>,
    %97 = vector.extract_strided_slice %60 {offsets = [0, 0, 0], sizes = [2, 16, 8], strides = [1, 1, 1]} : vector<2x16x32xf32> to vector<2x16x8xf32>
    %c0_27 = arith.constant 0 : index
    %c0_28 = arith.constant 0 : index
    %c0_29 = arith.constant 0 : index
    %98 = vector.load %arg22[%c0_27, %c0_28, %c0_29] : memref<8x16x8xf32, #tpu.memory_space<vmem>>, vector<2x16x8xf32>
    tpu.vector_store %arg22[%c0_27, %c0_28, %c0_29], %97 {strides = array<i32>} : memref<8x16x8xf32, #tpu.memory_space<vmem>>, vector<2x16x8xf32>,
    %99 = vector.extract_strided_slice %81 {offsets = [0, 0, 0], sizes = [2, 16, 8], strides = [1, 1, 1]} : vector<2x16x32xf32> to vector<2x16x8xf32>
    %c0_30 = arith.constant 0 : index
    %c0_31 = arith.constant 0 : index
    %c0_32 = arith.constant 0 : index
    %100 = vector.load %arg23[%c0_30, %c0_31, %c0_32] : memref<8x16x8xf32, #tpu.memory_space<vmem>>, vector<2x16x8xf32>
    tpu.vector_store %arg23[%c0_30, %c0_31, %c0_32], %99 {strides = array<i32>} : memref<8x16x8xf32, #tpu.memory_space<vmem>>, vector<2x16x8xf32>,
    %101 = vector.extract_strided_slice %94 {offsets = [0, 0, 0], sizes = [2, 16, 1], strides = [1, 1, 1]} : vector<2x16x4xf32> to vector<2x16x1xf32>
    %c0_33 = arith.constant 0 : index
    %c0_34 = arith.constant 0 : index
    %c0_35 = arith.constant 0 : index
    %102 = vector.load %arg24[%c0_33, %c0_34, %c0_35] : memref<8x16x1xf32, #tpu.memory_space<vmem>>, vector<2x16x1xf32>
    tpu.vector_store %arg24[%c0_33, %c0_34, %c0_35], %101 {strides = array<i32>} : memref<8x16x1xf32, #tpu.memory_space<vmem>>, vector<2x16x1xf32>,
    %103 = vector.extract_strided_slice %39 {offsets = [0, 0, 8], sizes = [2, 16, 8], strides = [1, 1, 1]} : vector<2x16x32xf32> to vector<2x16x8xf32>
    %c2 = arith.constant 2 : index
    %c0_36 = arith.constant 0 : index
    %c0_37 = arith.constant 0 : index
    %104 = vector.load %arg21[%c2, %c0_36, %c0_37] : memref<8x16x8xf32, #tpu.memory_space<vmem>>, vector<2x16x8xf32>
    tpu.vector_store %arg21[%c2, %c0_36, %c0_37], %103 {strides = array<i32>} : memref<8x16x8xf32, #tpu.memory_space<vmem>>, vector<2x16x8xf32>,
    %105 = vector.extract_strided_slice %60 {offsets = [0, 0, 8], sizes = [2, 16, 8], strides = [1, 1, 1]} : vector<2x16x32xf32> to vector<2x16x8xf32>
    %c2_38 = arith.constant 2 : index
    %c0_39 = arith.constant 0 : index
    %c0_40 = arith.constant 0 : index
    %106 = vector.load %arg22[%c2_38, %c0_39, %c0_40] : memref<8x16x8xf32, #tpu.memory_space<vmem>>, vector<2x16x8xf32>
    tpu.vector_store %arg22[%c2_38, %c0_39, %c0_40], %105 {strides = array<i32>} : memref<8x16x8xf32, #tpu.memory_space<vmem>>, vector<2x16x8xf32>,
    %107 = vector.extract_strided_slice %81 {offsets = [0, 0, 8], sizes = [2, 16, 8], strides = [1, 1, 1]} : vector<2x16x32xf32> to vector<2x16x8xf32>
    %c2_41 = arith.constant 2 : index
    %c0_42 = arith.constant 0 : index
    %c0_43 = arith.constant 0 : index
    %108 = vector.load %arg23[%c2_41, %c0_42, %c0_43] : memref<8x16x8xf32, #tpu.memory_space<vmem>>, vector<2x16x8xf32>
    tpu.vector_store %arg23[%c2_41, %c0_42, %c0_43], %107 {strides = array<i32>} : memref<8x16x8xf32, #tpu.memory_space<vmem>>, vector<2x16x8xf32>,
    %109 = vector.extract_strided_slice %94 {offsets = [0, 0, 1], sizes = [2, 16, 1], strides = [1, 1, 1]} : vector<2x16x4xf32> to vector<2x16x1xf32>
    %c2_44 = arith.constant 2 : index
    %c0_45 = arith.constant 0 : index
    %c0_46 = arith.constant 0 : index
    %110 = vector.load %arg24[%c2_44, %c0_45, %c0_46] : memref<8x16x1xf32, #tpu.memory_space<vmem>>, vector<2x16x1xf32>
    tpu.vector_store %arg24[%c2_44, %c0_45, %c0_46], %109 {strides = array<i32>} : memref<8x16x1xf32, #tpu.memory_space<vmem>>, vector<2x16x1xf32>,
    %111 = vector.extract_strided_slice %39 {offsets = [0, 0, 16], sizes = [2, 16, 8], strides = [1, 1, 1]} : vector<2x16x32xf32> to vector<2x16x8xf32>
    %c4 = arith.constant 4 : index
    %c0_47 = arith.constant 0 : index
    %c0_48 = arith.constant 0 : index
    %112 = vector.load %arg21[%c4, %c0_47, %c0_48] : memref<8x16x8xf32, #tpu.memory_space<vmem>>, vector<2x16x8xf32>
    tpu.vector_store %arg21[%c4, %c0_47, %c0_48], %111 {strides = array<i32>} : memref<8x16x8xf32, #tpu.memory_space<vmem>>, vector<2x16x8xf32>,
    %113 = vector.extract_strided_slice %60 {offsets = [0, 0, 16], sizes = [2, 16, 8], strides = [1, 1, 1]} : vector<2x16x32xf32> to vector<2x16x8xf32>
    %c4_49 = arith.constant 4 : index
    %c0_50 = arith.constant 0 : index
    %c0_51 = arith.constant 0 : index
    %114 = vector.load %arg22[%c4_49, %c0_50, %c0_51] : memref<8x16x8xf32, #tpu.memory_space<vmem>>, vector<2x16x8xf32>
    tpu.vector_store %arg22[%c4_49, %c0_50, %c0_51], %113 {strides = array<i32>} : memref<8x16x8xf32, #tpu.memory_space<vmem>>, vector<2x16x8xf32>,
    %115 = vector.extract_strided_slice %81 {offsets = [0, 0, 16], sizes = [2, 16, 8], strides = [1, 1, 1]} : vector<2x16x32xf32> to vector<2x16x8xf32>
    %c4_52 = arith.constant 4 : index
    %c0_53 = arith.constant 0 : index
    %c0_54 = arith.constant 0 : index
    %116 = vector.load %arg23[%c4_52, %c0_53, %c0_54] : memref<8x16x8xf32, #tpu.memory_space<vmem>>, vector<2x16x8xf32>
    tpu.vector_store %arg23[%c4_52, %c0_53, %c0_54], %115 {strides = array<i32>} : memref<8x16x8xf32, #tpu.memory_space<vmem>>, vector<2x16x8xf32>,
    %117 = vector.extract_strided_slice %94 {offsets = [0, 0, 2], sizes = [2, 16, 1], strides = [1, 1, 1]} : vector<2x16x4xf32> to vector<2x16x1xf32>
    %c4_55 = arith.constant 4 : index
    %c0_56 = arith.constant 0 : index
    %c0_57 = arith.constant 0 : index
    %118 = vector.load %arg24[%c4_55, %c0_56, %c0_57] : memref<8x16x1xf32, #tpu.memory_space<vmem>>, vector<2x16x1xf32>
    tpu.vector_store %arg24[%c4_55, %c0_56, %c0_57], %117 {strides = array<i32>} : memref<8x16x1xf32, #tpu.memory_space<vmem>>, vector<2x16x1xf32>,
    %119 = vector.extract_strided_slice %39 {offsets = [0, 0, 24], sizes = [2, 16, 8], strides = [1, 1, 1]} : vector<2x16x32xf32> to vector<2x16x8xf32>
    %c6 = arith.constant 6 : index
    %c0_58 = arith.constant 0 : index
    %c0_59 = arith.constant 0 : index
    %120 = vector.load %arg21[%c6, %c0_58, %c0_59] : memref<8x16x8xf32, #tpu.memory_space<vmem>>, vector<2x16x8xf32>
    tpu.vector_store %arg21[%c6, %c0_58, %c0_59], %119 {strides = array<i32>} : memref<8x16x8xf32, #tpu.memory_space<vmem>>, vector<2x16x8xf32>,
    %121 = vector.extract_strided_slice %60 {offsets = [0, 0, 24], sizes = [2, 16, 8], strides = [1, 1, 1]} : vector<2x16x32xf32> to vector<2x16x8xf32>
    %c6_60 = arith.constant 6 : index
    %c0_61 = arith.constant 0 : index
    %c0_62 = arith.constant 0 : index
    %122 = vector.load %arg22[%c6_60, %c0_61, %c0_62] : memref<8x16x8xf32, #tpu.memory_space<vmem>>, vector<2x16x8xf32>
    tpu.vector_store %arg22[%c6_60, %c0_61, %c0_62], %121 {strides = array<i32>} : memref<8x16x8xf32, #tpu.memory_space<vmem>>, vector<2x16x8xf32>,
    %123 = vector.extract_strided_slice %81 {offsets = [0, 0, 24], sizes = [2, 16, 8], strides = [1, 1, 1]} : vector<2x16x32xf32> to vector<2x16x8xf32>
    %c6_63 = arith.constant 6 : index
    %c0_64 = arith.constant 0 : index
    %c0_65 = arith.constant 0 : index
    %124 = vector.load %arg23[%c6_63, %c0_64, %c0_65] : memref<8x16x8xf32, #tpu.memory_space<vmem>>, vector<2x16x8xf32>
    tpu.vector_store %arg23[%c6_63, %c0_64, %c0_65], %123 {strides = array<i32>} : memref<8x16x8xf32, #tpu.memory_space<vmem>>, vector<2x16x8xf32>,
    %125 = vector.extract_strided_slice %94 {offsets = [0, 0, 3], sizes = [2, 16, 1], strides = [1, 1, 1]} : vector<2x16x4xf32> to vector<2x16x1xf32>
    %c6_66 = arith.constant 6 : index
    %c0_67 = arith.constant 0 : index
    %c0_68 = arith.constant 0 : index
    %126 = vector.load %arg24[%c6_66, %c0_67, %c0_68] : memref<8x16x1xf32, #tpu.memory_space<vmem>>, vector<2x16x1xf32>
    tpu.vector_store %arg24[%c6_66, %c0_67, %c0_68], %125 {strides = array<i32>} : memref<8x16x1xf32, #tpu.memory_space<vmem>>, vector<2x16x1xf32>,
    %c0_69 = arith.constant 0 : index
    %c0_70 = arith.constant 0 : index
    %c0_71 = arith.constant 0 : index
    %127 = vector.load %arg9[%c0_69, %c0_70, %c0_71] : memref<8x1x8xf32, #tpu.memory_space<vmem>>, vector<8x1x8xf32>
    %c0_72 = arith.constant 0 : index
    %c0_73 = arith.constant 0 : index
    %c0_74 = arith.constant 0 : index
    %128 = vector.load %arg10[%c0_72, %c0_73, %c0_74] : memref<8x1x8xf32, #tpu.memory_space<vmem>>, vector<8x1x8xf32>
    %c0_75 = arith.constant 0 : index
    %c0_76 = arith.constant 0 : index
    %129 = vector.load %arg8[%c0_75, %c0_76] : memref<8x1xf32, #tpu.memory_space<vmem>>, vector<8x1xf32>
    %130 = vector.shape_cast %129 : vector<8x1xf32> to vector<1x8x1xf32>
    %131 = vector.extract_strided_slice %130 {offsets = [0, 7, 0], sizes = [1, 1, 1], strides = [1, 1, 1]} : vector<1x8x1xf32> to vector<1x1x1xf32>
    %132 = tpu.iota {dimensions = array<i32: 0>} : vector<8x8xi32>
    %133 = tpu.iota {dimensions = array<i32: 1>} : vector<8x8xi32>
    %134 = arith.cmpi sle, %133, %132 : vector<8x8xi32>
    %135 = arith.extui %134 : vector<8x8xi1> to vector<8x8xi32>
    %136 = arith.sitofp %135 : vector<8x8xi32> to vector<8x8xf32>
    %137 = vector.shape_cast %136 : vector<8x8xf32> to vector<1x8x8xf32>
    %138 = vector.broadcast %137 : vector<1x8x8xf32> to vector<8x8x8xf32>
    %139 = arith.cmpi sge, %133, %132 : vector<8x8xi32>
    %140 = arith.extui %139 : vector<8x8xi1> to vector<8x8xi32>
    %141 = arith.sitofp %140 : vector<8x8xi32> to vector<8x8xf32>
    %142 = vector.shape_cast %141 : vector<8x8xf32> to vector<1x8x8xf32>
    %143 = vector.broadcast %142 : vector<1x8x8xf32> to vector<8x8x8xf32>
    %c0_77 = arith.constant 0 : index
    %c0_78 = arith.constant 0 : index
    %c0_79 = arith.constant 0 : index
    %144 = vector.load %arg11[%c0_77, %c0_78, %c0_79] : memref<8x8x8xf32, #tpu.memory_space<vmem>>, vector<8x8x8xf32>
    %c0_80 = arith.constant 0 : index
    %c0_81 = arith.constant 0 : index
    %c0_82 = arith.constant 0 : index
    %145 = vector.load %arg12[%c0_80, %c0_81, %c0_82] : memref<8x1x8xf32, #tpu.memory_space<vmem>>, vector<8x1x8xf32>
    %cst_83 = arith.constant 0.000000e+00 : f32
    %146 = vector.broadcast %cst_83 : f32 to vector<8x8x8xf32>
    %cst_84 = arith.constant 0.000000e+00 : f32
    %147 = vector.broadcast %cst_84 : f32 to vector<8x1x8xf32>
    %c0_i32_85 = arith.constant 0 : i32
    %c8_i32 = arith.constant 8 : i32
    %148 = arith.muli %c0_i32_85, %c8_i32 : i32
    %149 = tpu.assume_multiple %148, 8 : i32
    %c0_86 = arith.constant 0 : index
    %150 = arith.index_cast %149 : i32 to index
    %c0_87 = arith.constant 0 : index
    %151 = vector.load %arg21[%c0_86, %150, %c0_87] : memref<8x16x8xf32, #tpu.memory_space<vmem>>, vector<8x8x8xf32>
    %c0_88 = arith.constant 0 : index
    %152 = arith.index_cast %149 : i32 to index
    %c0_89 = arith.constant 0 : index
    %153 = vector.load %arg22[%c0_88, %152, %c0_89] : memref<8x16x8xf32, #tpu.memory_space<vmem>>, vector<8x8x8xf32>
    %c0_90 = arith.constant 0 : index
    %154 = arith.index_cast %149 : i32 to index
    %c0_91 = arith.constant 0 : index
    %155 = vector.load %arg23[%c0_90, %154, %c0_91] : memref<8x16x8xf32, #tpu.memory_space<vmem>>, vector<8x8x8xf32>
    %c0_92 = arith.constant 0 : index
    %156 = arith.index_cast %149 : i32 to index
    %c0_93 = arith.constant 0 : index
    %157 = vector.load %arg24[%c0_92, %156, %c0_93] : memref<8x16x1xf32, #tpu.memory_space<vmem>>, vector<8x8x1xf32>
    "tpu.trace_start"() <{level = 10 : i32, message = "gki,gij->gkj"}> : () -> ()
    %cst_94 = arith.constant dense<0.000000e+00> : vector<8x8x8xf32>
    %158 = tpu.matmul %153, %144, %cst_94 {dimension_numbers = #tpu.dot_dimension_numbers<[2], [1], [1], [2], [0, 0, 0, 1, 1, 2], [0], [0]>} : vector<8x8x8xf32>, vector<8x8x8xf32>, vector<8x8x8xf32> -> vector<8x8x8xf32>
    "tpu.trace_stop"() : () -> ()
    %159 = vector.broadcast %145 : vector<8x1x8xf32> to vector<8x8x8xf32>
    %160 = arith.addf %158, %159 : vector<8x8x8xf32>
    %161 = arith.subf %155, %153 : vector<8x8x8xf32>
    %cst_95 = arith.constant dense<0.000000e+00> : vector<8x8xf32>
    %162 = vector.multi_reduction <add>, %160, %cst_95 [2] : vector<8x8x8xf32> to vector<8x8xf32>
    %163 = vector.shape_cast %162 : vector<8x8xf32> to vector<8x8x1xf32>
    %cst_96 = arith.constant 8.000000e+00 : f32
    %164 = vector.broadcast %cst_96 : f32 to vector<8x8x1xf32>
    %165 = arith.divf %163, %164 : vector<8x8x1xf32>
    %166 = vector.broadcast %165 : vector<8x8x1xf32> to vector<8x8x8xf32>
    %167 = arith.subf %160, %166 : vector<8x8x8xf32>
    %168 = arith.mulf %167, %167 : vector<8x8x8xf32>
    %cst_97 = arith.constant dense<0.000000e+00> : vector<8x8xf32>
    %169 = vector.multi_reduction <add>, %168, %cst_97 [2] : vector<8x8x8xf32> to vector<8x8xf32>
    %170 = vector.shape_cast %169 : vector<8x8xf32> to vector<8x8x1xf32>
    %cst_98 = arith.constant 8.000000e+00 : f32
    %171 = vector.broadcast %cst_98 : f32 to vector<8x8x1xf32>
    %172 = arith.divf %170, %171 : vector<8x8x1xf32>
    %cst_99 = arith.constant 9.99999997E-7 : f32
    %173 = vector.broadcast %cst_99 : f32 to vector<8x8x1xf32>
    %174 = arith.addf %172, %173 : vector<8x8x1xf32>
    %175 = math.rsqrt %174 : vector<8x8x1xf32>
    %176 = vector.broadcast %165 : vector<8x8x1xf32> to vector<8x8x8xf32>
    %177 = arith.subf %160, %176 : vector<8x8x8xf32>
    %178 = vector.broadcast %175 : vector<8x8x1xf32> to vector<8x8x8xf32>
    %179 = arith.mulf %177, %178 : vector<8x8x8xf32>
    %180 = vector.broadcast %127 : vector<8x1x8xf32> to vector<8x8x8xf32>
    %181 = arith.mulf %180, %179 : vector<8x8x8xf32>
    %182 = vector.broadcast %128 : vector<8x1x8xf32> to vector<8x8x8xf32>
    %183 = arith.addf %181, %182 : vector<8x8x8xf32>
    %184 = arith.subf %183, %161 : vector<8x8x8xf32>
    %185 = vector.broadcast %127 : vector<8x1x8xf32> to vector<8x8x8xf32>
    %186 = arith.mulf %184, %185 : vector<8x8x8xf32>
    %cst_100 = arith.constant 8.000000e+00 : f32
    %187 = vector.broadcast %cst_100 : f32 to vector<8x8x8xf32>
    %188 = arith.mulf %187, %186 : vector<8x8x8xf32>
    %cst_101 = arith.constant dense<0.000000e+00> : vector<8x8xf32>
    %189 = vector.multi_reduction <add>, %186, %cst_101 [2] : vector<8x8x8xf32> to vector<8x8xf32>
    %190 = vector.shape_cast %189 : vector<8x8xf32> to vector<8x8x1xf32>
    %191 = vector.broadcast %190 : vector<8x8x1xf32> to vector<8x8x8xf32>
    %192 = arith.subf %188, %191 : vector<8x8x8xf32>
    %193 = arith.mulf %186, %179 : vector<8x8x8xf32>
    %cst_102 = arith.constant dense<0.000000e+00> : vector<8x8xf32>
    %194 = vector.multi_reduction <add>, %193, %cst_102 [2] : vector<8x8x8xf32> to vector<8x8xf32>
    %195 = vector.shape_cast %194 : vector<8x8xf32> to vector<8x8x1xf32>
    %196 = vector.broadcast %195 : vector<8x8x1xf32> to vector<8x8x8xf32>
    %197 = arith.mulf %179, %196 : vector<8x8x8xf32>
    %198 = arith.subf %192, %197 : vector<8x8x8xf32>
    %cst_103 = arith.constant 8.000000e+00 : f32
    %199 = vector.broadcast %cst_103 : f32 to vector<8x8x1xf32>
    %200 = arith.divf %175, %199 : vector<8x8x1xf32>
    %201 = vector.broadcast %200 : vector<8x8x1xf32> to vector<8x8x8xf32>
    %202 = arith.mulf %198, %201 : vector<8x8x8xf32>
    %203 = vector.broadcast %157 : vector<8x8x1xf32> to vector<8x8x8xf32>
    %204 = arith.mulf %203, %202 : vector<8x8x8xf32>
    "tpu.trace_start"() <{level = 10 : i32, message = "grk,gki->gri"}> : () -> ()
    %cst_104 = arith.constant dense<0.000000e+00> : vector<8x8x8xf32>
    %205 = tpu.matmul %143, %202, %cst_104 {dimension_numbers = #tpu.dot_dimension_numbers<[2], [1], [1], [2], [0, 0, 0, 1, 1, 2], [0], [0]>} : vector<8x8x8xf32>, vector<8x8x8xf32>, vector<8x8x8xf32> -> vector<8x8x8xf32>
    "tpu.trace_stop"() : () -> ()
    %206 = vector.broadcast %157 : vector<8x8x1xf32> to vector<8x8x8xf32>
    %207 = arith.mulf %206, %205 : vector<8x8x8xf32>
    %208 = vector.broadcast %147 : vector<8x1x8xf32> to vector<8x8x8xf32>
    %209 = arith.addf %207, %208 : vector<8x8x8xf32>
    %210 = vector.broadcast %130 : vector<1x8x1xf32> to vector<8x8x8xf32>
    %211 = arith.mulf %210, %209 : vector<8x8x8xf32>
    %212 = vector.broadcast %145 : vector<8x1x8xf32> to vector<8x8x8xf32>
    %213 = arith.subf %212, %211 : vector<8x8x8xf32>
    "tpu.trace_start"() <{level = 10 : i32, message = "gri,gki->grk"}> : () -> ()
    %cst_105 = arith.constant dense<0.000000e+00> : vector<8x8x8xf32>
    %214 = tpu.matmul %151, %153, %cst_105 {dimension_numbers = #tpu.dot_dimension_numbers<[2], [2], [1], [1], [0, 0, 0, 1, 1, 1], [0], [0]>} : vector<8x8x8xf32>, vector<8x8x8xf32>, vector<8x8x8xf32> -> vector<8x8x8xf32>
    "tpu.trace_stop"() : () -> ()
    %215 = arith.mulf %138, %214 : vector<8x8x8xf32>
    "tpu.trace_start"() <{level = 10 : i32, message = "grk,gkj->grj"}> : () -> ()
    %cst_106 = arith.constant dense<0.000000e+00> : vector<8x8x8xf32>
    %216 = tpu.matmul %215, %204, %cst_106 {dimension_numbers = #tpu.dot_dimension_numbers<[2], [1], [1], [2], [0, 0, 0, 1, 1, 2], [0], [0]>} : vector<8x8x8xf32>, vector<8x8x8xf32>, vector<8x8x8xf32> -> vector<8x8x8xf32>
    "tpu.trace_stop"() : () -> ()
    "tpu.trace_start"() <{level = 10 : i32, message = "gri,gij->grj"}> : () -> ()
    %cst_107 = arith.constant dense<0.000000e+00> : vector<8x8x8xf32>
    %217 = tpu.matmul %151, %144, %cst_107 {dimension_numbers = #tpu.dot_dimension_numbers<[2], [1], [1], [2], [0, 0, 0, 1, 1, 2], [0], [0]>} : vector<8x8x8xf32>, vector<8x8x8xf32>, vector<8x8x8xf32> -> vector<8x8x8xf32>
    %cst_108 = arith.constant dense<0.000000e+00> : vector<8x8x8xf32>
    %218 = tpu.matmul %151, %146, %cst_108 {dimension_numbers = #tpu.dot_dimension_numbers<[2], [1], [1], [2], [0, 0, 0, 1, 1, 2], [0], [0]>} : vector<8x8x8xf32>, vector<8x8x8xf32>, vector<8x8x8xf32> -> vector<8x8x8xf32>
    "tpu.trace_stop"() : () -> ()
    %219 = arith.addf %216, %218 : vector<8x8x8xf32>
    %220 = vector.broadcast %130 : vector<1x8x1xf32> to vector<8x8x8xf32>
    %221 = arith.mulf %220, %219 : vector<8x8x8xf32>
    %222 = arith.subf %217, %221 : vector<8x8x8xf32>
    %223 = arith.addf %222, %213 : vector<8x8x8xf32>
    %cst_109 = arith.constant dense<0.000000e+00> : vector<8x8xf32>
    %224 = vector.multi_reduction <add>, %223, %cst_109 [2] : vector<8x8x8xf32> to vector<8x8xf32>
    %225 = vector.shape_cast %224 : vector<8x8xf32> to vector<8x8x1xf32>
    %cst_110 = arith.constant 8.000000e+00 : f32
    %226 = vector.broadcast %cst_110 : f32 to vector<8x8x1xf32>
    %227 = arith.divf %225, %226 : vector<8x8x1xf32>
    %228 = vector.broadcast %227 : vector<8x8x1xf32> to vector<8x8x8xf32>
    %229 = arith.subf %223, %228 : vector<8x8x8xf32>
    %230 = arith.mulf %229, %229 : vector<8x8x8xf32>
    %cst_111 = arith.constant dense<0.000000e+00> : vector<8x8xf32>
    %231 = vector.multi_reduction <add>, %230, %cst_111 [2] : vector<8x8x8xf32> to vector<8x8xf32>
    %232 = vector.shape_cast %231 : vector<8x8xf32> to vector<8x8x1xf32>
    %cst_112 = arith.constant 8.000000e+00 : f32
    %233 = vector.broadcast %cst_112 : f32 to vector<8x8x1xf32>
    %234 = arith.divf %232, %233 : vector<8x8x1xf32>
    %235 = vector.broadcast %227 : vector<8x8x1xf32> to vector<8x8x8xf32>
    %236 = arith.subf %223, %235 : vector<8x8x8xf32>
    %237 = vector.broadcast %127 : vector<8x1x8xf32> to vector<8x8x8xf32>
    %238 = arith.mulf %237, %236 : vector<8x8x8xf32>
    %cst_113 = arith.constant 9.99999997E-7 : f32
    %239 = vector.broadcast %cst_113 : f32 to vector<8x8x1xf32>
    %240 = arith.addf %234, %239 : vector<8x8x1xf32>
    %241 = math.rsqrt %240 : vector<8x8x1xf32>
    %242 = vector.broadcast %241 : vector<8x8x1xf32> to vector<8x8x8xf32>
    %243 = arith.mulf %238, %242 : vector<8x8x8xf32>
    %244 = vector.broadcast %128 : vector<8x1x8xf32> to vector<8x8x8xf32>
    %245 = arith.addf %243, %244 : vector<8x8x8xf32>
    %246 = arith.addf %151, %245 : vector<8x8x8xf32>
    %247 = vector.shape_cast %246 : vector<8x8x8xf32> to vector<4x2x8x8xf32>
    %248 = vector.extract_strided_slice %247 {offsets = [0, 0, 0, 0], sizes = [1, 2, 8, 8], strides = [1, 1, 1, 1]} : vector<4x2x8x8xf32> to vector<1x2x8x8xf32>
    %249 = vector.shape_cast %248 : vector<1x2x8x8xf32> to vector<2x8x8xf32>
    %250 = vector.extract_strided_slice %247 {offsets = [1, 0, 0, 0], sizes = [1, 2, 8, 8], strides = [1, 1, 1, 1]} : vector<4x2x8x8xf32> to vector<1x2x8x8xf32>
    %251 = vector.shape_cast %250 : vector<1x2x8x8xf32> to vector<2x8x8xf32>
    %252 = vector.extract_strided_slice %247 {offsets = [2, 0, 0, 0], sizes = [1, 2, 8, 8], strides = [1, 1, 1, 1]} : vector<4x2x8x8xf32> to vector<1x2x8x8xf32>
    %253 = vector.shape_cast %252 : vector<1x2x8x8xf32> to vector<2x8x8xf32>
    %254 = vector.extract_strided_slice %247 {offsets = [3, 0, 0, 0], sizes = [1, 2, 8, 8], strides = [1, 1, 1, 1]} : vector<4x2x8x8xf32> to vector<1x2x8x8xf32>
    %255 = vector.shape_cast %254 : vector<1x2x8x8xf32> to vector<2x8x8xf32>
    %256 = tpu.concatenate %249, %251, %253, %255 in 2 : vector<2x8x8xf32>, vector<2x8x8xf32>, vector<2x8x8xf32>, vector<2x8x8xf32> -> vector<2x8x32xf32>
    %c0_114 = arith.constant 0 : index
    %257 = arith.index_cast %149 : i32 to index
    %c0_115 = arith.constant 0 : index
    %258 = vector.load %arg25[%c0_114, %257, %c0_115] : memref<2x16x32xf32, #tpu.memory_space<vmem>>, vector<2x8x32xf32>
    tpu.vector_store %arg25[%c0_114, %257, %c0_115], %256 {strides = array<i32>} : memref<2x16x32xf32, #tpu.memory_space<vmem>>, vector<2x8x32xf32>,
    "tpu.trace_start"() <{level = 10 : i32, message = "gki,gkj->gij"}> : () -> ()
    %cst_116 = arith.constant dense<0.000000e+00> : vector<8x8x8xf32>
    %259 = tpu.matmul %153, %204, %cst_116 {dimension_numbers = #tpu.dot_dimension_numbers<[1], [1], [2], [2], [0, 0, 0, 2, 1, 2], [0], [0]>} : vector<8x8x8xf32>, vector<8x8x8xf32>, vector<8x8x8xf32> -> vector<8x8x8xf32>
    "tpu.trace_stop"() : () -> ()
    %260 = arith.addf %259, %146 : vector<8x8x8xf32>
    %261 = vector.broadcast %131 : vector<1x1x1xf32> to vector<8x8x8xf32>
    %262 = arith.mulf %261, %260 : vector<8x8x8xf32>
    %263 = arith.subf %144, %262 : vector<8x8x8xf32>
    %264 = vector.extract_strided_slice %209 {offsets = [0, 7, 0], sizes = [8, 1, 8], strides = [1, 1, 1]} : vector<8x8x8xf32> to vector<8x1x8xf32>
    %265 = vector.extract_strided_slice %213 {offsets = [0, 7, 0], sizes = [8, 1, 8], strides = [1, 1, 1]} : vector<8x8x8xf32> to vector<8x1x8xf32>
    %c1_i32_117 = arith.constant 1 : i32
    %c8_i32_118 = arith.constant 8 : i32
    %266 = arith.muli %c1_i32_117, %c8_i32_118 : i32
    %267 = tpu.assume_multiple %266, 8 : i32
    %c0_119 = arith.constant 0 : index
    %268 = arith.index_cast %267 : i32 to index
    %c0_120 = arith.constant 0 : index
    %269 = vector.load %arg21[%c0_119, %268, %c0_120] : memref<8x16x8xf32, #tpu.memory_space<vmem>>, vector<8x8x8xf32>
    %c0_121 = arith.constant 0 : index
    %270 = arith.index_cast %267 : i32 to index
    %c0_122 = arith.constant 0 : index
    %271 = vector.load %arg22[%c0_121, %270, %c0_122] : memref<8x16x8xf32, #tpu.memory_space<vmem>>, vector<8x8x8xf32>
    %c0_123 = arith.constant 0 : index
    %272 = arith.index_cast %267 : i32 to index
    %c0_124 = arith.constant 0 : index
    %273 = vector.load %arg23[%c0_123, %272, %c0_124] : memref<8x16x8xf32, #tpu.memory_space<vmem>>, vector<8x8x8xf32>
    %c0_125 = arith.constant 0 : index
    %274 = arith.index_cast %267 : i32 to index
    %c0_126 = arith.constant 0 : index
    %275 = vector.load %arg24[%c0_125, %274, %c0_126] : memref<8x16x1xf32, #tpu.memory_space<vmem>>, vector<8x8x1xf32>
    "tpu.trace_start"() <{level = 10 : i32, message = "gki,gij->gkj"}> : () -> ()
    %cst_127 = arith.constant dense<0.000000e+00> : vector<8x8x8xf32>
    %276 = tpu.matmul %271, %263, %cst_127 {dimension_numbers = #tpu.dot_dimension_numbers<[2], [1], [1], [2], [0, 0, 0, 1, 1, 2], [0], [0]>} : vector<8x8x8xf32>, vector<8x8x8xf32>, vector<8x8x8xf32> -> vector<8x8x8xf32>
    "tpu.trace_stop"() : () -> ()
    %277 = vector.broadcast %265 : vector<8x1x8xf32> to vector<8x8x8xf32>
    %278 = arith.addf %276, %277 : vector<8x8x8xf32>
    %279 = arith.subf %273, %271 : vector<8x8x8xf32>
    %cst_128 = arith.constant dense<0.000000e+00> : vector<8x8xf32>
    %280 = vector.multi_reduction <add>, %278, %cst_128 [2] : vector<8x8x8xf32> to vector<8x8xf32>
    %281 = vector.shape_cast %280 : vector<8x8xf32> to vector<8x8x1xf32>
    %cst_129 = arith.constant 8.000000e+00 : f32
    %282 = vector.broadcast %cst_129 : f32 to vector<8x8x1xf32>
    %283 = arith.divf %281, %282 : vector<8x8x1xf32>
    %284 = vector.broadcast %283 : vector<8x8x1xf32> to vector<8x8x8xf32>
    %285 = arith.subf %278, %284 : vector<8x8x8xf32>
    %286 = arith.mulf %285, %285 : vector<8x8x8xf32>
    %cst_130 = arith.constant dense<0.000000e+00> : vector<8x8xf32>
    %287 = vector.multi_reduction <add>, %286, %cst_130 [2] : vector<8x8x8xf32> to vector<8x8xf32>
    %288 = vector.shape_cast %287 : vector<8x8xf32> to vector<8x8x1xf32>
    %cst_131 = arith.constant 8.000000e+00 : f32
    %289 = vector.broadcast %cst_131 : f32 to vector<8x8x1xf32>
    %290 = arith.divf %288, %289 : vector<8x8x1xf32>
    %cst_132 = arith.constant 9.99999997E-7 : f32
    %291 = vector.broadcast %cst_132 : f32 to vector<8x8x1xf32>
    %292 = arith.addf %290, %291 : vector<8x8x1xf32>
    %293 = math.rsqrt %292 : vector<8x8x1xf32>
    %294 = vector.broadcast %283 : vector<8x8x1xf32> to vector<8x8x8xf32>
    %295 = arith.subf %278, %294 : vector<8x8x8xf32>
    %296 = vector.broadcast %293 : vector<8x8x1xf32> to vector<8x8x8xf32>
    %297 = arith.mulf %295, %296 : vector<8x8x8xf32>
    %298 = vector.broadcast %127 : vector<8x1x8xf32> to vector<8x8x8xf32>
    %299 = arith.mulf %298, %297 : vector<8x8x8xf32>
    %300 = vector.broadcast %128 : vector<8x1x8xf32> to vector<8x8x8xf32>
    %301 = arith.addf %299, %300 : vector<8x8x8xf32>
    %302 = arith.subf %301, %279 : vector<8x8x8xf32>
    %303 = vector.broadcast %127 : vector<8x1x8xf32> to vector<8x8x8xf32>
    %304 = arith.mulf %302, %303 : vector<8x8x8xf32>
    %cst_133 = arith.constant 8.000000e+00 : f32
    %305 = vector.broadcast %cst_133 : f32 to vector<8x8x8xf32>
    %306 = arith.mulf %305, %304 : vector<8x8x8xf32>
    %cst_134 = arith.constant dense<0.000000e+00> : vector<8x8xf32>
    %307 = vector.multi_reduction <add>, %304, %cst_134 [2] : vector<8x8x8xf32> to vector<8x8xf32>
    %308 = vector.shape_cast %307 : vector<8x8xf32> to vector<8x8x1xf32>
    %309 = vector.broadcast %308 : vector<8x8x1xf32> to vector<8x8x8xf32>
    %310 = arith.subf %306, %309 : vector<8x8x8xf32>
    %311 = arith.mulf %304, %297 : vector<8x8x8xf32>
    %cst_135 = arith.constant dense<0.000000e+00> : vector<8x8xf32>
    %312 = vector.multi_reduction <add>, %311, %cst_135 [2] : vector<8x8x8xf32> to vector<8x8xf32>
    %313 = vector.shape_cast %312 : vector<8x8xf32> to vector<8x8x1xf32>
    %314 = vector.broadcast %313 : vector<8x8x1xf32> to vector<8x8x8xf32>
    %315 = arith.mulf %297, %314 : vector<8x8x8xf32>
    %316 = arith.subf %310, %315 : vector<8x8x8xf32>
    %cst_136 = arith.constant 8.000000e+00 : f32
    %317 = vector.broadcast %cst_136 : f32 to vector<8x8x1xf32>
    %318 = arith.divf %293, %317 : vector<8x8x1xf32>
    %319 = vector.broadcast %318 : vector<8x8x1xf32> to vector<8x8x8xf32>
    %320 = arith.mulf %316, %319 : vector<8x8x8xf32>
    %321 = vector.broadcast %275 : vector<8x8x1xf32> to vector<8x8x8xf32>
    %322 = arith.mulf %321, %320 : vector<8x8x8xf32>
    "tpu.trace_start"() <{level = 10 : i32, message = "grk,gki->gri"}> : () -> ()
    %cst_137 = arith.constant dense<0.000000e+00> : vector<8x8x8xf32>
    %323 = tpu.matmul %143, %320, %cst_137 {dimension_numbers = #tpu.dot_dimension_numbers<[2], [1], [1], [2], [0, 0, 0, 1, 1, 2], [0], [0]>} : vector<8x8x8xf32>, vector<8x8x8xf32>, vector<8x8x8xf32> -> vector<8x8x8xf32>
    "tpu.trace_stop"() : () -> ()
    %324 = vector.broadcast %275 : vector<8x8x1xf32> to vector<8x8x8xf32>
    %325 = arith.mulf %324, %323 : vector<8x8x8xf32>
    %326 = vector.broadcast %264 : vector<8x1x8xf32> to vector<8x8x8xf32>
    %327 = arith.addf %325, %326 : vector<8x8x8xf32>
    %328 = vector.broadcast %130 : vector<1x8x1xf32> to vector<8x8x8xf32>
    %329 = arith.mulf %328, %327 : vector<8x8x8xf32>
    %330 = vector.broadcast %265 : vector<8x1x8xf32> to vector<8x8x8xf32>
    %331 = arith.subf %330, %329 : vector<8x8x8xf32>
    "tpu.trace_start"() <{level = 10 : i32, message = "gri,gki->grk"}> : () -> ()
    %cst_138 = arith.constant dense<0.000000e+00> : vector<8x8x8xf32>
    %332 = tpu.matmul %269, %271, %cst_138 {dimension_numbers = #tpu.dot_dimension_numbers<[2], [2], [1], [1], [0, 0, 0, 1, 1, 1], [0], [0]>} : vector<8x8x8xf32>, vector<8x8x8xf32>, vector<8x8x8xf32> -> vector<8x8x8xf32>
    "tpu.trace_stop"() : () -> ()
    %333 = arith.mulf %138, %332 : vector<8x8x8xf32>
    "tpu.trace_start"() <{level = 10 : i32, message = "grk,gkj->grj"}> : () -> ()
    %cst_139 = arith.constant dense<0.000000e+00> : vector<8x8x8xf32>
    %334 = tpu.matmul %333, %322, %cst_139 {dimension_numbers = #tpu.dot_dimension_numbers<[2], [1], [1], [2], [0, 0, 0, 1, 1, 2], [0], [0]>} : vector<8x8x8xf32>, vector<8x8x8xf32>, vector<8x8x8xf32> -> vector<8x8x8xf32>
    "tpu.trace_stop"() : () -> ()
    "tpu.trace_start"() <{level = 10 : i32, message = "gri,gij->grj"}> : () -> ()
    %cst_140 = arith.constant dense<0.000000e+00> : vector<8x8x8xf32>
    %335 = tpu.matmul %269, %263, %cst_140 {dimension_numbers = #tpu.dot_dimension_numbers<[2], [1], [1], [2], [0, 0, 0, 1, 1, 2], [0], [0]>} : vector<8x8x8xf32>, vector<8x8x8xf32>, vector<8x8x8xf32> -> vector<8x8x8xf32>
    %cst_141 = arith.constant dense<0.000000e+00> : vector<8x8x8xf32>
    %336 = tpu.matmul %269, %260, %cst_141 {dimension_numbers = #tpu.dot_dimension_numbers<[2], [1], [1], [2], [0, 0, 0, 1, 1, 2], [0], [0]>} : vector<8x8x8xf32>, vector<8x8x8xf32>, vector<8x8x8xf32> -> vector<8x8x8xf32>
    "tpu.trace_stop"() : () -> ()
    %337 = arith.addf %334, %336 : vector<8x8x8xf32>
    %338 = vector.broadcast %130 : vector<1x8x1xf32> to vector<8x8x8xf32>
    %339 = arith.mulf %338, %337 : vector<8x8x8xf32>
    %340 = arith.subf %335, %339 : vector<8x8x8xf32>
    %341 = arith.addf %340, %331 : vector<8x8x8xf32>
    %cst_142 = arith.constant dense<0.000000e+00> : vector<8x8xf32>
    %342 = vector.multi_reduction <add>, %341, %cst_142 [2] : vector<8x8x8xf32> to vector<8x8xf32>
    %343 = vector.shape_cast %342 : vector<8x8xf32> to vector<8x8x1xf32>
    %cst_143 = arith.constant 8.000000e+00 : f32
    %344 = vector.broadcast %cst_143 : f32 to vector<8x8x1xf32>
    %345 = arith.divf %343, %344 : vector<8x8x1xf32>
    %346 = vector.broadcast %345 : vector<8x8x1xf32> to vector<8x8x8xf32>
    %347 = arith.subf %341, %346 : vector<8x8x8xf32>
    %348 = arith.mulf %347, %347 : vector<8x8x8xf32>
    %cst_144 = arith.constant dense<0.000000e+00> : vector<8x8xf32>
    %349 = vector.multi_reduction <add>, %348, %cst_144 [2] : vector<8x8x8xf32> to vector<8x8xf32>
    %350 = vector.shape_cast %349 : vector<8x8xf32> to vector<8x8x1xf32>
    %cst_145 = arith.constant 8.000000e+00 : f32
    %351 = vector.broadcast %cst_145 : f32 to vector<8x8x1xf32>
    %352 = arith.divf %350, %351 : vector<8x8x1xf32>
    %353 = vector.broadcast %345 : vector<8x8x1xf32> to vector<8x8x8xf32>
    %354 = arith.subf %341, %353 : vector<8x8x8xf32>
    %355 = vector.broadcast %127 : vector<8x1x8xf32> to vector<8x8x8xf32>
    %356 = arith.mulf %355, %354 : vector<8x8x8xf32>
    %cst_146 = arith.constant 9.99999997E-7 : f32
    %357 = vector.broadcast %cst_146 : f32 to vector<8x8x1xf32>
    %358 = arith.addf %352, %357 : vector<8x8x1xf32>
    %359 = math.rsqrt %358 : vector<8x8x1xf32>
    %360 = vector.broadcast %359 : vector<8x8x1xf32> to vector<8x8x8xf32>
    %361 = arith.mulf %356, %360 : vector<8x8x8xf32>
    %362 = vector.broadcast %128 : vector<8x1x8xf32> to vector<8x8x8xf32>
    %363 = arith.addf %361, %362 : vector<8x8x8xf32>
    %364 = arith.addf %269, %363 : vector<8x8x8xf32>
    %365 = vector.shape_cast %364 : vector<8x8x8xf32> to vector<4x2x8x8xf32>
    %366 = vector.extract_strided_slice %365 {offsets = [0, 0, 0, 0], sizes = [1, 2, 8, 8], strides = [1, 1, 1, 1]} : vector<4x2x8x8xf32> to vector<1x2x8x8xf32>
    %367 = vector.shape_cast %366 : vector<1x2x8x8xf32> to vector<2x8x8xf32>
    %368 = vector.extract_strided_slice %365 {offsets = [1, 0, 0, 0], sizes = [1, 2, 8, 8], strides = [1, 1, 1, 1]} : vector<4x2x8x8xf32> to vector<1x2x8x8xf32>
    %369 = vector.shape_cast %368 : vector<1x2x8x8xf32> to vector<2x8x8xf32>
    %370 = vector.extract_strided_slice %365 {offsets = [2, 0, 0, 0], sizes = [1, 2, 8, 8], strides = [1, 1, 1, 1]} : vector<4x2x8x8xf32> to vector<1x2x8x8xf32>
    %371 = vector.shape_cast %370 : vector<1x2x8x8xf32> to vector<2x8x8xf32>
    %372 = vector.extract_strided_slice %365 {offsets = [3, 0, 0, 0], sizes = [1, 2, 8, 8], strides = [1, 1, 1, 1]} : vector<4x2x8x8xf32> to vector<1x2x8x8xf32>
    %373 = vector.shape_cast %372 : vector<1x2x8x8xf32> to vector<2x8x8xf32>
    %374 = tpu.concatenate %367, %369, %371, %373 in 2 : vector<2x8x8xf32>, vector<2x8x8xf32>, vector<2x8x8xf32>, vector<2x8x8xf32> -> vector<2x8x32xf32>
    %c0_147 = arith.constant 0 : index
    %375 = arith.index_cast %267 : i32 to index
    %c0_148 = arith.constant 0 : index
    %376 = vector.load %arg25[%c0_147, %375, %c0_148] : memref<2x16x32xf32, #tpu.memory_space<vmem>>, vector<2x8x32xf32>
    tpu.vector_store %arg25[%c0_147, %375, %c0_148], %374 {strides = array<i32>} : memref<2x16x32xf32, #tpu.memory_space<vmem>>, vector<2x8x32xf32>,
    "tpu.trace_start"() <{level = 10 : i32, message = "gki,gkj->gij"}> : () -> ()
    %cst_149 = arith.constant dense<0.000000e+00> : vector<8x8x8xf32>
    %377 = tpu.matmul %271, %322, %cst_149 {dimension_numbers = #tpu.dot_dimension_numbers<[1], [1], [2], [2], [0, 0, 0, 2, 1, 2], [0], [0]>} : vector<8x8x8xf32>, vector<8x8x8xf32>, vector<8x8x8xf32> -> vector<8x8x8xf32>
    "tpu.trace_stop"() : () -> ()
    %378 = arith.addf %377, %260 : vector<8x8x8xf32>
    %379 = vector.broadcast %131 : vector<1x1x1xf32> to vector<8x8x8xf32>
    %380 = arith.mulf %379, %378 : vector<8x8x8xf32>
    %381 = arith.subf %263, %380 : vector<8x8x8xf32>
    %382 = vector.extract_strided_slice %327 {offsets = [0, 7, 0], sizes = [8, 1, 8], strides = [1, 1, 1]} : vector<8x8x8xf32> to vector<8x1x8xf32>
    %383 = vector.extract_strided_slice %331 {offsets = [0, 7, 0], sizes = [8, 1, 8], strides = [1, 1, 1]} : vector<8x8x8xf32> to vector<8x1x8xf32>
    %c2_i32 = arith.constant 2 : i32
    %c0_150 = arith.constant 0 : index
    %c0_151 = arith.constant 0 : index
    %c0_152 = arith.constant 0 : index
    %384 = vector.load %arg1[%c0_150, %c0_151, %c0_152] : memref<2x16x32xf32, #tpu.memory_space<vmem>>, vector<2x16x32xf32>
    %385 = vector.shape_cast %384 : vector<2x16x32xf32> to vector<32x32xf32>
    %c0_153 = arith.constant 0 : index
    %c0_154 = arith.constant 0 : index
    %c0_155 = arith.constant 0 : index
    %386 = vector.load %arg25[%c0_153, %c0_154, %c0_155] : memref<2x16x32xf32, #tpu.memory_space<vmem>>, vector<2x16x32xf32>
    %387 = vector.shape_cast %386 : vector<2x16x32xf32> to vector<32x32xf32>
    %cst_156 = arith.constant dense<0.000000e+00> : vector<32xf32>
    %388 = vector.multi_reduction <add>, %387, %cst_156 [1] : vector<32x32xf32> to vector<32xf32>
    %389 = vector.shape_cast %388 : vector<32xf32> to vector<32x1xf32>
    %cst_157 = arith.constant 3.200000e+01 : f32
    %390 = vector.broadcast %cst_157 : f32 to vector<32x1xf32>
    %391 = arith.divf %389, %390 : vector<32x1xf32>
    %392 = vector.broadcast %391 : vector<32x1xf32> to vector<32x32xf32>
    %393 = arith.subf %387, %392 : vector<32x32xf32>
    %394 = arith.mulf %393, %393 : vector<32x32xf32>
    %cst_158 = arith.constant dense<0.000000e+00> : vector<32xf32>
    %395 = vector.multi_reduction <add>, %394, %cst_158 [1] : vector<32x32xf32> to vector<32xf32>
    %396 = vector.shape_cast %395 : vector<32xf32> to vector<32x1xf32>
    %cst_159 = arith.constant 3.200000e+01 : f32
    %397 = vector.broadcast %cst_159 : f32 to vector<32x1xf32>
    %398 = arith.divf %396, %397 : vector<32x1xf32>
    %399 = vector.broadcast %391 : vector<32x1xf32> to vector<32x32xf32>
    %400 = arith.subf %387, %399 : vector<32x32xf32>
    %cst_160 = arith.constant 9.99999997E-7 : f32
    %401 = vector.broadcast %cst_160 : f32 to vector<32x1xf32>
    %402 = arith.addf %398, %401 : vector<32x1xf32>
    %403 = math.rsqrt %402 : vector<32x1xf32>
    %404 = vector.broadcast %403 : vector<32x1xf32> to vector<32x32xf32>
    %405 = arith.mulf %400, %404 : vector<32x32xf32>
    %c0_161 = arith.constant 0 : index
    %c0_162 = arith.constant 0 : index
    %406 = vector.load %arg13[%c0_161, %c0_162] : memref<1x32xf32, #tpu.memory_space<vmem>>, vector<1x32xf32>
    %407 = vector.broadcast %406 : vector<1x32xf32> to vector<32x32xf32>
    %408 = arith.mulf %405, %407 : vector<32x32xf32>
    %c0_163 = arith.constant 0 : index
    %c0_164 = arith.constant 0 : index
    %409 = vector.load %arg14[%c0_163, %c0_164] : memref<1x32xf32, #tpu.memory_space<vmem>>, vector<1x32xf32>
    %410 = vector.broadcast %409 : vector<1x32xf32> to vector<32x32xf32>
    %411 = arith.addf %408, %410 : vector<32x32xf32>
    %c0_165 = arith.constant 0 : index
    %c0_166 = arith.constant 0 : index
    %412 = vector.load %arg15[%c0_165, %c0_166] : memref<32x32xf32, #tpu.memory_space<vmem>>, vector<32x32xf32>
    %cst_167 = arith.constant dense<0.000000e+00> : vector<32x32xf32>
    %413 = tpu.matmul %411, %412, %cst_167 {dimension_numbers = #tpu.dot_dimension_numbers<[1], [0], [0], [1], [0, 0, 1, 1], [], []>} : vector<32x32xf32>, vector<32x32xf32>, vector<32x32xf32> -> vector<32x32xf32>
    %414 = arith.addf %385, %413 : vector<32x32xf32>
    %415 = arith.mulf %414, %414 : vector<32x32xf32>
    %cst_168 = arith.constant dense<0.000000e+00> : vector<32xf32>
    %416 = vector.multi_reduction <add>, %415, %cst_168 [1] : vector<32x32xf32> to vector<32xf32>
    %417 = vector.shape_cast %416 : vector<32xf32> to vector<32x1xf32>
    %cst_169 = arith.constant 3.200000e+01 : f32
    %418 = vector.broadcast %cst_169 : f32 to vector<32x1xf32>
    %419 = arith.divf %417, %418 : vector<32x1xf32>
    %cst_170 = arith.constant 9.99999997E-7 : f32
    %420 = vector.broadcast %cst_170 : f32 to vector<32x1xf32>
    %421 = arith.addf %419, %420 : vector<32x1xf32>
    %422 = math.rsqrt %421 : vector<32x1xf32>
    %423 = vector.broadcast %422 : vector<32x1xf32> to vector<32x32xf32>
    %424 = arith.mulf %414, %423 : vector<32x32xf32>
    %c0_171 = arith.constant 0 : index
    %c0_172 = arith.constant 0 : index
    %425 = vector.load %arg16[%c0_171, %c0_172] : memref<1x32xf32, #tpu.memory_space<vmem>>, vector<1x32xf32>
    %426 = vector.broadcast %425 : vector<1x32xf32> to vector<32x32xf32>
    %427 = arith.mulf %424, %426 : vector<32x32xf32>
    %c0_173 = arith.constant 0 : index
    %c0_174 = arith.constant 0 : index
    %428 = vector.load %arg17[%c0_173, %c0_174] : memref<32x64xf32, #tpu.memory_space<vmem>>, vector<32x64xf32>
    %cst_175 = arith.constant dense<0.000000e+00> : vector<32x64xf32>
    %429 = tpu.matmul %427, %428, %cst_175 {dimension_numbers = #tpu.dot_dimension_numbers<[1], [0], [0], [1], [0, 0, 1, 1], [], []>} : vector<32x32xf32>, vector<32x64xf32>, vector<32x64xf32> -> vector<32x64xf32>
    %430 = arith.negf %429 : vector<32x64xf32>
    %431 = math.exp %430 : vector<32x64xf32>
    %cst_176 = arith.constant 1.000000e+00 : f32
    %432 = vector.broadcast %cst_176 : f32 to vector<32x64xf32>
    %433 = arith.addf %432, %431 : vector<32x64xf32>
    %434 = arith.divf %432, %433 : vector<32x64xf32>
    %435 = arith.mulf %429, %434 : vector<32x64xf32>
    %c0_177 = arith.constant 0 : index
    %c0_178 = arith.constant 0 : index
    %436 = vector.load %arg18[%c0_177, %c0_178] : memref<32x64xf32, #tpu.memory_space<vmem>>, vector<32x64xf32>
    %cst_179 = arith.constant dense<0.000000e+00> : vector<32x64xf32>
    %437 = tpu.matmul %427, %436, %cst_179 {dimension_numbers = #tpu.dot_dimension_numbers<[1], [0], [0], [1], [0, 0, 1, 1], [], []>} : vector<32x32xf32>, vector<32x64xf32>, vector<32x64xf32> -> vector<32x64xf32>
    %438 = arith.mulf %435, %437 : vector<32x64xf32>
    %c0_180 = arith.constant 0 : index
    %c0_181 = arith.constant 0 : index
    %439 = vector.load %arg19[%c0_180, %c0_181] : memref<64x32xf32, #tpu.memory_space<vmem>>, vector<64x32xf32>
    %cst_182 = arith.constant dense<0.000000e+00> : vector<32x32xf32>
    %440 = tpu.matmul %438, %439, %cst_182 {dimension_numbers = #tpu.dot_dimension_numbers<[1], [0], [0], [1], [0, 0, 1, 1], [], []>} : vector<32x64xf32>, vector<64x32xf32>, vector<32x32xf32> -> vector<32x32xf32>
    %441 = arith.addf %414, %440 : vector<32x32xf32>
    %442 = vector.shape_cast %441 : vector<32x32xf32> to vector<2x16x32xf32>
    %c0_183 = arith.constant 0 : index
    %c0_184 = arith.constant 0 : index
    %c0_185 = arith.constant 0 : index
    %443 = vector.load %arg20[%c0_183, %c0_184, %c0_185] : memref<2x16x32xf32, #tpu.memory_space<vmem>>, vector<2x16x32xf32>
    tpu.vector_store %arg20[%c0_183, %c0_184, %c0_185], %442 {strides = array<i32>} : memref<2x16x32xf32, #tpu.memory_space<vmem>>, vector<2x16x32xf32>,
    return
  }
  func.func @transform_0(%arg0: i32) -> (i32, i32, i32) {
    %c0_i32 = arith.constant 0 : i32
    %c0_i32_0 = arith.constant 0 : i32
    %c0_i32_1 = arith.constant 0 : i32
    return %arg0, %c0_i32, %c0_i32_0 : i32, i32, i32
  }
  func.func @transform_1(%arg0: i32) -> (i32, i32) {
    %c0_i32 = arith.constant 0 : i32
    %c0_i32_0 = arith.constant 0 : i32
    %c0_i32_1 = arith.constant 0 : i32
    return %c0_i32, %c0_i32_0 : i32, i32
  }
  func.func @transform_2(%arg0: i32) -> (i32, i32) {
    %c0_i32 = arith.constant 0 : i32
    %c0_i32_0 = arith.constant 0 : i32
    %c0_i32_1 = arith.constant 0 : i32
    return %c0_i32, %c0_i32_0 : i32, i32
  }
  func.func @transform_3(%arg0: i32) -> (i32, i32) {
    %c0_i32 = arith.constant 0 : i32
    %c0_i32_0 = arith.constant 0 : i32
    %c0_i32_1 = arith.constant 0 : i32
    return %c0_i32, %c0_i32_0 : i32, i32
  }
  func.func @transform_4(%arg0: i32) -> (i32, i32) {
    %c0_i32 = arith.constant 0 : i32
    %c0_i32_0 = arith.constant 0 : i32
    %c0_i32_1 = arith.constant 0 : i32
    return %c0_i32, %c0_i32_0 : i32, i32
  }
  func.func @transform_5(%arg0: i32) -> (i32, i32) {
    %c0_i32 = arith.constant 0 : i32
    %c0_i32_0 = arith.constant 0 : i32
    %c0_i32_1 = arith.constant 0 : i32
    return %c0_i32, %c0_i32_0 : i32, i32
  }
  func.func @transform_6(%arg0: i32) -> (i32, i32) {
    %c0_i32 = arith.constant 0 : i32
    %c0_i32_0 = arith.constant 0 : i32
    %c0_i32_1 = arith.constant 0 : i32
    return %c0_i32, %c0_i32_0 : i32, i32
  }
  func.func @transform_7(%arg0: i32) -> (i32, i32) {
    %c0_i32 = arith.constant 0 : i32
    %c0_i32_0 = arith.constant 0 : i32
    %c0_i32_1 = arith.constant 0 : i32
    return %c0_i32, %c0_i32_0 : i32, i32
  }
  func.func @transform_8(%arg0: i32) -> (i32, i32, i32) {
    %c0_i32 = arith.constant 0 : i32
    %c0_i32_0 = arith.constant 0 : i32
    %c0_i32_1 = arith.constant 0 : i32
    %c0_i32_2 = arith.constant 0 : i32
    return %c0_i32, %c0_i32_0, %c0_i32_1 : i32, i32, i32
  }
  func.func @transform_9(%arg0: i32) -> (i32, i32, i32) {
    %c0_i32 = arith.constant 0 : i32
    %c0_i32_0 = arith.constant 0 : i32
    %c0_i32_1 = arith.constant 0 : i32
    %c0_i32_2 = arith.constant 0 : i32
    return %c0_i32, %c0_i32_0, %c0_i32_1 : i32, i32, i32
  }
  func.func @transform_10(%arg0: i32) -> (i32, i32, i32) {
    %c0_i32 = arith.constant 0 : i32
    %c0_i32_0 = arith.constant 0 : i32
    %c0_i32_1 = arith.constant 0 : i32
    %c0_i32_2 = arith.constant 0 : i32
    return %c0_i32, %c0_i32_0, %c0_i32_1 : i32, i32, i32
  }
  func.func @transform_11(%arg0: i32) -> (i32, i32, i32) {
    %c0_i32 = arith.constant 0 : i32
    %c0_i32_0 = arith.constant 0 : i32
    %c0_i32_1 = arith.constant 0 : i32
    %c0_i32_2 = arith.constant 0 : i32
    return %c0_i32, %c0_i32_0, %c0_i32_1 : i32, i32, i32
  }
  func.func @transform_12(%arg0: i32) -> (i32, i32) {
    %c0_i32 = arith.constant 0 : i32
    %c0_i32_0 = arith.constant 0 : i32
    %c0_i32_1 = arith.constant 0 : i32
    return %c0_i32, %c0_i32_0 : i32, i32
  }
  func.func @transform_13(%arg0: i32) -> (i32, i32) {
    %c0_i32 = arith.constant 0 : i32
    %c0_i32_0 = arith.constant 0 : i32
    %c0_i32_1 = arith.constant 0 : i32
    return %c0_i32, %c0_i32_0 : i32, i32
  }
  func.func @transform_14(%arg0: i32) -> (i32, i32) {
    %c0_i32 = arith.constant 0 : i32
    %c0_i32_0 = arith.constant 0 : i32
    %c0_i32_1 = arith.constant 0 : i32
    return %c0_i32, %c0_i32_0 : i32, i32
  }
  func.func @transform_15(%arg0: i32) -> (i32, i32) {
    %c0_i32 = arith.constant 0 : i32
    %c0_i32_0 = arith.constant 0 : i32
    %c0_i32_1 = arith.constant 0 : i32
    return %c0_i32, %c0_i32_0 : i32, i32
  }
  func.func @transform_16(%arg0: i32) -> (i32, i32) {
    %c0_i32 = arith.constant 0 : i32
    %c0_i32_0 = arith.constant 0 : i32
    %c0_i32_1 = arith.constant 0 : i32
    return %c0_i32, %c0_i32_0 : i32, i32
  }
  func.func @transform_17(%arg0: i32) -> (i32, i32) {
    %c0_i32 = arith.constant 0 : i32
    %c0_i32_0 = arith.constant 0 : i32
    %c0_i32_1 = arith.constant 0 : i32
    return %c0_i32, %c0_i32_0 : i32, i32
  }
  func.func @transform_18(%arg0: i32) -> (i32, i32) {
    %c0_i32 = arith.constant 0 : i32
    %c0_i32_0 = arith.constant 0 : i32
    %c0_i32_1 = arith.constant 0 : i32
    return %c0_i32, %c0_i32_0 : i32, i32
  }
  func.func @transform_19(%arg0: i32) -> (i32, i32, i32) {
    %c0_i32 = arith.constant 0 : i32
    %c0_i32_0 = arith.constant 0 : i32
    %c0_i32_1 = arith.constant 0 : i32
    return %arg0, %c0_i32, %c0_i32_0 : i32, i32, i32
  }
}

</mosaic_0001>

<llo_original>
// kernel: ttt_block_forward.1
$region0: #{ttt_block_forward.1}
  #allocation0 [shape = 'u32[]', space=smem, size = 0x4, offset = 0x4, fixed_abs, tag = 'smem constant byte address 0x4 - core index']
  #allocation1 [shape = 'u32[144,128]{1,0:T(1,128)}', space=vmem, size = 0x12000, scoped, tag = 'internal scratch']
  #allocation2 [shape = 'f32[8,16,8]{2,1,0:T(8,128)}', space=vmem, size = 0x10000, scoped, tag = 'scratch operand']
  #allocation3 [shape = 'f32[8,16,8]{2,1,0:T(8,128)}', space=vmem, size = 0x10000, scoped, tag = 'scratch operand']
  #allocation4 [shape = 'f32[8,16,8]{2,1,0:T(8,128)}', space=vmem, size = 0x10000, scoped, tag = 'scratch operand']
  #allocation5 [shape = 'f32[8,16,1]{2,1,0:T(8,128)}', space=vmem, size = 0x10000, scoped, tag = 'scratch operand']
  #allocation6 [shape = 'f32[2,16,32]{2,1,0:T(8,128)}', space=vmem, size = 0x4000, scoped, tag = 'scratch operand']
  %s0 = inlined_call_operand.vmem [shape: f32[2,16,32], index: 0, kind: input, shape index: {}]
  %s1 = inlined_call_operand.vmem [shape: f32[16,32], index: 1, kind: input, shape index: {}]
  %s2 = inlined_call_operand.vmem [shape: f32[16,32], index: 2, kind: input, shape index: {}]
  %s3 = inlined_call_operand.vmem [shape: f32[1,32], index: 3, kind: input, shape index: {}]
  %s4 = inlined_call_operand.vmem [shape: f32[32,96], index: 4, kind: input, shape index: {}]
  %s5 = inlined_call_operand.vmem [shape: f32[32,4], index: 5, kind: input, shape index: {}]
  %s6 = inlined_call_operand.vmem [shape: f32[1,4], index: 6, kind: input, shape index: {}]
  %s7 = inlined_call_operand.vmem [shape: f32[8,1], index: 7, kind: input, shape index: {}]
  %s8 = inlined_call_operand.vmem [shape: f32[8,1,8], index: 8, kind: input, shape index: {}]
  %s9 = inlined_call_operand.vmem [shape: f32[8,1,8], index: 9, kind: input, shape index: {}]
  %s10 = inlined_call_operand.vmem [shape: f32[8,8,8], index: 10, kind: input, shape index: {}]
  %s11 = inlined_call_operand.vmem [shape: f32[8,1,8], index: 11, kind: input, shape index: {}]
  %s12 = inlined_call_operand.vmem [shape: f32[1,32], index: 12, kind: input, shape index: {}]
  %s13 = inlined_call_operand.vmem [shape: f32[1,32], index: 13, kind: input, shape index: {}]
  %s14 = inlined_call_operand.vmem [shape: f32[32,32], index: 14, kind: input, shape index: {}]
  %s15 = inlined_call_operand.vmem [shape: f32[1,32], index: 15, kind: input, shape index: {}]
  %s16 = inlined_call_operand.vmem [shape: f32[32,64], index: 16, kind: input, shape index: {}]
  %s17 = inlined_call_operand.vmem [shape: f32[32,64], index: 17, kind: input, shape index: {}]
  %s18 = inlined_call_operand.vmem [shape: f32[64,32], index: 18, kind: input, shape index: {}]
  %s19 = inlined_call_operand.hbm [shape: f32[2,16,32], index: 19, kind: output, shape index: {}]
  %s20 = sld [smem:[#allocation0]]
  $region86: #{ttt_block_forward.1} parent=0
    _
  %s22 = ssub.s32 1, %s20
  %s23 = scalar_select 0, %s22, %s20
  $region1: #{ttt_block_forward.1} parent=0
    #allocation7 [shape = 'u8[16384]{0}', space=vmem, size = 0x4000, scoped, tag = 'output window, operand 0, single buffered']
    #allocation8 [shape = 's32[1]{0}', space=sflag, size = 0x4, scoped, tag = 'scoped memory for ttt_block_forward.1']
    %24 = vsyncpa [#allocation8], 0
    // Predicated region
    $region2: #{ttt_block_forward.1} parent=1 // pred_check
      _
    $region3: #{ttt_block_forward.1} parent=1 // pred_check_branch
      %26 = sbr.rel (0) target = $region5
    $region4: #{ttt_block_forward.1} parent=1 // pred_region
      _
    $region5: #{ttt_block_forward.1} parent=1 // pred_fallthru
      _
    // Predicated region
    $region6: #{ttt_block_forward.1} parent=1 // pred_check
      _
    $region7: #{ttt_block_forward.1} parent=1 // pred_check_branch
      %28 = sbr.rel (0) target = $region9
    $region8: #{ttt_block_forward.1} parent=1 // pred_region
      _
    $region9: #{ttt_block_forward.1} parent=1 // pred_fallthru
      _
    // Predicated region
    $region10: #{ttt_block_forward.1} parent=1 // pred_check
      _
    $region11: #{ttt_block_forward.1} parent=1 // pred_check_branch
      %30 = sbr.rel (0) target = $region13
    $region12: #{ttt_block_forward.1} parent=1 // pred_region
      _
    $region13: #{ttt_block_forward.1} parent=1 // pred_fallthru
      _
    // Predicated region
    $region14: #{ttt_block_forward.1} parent=1 // pred_check
      _
    $region15: #{ttt_block_forward.1} parent=1 // pred_check_branch
      %32 = sbr.rel (0) target = $region17
    $region16: #{ttt_block_forward.1} parent=1 // pred_region
      _
    $region17: #{ttt_block_forward.1} parent=1 // pred_fallthru
      _
    // Predicated region
    $region18: #{ttt_block_forward.1} parent=1 // pred_check
      _
    $region19: #{ttt_block_forward.1} parent=1 // pred_check_branch
      %34 = sbr.rel (0) target = $region21
    $region20: #{ttt_block_forward.1} parent=1 // pred_region
      _
    $region21: #{ttt_block_forward.1} parent=1 // pred_fallthru
      _
    // Predicated region
    $region22: #{ttt_block_forward.1} parent=1 // pred_check
      _
    $region23: #{ttt_block_forward.1} parent=1 // pred_check_branch
      %36 = sbr.rel (0) target = $region25
    $region24: #{ttt_block_forward.1} parent=1 // pred_region
      _
    $region25: #{ttt_block_forward.1} parent=1 // pred_fallthru
      _
    // Predicated region
    $region26: #{ttt_block_forward.1} parent=1 // pred_check
      _
    $region27: #{ttt_block_forward.1} parent=1 // pred_check_branch
      %38 = sbr.rel (0) target = $region29
    $region28: #{ttt_block_forward.1} parent=1 // pred_region
      _
    $region29: #{ttt_block_forward.1} parent=1 // pred_fallthru
      _
    // Predicated region
    $region30: #{ttt_block_forward.1} parent=1 // pred_check
      _
    $region31: #{ttt_block_forward.1} parent=1 // pred_check_branch
      %40 = sbr.rel (0) target = $region33
    $region32: #{ttt_block_forward.1} parent=1 // pred_region
      _
    $region33: #{ttt_block_forward.1} parent=1 // pred_fallthru
      _
    // Predicated region
    $region34: #{ttt_block_forward.1} parent=1 // pred_check
      _
    $region35: #{ttt_block_forward.1} parent=1 // pred_check_branch
      %42 = sbr.rel (0) target = $region37
    $region36: #{ttt_block_forward.1} parent=1 // pred_region
      _
    $region37: #{ttt_block_forward.1} parent=1 // pred_fallthru
      _
    // Predicated region
    $region38: #{ttt_block_forward.1} parent=1 // pred_check
      _
    $region39: #{ttt_block_forward.1} parent=1 // pred_check_branch
      %44 = sbr.rel (0) target = $region41
    $region40: #{ttt_block_forward.1} parent=1 // pred_region
      _
    $region41: #{ttt_block_forward.1} parent=1 // pred_fallthru
      _
    // Predicated region
    $region42: #{ttt_block_forward.1} parent=1 // pred_check
      _
    $region43: #{ttt_block_forward.1} parent=1 // pred_check_branch
      %46 = sbr.rel (0) target = $region45
    $region44: #{ttt_block_forward.1} parent=1 // pred_region
      _
    $region45: #{ttt_block_forward.1} parent=1 // pred_fallthru
      _
    // Predicated region
    $region46: #{ttt_block_forward.1} parent=1 // pred_check
      _
    $region47: #{ttt_block_forward.1} parent=1 // pred_check_branch
      %48 = sbr.rel (0) target = $region49
    $region48: #{ttt_block_forward.1} parent=1 // pred_region
      _
    $region49: #{ttt_block_forward.1} parent=1 // pred_fallthru
      _
    // Predicated region
    $region50: #{ttt_block_forward.1} parent=1 // pred_check
      _
    $region51: #{ttt_block_forward.1} parent=1 // pred_check_branch
      %50 = sbr.rel (0) target = $region53
    $region52: #{ttt_block_forward.1} parent=1 // pred_region
      _
    $region53: #{ttt_block_forward.1} parent=1 // pred_fallthru
      _
    // Predicated region
    $region54: #{ttt_block_forward.1} parent=1 // pred_check
      _
    $region55: #{ttt_block_forward.1} parent=1 // pred_check_branch
      %52 = sbr.rel (0) target = $region57
    $region56: #{ttt_block_forward.1} parent=1 // pred_region
      _
    $region57: #{ttt_block_forward.1} parent=1 // pred_fallthru
      _
    // Predicated region
    $region58: #{ttt_block_forward.1} parent=1 // pred_check
      _
    $region59: #{ttt_block_forward.1} parent=1 // pred_check_branch
      %54 = sbr.rel (0) target = $region61
    $region60: #{ttt_block_forward.1} parent=1 // pred_region
      _
    $region61: #{ttt_block_forward.1} parent=1 // pred_fallthru
      _
    // Predicated region
    $region62: #{ttt_block_forward.1} parent=1 // pred_check
      _
    $region63: #{ttt_block_forward.1} parent=1 // pred_check_branch
      %56 = sbr.rel (0) target = $region65
    $region64: #{ttt_block_forward.1} parent=1 // pred_region
      _
    $region65: #{ttt_block_forward.1} parent=1 // pred_fallthru
      _
    // Predicated region
    $region66: #{ttt_block_forward.1} parent=1 // pred_check
      _
    $region67: #{ttt_block_forward.1} parent=1 // pred_check_branch
      %58 = sbr.rel (0) target = $region69
    $region68: #{ttt_block_forward.1} parent=1 // pred_region
      _
    $region69: #{ttt_block_forward.1} parent=1 // pred_fallthru
      _
    // Predicated region
    $region70: #{ttt_block_forward.1} parent=1 // pred_check
      _
    $region71: #{ttt_block_forward.1} parent=1 // pred_check_branch
      %60 = sbr.rel (0) target = $region73
    $region72: #{ttt_block_forward.1} parent=1 // pred_region
      _
    $region73: #{ttt_block_forward.1} parent=1 // pred_fallthru
      _
    // Predicated region
    $region74: #{ttt_block_forward.1} parent=1 // pred_check
      _
    $region75: #{ttt_block_forward.1} parent=1 // pred_check_branch
      %62 = sbr.rel (0) target = $region77
    $region76: #{ttt_block_forward.1} parent=1 // pred_region
      _
    $region77: #{ttt_block_forward.1} parent=1 // pred_fallthru
      _
    %v63 = vld [vmem:[%s0] sm:$0xff]
    %v64 = vld [vmem:[%s0 + $0x8] sm:$0xff]
    %v65 = vld [vmem:[%s0 + $0x10] sm:$0xff]
    %v66 = vld [vmem:[%s0 + $0x18] sm:$0xff]
    %v67 = vmul.f32 %v63, %v63
    %v68 = vmul.f32 %v64, %v64
    %v69 = vmul.f32 %v65, %v65
    %v70 = vmul.f32 %v66, %v66
    %vm71 = vcmask 261120
    %v72 = vsel %vm71, %v67, 0.0
    %73 = vadd.xlane.f32.xlu0 %v72
    %v74 = vpop.xlane.xlu0 %73
    %v75 = vsel %vm71, %v68, 0.0
    %76 = vadd.xlane.f32.xlu0 %v75
    %v77 = vpop.xlane.xlu0 %76
    %v78 = vsel %vm71, %v69, 0.0
    %79 = vadd.xlane.f32.xlu0 %v78
    %v80 = vpop.xlane.xlu0 %79
    %v81 = vsel %vm71, %v70, 0.0
    %82 = vadd.xlane.f32.xlu0 %v81
    %v83 = vpop.xlane.xlu0 %82
    %v84 = vrcp.pop 32.0
    %v85 = vmul.f32 %v74, %v84
    %v86 = vmul.f32 %v77, %v84
    %v87 = vmul.f32 %v80, %v84
    %v88 = vmul.f32 %v83, %v84
    %v89 = vadd.f32 %v85, 1e-06
    %v90 = vadd.f32 %v86, 1e-06
    %v91 = vadd.f32 %v87, 1e-06
    %v92 = vadd.f32 %v88, 1e-06
    %v93 = vrsqrt.pop %v89
    %v94 = vrsqrt.pop %v90
    %v95 = vrsqrt.pop %v91
    %v96 = vrsqrt.pop %v92
    %v97 = vmul.f32 %v63, %v93
    %v98 = vmul.f32 %v64, %v94
    %v99 = vmul.f32 %v65, %v95
    %v100 = vmul.f32 %v66, %v96
    %v101 = vld [vmem:[%s3] sm:$0x1]
    %v103 = vlaneseq
    %v104 = vshrl.u32 %v103, 7
    %v105 = vsub.s32 0, %v104
    %v106 = vrot.slane %v101, %v105
    %v108 = vmul.f32 %v97, %v106
    %v109 = vmul.f32 %v98, %v106
    %v110 = vmul.f32 %v99, %v106
    %v111 = vmul.f32 %v100, %v106
    %v112 = vld [vmem:[%s4] sm:$0xff]
    %v113 = vld [vmem:[%s4 + $0x8] sm:$0xff]
    %v114 = vld [vmem:[%s4 + $0x10] sm:$0xff]
    %v115 = vld [vmem:[%s4 + $0x18] sm:$0xff]
    %v117 = vsel %vm71, %v108, 0
    %v120 = vsel %vm71, %v109, 0
    %v123 = vsel %vm71, %v110, 0
    %v126 = vsel %vm71, %v111, 0
    %128 = vmatprep.subr.mxu0 0.0
    %129 = vmatpush1.msra.mxu0 0.0
    %130 = vmatprep.subr.mxu0 0.0
    %131 = vmatpush1.msra.mxu0 0.0
    %132 = vmatprep.subr.mxu0 0.0
    %133 = vmatpush1.msra.mxu0 0.0
    %134 = vmatprep.subr.mxu0 0.0
    %135 = vmatpush1.msra.mxu0 0.0
    %136 = vmatprep.subr.mxu0 0.0
    %137 = vmatpush1.msra.mxu0 0.0
    %138 = vmatprep.subr.mxu0 0.0
    %139 = vmatpush1.msra.mxu0 0.0
    %140 = vmatprep.subr.mxu0 0.0
    %141 = vmatpush1.msra.mxu0 0.0
    %142 = vmatprep.subr.mxu0 0.0
    %143 = vmatpush1.msra.mxu0 0.0
    %144 = vmatprep.subr.mxu0 0.0
    %145 = vmatpush1.msra.mxu0 0.0
    %146 = vmatprep.subr.mxu0 0.0
    %147 = vmatpush1.msra.mxu0 0.0
    %148 = vmatprep.subr.mxu0 0.0
    %149 = vmatpush1.msra.mxu0 0.0
    %150 = vmatprep.subr.mxu0 0.0
    %151 = vmatpush1.msra.mxu0 0.0
    %152 = vmatprep.subr.mxu0 0.0
    %153 = vmatpush1.msra.mxu0 %v115
    %154 = vmatprep.subr.mxu0 0.0
    %155 = vmatpush1.msra.mxu0 %v114
    %156 = vmatprep.subr.mxu0 0.0
    %157 = vmatpush1.msra.mxu0 %v113
    %158 = vmatprep.subr.mxu0 0.0
    %159 = vmatpush1.msra.mxu0 %v112
    %160 = vmatprep.subr.mxu0 0.0
    %161 = vmatpush2.msra.mxu0 0.0
    %162 = vmatprep.subr.mxu0 0.0
    %163 = vmatpush2.msra.mxu0 0.0
    %164 = vmatprep.subr.mxu0 0.0
    %165 = vmatpush2.msra.mxu0 0.0
    %166 = vmatprep.subr.mxu0 0.0
    %167 = vmatpush2.msra.mxu0 0.0
    %168 = vmatprep.subr.mxu0 0.0
    %169 = vmatpush2.msra.mxu0 0.0
    %170 = vmatprep.subr.mxu0 0.0
    %171 = vmatpush2.msra.mxu0 0.0
    %172 = vmatprep.subr.mxu0 0.0
    %173 = vmatpush2.msra.mxu0 0.0
    %174 = vmatprep.subr.mxu0 0.0
    %175 = vmatpush2.msra.mxu0 0.0
    %176 = vmatprep.subr.mxu0 0.0
    %177 = vmatpush2.msra.mxu0 0.0
    %178 = vmatprep.subr.mxu0 0.0
    %179 = vmatpush2.msra.mxu0 0.0
    %180 = vmatprep.subr.mxu0 0.0
    %181 = vmatpush2.msra.mxu0 0.0
    %182 = vmatprep.subr.mxu0 0.0
    %183 = vmatpush2.msra.mxu0 0.0
    %184 = vmatprep.subr.mxu0 0.0
    %185 = vmatpush2.msra.mxu0 0.0
    %186 = vmatprep.subr.mxu0 0.0
    %187 = vmatpush2.msra.mxu0 0.0
    %188 = vmatprep.subr.mxu0 0.0
    %189 = vmatpush2.msra.mxu0 0.0
    %190 = vmatprep.subr.mxu0 0.0
    %191 = vmatpush2.msra.mxu0 0.0
    %192 = vmatprep.mubr.f32.mxu0 0.0
    %193 = vmatmul.mubr.f32.gmra.mxu0 %v117
    %v194 = vpop.f32.mrf.mxu0
    %v195 = vadd.f32 0.0, %v194
    %v196 = vpop.f32.mrf.mxu0
    %197 = vmatprep.mubr.f32.mxu0 0.0
    %198 = vmatmul.mubr.f32.gmra.mxu0 %v120
    %v199 = vpop.f32.mrf.mxu0
    %v200 = vadd.f32 0.0, %v199
    %v201 = vpop.f32.mrf.mxu0
    %202 = vmatprep.mubr.f32.mxu0 0.0
    %203 = vmatmul.mubr.f32.gmra.mxu0 %v123
    %v204 = vpop.f32.mrf.mxu0
    %v205 = vadd.f32 0.0, %v204
    %v206 = vpop.f32.mrf.mxu0
    %207 = vmatprep.mubr.f32.mxu0 0.0
    %208 = vmatmul.mubr.f32.gmra.mxu0 %v126
    %v209 = vpop.f32.mrf.mxu0
    %v210 = vadd.f32 0.0, %v209
    %v211 = vpop.f32.mrf.mxu0
    %212 = vdwg.mxu0
    %v213 = vld [vmem:[%s1] sm:$0xff]
    %v214 = vld [vmem:[%s1 + $0x8] sm:$0xff]
    %v215 = vld [vmem:[%s2] sm:$0xff]
    %v216 = vld [vmem:[%s2 + $0x8] sm:$0xff]
    %v217 = vmul.f32 %v195, %v213
    %v218 = vmul.f32 %v200, %v214
    %v219 = vmul.f32 %v205, %v213
    %v220 = vmul.f32 %v210, %v214
    %225 = vrot.lane.b32.xlu0 %v195, 127
    %v226 = vpop.permute.xlu0 %225
    %227 = vrot.lane.b32.xlu0 %v200, 127
    %v228 = vpop.permute.xlu0 %227
    %229 = vrot.lane.b32.xlu0 %v205, 127
    %v230 = vpop.permute.xlu0 %229
    %231 = vrot.lane.b32.xlu0 %v210, 127
    %v232 = vpop.permute.xlu0 %231
    %237 = vrot.lane.b32.xlu0 %v195, 31
    %v238 = vpop.permute.xlu0 %237
    %239 = vrot.lane.b32.xlu0 %v200, 31
    %v240 = vpop.permute.xlu0 %239
    %241 = vrot.lane.b32.xlu0 %v205, 31
    %v242 = vpop.permute.xlu0 %241
    %243 = vrot.lane.b32.xlu0 %v210, 31
    %v244 = vpop.permute.xlu0 %243
    %vm249 = vcmask 252928
    %v250 = vsel %vm249, %v226, %v238
    %v251 = vsel %vm249, %v228, %v240
    %v252 = vsel %vm249, %v230, %v242
    %v253 = vsel %vm249, %v232, %v244
    %254 = vrot.lane.b32.xlu0 %v195, 97
    %v255 = vpop.permute.xlu0 %254
    %256 = vrot.lane.b32.xlu0 %v200, 97
    %v257 = vpop.permute.xlu0 %256
    %258 = vrot.lane.b32.xlu0 %v205, 97
    %v259 = vpop.permute.xlu0 %258
    %260 = vrot.lane.b32.xlu0 %v210, 97
    %v261 = vpop.permute.xlu0 %260
    %266 = vrot.lane.b32.xlu0 %v195, 1
    %v267 = vpop.permute.xlu0 %266
    %268 = vrot.lane.b32.xlu0 %v200, 1
    %v269 = vpop.permute.xlu0 %268
    %270 = vrot.lane.b32.xlu0 %v205, 1
    %v271 = vpop.permute.xlu0 %270
    %272 = vrot.lane.b32.xlu0 %v210, 1
    %v273 = vpop.permute.xlu0 %272
    %vm278 = vcmask 7168
    %v279 = vsel %vm278, %v255, %v267
    %v280 = vsel %vm278, %v257, %v269
    %v281 = vsel %vm278, %v259, %v271
    %v282 = vsel %vm278, %v261, %v273
    %v283 = vlaneseq
    %v284 = vand.u32 %v283, 127
    %v285 = vand.u32 %v284, 1
    %vm286 = vcmp.eq.s32.totalorder %v285, 0
    %v287 = vsel %vm286, %v250, %v279
    %v288 = vsel %vm286, %v251, %v280
    %v289 = vsel %vm286, %v252, %v281
    %v290 = vsel %vm286, %v253, %v282
    %v291 = vmul.f32 %v287, %v215
    %v292 = vmul.f32 %v288, %v216
    %v293 = vmul.f32 %v289, %v215
    %v294 = vmul.f32 %v290, %v216
    %v295 = vadd.f32 %v217, %v291
    %v296 = vadd.f32 %v218, %v292
    %v297 = vadd.f32 %v219, %v293
    %v298 = vadd.f32 %v220, %v294
    %301 = vrot.lane.b32.xlu0 %v213, 32
    %v302 = vpop.permute.xlu0 %301
    %303 = vrot.lane.b32.xlu0 %v214, 32
    %v304 = vpop.permute.xlu0 %303
    %v307 = vmul.f32 %v195, %v302
    %v308 = vmul.f32 %v200, %v304
    %v309 = vmul.f32 %v205, %v302
    %v310 = vmul.f32 %v210, %v304
    %311 = vrot.lane.b32.xlu0 %v195, 95
    %v312 = vpop.permute.xlu0 %311
    %313 = vrot.lane.b32.xlu0 %v200, 95
    %v314 = vpop.permute.xlu0 %313
    %315 = vrot.lane.b32.xlu0 %v205, 95
    %v316 = vpop.permute.xlu0 %315
    %317 = vrot.lane.b32.xlu0 %v210, 95
    %v318 = vpop.permute.xlu0 %317
    %v323 = vsel %vm249, %v312, %v226
    %v324 = vsel %vm249, %v314, %v228
    %v325 = vsel %vm249, %v316, %v230
    %v326 = vsel %vm249, %v318, %v232
    %327 = vrot.lane.b32.xlu0 %v195, 65
    %v328 = vpop.permute.xlu0 %327
    %329 = vrot.lane.b32.xlu0 %v200, 65
    %v330 = vpop.permute.xlu0 %329
    %331 = vrot.lane.b32.xlu0 %v205, 65
    %v332 = vpop.permute.xlu0 %331
    %333 = vrot.lane.b32.xlu0 %v210, 65
    %v334 = vpop.permute.xlu0 %333
    %v339 = vsel %vm278, %v328, %v255
    %v340 = vsel %vm278, %v330, %v257
    %v341 = vsel %vm278, %v332, %v259
    %v342 = vsel %vm278, %v334, %v261
    %v343 = vsel %vm286, %v323, %v339
    %v344 = vsel %vm286, %v324, %v340
    %v345 = vsel %vm286, %v325, %v341
    %v346 = vsel %vm286, %v326, %v342
    %v347 = vmul.f32 %v343, %v215
    %v348 = vmul.f32 %v344, %v216
    %v349 = vmul.f32 %v345, %v215
    %v350 = vmul.f32 %v346, %v216
    %355 = vrot.lane.b32.xlu0 %v347, 32
    %v356 = vpop.permute.xlu0 %355
    %357 = vrot.lane.b32.xlu0 %v348, 32
    %v358 = vpop.permute.xlu0 %357
    %359 = vrot.lane.b32.xlu0 %v349, 32
    %v360 = vpop.permute.xlu0 %359
    %361 = vrot.lane.b32.xlu0 %v350, 32
    %v362 = vpop.permute.xlu0 %361
    %v367 = vadd.f32 %v307, %v356
    %v368 = vadd.f32 %v308, %v358
    %v369 = vadd.f32 %v309, %v360
    %v370 = vadd.f32 %v310, %v362
    %371 = vrot.lane.b32.xlu0 %v213, 64
    %v372 = vpop.permute.xlu0 %371
    %373 = vrot.lane.b32.xlu0 %v214, 64
    %v374 = vpop.permute.xlu0 %373
    %v377 = vmul.f32 %v195, %v372
    %v378 = vmul.f32 %v200, %v374
    %v379 = vmul.f32 %v205, %v372
    %v380 = vmul.f32 %v210, %v374
    %381 = vrot.lane.b32.xlu0 %v195, 63
    %v382 = vpop.permute.xlu0 %381
    %383 = vrot.lane.b32.xlu0 %v200, 63
    %v384 = vpop.permute.xlu0 %383
    %385 = vrot.lane.b32.xlu0 %v205, 63
    %v386 = vpop.permute.xlu0 %385
    %387 = vrot.lane.b32.xlu0 %v210, 63
    %v388 = vpop.permute.xlu0 %387
    %v393 = vsel %vm249, %v382, %v312
    %v394 = vsel %vm249, %v384, %v314
    %v395 = vsel %vm249, %v386, %v316
    %v396 = vsel %vm249, %v388, %v318
    %397 = vrot.lane.b32.xlu0 %v195, 33
    %v398 = vpop.permute.xlu0 %397
    %399 = vrot.lane.b32.xlu0 %v200, 33
    %v400 = vpop.permute.xlu0 %399
    %401 = vrot.lane.b32.xlu0 %v205, 33
    %v402 = vpop.permute.xlu0 %401
    %403 = vrot.lane.b32.xlu0 %v210, 33
    %v404 = vpop.permute.xlu0 %403
    %v409 = vsel %vm278, %v398, %v328
    %v410 = vsel %vm278, %v400, %v330
    %v411 = vsel %vm278, %v402, %v332
    %v412 = vsel %vm278, %v404, %v334
    %v413 = vsel %vm286, %v393, %v409
    %v414 = vsel %vm286, %v394, %v410
    %v415 = vsel %vm286, %v395, %v411
    %v416 = vsel %vm286, %v396, %v412
    %v417 = vmul.f32 %v413, %v215
    %v418 = vmul.f32 %v414, %v216
    %v419 = vmul.f32 %v415, %v215
    %v420 = vmul.f32 %v416, %v216
    %425 = vrot.lane.b32.xlu0 %v417, 64
    %v426 = vpop.permute.xlu0 %425
    %427 = vrot.lane.b32.xlu0 %v418, 64
    %v428 = vpop.permute.xlu0 %427
    %429 = vrot.lane.b32.xlu0 %v419, 64
    %v430 = vpop.permute.xlu0 %429
    %431 = vrot.lane.b32.xlu0 %v420, 64
    %v432 = vpop.permute.xlu0 %431
    %v437 = vadd.f32 %v377, %v426
    %v438 = vadd.f32 %v378, %v428
    %v439 = vadd.f32 %v379, %v430
    %v440 = vadd.f32 %v380, %v432
    %v441 = vld [vmem:[%s5] sm:$0xff]
    %v442 = vld [vmem:[%s5 + $0x8] sm:$0xff]
    %v443 = vld [vmem:[%s5 + $0x10] sm:$0xff]
    %v444 = vld [vmem:[%s5 + $0x18] sm:$0xff]
    %v445 = vld [vmem:[%s6] sm:$0x1]
    %v447 = vlaneseq
    %v448 = vshrl.u32 %v447, 7
    %v449 = vsub.s32 0, %v448
    %v450 = vrot.slane %v445, %v449
    %452 = vmatprep.subr.mxu0 0.0
    %453 = vmatpush1.msra.mxu0 0.0
    %454 = vmatprep.subr.mxu0 0.0
    %455 = vmatpush1.msra.mxu0 0.0
    %456 = vmatprep.subr.mxu0 0.0
    %457 = vmatpush1.msra.mxu0 0.0
    %458 = vmatprep.subr.mxu0 0.0
    %459 = vmatpush1.msra.mxu0 0.0
    %460 = vmatprep.subr.mxu0 0.0
    %461 = vmatpush1.msra.mxu0 0.0
    %462 = vmatprep.subr.mxu0 0.0
    %463 = vmatpush1.msra.mxu0 0.0
    %464 = vmatprep.subr.mxu0 0.0
    %465 = vmatpush1.msra.mxu0 0.0
    %466 = vmatprep.subr.mxu0 0.0
    %467 = vmatpush1.msra.mxu0 0.0
    %468 = vmatprep.subr.mxu0 0.0
    %469 = vmatpush1.msra.mxu0 0.0
    %470 = vmatprep.subr.mxu0 0.0
    %471 = vmatpush1.msra.mxu0 0.0
    %472 = vmatprep.subr.mxu0 0.0
    %473 = vmatpush1.msra.mxu0 0.0
    %474 = vmatprep.subr.mxu0 0.0
    %475 = vmatpush1.msra.mxu0 0.0
    %476 = vmatprep.subr.mxu0 0.0
    %477 = vmatpush1.msra.mxu0 %v444
    %478 = vmatprep.subr.mxu0 0.0
    %479 = vmatpush1.msra.mxu0 %v443
    %480 = vmatprep.subr.mxu0 0.0
    %481 = vmatpush1.msra.mxu0 %v442
    %482 = vmatprep.subr.mxu0 0.0
    %483 = vmatpush1.msra.mxu0 %v441
    %484 = vmatprep.subr.mxu0 0.0
    %485 = vmatpush2.msra.mxu0 0.0
    %486 = vmatprep.subr.mxu0 0.0
    %487 = vmatpush2.msra.mxu0 0.0
    %488 = vmatprep.subr.mxu0 0.0
    %489 = vmatpush2.msra.mxu0 0.0
    %490 = vmatprep.subr.mxu0 0.0
    %491 = vmatpush2.msra.mxu0 0.0
    %492 = vmatprep.subr.mxu0 0.0
    %493 = vmatpush2.msra.mxu0 0.0
    %494 = vmatprep.subr.mxu0 0.0
    %495 = vmatpush2.msra.mxu0 0.0
    %496 = vmatprep.subr.mxu0 0.0
    %497 = vmatpush2.msra.mxu0 0.0
    %498 = vmatprep.subr.mxu0 0.0
    %499 = vmatpush2.msra.mxu0 0.0
    %500 = vmatprep.subr.mxu0 0.0
    %501 = vmatpush2.msra.mxu0 0.0
    %502 = vmatprep.subr.mxu0 0.0
    %503 = vmatpush2.msra.mxu0 0.0
    %504 = vmatprep.subr.mxu0 0.0
    %505 = vmatpush2.msra.mxu0 0.0
    %506 = vmatprep.subr.mxu0 0.0
    %507 = vmatpush2.msra.mxu0 0.0
    %508 = vmatprep.subr.mxu0 0.0
    %509 = vmatpush2.msra.mxu0 0.0
    %510 = vmatprep.subr.mxu0 0.0
    %511 = vmatpush2.msra.mxu0 0.0
    %512 = vmatprep.subr.mxu0 0.0
    %513 = vmatpush2.msra.mxu0 0.0
    %514 = vmatprep.subr.mxu0 0.0
    %515 = vmatpush2.msra.mxu0 0.0
    %516 = vmatprep.mubr.f32.mxu0 0.0
    %517 = vmatmul.mubr.f32.gmra.mxu0 %v117
    %v518 = vpop.f32.mrf.mxu0
    %v519 = vadd.f32 %v450, %v518
    %v520 = vpop.f32.mrf.mxu0
    %521 = vmatprep.mubr.f32.mxu0 0.0
    %522 = vmatmul.mubr.f32.gmra.mxu0 %v120
    %v523 = vpop.f32.mrf.mxu0
    %v524 = vadd.f32 %v450, %v523
    %v525 = vpop.f32.mrf.mxu0
    %526 = vmatprep.mubr.f32.mxu0 0.0
    %527 = vmatmul.mubr.f32.gmra.mxu0 %v123
    %v528 = vpop.f32.mrf.mxu0
    %v529 = vadd.f32 %v450, %v528
    %v530 = vpop.f32.mrf.mxu0
    %531 = vmatprep.mubr.f32.mxu0 0.0
    %532 = vmatmul.mubr.f32.gmra.mxu0 %v126
    %v533 = vpop.f32.mrf.mxu0
    %v534 = vadd.f32 %v450, %v533
    %v535 = vpop.f32.mrf.mxu0
    %536 = vdwg.mxu0
    %v537 = vxor.u32 %v519, 2147483648
    %v538 = vxor.u32 %v524, 2147483648
    %v539 = vxor.u32 %v529, 2147483648
    %v540 = vxor.u32 %v534, 2147483648
    %v541 = vmul.f32 %v537, 1.442695
    %v542 = vpow.pop %v541
    %v543 = vmul.f32 %v538, 1.442695
    %v544 = vpow.pop %v543
    %v545 = vmul.f32 %v539, 1.442695
    %v546 = vpow.pop %v545
    %v547 = vmul.f32 %v540, 1.442695
    %v548 = vpow.pop %v547
    %v549 = vadd.f32 %v542, 1.0
    %v550 = vadd.f32 %v544, 1.0
    %v551 = vadd.f32 %v546, 1.0
    %v552 = vadd.f32 %v548, 1.0
    %v553 = vrcp.pop %v549
    %v554 = vmul.f32 1.0, %v553
    %v555 = vrcp.pop %v550
    %v556 = vmul.f32 1.0, %v555
    %v557 = vrcp.pop %v551
    %v558 = vmul.f32 1.0, %v557
    %v559 = vrcp.pop %v552
    %v560 = vmul.f32 1.0, %v559
    %v561 = vmul.f32 %v554, 0.125
    %v562 = vmul.f32 %v556, 0.125
    %v563 = vmul.f32 %v558, 0.125
    %v564 = vmul.f32 %v560, 0.125
    %vm565 = vcmask 64512
    %566 = vst.msk [vmem:[#allocation2] sm:$0xff] %vm565, %v295
    %567 = vst.msk [vmem:[#allocation2 + $0x8] sm:$0xff] %vm565, %v296
    %568 = vst.msk [vmem:[#allocation2 + $0x10] sm:$0xff] %vm565, %v297
    %569 = vst.msk [vmem:[#allocation2 + $0x18] sm:$0xff] %vm565, %v298
    %574 = vrot.lane.b32.xlu0 %v367, 96
    %v575 = vpop.permute.xlu0 %574
    %576 = vrot.lane.b32.xlu0 %v368, 96
    %v577 = vpop.permute.xlu0 %576
    %578 = vrot.lane.b32.xlu0 %v369, 96
    %v579 = vpop.permute.xlu0 %578
    %580 = vrot.lane.b32.xlu0 %v370, 96
    %v581 = vpop.permute.xlu0 %580
    %586 = vst.msk [vmem:[#allocation3] sm:$0xff] %vm565, %v575
    %587 = vst.msk [vmem:[#allocation3 + $0x8] sm:$0xff] %vm565, %v577
    %588 = vst.msk [vmem:[#allocation3 + $0x10] sm:$0xff] %vm565, %v579
    %589 = vst.msk [vmem:[#allocation3 + $0x18] sm:$0xff] %vm565, %v581
    %594 = vrot.lane.b32.xlu0 %v437, 64
    %v595 = vpop.permute.xlu0 %594
    %596 = vrot.lane.b32.xlu0 %v438, 64
    %v597 = vpop.permute.xlu0 %596
    %598 = vrot.lane.b32.xlu0 %v439, 64
    %v599 = vpop.permute.xlu0 %598
    %600 = vrot.lane.b32.xlu0 %v440, 64
    %v601 = vpop.permute.xlu0 %600
    %606 = vst.msk [vmem:[#allocation4] sm:$0xff] %vm565, %v595
    %607 = vst.msk [vmem:[#allocation4 + $0x8] sm:$0xff] %vm565, %v597
    %608 = vst.msk [vmem:[#allocation4 + $0x10] sm:$0xff] %vm565, %v599
    %609 = vst.msk [vmem:[#allocation4 + $0x18] sm:$0xff] %vm565, %v601
    %610 = vst.msk [vmem:[#allocation5] sm:$0xff] %vm278, %v561
    %611 = vst.msk [vmem:[#allocation5 + $0x8] sm:$0xff] %vm278, %v562
    %612 = vst.msk [vmem:[#allocation5 + $0x10] sm:$0xff] %vm278, %v563
    %613 = vst.msk [vmem:[#allocation5 + $0x18] sm:$0xff] %vm278, %v564
    %618 = vrot.lane.b32.xlu0 %v295, 120
    %v619 = vpop.permute.xlu0 %618
    %620 = vrot.lane.b32.xlu0 %v296, 120
    %v621 = vpop.permute.xlu0 %620
    %622 = vrot.lane.b32.xlu0 %v297, 120
    %v623 = vpop.permute.xlu0 %622
    %624 = vrot.lane.b32.xlu0 %v298, 120
    %v625 = vpop.permute.xlu0 %624
    %s630 = scalar_lea.vmem [#allocation2], 32
    %631 = vst.msk [vmem:[%s630] sm:$0xff] %vm565, %v619
    %632 = vst.msk [vmem:[%s630 + $0x8] sm:$0xff] %vm565, %v621
    %633 = vst.msk [vmem:[%s630 + $0x10] sm:$0xff] %vm565, %v623
    %634 = vst.msk [vmem:[%s630 + $0x18] sm:$0xff] %vm565, %v625
    %635 = vrot.lane.b32.xlu0 %v367, 88
    %v636 = vpop.permute.xlu0 %635
    %637 = vrot.lane.b32.xlu0 %v368, 88
    %v638 = vpop.permute.xlu0 %637
    %639 = vrot.lane.b32.xlu0 %v369, 88
    %v640 = vpop.permute.xlu0 %639
    %641 = vrot.lane.b32.xlu0 %v370, 88
    %v642 = vpop.permute.xlu0 %641
    %s647 = scalar_lea.vmem [#allocation3], 32
    %648 = vst.msk [vmem:[%s647] sm:$0xff] %vm565, %v636
    %649 = vst.msk [vmem:[%s647 + $0x8] sm:$0xff] %vm565, %v638
    %650 = vst.msk [vmem:[%s647 + $0x10] sm:$0xff] %vm565, %v640
    %651 = vst.msk [vmem:[%s647 + $0x18] sm:$0xff] %vm565, %v642
    %652 = vrot.lane.b32.xlu0 %v437, 56
    %v653 = vpop.permute.xlu0 %652
    %654 = vrot.lane.b32.xlu0 %v438, 56
    %v655 = vpop.permute.xlu0 %654
    %656 = vrot.lane.b32.xlu0 %v439, 56
    %v657 = vpop.permute.xlu0 %656
    %658 = vrot.lane.b32.xlu0 %v440, 56
    %v659 = vpop.permute.xlu0 %658
    %s664 = scalar_lea.vmem [#allocation4], 32
    %665 = vst.msk [vmem:[%s664] sm:$0xff] %vm565, %v653
    %666 = vst.msk [vmem:[%s664 + $0x8] sm:$0xff] %vm565, %v655
    %667 = vst.msk [vmem:[%s664 + $0x10] sm:$0xff] %vm565, %v657
    %668 = vst.msk [vmem:[%s664 + $0x18] sm:$0xff] %vm565, %v659
    %673 = vrot.lane.b32.xlu0 %v561, 127
    %v674 = vpop.permute.xlu0 %673
    %675 = vrot.lane.b32.xlu0 %v562, 127
    %v676 = vpop.permute.xlu0 %675
    %677 = vrot.lane.b32.xlu0 %v563, 127
    %v678 = vpop.permute.xlu0 %677
    %679 = vrot.lane.b32.xlu0 %v564, 127
    %v680 = vpop.permute.xlu0 %679
    %s685 = scalar_lea.vmem [#allocation5], 32
    %686 = vst.msk [vmem:[%s685] sm:$0xff] %vm278, %v674
    %687 = vst.msk [vmem:[%s685 + $0x8] sm:$0xff] %vm278, %v676
    %688 = vst.msk [vmem:[%s685 + $0x10] sm:$0xff] %vm278, %v678
    %689 = vst.msk [vmem:[%s685 + $0x18] sm:$0xff] %vm278, %v680
    %690 = vrot.lane.b32.xlu0 %v295, 112
    %v691 = vpop.permute.xlu0 %690
    %692 = vrot.lane.b32.xlu0 %v296, 112
    %v693 = vpop.permute.xlu0 %692
    %694 = vrot.lane.b32.xlu0 %v297, 112
    %v695 = vpop.permute.xlu0 %694
    %696 = vrot.lane.b32.xlu0 %v298, 112
    %v697 = vpop.permute.xlu0 %696
    %s702 = scalar_lea.vmem [#allocation2], 64
    %703 = vst.msk [vmem:[%s702] sm:$0xff] %vm565, %v691
    %704 = vst.msk [vmem:[%s702 + $0x8] sm:$0xff] %vm565, %v693
    %705 = vst.msk [vmem:[%s702 + $0x10] sm:$0xff] %vm565, %v695
    %706 = vst.msk [vmem:[%s702 + $0x18] sm:$0xff] %vm565, %v697
    %707 = vrot.lane.b32.xlu0 %v367, 80
    %v708 = vpop.permute.xlu0 %707
    %709 = vrot.lane.b32.xlu0 %v368, 80
    %v710 = vpop.permute.xlu0 %709
    %711 = vrot.lane.b32.xlu0 %v369, 80
    %v712 = vpop.permute.xlu0 %711
    %713 = vrot.lane.b32.xlu0 %v370, 80
    %v714 = vpop.permute.xlu0 %713
    %s719 = scalar_lea.vmem [#allocation3], 64
    %720 = vst.msk [vmem:[%s719] sm:$0xff] %vm565, %v708
    %721 = vst.msk [vmem:[%s719 + $0x8] sm:$0xff] %vm565, %v710
    %722 = vst.msk [vmem:[%s719 + $0x10] sm:$0xff] %vm565, %v712
    %723 = vst.msk [vmem:[%s719 + $0x18] sm:$0xff] %vm565, %v714
    %724 = vrot.lane.b32.xlu0 %v437, 48
    %v725 = vpop.permute.xlu0 %724
    %726 = vrot.lane.b32.xlu0 %v438, 48
    %v727 = vpop.permute.xlu0 %726
    %728 = vrot.lane.b32.xlu0 %v439, 48
    %v729 = vpop.permute.xlu0 %728
    %730 = vrot.lane.b32.xlu0 %v440, 48
    %v731 = vpop.permute.xlu0 %730
    %s736 = scalar_lea.vmem [#allocation4], 64
    %737 = vst.msk [vmem:[%s736] sm:$0xff] %vm565, %v725
    %738 = vst.msk [vmem:[%s736 + $0x8] sm:$0xff] %vm565, %v727
    %739 = vst.msk [vmem:[%s736 + $0x10] sm:$0xff] %vm565, %v729
    %740 = vst.msk [vmem:[%s736 + $0x18] sm:$0xff] %vm565, %v731
    %741 = vrot.lane.b32.xlu0 %v561, 126
    %v742 = vpop.permute.xlu0 %741
    %743 = vrot.lane.b32.xlu0 %v562, 126
    %v744 = vpop.permute.xlu0 %743
    %745 = vrot.lane.b32.xlu0 %v563, 126
    %v746 = vpop.permute.xlu0 %745
    %747 = vrot.lane.b32.xlu0 %v564, 126
    %v748 = vpop.permute.xlu0 %747
    %s753 = scalar_lea.vmem [#allocation5], 64
    %754 = vst.msk [vmem:[%s753] sm:$0xff] %vm278, %v742
    %755 = vst.msk [vmem:[%s753 + $0x8] sm:$0xff] %vm278, %v744
    %756 = vst.msk [vmem:[%s753 + $0x10] sm:$0xff] %vm278, %v746
    %757 = vst.msk [vmem:[%s753 + $0x18] sm:$0xff] %vm278, %v748
    %758 = vrot.lane.b32.xlu0 %v295, 104
    %v759 = vpop.permute.xlu0 %758
    %760 = vrot.lane.b32.xlu0 %v296, 104
    %v761 = vpop.permute.xlu0 %760
    %762 = vrot.lane.b32.xlu0 %v297, 104
    %v763 = vpop.permute.xlu0 %762
    %764 = vrot.lane.b32.xlu0 %v298, 104
    %v765 = vpop.permute.xlu0 %764
    %s770 = scalar_lea.vmem [#allocation2], 96
    %771 = vst.msk [vmem:[%s770] sm:$0xff] %vm565, %v759
    %772 = vst.msk [vmem:[%s770 + $0x8] sm:$0xff] %vm565, %v761
    %773 = vst.msk [vmem:[%s770 + $0x10] sm:$0xff] %vm565, %v763
    %774 = vst.msk [vmem:[%s770 + $0x18] sm:$0xff] %vm565, %v765
    %775 = vrot.lane.b32.xlu0 %v367, 72
    %v776 = vpop.permute.xlu0 %775
    %777 = vrot.lane.b32.xlu0 %v368, 72
    %v778 = vpop.permute.xlu0 %777
    %779 = vrot.lane.b32.xlu0 %v369, 72
    %v780 = vpop.permute.xlu0 %779
    %781 = vrot.lane.b32.xlu0 %v370, 72
    %v782 = vpop.permute.xlu0 %781
    %s787 = scalar_lea.vmem [#allocation3], 96
    %788 = vst.msk [vmem:[%s787] sm:$0xff] %vm565, %v776
    %789 = vst.msk [vmem:[%s787 + $0x8] sm:$0xff] %vm565, %v778
    %790 = vst.msk [vmem:[%s787 + $0x10] sm:$0xff] %vm565, %v780
    %791 = vst.msk [vmem:[%s787 + $0x18] sm:$0xff] %vm565, %v782
    %792 = vrot.lane.b32.xlu0 %v437, 40
    %v793 = vpop.permute.xlu0 %792
    %794 = vrot.lane.b32.xlu0 %v438, 40
    %v795 = vpop.permute.xlu0 %794
    %796 = vrot.lane.b32.xlu0 %v439, 40
    %v797 = vpop.permute.xlu0 %796
    %798 = vrot.lane.b32.xlu0 %v440, 40
    %v799 = vpop.permute.xlu0 %798
    %s804 = scalar_lea.vmem [#allocation4], 96
    %805 = vst.msk [vmem:[%s804] sm:$0xff] %vm565, %v793
    %806 = vst.msk [vmem:[%s804 + $0x8] sm:$0xff] %vm565, %v795
    %807 = vst.msk [vmem:[%s804 + $0x10] sm:$0xff] %vm565, %v797
    %808 = vst.msk [vmem:[%s804 + $0x18] sm:$0xff] %vm565, %v799
    %809 = vrot.lane.b32.xlu0 %v561, 125
    %v810 = vpop.permute.xlu0 %809
    %811 = vrot.lane.b32.xlu0 %v562, 125
    %v812 = vpop.permute.xlu0 %811
    %813 = vrot.lane.b32.xlu0 %v563, 125
    %v814 = vpop.permute.xlu0 %813
    %815 = vrot.lane.b32.xlu0 %v564, 125
    %v816 = vpop.permute.xlu0 %815
    %s821 = scalar_lea.vmem [#allocation5], 96
    %822 = vst.msk [vmem:[%s821] sm:$0xff] %vm278, %v810
    %823 = vst.msk [vmem:[%s821 + $0x8] sm:$0xff] %vm278, %v812
    %824 = vst.msk [vmem:[%s821 + $0x10] sm:$0xff] %vm278, %v814
    %825 = vst.msk [vmem:[%s821 + $0x18] sm:$0xff] %vm278, %v816
    %v826 = vld [vmem:[%s8] sm:$0x1]
    %v827 = vld [vmem:[%s8 + $0x1] sm:$0x1]
    %v828 = vld [vmem:[%s8 + $0x2] sm:$0x1]
    %v829 = vld [vmem:[%s8 + $0x3] sm:$0x1]
    %v830 = vld [vmem:[%s8 + $0x4] sm:$0x1]
    %v831 = vld [vmem:[%s8 + $0x5] sm:$0x1]
    %v832 = vld [vmem:[%s8 + $0x6] sm:$0x1]
    %v833 = vld [vmem:[%s8 + $0x7] sm:$0x1]
    %v834 = vld [vmem:[%s9] sm:$0x1]
    %v835 = vld [vmem:[%s9 + $0x1] sm:$0x1]
    %v836 = vld [vmem:[%s9 + $0x2] sm:$0x1]
    %v837 = vld [vmem:[%s9 + $0x3] sm:$0x1]
    %v838 = vld [vmem:[%s9 + $0x4] sm:$0x1]
    %v839 = vld [vmem:[%s9 + $0x5] sm:$0x1]
    %v840 = vld [vmem:[%s9 + $0x6] sm:$0x1]
    %v841 = vld [vmem:[%s9 + $0x7] sm:$0x1]
    %v842 = vld [vmem:[%s7] sm:$0xff]
    %v843 = vlaneseq
    %v844 = vshrl.u32 %v843, 7
    %vm845 = vcmp.le.s32.totalorder %v284, %v844
    %v846 = vsel %vm845, 1, 0
    %v847 = vcvt.s32.f32 %v846
    %vm848 = vcmp.ge.s32.totalorder %v284, %v844
    %v849 = vsel %vm848, 1, 0
    %v850 = vcvt.s32.f32 %v849
    %v851 = vld [vmem:[%s10] sm:$0xff]
    %v852 = vld [vmem:[%s10 + $0x8] sm:$0xff]
    %v853 = vld [vmem:[%s10 + $0x10] sm:$0xff]
    %v854 = vld [vmem:[%s10 + $0x18] sm:$0xff]
    %v855 = vld [vmem:[%s10 + $0x20] sm:$0xff]
    %v856 = vld [vmem:[%s10 + $0x28] sm:$0xff]
    %v857 = vld [vmem:[%s10 + $0x30] sm:$0xff]
    %v858 = vld [vmem:[%s10 + $0x38] sm:$0xff]
    %v859 = vld [vmem:[%s11] sm:$0x1]
    %v860 = vld [vmem:[%s11 + $0x1] sm:$0x1]
    %v861 = vld [vmem:[%s11 + $0x2] sm:$0x1]
    %v862 = vld [vmem:[%s11 + $0x3] sm:$0x1]
    %v863 = vld [vmem:[%s11 + $0x4] sm:$0x1]
    %v864 = vld [vmem:[%s11 + $0x5] sm:$0x1]
    %v865 = vld [vmem:[%s11 + $0x6] sm:$0x1]
    %v866 = vld [vmem:[%s11 + $0x7] sm:$0x1]
    %v867 = vld [vmem:[#allocation2] sm:$0xff]
    %v868 = vld [vmem:[#allocation2 + $0x10] sm:$0xff]
    %v869 = vld [vmem:[#allocation2 + $0x20] sm:$0xff]
    %v870 = vld [vmem:[#allocation2 + $0x30] sm:$0xff]
    %v871 = vld [vmem:[#allocation2 + $0x40] sm:$0xff]
    %v872 = vld [vmem:[#allocation2 + $0x50] sm:$0xff]
    %v873 = vld [vmem:[#allocation2 + $0x60] sm:$0xff]
    %v874 = vld [vmem:[#allocation2 + $0x70] sm:$0xff]
    %v875 = vld [vmem:[#allocation3] sm:$0xff]
    %v876 = vld [vmem:[#allocation3 + $0x10] sm:$0xff]
    %v877 = vld [vmem:[#allocation3 + $0x20] sm:$0xff]
    %v878 = vld [vmem:[#allocation3 + $0x30] sm:$0xff]
    %v879 = vld [vmem:[#allocation3 + $0x40] sm:$0xff]
    %v880 = vld [vmem:[#allocation3 + $0x50] sm:$0xff]
    %v881 = vld [vmem:[#allocation3 + $0x60] sm:$0xff]
    %v882 = vld [vmem:[#allocation3 + $0x70] sm:$0xff]
    %v883 = vld [vmem:[#allocation4] sm:$0xff]
    %v884 = vld [vmem:[#allocation4 + $0x10] sm:$0xff]
    %v885 = vld [vmem:[#allocation4 + $0x20] sm:$0xff]
    %v886 = vld [vmem:[#allocation4 + $0x30] sm:$0xff]
    %v887 = vld [vmem:[#allocation4 + $0x40] sm:$0xff]
    %v888 = vld [vmem:[#allocation4 + $0x50] sm:$0xff]
    %v889 = vld [vmem:[#allocation4 + $0x60] sm:$0xff]
    %v890 = vld [vmem:[#allocation4 + $0x70] sm:$0xff]
    %v891 = vld [vmem:[#allocation5] sm:$0xff]
    %v892 = vld [vmem:[#allocation5 + $0x10] sm:$0xff]
    %v893 = vld [vmem:[#allocation5 + $0x20] sm:$0xff]
    %v894 = vld [vmem:[#allocation5 + $0x30] sm:$0xff]
    %v895 = vld [vmem:[#allocation5 + $0x40] sm:$0xff]
    %v896 = vld [vmem:[#allocation5 + $0x50] sm:$0xff]
    %v897 = vld [vmem:[#allocation5 + $0x60] sm:$0xff]
    %v898 = vld [vmem:[#allocation5 + $0x70] sm:$0xff]
    %v907 = vlaneseq
    %v908 = vshrl.u32 %v907, 7
    %v909 = vsub.s32 0, %v908
    %v910 = vrot.slane %v859, %v909
    %v911 = vlaneseq
    %v912 = vshrl.u32 %v911, 7
    %v913 = vsub.s32 0, %v912
    %v914 = vrot.slane %v860, %v913
    %v915 = vlaneseq
    %v916 = vshrl.u32 %v915, 7
    %v917 = vsub.s32 0, %v916
    %v918 = vrot.slane %v861, %v917
    %v919 = vlaneseq
    %v920 = vshrl.u32 %v919, 7
    %v921 = vsub.s32 0, %v920
    %v922 = vrot.slane %v862, %v921
    %v923 = vlaneseq
    %v924 = vshrl.u32 %v923, 7
    %v925 = vsub.s32 0, %v924
    %v926 = vrot.slane %v863, %v925
    %v927 = vlaneseq
    %v928 = vshrl.u32 %v927, 7
    %v929 = vsub.s32 0, %v928
    %v930 = vrot.slane %v864, %v929
    %v931 = vlaneseq
    %v932 = vshrl.u32 %v931, 7
    %v933 = vsub.s32 0, %v932
    %v934 = vrot.slane %v865, %v933
    %v935 = vlaneseq
    %v936 = vshrl.u32 %v935, 7
    %v937 = vsub.s32 0, %v936
    %v938 = vrot.slane %v866, %v937
    %v948 = vsel %vm565, %v875, 0
    %950 = vmatprep.subr.mxu0 0.0
    %951 = vmatpush1.msra.mxu0 0.0
    %952 = vmatprep.subr.mxu0 0.0
    %953 = vmatpush1.msra.mxu0 0.0
    %954 = vmatprep.subr.mxu0 0.0
    %955 = vmatpush1.msra.mxu0 0.0
    %956 = vmatprep.subr.mxu0 0.0
    %957 = vmatpush1.msra.mxu0 0.0
    %958 = vmatprep.subr.mxu0 0.0
    %959 = vmatpush1.msra.mxu0 0.0
    %960 = vmatprep.subr.mxu0 0.0
    %961 = vmatpush1.msra.mxu0 0.0
    %962 = vmatprep.subr.mxu0 0.0
    %963 = vmatpush1.msra.mxu0 0.0
    %964 = vmatprep.subr.mxu0 0.0
    %965 = vmatpush1.msra.mxu0 0.0
    %966 = vmatprep.subr.mxu0 0.0
    %967 = vmatpush1.msra.mxu0 0.0
    %968 = vmatprep.subr.mxu0 0.0
    %969 = vmatpush1.msra.mxu0 0.0
    %970 = vmatprep.subr.mxu0 0.0
    %971 = vmatpush1.msra.mxu0 0.0
    %972 = vmatprep.subr.mxu0 0.0
    %973 = vmatpush1.msra.mxu0 0.0
    %974 = vmatprep.subr.mxu0 0.0
    %975 = vmatpush1.msra.mxu0 0.0
    %976 = vmatprep.subr.mxu0 0.0
    %977 = vmatpush1.msra.mxu0 0.0
    %978 = vmatprep.subr.mxu0 0.0
    %979 = vmatpush1.msra.mxu0 0.0
    %980 = vmatprep.subr.mxu0 0.0
    %981 = vmatpush1.msra.mxu0 %v851
    %982 = vmatprep.subr.mxu0 0.0
    %983 = vmatpush2.msra.mxu0 0.0
    %984 = vmatprep.subr.mxu0 0.0
    %985 = vmatpush2.msra.mxu0 0.0
    %986 = vmatprep.subr.mxu0 0.0
    %987 = vmatpush2.msra.mxu0 0.0
    %988 = vmatprep.subr.mxu0 0.0
    %989 = vmatpush2.msra.mxu0 0.0
    %990 = vmatprep.subr.mxu0 0.0
    %991 = vmatpush2.msra.mxu0 0.0
    %992 = vmatprep.subr.mxu0 0.0
    %993 = vmatpush2.msra.mxu0 0.0
    %994 = vmatprep.subr.mxu0 0.0
    %995 = vmatpush2.msra.mxu0 0.0
    %996 = vmatprep.subr.mxu0 0.0
    %997 = vmatpush2.msra.mxu0 0.0
    %998 = vmatprep.subr.mxu0 0.0
    %999 = vmatpush2.msra.mxu0 0.0
    %1000 = vmatprep.subr.mxu0 0.0
    %1001 = vmatpush2.msra.mxu0 0.0
    %1002 = vmatprep.subr.mxu0 0.0
    %1003 = vmatpush2.msra.mxu0 0.0
    %1004 = vmatprep.subr.mxu0 0.0
    %1005 = vmatpush2.msra.mxu0 0.0
    %1006 = vmatprep.subr.mxu0 0.0
    %1007 = vmatpush2.msra.mxu0 0.0
    %1008 = vmatprep.subr.mxu0 0.0
    %1009 = vmatpush2.msra.mxu0 0.0
    %1010 = vmatprep.subr.mxu0 0.0
    %1011 = vmatpush2.msra.mxu0 0.0
    %1012 = vmatprep.subr.mxu0 0.0
    %1013 = vmatpush2.msra.mxu0 0.0
    %1014 = vmatprep.mubr.f32.mxu0 0.0
    %1015 = vmatmul.mubr.f32.gmra.mxu0 %v948
    %v1016 = vpop.f32.mrf.mxu0
    %v1017 = vadd.f32 %v910, %v1016
    %v1018 = vpop.f32.mrf.mxu0
    %1019 = vdwg.mxu0
    %v1021 = vsel %vm565, %v876, 0
    %1023 = vmatprep.subr.mxu0 0.0
    %1024 = vmatpush1.msra.mxu0 0.0
    %1025 = vmatprep.subr.mxu0 0.0
    %1026 = vmatpush1.msra.mxu0 0.0
    %1027 = vmatprep.subr.mxu0 0.0
    %1028 = vmatpush1.msra.mxu0 0.0
    %1029 = vmatprep.subr.mxu0 0.0
    %1030 = vmatpush1.msra.mxu0 0.0
    %1031 = vmatprep.subr.mxu0 0.0
    %1032 = vmatpush1.msra.mxu0 0.0
    %1033 = vmatprep.subr.mxu0 0.0
    %1034 = vmatpush1.msra.mxu0 0.0
    %1035 = vmatprep.subr.mxu0 0.0
    %1036 = vmatpush1.msra.mxu0 0.0
    %1037 = vmatprep.subr.mxu0 0.0
    %1038 = vmatpush1.msra.mxu0 0.0
    %1039 = vmatprep.subr.mxu0 0.0
    %1040 = vmatpush1.msra.mxu0 0.0
    %1041 = vmatprep.subr.mxu0 0.0
    %1042 = vmatpush1.msra.mxu0 0.0
    %1043 = vmatprep.subr.mxu0 0.0
    %1044 = vmatpush1.msra.mxu0 0.0
    %1045 = vmatprep.subr.mxu0 0.0
    %1046 = vmatpush1.msra.mxu0 0.0
    %1047 = vmatprep.subr.mxu0 0.0
    %1048 = vmatpush1.msra.mxu0 0.0
    %1049 = vmatprep.subr.mxu0 0.0
    %1050 = vmatpush1.msra.mxu0 0.0
    %1051 = vmatprep.subr.mxu0 0.0
    %1052 = vmatpush1.msra.mxu0 0.0
    %1053 = vmatprep.subr.mxu0 0.0
    %1054 = vmatpush1.msra.mxu0 %v852
    %1055 = vmatprep.subr.mxu0 0.0
    %1056 = vmatpush2.msra.mxu0 0.0
    %1057 = vmatprep.subr.mxu0 0.0
    %1058 = vmatpush2.msra.mxu0 0.0
    %1059 = vmatprep.subr.mxu0 0.0
    %1060 = vmatpush2.msra.mxu0 0.0
    %1061 = vmatprep.subr.mxu0 0.0
    %1062 = vmatpush2.msra.mxu0 0.0
    %1063 = vmatprep.subr.mxu0 0.0
    %1064 = vmatpush2.msra.mxu0 0.0
    %1065 = vmatprep.subr.mxu0 0.0
    %1066 = vmatpush2.msra.mxu0 0.0
    %1067 = vmatprep.subr.mxu0 0.0
    %1068 = vmatpush2.msra.mxu0 0.0
    %1069 = vmatprep.subr.mxu0 0.0
    %1070 = vmatpush2.msra.mxu0 0.0
    %1071 = vmatprep.subr.mxu0 0.0
    %1072 = vmatpush2.msra.mxu0 0.0
    %1073 = vmatprep.subr.mxu0 0.0
    %1074 = vmatpush2.msra.mxu0 0.0
    %1075 = vmatprep.subr.mxu0 0.0
    %1076 = vmatpush2.msra.mxu0 0.0
    %1077 = vmatprep.subr.mxu0 0.0
    %1078 = vmatpush2.msra.mxu0 0.0
    %1079 = vmatprep.subr.mxu0 0.0
    %1080 = vmatpush2.msra.mxu0 0.0
    %1081 = vmatprep.subr.mxu0 0.0
    %1082 = vmatpush2.msra.mxu0 0.0
    %1083 = vmatprep.subr.mxu0 0.0
    %1084 = vmatpush2.msra.mxu0 0.0
    %1085 = vmatprep.subr.mxu0 0.0
    %1086 = vmatpush2.msra.mxu0 0.0
    %1087 = vmatprep.mubr.f32.mxu0 0.0
    %1088 = vmatmul.mubr.f32.gmra.mxu0 %v1021
    %v1089 = vpop.f32.mrf.mxu0
    %v1090 = vadd.f32 %v914, %v1089
    %v1091 = vpop.f32.mrf.mxu0
    %1092 = vdwg.mxu0
    %v1094 = vsel %vm565, %v877, 0
    %1096 = vmatprep.subr.mxu0 0.0
    %1097 = vmatpush1.msra.mxu0 0.0
    %1098 = vmatprep.subr.mxu0 0.0
    %1099 = vmatpush1.msra.mxu0 0.0
    %1100 = vmatprep.subr.mxu0 0.0
    %1101 = vmatpush1.msra.mxu0 0.0
    %1102 = vmatprep.subr.mxu0 0.0
    %1103 = vmatpush1.msra.mxu0 0.0
    %1104 = vmatprep.subr.mxu0 0.0
    %1105 = vmatpush1.msra.mxu0 0.0
    %1106 = vmatprep.subr.mxu0 0.0
    %1107 = vmatpush1.msra.mxu0 0.0
    %1108 = vmatprep.subr.mxu0 0.0
    %1109 = vmatpush1.msra.mxu0 0.0
    %1110 = vmatprep.subr.mxu0 0.0
    %1111 = vmatpush1.msra.mxu0 0.0
    %1112 = vmatprep.subr.mxu0 0.0
    %1113 = vmatpush1.msra.mxu0 0.0
    %1114 = vmatprep.subr.mxu0 0.0
    %1115 = vmatpush1.msra.mxu0 0.0
    %1116 = vmatprep.subr.mxu0 0.0
    %1117 = vmatpush1.msra.mxu0 0.0
    %1118 = vmatprep.subr.mxu0 0.0
    %1119 = vmatpush1.msra.mxu0 0.0
    %1120 = vmatprep.subr.mxu0 0.0
    %1121 = vmatpush1.msra.mxu0 0.0
    %1122 = vmatprep.subr.mxu0 0.0
    %1123 = vmatpush1.msra.mxu0 0.0
    %1124 = vmatprep.subr.mxu0 0.0
    %1125 = vmatpush1.msra.mxu0 0.0
    %1126 = vmatprep.subr.mxu0 0.0
    %1127 = vmatpush1.msra.mxu0 %v853
    %1128 = vmatprep.subr.mxu0 0.0
    %1129 = vmatpush2.msra.mxu0 0.0
    %1130 = vmatprep.subr.mxu0 0.0
    %1131 = vmatpush2.msra.mxu0 0.0
    %1132 = vmatprep.subr.mxu0 0.0
    %1133 = vmatpush2.msra.mxu0 0.0
    %1134 = vmatprep.subr.mxu0 0.0
    %1135 = vmatpush2.msra.mxu0 0.0
    %1136 = vmatprep.subr.mxu0 0.0
    %1137 = vmatpush2.msra.mxu0 0.0
    %1138 = vmatprep.subr.mxu0 0.0
    %1139 = vmatpush2.msra.mxu0 0.0
    %1140 = vmatprep.subr.mxu0 0.0
    %1141 = vmatpush2.msra.mxu0 0.0
    %1142 = vmatprep.subr.mxu0 0.0
    %1143 = vmatpush2.msra.mxu0 0.0
    %1144 = vmatprep.subr.mxu0 0.0
    %1145 = vmatpush2.msra.mxu0 0.0
    %1146 = vmatprep.subr.mxu0 0.0
    %1147 = vmatpush2.msra.mxu0 0.0
    %1148 = vmatprep.subr.mxu0 0.0
    %1149 = vmatpush2.msra.mxu0 0.0
    %1150 = vmatprep.subr.mxu0 0.0
    %1151 = vmatpush2.msra.mxu0 0.0
    %1152 = vmatprep.subr.mxu0 0.0
    %1153 = vmatpush2.msra.mxu0 0.0
    %1154 = vmatprep.subr.mxu0 0.0
    %1155 = vmatpush2.msra.mxu0 0.0
    %1156 = vmatprep.subr.mxu0 0.0
    %1157 = vmatpush2.msra.mxu0 0.0
    %1158 = vmatprep.subr.mxu0 0.0
    %1159 = vmatpush2.msra.mxu0 0.0
    %1160 = vmatprep.mubr.f32.mxu0 0.0
    %1161 = vmatmul.mubr.f32.gmra.mxu0 %v1094
    %v1162 = vpop.f32.mrf.mxu0
    %v1163 = vadd.f32 %v918, %v1162
    %v1164 = vpop.f32.mrf.mxu0
    %1165 = vdwg.mxu0
    %v1167 = vsel %vm565, %v878, 0
    %1169 = vmatprep.subr.mxu0 0.0
    %1170 = vmatpush1.msra.mxu0 0.0
    %1171 = vmatprep.subr.mxu0 0.0
    %1172 = vmatpush1.msra.mxu0 0.0
    %1173 = vmatprep.subr.mxu0 0.0
    %1174 = vmatpush1.msra.mxu0 0.0
    %1175 = vmatprep.subr.mxu0 0.0
    %1176 = vmatpush1.msra.mxu0 0.0
    %1177 = vmatprep.subr.mxu0 0.0
    %1178 = vmatpush1.msra.mxu0 0.0
    %1179 = vmatprep.subr.mxu0 0.0
    %1180 = vmatpush1.msra.mxu0 0.0
    %1181 = vmatprep.subr.mxu0 0.0
    %1182 = vmatpush1.msra.mxu0 0.0
    %1183 = vmatprep.subr.mxu0 0.0
    %1184 = vmatpush1.msra.mxu0 0.0
    %1185 = vmatprep.subr.mxu0 0.0
    %1186 = vmatpush1.msra.mxu0 0.0
    %1187 = vmatprep.subr.mxu0 0.0
    %1188 = vmatpush1.msra.mxu0 0.0
    %1189 = vmatprep.subr.mxu0 0.0
    %1190 = vmatpush1.msra.mxu0 0.0
    %1191 = vmatprep.subr.mxu0 0.0
    %1192 = vmatpush1.msra.mxu0 0.0
    %1193 = vmatprep.subr.mxu0 0.0
    %1194 = vmatpush1.msra.mxu0 0.0
    %1195 = vmatprep.subr.mxu0 0.0
    %1196 = vmatpush1.msra.mxu0 0.0
    %1197 = vmatprep.subr.mxu0 0.0
    %1198 = vmatpush1.msra.mxu0 0.0
    %1199 = vmatprep.subr.mxu0 0.0
    %1200 = vmatpush1.msra.mxu0 %v854
    %1201 = vmatprep.subr.mxu0 0.0
    %1202 = vmatpush2.msra.mxu0 0.0
    %1203 = vmatprep.subr.mxu0 0.0
    %1204 = vmatpush2.msra.mxu0 0.0
    %1205 = vmatprep.subr.mxu0 0.0
    %1206 = vmatpush2.msra.mxu0 0.0
    %1207 = vmatprep.subr.mxu0 0.0
    %1208 = vmatpush2.msra.mxu0 0.0
    %1209 = vmatprep.subr.mxu0 0.0
    %1210 = vmatpush2.msra.mxu0 0.0
    %1211 = vmatprep.subr.mxu0 0.0
    %1212 = vmatpush2.msra.mxu0 0.0
    %1213 = vmatprep.subr.mxu0 0.0
    %1214 = vmatpush2.msra.mxu0 0.0
    %1215 = vmatprep.subr.mxu0 0.0
    %1216 = vmatpush2.msra.mxu0 0.0
    %1217 = vmatprep.subr.mxu0 0.0
    %1218 = vmatpush2.msra.mxu0 0.0
    %1219 = vmatprep.subr.mxu0 0.0
    %1220 = vmatpush2.msra.mxu0 0.0
    %1221 = vmatprep.subr.mxu0 0.0
    %1222 = vmatpush2.msra.mxu0 0.0
    %1223 = vmatprep.subr.mxu0 0.0
    %1224 = vmatpush2.msra.mxu0 0.0
    %1225 = vmatprep.subr.mxu0 0.0
    %1226 = vmatpush2.msra.mxu0 0.0
    %1227 = vmatprep.subr.mxu0 0.0
    %1228 = vmatpush2.msra.mxu0 0.0
    %1229 = vmatprep.subr.mxu0 0.0
    %1230 = vmatpush2.msra.mxu0 0.0
    %1231 = vmatprep.subr.mxu0 0.0
    %1232 = vmatpush2.msra.mxu0 0.0
    %1233 = vmatprep.mubr.f32.mxu0 0.0
    %1234 = vmatmul.mubr.f32.gmra.mxu0 %v1167
    %v1235 = vpop.f32.mrf.mxu0
    %v1236 = vadd.f32 %v922, %v1235
    %v1237 = vpop.f32.mrf.mxu0
    %1238 = vdwg.mxu0
    %v1240 = vsel %vm565, %v879, 0
    %1242 = vmatprep.subr.mxu0 0.0
    %1243 = vmatpush1.msra.mxu0 0.0
    %1244 = vmatprep.subr.mxu0 0.0
    %1245 = vmatpush1.msra.mxu0 0.0
    %1246 = vmatprep.subr.mxu0 0.0
    %1247 = vmatpush1.msra.mxu0 0.0
    %1248 = vmatprep.subr.mxu0 0.0
    %1249 = vmatpush1.msra.mxu0 0.0
    %1250 = vmatprep.subr.mxu0 0.0
    %1251 = vmatpush1.msra.mxu0 0.0
    %1252 = vmatprep.subr.mxu0 0.0
    %1253 = vmatpush1.msra.mxu0 0.0
    %1254 = vmatprep.subr.mxu0 0.0
    %1255 = vmatpush1.msra.mxu0 0.0
    %1256 = vmatprep.subr.mxu0 0.0
    %1257 = vmatpush1.msra.mxu0 0.0
    %1258 = vmatprep.subr.mxu0 0.0
    %1259 = vmatpush1.msra.mxu0 0.0
    %1260 = vmatprep.subr.mxu0 0.0
    %1261 = vmatpush1.msra.mxu0 0.0
    %1262 = vmatprep.subr.mxu0 0.0
    %1263 = vmatpush1.msra.mxu0 0.0
    %1264 = vmatprep.subr.mxu0 0.0
    %1265 = vmatpush1.msra.mxu0 0.0
    %1266 = vmatprep.subr.mxu0 0.0
    %1267 = vmatpush1.msra.mxu0 0.0
    %1268 = vmatprep.subr.mxu0 0.0
    %1269 = vmatpush1.msra.mxu0 0.0
    %1270 = vmatprep.subr.mxu0 0.0
    %1271 = vmatpush1.msra.mxu0 0.0
    %1272 = vmatprep.subr.mxu0 0.0
    %1273 = vmatpush1.msra.mxu0 %v855
    %1274 = vmatprep.subr.mxu0 0.0
    %1275 = vmatpush2.msra.mxu0 0.0
    %1276 = vmatprep.subr.mxu0 0.0
    %1277 = vmatpush2.msra.mxu0 0.0
    %1278 = vmatprep.subr.mxu0 0.0
    %1279 = vmatpush2.msra.mxu0 0.0
    %1280 = vmatprep.subr.mxu0 0.0
    %1281 = vmatpush2.msra.mxu0 0.0
    %1282 = vmatprep.subr.mxu0 0.0
    %1283 = vmatpush2.msra.mxu0 0.0
    %1284 = vmatprep.subr.mxu0 0.0
    %1285 = vmatpush2.msra.mxu0 0.0
    %1286 = vmatprep.subr.mxu0 0.0
    %1287 = vmatpush2.msra.mxu0 0.0
    %1288 = vmatprep.subr.mxu0 0.0
    %1289 = vmatpush2.msra.mxu0 0.0
    %1290 = vmatprep.subr.mxu0 0.0
    %1291 = vmatpush2.msra.mxu0 0.0
    %1292 = vmatprep.subr.mxu0 0.0
    %1293 = vmatpush2.msra.mxu0 0.0
    %1294 = vmatprep.subr.mxu0 0.0
    %1295 = vmatpush2.msra.mxu0 0.0
    %1296 = vmatprep.subr.mxu0 0.0
    %1297 = vmatpush2.msra.mxu0 0.0
    %1298 = vmatprep.subr.mxu0 0.0
    %1299 = vmatpush2.msra.mxu0 0.0
    %1300 = vmatprep.subr.mxu0 0.0
    %1301 = vmatpush2.msra.mxu0 0.0
    %1302 = vmatprep.subr.mxu0 0.0
    %1303 = vmatpush2.msra.mxu0 0.0
    %1304 = vmatprep.subr.mxu0 0.0
    %1305 = vmatpush2.msra.mxu0 0.0
    %1306 = vmatprep.mubr.f32.mxu0 0.0
    %1307 = vmatmul.mubr.f32.gmra.mxu0 %v1240
    %v1308 = vpop.f32.mrf.mxu0
    %v1309 = vadd.f32 %v926, %v1308
    %v1310 = vpop.f32.mrf.mxu0
    %1311 = vdwg.mxu0
    %v1313 = vsel %vm565, %v880, 0
    %1315 = vmatprep.subr.mxu0 0.0
    %1316 = vmatpush1.msra.mxu0 0.0
    %1317 = vmatprep.subr.mxu0 0.0
    %1318 = vmatpush1.msra.mxu0 0.0
    %1319 = vmatprep.subr.mxu0 0.0
    %1320 = vmatpush1.msra.mxu0 0.0
    %1321 = vmatprep.subr.mxu0 0.0
    %1322 = vmatpush1.msra.mxu0 0.0
    %1323 = vmatprep.subr.mxu0 0.0
    %1324 = vmatpush1.msra.mxu0 0.0
    %1325 = vmatprep.subr.mxu0 0.0
    %1326 = vmatpush1.msra.mxu0 0.0
    %1327 = vmatprep.subr.mxu0 0.0
    %1328 = vmatpush1.msra.mxu0 0.0
    %1329 = vmatprep.subr.mxu0 0.0
    %1330 = vmatpush1.msra.mxu0 0.0
    %1331 = vmatprep.subr.mxu0 0.0
    %1332 = vmatpush1.msra.mxu0 0.0
    %1333 = vmatprep.subr.mxu0 0.0
    %1334 = vmatpush1.msra.mxu0 0.0
    %1335 = vmatprep.subr.mxu0 0.0
    %1336 = vmatpush1.msra.mxu0 0.0
    %1337 = vmatprep.subr.mxu0 0.0
    %1338 = vmatpush1.msra.mxu0 0.0
    %1339 = vmatprep.subr.mxu0 0.0
    %1340 = vmatpush1.msra.mxu0 0.0
    %1341 = vmatprep.subr.mxu0 0.0
    %1342 = vmatpush1.msra.mxu0 0.0
    %1343 = vmatprep.subr.mxu0 0.0
    %1344 = vmatpush1.msra.mxu0 0.0
    %1345 = vmatprep.subr.mxu0 0.0
    %1346 = vmatpush1.msra.mxu0 %v856
    %1347 = vmatprep.subr.mxu0 0.0
    %1348 = vmatpush2.msra.mxu0 0.0
    %1349 = vmatprep.subr.mxu0 0.0
    %1350 = vmatpush2.msra.mxu0 0.0
    %1351 = vmatprep.subr.mxu0 0.0
    %1352 = vmatpush2.msra.mxu0 0.0
    %1353 = vmatprep.subr.mxu0 0.0
    %1354 = vmatpush2.msra.mxu0 0.0
    %1355 = vmatprep.subr.mxu0 0.0
    %1356 = vmatpush2.msra.mxu0 0.0
    %1357 = vmatprep.subr.mxu0 0.0
    %1358 = vmatpush2.msra.mxu0 0.0
    %1359 = vmatprep.subr.mxu0 0.0
    %1360 = vmatpush2.msra.mxu0 0.0
    %1361 = vmatprep.subr.mxu0 0.0
    %1362 = vmatpush2.msra.mxu0 0.0
    %1363 = vmatprep.subr.mxu0 0.0
    %1364 = vmatpush2.msra.mxu0 0.0
    %1365 = vmatprep.subr.mxu0 0.0
    %1366 = vmatpush2.msra.mxu0 0.0
    %1367 = vmatprep.subr.mxu0 0.0
    %1368 = vmatpush2.msra.mxu0 0.0
    %1369 = vmatprep.subr.mxu0 0.0
    %1370 = vmatpush2.msra.mxu0 0.0
    %1371 = vmatprep.subr.mxu0 0.0
    %1372 = vmatpush2.msra.mxu0 0.0
    %1373 = vmatprep.subr.mxu0 0.0
    %1374 = vmatpush2.msra.mxu0 0.0
    %1375 = vmatprep.subr.mxu0 0.0
    %1376 = vmatpush2.msra.mxu0 0.0
    %1377 = vmatprep.subr.mxu0 0.0
    %1378 = vmatpush2.msra.mxu0 0.0
    %1379 = vmatprep.mubr.f32.mxu0 0.0
    %1380 = vmatmul.mubr.f32.gmra.mxu0 %v1313
    %v1381 = vpop.f32.mrf.mxu0
    %v1382 = vadd.f32 %v930, %v1381
    %v1383 = vpop.f32.mrf.mxu0
    %1384 = vdwg.mxu0
    %v1386 = vsel %vm565, %v881, 0
    %1388 = vmatprep.subr.mxu0 0.0
    %1389 = vmatpush1.msra.mxu0 0.0
    %1390 = vmatprep.subr.mxu0 0.0
    %1391 = vmatpush1.msra.mxu0 0.0
    %1392 = vmatprep.subr.mxu0 0.0
    %1393 = vmatpush1.msra.mxu0 0.0
    %1394 = vmatprep.subr.mxu0 0.0
    %1395 = vmatpush1.msra.mxu0 0.0
    %1396 = vmatprep.subr.mxu0 0.0
    %1397 = vmatpush1.msra.mxu0 0.0
    %1398 = vmatprep.subr.mxu0 0.0
    %1399 = vmatpush1.msra.mxu0 0.0
    %1400 = vmatprep.subr.mxu0 0.0
    %1401 = vmatpush1.msra.mxu0 0.0
    %1402 = vmatprep.subr.mxu0 0.0
    %1403 = vmatpush1.msra.mxu0 0.0
    %1404 = vmatprep.subr.mxu0 0.0
    %1405 = vmatpush1.msra.mxu0 0.0
    %1406 = vmatprep.subr.mxu0 0.0
    %1407 = vmatpush1.msra.mxu0 0.0
    %1408 = vmatprep.subr.mxu0 0.0
    %1409 = vmatpush1.msra.mxu0 0.0
    %1410 = vmatprep.subr.mxu0 0.0
    %1411 = vmatpush1.msra.mxu0 0.0
    %1412 = vmatprep.subr.mxu0 0.0
    %1413 = vmatpush1.msra.mxu0 0.0
    %1414 = vmatprep.subr.mxu0 0.0
    %1415 = vmatpush1.msra.mxu0 0.0
    %1416 = vmatprep.subr.mxu0 0.0
    %1417 = vmatpush1.msra.mxu0 0.0
    %1418 = vmatprep.subr.mxu0 0.0
    %1419 = vmatpush1.msra.mxu0 %v857
    %1420 = vmatprep.subr.mxu0 0.0
    %1421 = vmatpush2.msra.mxu0 0.0
    %1422 = vmatprep.subr.mxu0 0.0
    %1423 = vmatpush2.msra.mxu0 0.0
    %1424 = vmatprep.subr.mxu0 0.0
    %1425 = vmatpush2.msra.mxu0 0.0
    %1426 = vmatprep.subr.mxu0 0.0
    %1427 = vmatpush2.msra.mxu0 0.0
    %1428 = vmatprep.subr.mxu0 0.0
    %1429 = vmatpush2.msra.mxu0 0.0
    %1430 = vmatprep.subr.mxu0 0.0
    %1431 = vmatpush2.msra.mxu0 0.0
    %1432 = vmatprep.subr.mxu0 0.0
    %1433 = vmatpush2.msra.mxu0 0.0
    %1434 = vmatprep.subr.mxu0 0.0
    %1435 = vmatpush2.msra.mxu0 0.0
    %1436 = vmatprep.subr.mxu0 0.0
    %1437 = vmatpush2.msra.mxu0 0.0
    %1438 = vmatprep.subr.mxu0 0.0
    %1439 = vmatpush2.msra.mxu0 0.0
    %1440 = vmatprep.subr.mxu0 0.0
    %1441 = vmatpush2.msra.mxu0 0.0
    %1442 = vmatprep.subr.mxu0 0.0
    %1443 = vmatpush2.msra.mxu0 0.0
    %1444 = vmatprep.subr.mxu0 0.0
    %1445 = vmatpush2.msra.mxu0 0.0
    %1446 = vmatprep.subr.mxu0 0.0
    %1447 = vmatpush2.msra.mxu0 0.0
    %1448 = vmatprep.subr.mxu0 0.0
    %1449 = vmatpush2.msra.mxu0 0.0
    %1450 = vmatprep.subr.mxu0 0.0
    %1451 = vmatpush2.msra.mxu0 0.0
    %1452 = vmatprep.mubr.f32.mxu0 0.0
    %1453 = vmatmul.mubr.f32.gmra.mxu0 %v1386
    %v1454 = vpop.f32.mrf.mxu0
    %v1455 = vadd.f32 %v934, %v1454
    %v1456 = vpop.f32.mrf.mxu0
    %1457 = vdwg.mxu0
    %v1459 = vsel %vm565, %v882, 0
    %1461 = vmatprep.subr.mxu0 0.0
    %1462 = vmatpush1.msra.mxu0 0.0
    %1463 = vmatprep.subr.mxu0 0.0
    %1464 = vmatpush1.msra.mxu0 0.0
    %1465 = vmatprep.subr.mxu0 0.0
    %1466 = vmatpush1.msra.mxu0 0.0
    %1467 = vmatprep.subr.mxu0 0.0
    %1468 = vmatpush1.msra.mxu0 0.0
    %1469 = vmatprep.subr.mxu0 0.0
    %1470 = vmatpush1.msra.mxu0 0.0
    %1471 = vmatprep.subr.mxu0 0.0
    %1472 = vmatpush1.msra.mxu0 0.0
    %1473 = vmatprep.subr.mxu0 0.0
    %1474 = vmatpush1.msra.mxu0 0.0
    %1475 = vmatprep.subr.mxu0 0.0
    %1476 = vmatpush1.msra.mxu0 0.0
    %1477 = vmatprep.subr.mxu0 0.0
    %1478 = vmatpush1.msra.mxu0 0.0
    %1479 = vmatprep.subr.mxu0 0.0
    %1480 = vmatpush1.msra.mxu0 0.0
    %1481 = vmatprep.subr.mxu0 0.0
    %1482 = vmatpush1.msra.mxu0 0.0
    %1483 = vmatprep.subr.mxu0 0.0
    %1484 = vmatpush1.msra.mxu0 0.0
    %1485 = vmatprep.subr.mxu0 0.0
    %1486 = vmatpush1.msra.mxu0 0.0
    %1487 = vmatprep.subr.mxu0 0.0
    %1488 = vmatpush1.msra.mxu0 0.0
    %1489 = vmatprep.subr.mxu0 0.0
    %1490 = vmatpush1.msra.mxu0 0.0
    %1491 = vmatprep.subr.mxu0 0.0
    %1492 = vmatpush1.msra.mxu0 %v858
    %1493 = vmatprep.subr.mxu0 0.0
    %1494 = vmatpush2.msra.mxu0 0.0
    %1495 = vmatprep.subr.mxu0 0.0
    %1496 = vmatpush2.msra.mxu0 0.0
    %1497 = vmatprep.subr.mxu0 0.0
    %1498 = vmatpush2.msra.mxu0 0.0
    %1499 = vmatprep.subr.mxu0 0.0
    %1500 = vmatpush2.msra.mxu0 0.0
    %1501 = vmatprep.subr.mxu0 0.0
    %1502 = vmatpush2.msra.mxu0 0.0
    %1503 = vmatprep.subr.mxu0 0.0
    %1504 = vmatpush2.msra.mxu0 0.0
    %1505 = vmatprep.subr.mxu0 0.0
    %1506 = vmatpush2.msra.mxu0 0.0
    %1507 = vmatprep.subr.mxu0 0.0
    %1508 = vmatpush2.msra.mxu0 0.0
    %1509 = vmatprep.subr.mxu0 0.0
    %1510 = vmatpush2.msra.mxu0 0.0
    %1511 = vmatprep.subr.mxu0 0.0
    %1512 = vmatpush2.msra.mxu0 0.0
    %1513 = vmatprep.subr.mxu0 0.0
    %1514 = vmatpush2.msra.mxu0 0.0
    %1515 = vmatprep.subr.mxu0 0.0
    %1516 = vmatpush2.msra.mxu0 0.0
    %1517 = vmatprep.subr.mxu0 0.0
    %1518 = vmatpush2.msra.mxu0 0.0
    %1519 = vmatprep.subr.mxu0 0.0
    %1520 = vmatpush2.msra.mxu0 0.0
    %1521 = vmatprep.subr.mxu0 0.0
    %1522 = vmatpush2.msra.mxu0 0.0
    %1523 = vmatprep.subr.mxu0 0.0
    %1524 = vmatpush2.msra.mxu0 0.0
    %1525 = vmatprep.mubr.f32.mxu0 0.0
    %1526 = vmatmul.mubr.f32.gmra.mxu0 %v1459
    %v1527 = vpop.f32.mrf.mxu0
    %v1528 = vadd.f32 %v938, %v1527
    %v1529 = vpop.f32.mrf.mxu0
    %1530 = vdwg.mxu0
    %v1531 = vsub.f32 %v883, %v875
    %v1532 = vsub.f32 %v884, %v876
    %v1533 = vsub.f32 %v885, %v877
    %v1534 = vsub.f32 %v886, %v878
    %v1535 = vsub.f32 %v887, %v879
    %v1536 = vsub.f32 %v888, %v880
    %v1537 = vsub.f32 %v889, %v881
    %v1538 = vsub.f32 %v890, %v882
    %v1539 = vsel %vm565, %v1017, 0.0
    %1540 = vadd.xlane.f32.xlu0 %v1539
    %v1541 = vpop.xlane.xlu0 %1540
    %v1542 = vsel %vm565, %v1090, 0.0
    %1543 = vadd.xlane.f32.xlu0 %v1542
    %v1544 = vpop.xlane.xlu0 %1543
    %v1545 = vsel %vm565, %v1163, 0.0
    %1546 = vadd.xlane.f32.xlu0 %v1545
    %v1547 = vpop.xlane.xlu0 %1546
    %v1548 = vsel %vm565, %v1236, 0.0
    %1549 = vadd.xlane.f32.xlu0 %v1548
    %v1550 = vpop.xlane.xlu0 %1549
    %v1551 = vsel %vm565, %v1309, 0.0
    %1552 = vadd.xlane.f32.xlu0 %v1551
    %v1553 = vpop.xlane.xlu0 %1552
    %v1554 = vsel %vm565, %v1382, 0.0
    %1555 = vadd.xlane.f32.xlu0 %v1554
    %v1556 = vpop.xlane.xlu0 %1555
    %v1557 = vsel %vm565, %v1455, 0.0
    %1558 = vadd.xlane.f32.xlu0 %v1557
    %v1559 = vpop.xlane.xlu0 %1558
    %v1560 = vsel %vm565, %v1528, 0.0
    %1561 = vadd.xlane.f32.xlu0 %v1560
    %v1562 = vpop.xlane.xlu0 %1561
    %v1563 = vrcp.pop 8.0
    %v1564 = vmul.f32 %v1541, %v1563
    %v1565 = vmul.f32 %v1544, %v1563
    %v1566 = vmul.f32 %v1547, %v1563
    %v1567 = vmul.f32 %v1550, %v1563
    %v1568 = vmul.f32 %v1553, %v1563
    %v1569 = vmul.f32 %v1556, %v1563
    %v1570 = vmul.f32 %v1559, %v1563
    %v1571 = vmul.f32 %v1562, %v1563
    %v1572 = vsub.f32 %v1017, %v1564
    %v1573 = vsub.f32 %v1090, %v1565
    %v1574 = vsub.f32 %v1163, %v1566
    %v1575 = vsub.f32 %v1236, %v1567
    %v1576 = vsub.f32 %v1309, %v1568
    %v1577 = vsub.f32 %v1382, %v1569
    %v1578 = vsub.f32 %v1455, %v1570
    %v1579 = vsub.f32 %v1528, %v1571
    %v1580 = vmul.f32 %v1572, %v1572
    %v1581 = vmul.f32 %v1573, %v1573
    %v1582 = vmul.f32 %v1574, %v1574
    %v1583 = vmul.f32 %v1575, %v1575
    %v1584 = vmul.f32 %v1576, %v1576
    %v1585 = vmul.f32 %v1577, %v1577
    %v1586 = vmul.f32 %v1578, %v1578
    %v1587 = vmul.f32 %v1579, %v1579
    %v1588 = vsel %vm565, %v1580, 0.0
    %1589 = vadd.xlane.f32.xlu0 %v1588
    %v1590 = vpop.xlane.xlu0 %1589
    %v1591 = vsel %vm565, %v1581, 0.0
    %1592 = vadd.xlane.f32.xlu0 %v1591
    %v1593 = vpop.xlane.xlu0 %1592
    %v1594 = vsel %vm565, %v1582, 0.0
    %1595 = vadd.xlane.f32.xlu0 %v1594
    %v1596 = vpop.xlane.xlu0 %1595
    %v1597 = vsel %vm565, %v1583, 0.0
    %1598 = vadd.xlane.f32.xlu0 %v1597
    %v1599 = vpop.xlane.xlu0 %1598
    %v1600 = vsel %vm565, %v1584, 0.0
    %1601 = vadd.xlane.f32.xlu0 %v1600
    %v1602 = vpop.xlane.xlu0 %1601
    %v1603 = vsel %vm565, %v1585, 0.0
    %1604 = vadd.xlane.f32.xlu0 %v1603
    %v1605 = vpop.xlane.xlu0 %1604
    %v1606 = vsel %vm565, %v1586, 0.0
    %1607 = vadd.xlane.f32.xlu0 %v1606
    %v1608 = vpop.xlane.xlu0 %1607
    %v1609 = vsel %vm565, %v1587, 0.0
    %1610 = vadd.xlane.f32.xlu0 %v1609
    %v1611 = vpop.xlane.xlu0 %1610
    %v1612 = vmul.f32 %v1590, %v1563
    %v1613 = vmul.f32 %v1593, %v1563
    %v1614 = vmul.f32 %v1596, %v1563
    %v1615 = vmul.f32 %v1599, %v1563
    %v1616 = vmul.f32 %v1602, %v1563
    %v1617 = vmul.f32 %v1605, %v1563
    %v1618 = vmul.f32 %v1608, %v1563
    %v1619 = vmul.f32 %v1611, %v1563
    %v1620 = vadd.f32 %v1612, 1e-06
    %v1621 = vadd.f32 %v1613, 1e-06
    %v1622 = vadd.f32 %v1614, 1e-06
    %v1623 = vadd.f32 %v1615, 1e-06
    %v1624 = vadd.f32 %v1616, 1e-06
    %v1625 = vadd.f32 %v1617, 1e-06
    %v1626 = vadd.f32 %v1618, 1e-06
    %v1627 = vadd.f32 %v1619, 1e-06
    %v1628 = vrsqrt.pop %v1620
    %v1629 = vrsqrt.pop %v1621
    %v1630 = vrsqrt.pop %v1622
    %v1631 = vrsqrt.pop %v1623
    %v1632 = vrsqrt.pop %v1624
    %v1633 = vrsqrt.pop %v1625
    %v1634 = vrsqrt.pop %v1626
    %v1635 = vrsqrt.pop %v1627
    %v1636 = vmul.f32 %v1572, %v1628
    %v1637 = vmul.f32 %v1573, %v1629
    %v1638 = vmul.f32 %v1574, %v1630
    %v1639 = vmul.f32 %v1575, %v1631
    %v1640 = vmul.f32 %v1576, %v1632
    %v1641 = vmul.f32 %v1577, %v1633
    %v1642 = vmul.f32 %v1578, %v1634
    %v1643 = vmul.f32 %v1579, %v1635
    %v1652 = vlaneseq
    %v1653 = vshrl.u32 %v1652, 7
    %v1654 = vsub.s32 0, %v1653
    %v1655 = vrot.slane %v826, %v1654
    %v1656 = vlaneseq
    %v1657 = vshrl.u32 %v1656, 7
    %v1658 = vsub.s32 0, %v1657
    %v1659 = vrot.slane %v827, %v1658
    %v1660 = vlaneseq
    %v1661 = vshrl.u32 %v1660, 7
    %v1662 = vsub.s32 0, %v1661
    %v1663 = vrot.slane %v828, %v1662
    %v1664 = vlaneseq
    %v1665 = vshrl.u32 %v1664, 7
    %v1666 = vsub.s32 0, %v1665
    %v1667 = vrot.slane %v829, %v1666
    %v1668 = vlaneseq
    %v1669 = vshrl.u32 %v1668, 7
    %v1670 = vsub.s32 0, %v1669
    %v1671 = vrot.slane %v830, %v1670
    %v1672 = vlaneseq
    %v1673 = vshrl.u32 %v1672, 7
    %v1674 = vsub.s32 0, %v1673
    %v1675 = vrot.slane %v831, %v1674
    %v1676 = vlaneseq
    %v1677 = vshrl.u32 %v1676, 7
    %v1678 = vsub.s32 0, %v1677
    %v1679 = vrot.slane %v832, %v1678
    %v1680 = vlaneseq
    %v1681 = vshrl.u32 %v1680, 7
    %v1682 = vsub.s32 0, %v1681
    %v1683 = vrot.slane %v833, %v1682
    %v1692 = vmul.f32 %v1655, %v1636
    %v1693 = vmul.f32 %v1659, %v1637
    %v1694 = vmul.f32 %v1663, %v1638
    %v1695 = vmul.f32 %v1667, %v1639
    %v1696 = vmul.f32 %v1671, %v1640
    %v1697 = vmul.f32 %v1675, %v1641
    %v1698 = vmul.f32 %v1679, %v1642
    %v1699 = vmul.f32 %v1683, %v1643
    %v1708 = vlaneseq
    %v1709 = vshrl.u32 %v1708, 7
    %v1710 = vsub.s32 0, %v1709
    %v1711 = vrot.slane %v834, %v1710
    %v1712 = vlaneseq
    %v1713 = vshrl.u32 %v1712, 7
    %v1714 = vsub.s32 0, %v1713
    %v1715 = vrot.slane %v835, %v1714
    %v1716 = vlaneseq
    %v1717 = vshrl.u32 %v1716, 7
    %v1718 = vsub.s32 0, %v1717
    %v1719 = vrot.slane %v836, %v1718
    %v1720 = vlaneseq
    %v1721 = vshrl.u32 %v1720, 7
    %v1722 = vsub.s32 0, %v1721
    %v1723 = vrot.slane %v837, %v1722
    %v1724 = vlaneseq
    %v1725 = vshrl.u32 %v1724, 7
    %v1726 = vsub.s32 0, %v1725
    %v1727 = vrot.slane %v838, %v1726
    %v1728 = vlaneseq
    %v1729 = vshrl.u32 %v1728, 7
    %v1730 = vsub.s32 0, %v1729
    %v1731 = vrot.slane %v839, %v1730
    %v1732 = vlaneseq
    %v1733 = vshrl.u32 %v1732, 7
    %v1734 = vsub.s32 0, %v1733
    %v1735 = vrot.slane %v840, %v1734
    %v1736 = vlaneseq
    %v1737 = vshrl.u32 %v1736, 7
    %v1738 = vsub.s32 0, %v1737
    %v1739 = vrot.slane %v841, %v1738
    %v1748 = vadd.f32 %v1692, %v1711
    %v1749 = vadd.f32 %v1693, %v1715
    %v1750 = vadd.f32 %v1694, %v1719
    %v1751 = vadd.f32 %v1695, %v1723
    %v1752 = vadd.f32 %v1696, %v1727
    %v1753 = vadd.f32 %v1697, %v1731
    %v1754 = vadd.f32 %v1698, %v1735
    %v1755 = vadd.f32 %v1699, %v1739
    %v1756 = vsub.f32 %v1748, %v1531
    %v1757 = vsub.f32 %v1749, %v1532
    %v1758 = vsub.f32 %v1750, %v1533
    %v1759 = vsub.f32 %v1751, %v1534
    %v1760 = vsub.f32 %v1752, %v1535
    %v1761 = vsub.f32 %v1753, %v1536
    %v1762 = vsub.f32 %v1754, %v1537
    %v1763 = vsub.f32 %v1755, %v1538
    %v1764 = vmul.f32 %v1756, %v1655
    %v1765 = vmul.f32 %v1757, %v1659
    %v1766 = vmul.f32 %v1758, %v1663
    %v1767 = vmul.f32 %v1759, %v1667
    %v1768 = vmul.f32 %v1760, %v1671
    %v1769 = vmul.f32 %v1761, %v1675
    %v1770 = vmul.f32 %v1762, %v1679
    %v1771 = vmul.f32 %v1763, %v1683
    %v1772 = vmul.f32 %v1764, 8.0
    %v1773 = vmul.f32 %v1765, 8.0
    %v1774 = vmul.f32 %v1766, 8.0
    %v1775 = vmul.f32 %v1767, 8.0
    %v1776 = vmul.f32 %v1768, 8.0
    %v1777 = vmul.f32 %v1769, 8.0
    %v1778 = vmul.f32 %v1770, 8.0
    %v1779 = vmul.f32 %v1771, 8.0
    %v1780 = vsel %vm565, %v1764, 0.0
    %1781 = vadd.xlane.f32.xlu0 %v1780
    %v1782 = vpop.xlane.xlu0 %1781
    %v1783 = vsel %vm565, %v1765, 0.0
    %1784 = vadd.xlane.f32.xlu0 %v1783
    %v1785 = vpop.xlane.xlu0 %1784
    %v1786 = vsel %vm565, %v1766, 0.0
    %1787 = vadd.xlane.f32.xlu0 %v1786
    %v1788 = vpop.xlane.xlu0 %1787
    %v1789 = vsel %vm565, %v1767, 0.0
    %1790 = vadd.xlane.f32.xlu0 %v1789
    %v1791 = vpop.xlane.xlu0 %1790
    %v1792 = vsel %vm565, %v1768, 0.0
    %1793 = vadd.xlane.f32.xlu0 %v1792
    %v1794 = vpop.xlane.xlu0 %1793
    %v1795 = vsel %vm565, %v1769, 0.0
    %1796 = vadd.xlane.f32.xlu0 %v1795
    %v1797 = vpop.xlane.xlu0 %1796
    %v1798 = vsel %vm565, %v1770, 0.0
    %1799 = vadd.xlane.f32.xlu0 %v1798
    %v1800 = vpop.xlane.xlu0 %1799
    %v1801 = vsel %vm565, %v1771, 0.0
    %1802 = vadd.xlane.f32.xlu0 %v1801
    %v1803 = vpop.xlane.xlu0 %1802
    %v1804 = vsub.f32 %v1772, %v1782
    %v1805 = vsub.f32 %v1773, %v1785
    %v1806 = vsub.f32 %v1774, %v1788
    %v1807 = vsub.f32 %v1775, %v1791
    %v1808 = vsub.f32 %v1776, %v1794
    %v1809 = vsub.f32 %v1777, %v1797
    %v1810 = vsub.f32 %v1778, %v1800
    %v1811 = vsub.f32 %v1779, %v1803
    %v1812 = vmul.f32 %v1764, %v1636
    %v1813 = vmul.f32 %v1765, %v1637
    %v1814 = vmul.f32 %v1766, %v1638
    %v1815 = vmul.f32 %v1767, %v1639
    %v1816 = vmul.f32 %v1768, %v1640
    %v1817 = vmul.f32 %v1769, %v1641
    %v1818 = vmul.f32 %v1770, %v1642
    %v1819 = vmul.f32 %v1771, %v1643
    %v1820 = vsel %vm565, %v1812, 0.0
    %1821 = vadd.xlane.f32.xlu0 %v1820
    %v1822 = vpop.xlane.xlu0 %1821
    %v1823 = vsel %vm565, %v1813, 0.0
    %1824 = vadd.xlane.f32.xlu0 %v1823
    %v1825 = vpop.xlane.xlu0 %1824
    %v1826 = vsel %vm565, %v1814, 0.0
    %1827 = vadd.xlane.f32.xlu0 %v1826
    %v1828 = vpop.xlane.xlu0 %1827
    %v1829 = vsel %vm565, %v1815, 0.0
    %1830 = vadd.xlane.f32.xlu0 %v1829
    %v1831 = vpop.xlane.xlu0 %1830
    %v1832 = vsel %vm565, %v1816, 0.0
    %1833 = vadd.xlane.f32.xlu0 %v1832
    %v1834 = vpop.xlane.xlu0 %1833
    %v1835 = vsel %vm565, %v1817, 0.0
    %1836 = vadd.xlane.f32.xlu0 %v1835
    %v1837 = vpop.xlane.xlu0 %1836
    %v1838 = vsel %vm565, %v1818, 0.0
    %1839 = vadd.xlane.f32.xlu0 %v1838
    %v1840 = vpop.xlane.xlu0 %1839
    %v1841 = vsel %vm565, %v1819, 0.0
    %1842 = vadd.xlane.f32.xlu0 %v1841
    %v1843 = vpop.xlane.xlu0 %1842
    %v1844 = vmul.f32 %v1636, %v1822
    %v1845 = vmul.f32 %v1637, %v1825
    %v1846 = vmul.f32 %v1638, %v1828
    %v1847 = vmul.f32 %v1639, %v1831
    %v1848 = vmul.f32 %v1640, %v1834
    %v1849 = vmul.f32 %v1641, %v1837
    %v1850 = vmul.f32 %v1642, %v1840
    %v1851 = vmul.f32 %v1643, %v1843
    %v1852 = vsub.f32 %v1804, %v1844
    %v1853 = vsub.f32 %v1805, %v1845
    %v1854 = vsub.f32 %v1806, %v1846
    %v1855 = vsub.f32 %v1807, %v1847
    %v1856 = vsub.f32 %v1808, %v1848
    %v1857 = vsub.f32 %v1809, %v1849
    %v1858 = vsub.f32 %v1810, %v1850
    %v1859 = vsub.f32 %v1811, %v1851
    %v1860 = vmul.f32 %v1628, %v1563
    %v1861 = vmul.f32 %v1629, %v1563
    %v1862 = vmul.f32 %v1630, %v1563
    %v1863 = vmul.f32 %v1631, %v1563
    %v1864 = vmul.f32 %v1632, %v1563
    %v1865 = vmul.f32 %v1633, %v1563
    %v1866 = vmul.f32 %v1634, %v1563
    %v1867 = vmul.f32 %v1635, %v1563
    %v1868 = vmul.f32 %v1852, %v1860
    %v1869 = vmul.f32 %v1853, %v1861
    %v1870 = vmul.f32 %v1854, %v1862
    %v1871 = vmul.f32 %v1855, %v1863
    %v1872 = vmul.f32 %v1856, %v1864
    %v1873 = vmul.f32 %v1857, %v1865
    %v1874 = vmul.f32 %v1858, %v1866
    %v1875 = vmul.f32 %v1859, %v1867
    %1877 = vset.pattern.permute.xlu0 0
    %1878 = vperm.xlu0 %1877, %v891
    %v1879 = vpop.permute.xlu0 %1878
    %1882 = vset.pattern.permute.xlu0 0
    %1883 = vperm.xlu0 %1882, %v892
    %v1884 = vpop.permute.xlu0 %1883
    %1887 = vset.pattern.permute.xlu0 0
    %1888 = vperm.xlu0 %1887, %v893
    %v1889 = vpop.permute.xlu0 %1888
    %1892 = vset.pattern.permute.xlu0 0
    %1893 = vperm.xlu0 %1892, %v894
    %v1894 = vpop.permute.xlu0 %1893
    %1897 = vset.pattern.permute.xlu0 0
    %1898 = vperm.xlu0 %1897, %v895
    %v1899 = vpop.permute.xlu0 %1898
    %1902 = vset.pattern.permute.xlu0 0
    %1903 = vperm.xlu0 %1902, %v896
    %v1904 = vpop.permute.xlu0 %1903
    %1907 = vset.pattern.permute.xlu0 0
    %1908 = vperm.xlu0 %1907, %v897
    %v1909 = vpop.permute.xlu0 %1908
    %1912 = vset.pattern.permute.xlu0 0
    %1913 = vperm.xlu0 %1912, %v898
    %v1914 = vpop.permute.xlu0 %1913
    %v1916 = vmul.f32 %v1879, %v1868
    %v1917 = vmul.f32 %v1884, %v1869
    %v1918 = vmul.f32 %v1889, %v1870
    %v1919 = vmul.f32 %v1894, %v1871
    %v1920 = vmul.f32 %v1899, %v1872
    %v1921 = vmul.f32 %v1904, %v1873
    %v1922 = vmul.f32 %v1909, %v1874
    %v1923 = vmul.f32 %v1914, %v1875
    %v1925 = vsel %vm565, %v850, 0
    %1927 = vmatprep.subr.mxu0 0.0
    %1928 = vmatpush1.msra.mxu0 0.0
    %1929 = vmatprep.subr.mxu0 0.0
    %1930 = vmatpush1.msra.mxu0 0.0
    %1931 = vmatprep.subr.mxu0 0.0
    %1932 = vmatpush1.msra.mxu0 0.0
    %1933 = vmatprep.subr.mxu0 0.0
    %1934 = vmatpush1.msra.mxu0 0.0
    %1935 = vmatprep.subr.mxu0 0.0
    %1936 = vmatpush1.msra.mxu0 0.0
    %1937 = vmatprep.subr.mxu0 0.0
    %1938 = vmatpush1.msra.mxu0 0.0
    %1939 = vmatprep.subr.mxu0 0.0
    %1940 = vmatpush1.msra.mxu0 0.0
    %1941 = vmatprep.subr.mxu0 0.0
    %1942 = vmatpush1.msra.mxu0 0.0
    %1943 = vmatprep.subr.mxu0 0.0
    %1944 = vmatpush1.msra.mxu0 0.0
    %1945 = vmatprep.subr.mxu0 0.0
    %1946 = vmatpush1.msra.mxu0 0.0
    %1947 = vmatprep.subr.mxu0 0.0
    %1948 = vmatpush1.msra.mxu0 0.0
    %1949 = vmatprep.subr.mxu0 0.0
    %1950 = vmatpush1.msra.mxu0 0.0
    %1951 = vmatprep.subr.mxu0 0.0
    %1952 = vmatpush1.msra.mxu0 0.0
    %1953 = vmatprep.subr.mxu0 0.0
    %1954 = vmatpush1.msra.mxu0 0.0
    %1955 = vmatprep.subr.mxu0 0.0
    %1956 = vmatpush1.msra.mxu0 0.0
    %1957 = vmatprep.subr.mxu0 0.0
    %1958 = vmatpush1.msra.mxu0 %v1868
    %1959 = vmatprep.subr.mxu0 0.0
    %1960 = vmatpush2.msra.mxu0 0.0
    %1961 = vmatprep.subr.mxu0 0.0
    %1962 = vmatpush2.msra.mxu0 0.0
    %1963 = vmatprep.subr.mxu0 0.0
    %1964 = vmatpush2.msra.mxu0 0.0
    %1965 = vmatprep.subr.mxu0 0.0
    %1966 = vmatpush2.msra.mxu0 0.0
    %1967 = vmatprep.subr.mxu0 0.0
    %1968 = vmatpush2.msra.mxu0 0.0
    %1969 = vmatprep.subr.mxu0 0.0
    %1970 = vmatpush2.msra.mxu0 0.0
    %1971 = vmatprep.subr.mxu0 0.0
    %1972 = vmatpush2.msra.mxu0 0.0
    %1973 = vmatprep.subr.mxu0 0.0
    %1974 = vmatpush2.msra.mxu0 0.0
    %1975 = vmatprep.subr.mxu0 0.0
    %1976 = vmatpush2.msra.mxu0 0.0
    %1977 = vmatprep.subr.mxu0 0.0
    %1978 = vmatpush2.msra.mxu0 0.0
    %1979 = vmatprep.subr.mxu0 0.0
    %1980 = vmatpush2.msra.mxu0 0.0
    %1981 = vmatprep.subr.mxu0 0.0
    %1982 = vmatpush2.msra.mxu0 0.0
    %1983 = vmatprep.subr.mxu0 0.0
    %1984 = vmatpush2.msra.mxu0 0.0
    %1985 = vmatprep.subr.mxu0 0.0
    %1986 = vmatpush2.msra.mxu0 0.0
    %1987 = vmatprep.subr.mxu0 0.0
    %1988 = vmatpush2.msra.mxu0 0.0
    %1989 = vmatprep.subr.mxu0 0.0
    %1990 = vmatpush2.msra.mxu0 0.0
    %1991 = vmatprep.mubr.f32.mxu0 0.0
    %1992 = vmatmul.mubr.f32.gmra.mxu0 %v1925
    %v1993 = vpop.f32.mrf.mxu0
    %v1994 = vadd.f32 0.0, %v1993
    %v1995 = vpop.f32.mrf.mxu0
    %1996 = vdwg.mxu0
    %1997 = vmatprep.subr.mxu0 0.0
    %1998 = vmatpush1.msra.mxu0 0.0
    %1999 = vmatprep.subr.mxu0 0.0
    %2000 = vmatpush1.msra.mxu0 0.0
    %2001 = vmatprep.subr.mxu0 0.0
    %2002 = vmatpush1.msra.mxu0 0.0
    %2003 = vmatprep.subr.mxu0 0.0
    %2004 = vmatpush1.msra.mxu0 0.0
    %2005 = vmatprep.subr.mxu0 0.0
    %2006 = vmatpush1.msra.mxu0 0.0
    %2007 = vmatprep.subr.mxu0 0.0
    %2008 = vmatpush1.msra.mxu0 0.0
    %2009 = vmatprep.subr.mxu0 0.0
    %2010 = vmatpush1.msra.mxu0 0.0
    %2011 = vmatprep.subr.mxu0 0.0
    %2012 = vmatpush1.msra.mxu0 0.0
    %2013 = vmatprep.subr.mxu0 0.0
    %2014 = vmatpush1.msra.mxu0 0.0
    %2015 = vmatprep.subr.mxu0 0.0
    %2016 = vmatpush1.msra.mxu0 0.0
    %2017 = vmatprep.subr.mxu0 0.0
    %2018 = vmatpush1.msra.mxu0 0.0
    %2019 = vmatprep.subr.mxu0 0.0
    %2020 = vmatpush1.msra.mxu0 0.0
    %2021 = vmatprep.subr.mxu0 0.0
    %2022 = vmatpush1.msra.mxu0 0.0
    %2023 = vmatprep.subr.mxu0 0.0
    %2024 = vmatpush1.msra.mxu0 0.0
    %2025 = vmatprep.subr.mxu0 0.0
    %2026 = vmatpush1.msra.mxu0 0.0
    %2027 = vmatprep.subr.mxu0 0.0
    %2028 = vmatpush1.msra.mxu0 %v1869
    %2029 = vmatprep.subr.mxu0 0.0
    %2030 = vmatpush2.msra.mxu0 0.0
    %2031 = vmatprep.subr.mxu0 0.0
    %2032 = vmatpush2.msra.mxu0 0.0
    %2033 = vmatprep.subr.mxu0 0.0
    %2034 = vmatpush2.msra.mxu0 0.0
    %2035 = vmatprep.subr.mxu0 0.0
    %2036 = vmatpush2.msra.mxu0 0.0
    %2037 = vmatprep.subr.mxu0 0.0
    %2038 = vmatpush2.msra.mxu0 0.0
    %2039 = vmatprep.subr.mxu0 0.0
    %2040 = vmatpush2.msra.mxu0 0.0
    %2041 = vmatprep.subr.mxu0 0.0
    %2042 = vmatpush2.msra.mxu0 0.0
    %2043 = vmatprep.subr.mxu0 0.0
    %2044 = vmatpush2.msra.mxu0 0.0
    %2045 = vmatprep.subr.mxu0 0.0
    %2046 = vmatpush2.msra.mxu0 0.0
    %2047 = vmatprep.subr.mxu0 0.0
    %2048 = vmatpush2.msra.mxu0 0.0
    %2049 = vmatprep.subr.mxu0 0.0
    %2050 = vmatpush2.msra.mxu0 0.0
    %2051 = vmatprep.subr.mxu0 0.0
    %2052 = vmatpush2.msra.mxu0 0.0
    %2053 = vmatprep.subr.mxu0 0.0
    %2054 = vmatpush2.msra.mxu0 0.0
    %2055 = vmatprep.subr.mxu0 0.0
    %2056 = vmatpush2.msra.mxu0 0.0
    %2057 = vmatprep.subr.mxu0 0.0
    %2058 = vmatpush2.msra.mxu0 0.0
    %2059 = vmatprep.subr.mxu0 0.0
    %2060 = vmatpush2.msra.mxu0 0.0
    %2061 = vmatprep.mubr.f32.mxu0 0.0
    %2062 = vmatmul.mubr.f32.gmra.mxu0 %v1925
    %v2063 = vpop.f32.mrf.mxu0
    %v2064 = vadd.f32 0.0, %v2063
    %v2065 = vpop.f32.mrf.mxu0
    %2066 = vdwg.mxu0
    %2067 = vmatprep.subr.mxu0 0.0
    %2068 = vmatpush1.msra.mxu0 0.0
    %2069 = vmatprep.subr.mxu0 0.0
    %2070 = vmatpush1.msra.mxu0 0.0
    %2071 = vmatprep.subr.mxu0 0.0
    %2072 = vmatpush1.msra.mxu0 0.0
    %2073 = vmatprep.subr.mxu0 0.0
    %2074 = vmatpush1.msra.mxu0 0.0
    %2075 = vmatprep.subr.mxu0 0.0
    %2076 = vmatpush1.msra.mxu0 0.0
    %2077 = vmatprep.subr.mxu0 0.0
    %2078 = vmatpush1.msra.mxu0 0.0
    %2079 = vmatprep.subr.mxu0 0.0
    %2080 = vmatpush1.msra.mxu0 0.0
    %2081 = vmatprep.subr.mxu0 0.0
    %2082 = vmatpush1.msra.mxu0 0.0
    %2083 = vmatprep.subr.mxu0 0.0
    %2084 = vmatpush1.msra.mxu0 0.0
    %2085 = vmatprep.subr.mxu0 0.0
    %2086 = vmatpush1.msra.mxu0 0.0
    %2087 = vmatprep.subr.mxu0 0.0
    %2088 = vmatpush1.msra.mxu0 0.0
    %2089 = vmatprep.subr.mxu0 0.0
    %2090 = vmatpush1.msra.mxu0 0.0
    %2091 = vmatprep.subr.mxu0 0.0
    %2092 = vmatpush1.msra.mxu0 0.0
    %2093 = vmatprep.subr.mxu0 0.0
    %2094 = vmatpush1.msra.mxu0 0.0
    %2095 = vmatprep.subr.mxu0 0.0
    %2096 = vmatpush1.msra.mxu0 0.0
    %2097 = vmatprep.subr.mxu0 0.0
    %2098 = vmatpush1.msra.mxu0 %v1870
    %2099 = vmatprep.subr.mxu0 0.0
    %2100 = vmatpush2.msra.mxu0 0.0
    %2101 = vmatprep.subr.mxu0 0.0
    %2102 = vmatpush2.msra.mxu0 0.0
    %2103 = vmatprep.subr.mxu0 0.0
    %2104 = vmatpush2.msra.mxu0 0.0
    %2105 = vmatprep.subr.mxu0 0.0
    %2106 = vmatpush2.msra.mxu0 0.0
    %2107 = vmatprep.subr.mxu0 0.0
    %2108 = vmatpush2.msra.mxu0 0.0
    %2109 = vmatprep.subr.mxu0 0.0
    %2110 = vmatpush2.msra.mxu0 0.0
    %2111 = vmatprep.subr.mxu0 0.0
    %2112 = vmatpush2.msra.mxu0 0.0
    %2113 = vmatprep.subr.mxu0 0.0
    %2114 = vmatpush2.msra.mxu0 0.0
    %2115 = vmatprep.subr.mxu0 0.0
    %2116 = vmatpush2.msra.mxu0 0.0
    %2117 = vmatprep.subr.mxu0 0.0
    %2118 = vmatpush2.msra.mxu0 0.0
    %2119 = vmatprep.subr.mxu0 0.0
    %2120 = vmatpush2.msra.mxu0 0.0
    %2121 = vmatprep.subr.mxu0 0.0
    %2122 = vmatpush2.msra.mxu0 0.0
    %2123 = vmatprep.subr.mxu0 0.0
    %2124 = vmatpush2.msra.mxu0 0.0
    %2125 = vmatprep.subr.mxu0 0.0
    %2126 = vmatpush2.msra.mxu0 0.0
    %2127 = vmatprep.subr.mxu0 0.0
    %2128 = vmatpush2.msra.mxu0 0.0
    %2129 = vmatprep.subr.mxu0 0.0
    %2130 = vmatpush2.msra.mxu0 0.0
    %2131 = vmatprep.mubr.f32.mxu0 0.0
    %2132 = vmatmul.mubr.f32.gmra.mxu0 %v1925
    %v2133 = vpop.f32.mrf.mxu0
    %v2134 = vadd.f32 0.0, %v2133
    %v2135 = vpop.f32.mrf.mxu0
    %2136 = vdwg.mxu0
    %2137 = vmatprep.subr.mxu0 0.0
    %2138 = vmatpush1.msra.mxu0 0.0
    %2139 = vmatprep.subr.mxu0 0.0
    %2140 = vmatpush1.msra.mxu0 0.0
    %2141 = vmatprep.subr.mxu0 0.0
    %2142 = vmatpush1.msra.mxu0 0.0
    %2143 = vmatprep.subr.mxu0 0.0
    %2144 = vmatpush1.msra.mxu0 0.0
    %2145 = vmatprep.subr.mxu0 0.0
    %2146 = vmatpush1.msra.mxu0 0.0
    %2147 = vmatprep.subr.mxu0 0.0
    %2148 = vmatpush1.msra.mxu0 0.0
    %2149 = vmatprep.subr.mxu0 0.0
    %2150 = vmatpush1.msra.mxu0 0.0
    %2151 = vmatprep.subr.mxu0 0.0
    %2152 = vmatpush1.msra.mxu0 0.0
    %2153 = vmatprep.subr.mxu0 0.0
    %2154 = vmatpush1.msra.mxu0 0.0
    %2155 = vmatprep.subr.mxu0 0.0
    %2156 = vmatpush1.msra.mxu0 0.0
    %2157 = vmatprep.subr.mxu0 0.0
    %2158 = vmatpush1.msra.mxu0 0.0
    %2159 = vmatprep.subr.mxu0 0.0
    %2160 = vmatpush1.msra.mxu0 0.0
    %2161 = vmatprep.subr.mxu0 0.0
    %2162 = vmatpush1.msra.mxu0 0.0
    %2163 = vmatprep.subr.mxu0 0.0
    %2164 = vmatpush1.msra.mxu0 0.0
    %2165 = vmatprep.subr.mxu0 0.0
    %2166 = vmatpush1.msra.mxu0 0.0
    %2167 = vmatprep.subr.mxu0 0.0
    %2168 = vmatpush1.msra.mxu0 %v1871
    %2169 = vmatprep.subr.mxu0 0.0
    %2170 = vmatpush2.msra.mxu0 0.0
    %2171 = vmatprep.subr.mxu0 0.0
    %2172 = vmatpush2.msra.mxu0 0.0
    %2173 = vmatprep.subr.mxu0 0.0
    %2174 = vmatpush2.msra.mxu0 0.0
    %2175 = vmatprep.subr.mxu0 0.0
    %2176 = vmatpush2.msra.mxu0 0.0
    %2177 = vmatprep.subr.mxu0 0.0
    %2178 = vmatpush2.msra.mxu0 0.0
    %2179 = vmatprep.subr.mxu0 0.0
    %2180 = vmatpush2.msra.mxu0 0.0
    %2181 = vmatprep.subr.mxu0 0.0
    %2182 = vmatpush2.msra.mxu0 0.0
    %2183 = vmatprep.subr.mxu0 0.0
    %2184 = vmatpush2.msra.mxu0 0.0
    %2185 = vmatprep.subr.mxu0 0.0
    %2186 = vmatpush2.msra.mxu0 0.0
    %2187 = vmatprep.subr.mxu0 0.0
    %2188 = vmatpush2.msra.mxu0 0.0
    %2189 = vmatprep.subr.mxu0 0.0
    %2190 = vmatpush2.msra.mxu0 0.0
    %2191 = vmatprep.subr.mxu0 0.0
    %2192 = vmatpush2.msra.mxu0 0.0
    %2193 = vmatprep.subr.mxu0 0.0
    %2194 = vmatpush2.msra.mxu0 0.0
    %2195 = vmatprep.subr.mxu0 0.0
    %2196 = vmatpush2.msra.mxu0 0.0
    %2197 = vmatprep.subr.mxu0 0.0
    %2198 = vmatpush2.msra.mxu0 0.0
    %2199 = vmatprep.subr.mxu0 0.0
    %2200 = vmatpush2.msra.mxu0 0.0
    %2201 = vmatprep.mubr.f32.mxu0 0.0
    %2202 = vmatmul.mubr.f32.gmra.mxu0 %v1925
    %v2203 = vpop.f32.mrf.mxu0
    %v2204 = vadd.f32 0.0, %v2203
    %v2205 = vpop.f32.mrf.mxu0
    %2206 = vdwg.mxu0
    %2207 = vmatprep.subr.mxu0 0.0
    %2208 = vmatpush1.msra.mxu0 0.0
    %2209 = vmatprep.subr.mxu0 0.0
    %2210 = vmatpush1.msra.mxu0 0.0
    %2211 = vmatprep.subr.mxu0 0.0
    %2212 = vmatpush1.msra.mxu0 0.0
    %2213 = vmatprep.subr.mxu0 0.0
    %2214 = vmatpush1.msra.mxu0 0.0
    %2215 = vmatprep.subr.mxu0 0.0
    %2216 = vmatpush1.msra.mxu0 0.0
    %2217 = vmatprep.subr.mxu0 0.0
    %2218 = vmatpush1.msra.mxu0 0.0
    %2219 = vmatprep.subr.mxu0 0.0
    %2220 = vmatpush1.msra.mxu0 0.0
    %2221 = vmatprep.subr.mxu0 0.0
    %2222 = vmatpush1.msra.mxu0 0.0
    %2223 = vmatprep.subr.mxu0 0.0
    %2224 = vmatpush1.msra.mxu0 0.0
    %2225 = vmatprep.subr.mxu0 0.0
    %2226 = vmatpush1.msra.mxu0 0.0
    %2227 = vmatprep.subr.mxu0 0.0
    %2228 = vmatpush1.msra.mxu0 0.0
    %2229 = vmatprep.subr.mxu0 0.0
    %2230 = vmatpush1.msra.mxu0 0.0
    %2231 = vmatprep.subr.mxu0 0.0
    %2232 = vmatpush1.msra.mxu0 0.0
    %2233 = vmatprep.subr.mxu0 0.0
    %2234 = vmatpush1.msra.mxu0 0.0
    %2235 = vmatprep.subr.mxu0 0.0
    %2236 = vmatpush1.msra.mxu0 0.0
    %2237 = vmatprep.subr.mxu0 0.0
    %2238 = vmatpush1.msra.mxu0 %v1872
    %2239 = vmatprep.subr.mxu0 0.0
    %2240 = vmatpush2.msra.mxu0 0.0
    %2241 = vmatprep.subr.mxu0 0.0
    %2242 = vmatpush2.msra.mxu0 0.0
    %2243 = vmatprep.subr.mxu0 0.0
    %2244 = vmatpush2.msra.mxu0 0.0
    %2245 = vmatprep.subr.mxu0 0.0
    %2246 = vmatpush2.msra.mxu0 0.0
    %2247 = vmatprep.subr.mxu0 0.0
    %2248 = vmatpush2.msra.mxu0 0.0
    %2249 = vmatprep.subr.mxu0 0.0
    %2250 = vmatpush2.msra.mxu0 0.0
    %2251 = vmatprep.subr.mxu0 0.0
    %2252 = vmatpush2.msra.mxu0 0.0
    %2253 = vmatprep.subr.mxu0 0.0
    %2254 = vmatpush2.msra.mxu0 0.0
    %2255 = vmatprep.subr.mxu0 0.0
    %2256 = vmatpush2.msra.mxu0 0.0
    %2257 = vmatprep.subr.mxu0 0.0
    %2258 = vmatpush2.msra.mxu0 0.0
    %2259 = vmatprep.subr.mxu0 0.0
    %2260 = vmatpush2.msra.mxu0 0.0
    %2261 = vmatprep.subr.mxu0 0.0
    %2262 = vmatpush2.msra.mxu0 0.0
    %2263 = vmatprep.subr.mxu0 0.0
    %2264 = vmatpush2.msra.mxu0 0.0
    %2265 = vmatprep.subr.mxu0 0.0
    %2266 = vmatpush2.msra.mxu0 0.0
    %2267 = vmatprep.subr.mxu0 0.0
    %2268 = vmatpush2.msra.mxu0 0.0
    %2269 = vmatprep.subr.mxu0 0.0
    %2270 = vmatpush2.msra.mxu0 0.0
    %2271 = vmatprep.mubr.f32.mxu0 0.0
    %2272 = vmatmul.mubr.f32.gmra.mxu0 %v1925
    %v2273 = vpop.f32.mrf.mxu0
    %v2274 = vadd.f32 0.0, %v2273
    %v2275 = vpop.f32.mrf.mxu0
    %2276 = vdwg.mxu0
    %2277 = vmatprep.subr.mxu0 0.0
    %2278 = vmatpush1.msra.mxu0 0.0
    %2279 = vmatprep.subr.mxu0 0.0
    %2280 = vmatpush1.msra.mxu0 0.0
    %2281 = vmatprep.subr.mxu0 0.0
    %2282 = vmatpush1.msra.mxu0 0.0
    %2283 = vmatprep.subr.mxu0 0.0
    %2284 = vmatpush1.msra.mxu0 0.0
    %2285 = vmatprep.subr.mxu0 0.0
    %2286 = vmatpush1.msra.mxu0 0.0
    %2287 = vmatprep.subr.mxu0 0.0
    %2288 = vmatpush1.msra.mxu0 0.0
    %2289 = vmatprep.subr.mxu0 0.0
    %2290 = vmatpush1.msra.mxu0 0.0
    %2291 = vmatprep.subr.mxu0 0.0
    %2292 = vmatpush1.msra.mxu0 0.0
    %2293 = vmatprep.subr.mxu0 0.0
    %2294 = vmatpush1.msra.mxu0 0.0
    %2295 = vmatprep.subr.mxu0 0.0
    %2296 = vmatpush1.msra.mxu0 0.0
    %2297 = vmatprep.subr.mxu0 0.0
    %2298 = vmatpush1.msra.mxu0 0.0
    %2299 = vmatprep.subr.mxu0 0.0
    %2300 = vmatpush1.msra.mxu0 0.0
    %2301 = vmatprep.subr.mxu0 0.0
    %2302 = vmatpush1.msra.mxu0 0.0
    %2303 = vmatprep.subr.mxu0 0.0
    %2304 = vmatpush1.msra.mxu0 0.0
    %2305 = vmatprep.subr.mxu0 0.0
    %2306 = vmatpush1.msra.mxu0 0.0
    %2307 = vmatprep.subr.mxu0 0.0
    %2308 = vmatpush1.msra.mxu0 %v1873
    %2309 = vmatprep.subr.mxu0 0.0
    %2310 = vmatpush2.msra.mxu0 0.0
    %2311 = vmatprep.subr.mxu0 0.0
    %2312 = vmatpush2.msra.mxu0 0.0
    %2313 = vmatprep.subr.mxu0 0.0
    %2314 = vmatpush2.msra.mxu0 0.0
    %2315 = vmatprep.subr.mxu0 0.0
    %2316 = vmatpush2.msra.mxu0 0.0
    %2317 = vmatprep.subr.mxu0 0.0
    %2318 = vmatpush2.msra.mxu0 0.0
    %2319 = vmatprep.subr.mxu0 0.0
    %2320 = vmatpush2.msra.mxu0 0.0
    %2321 = vmatprep.subr.mxu0 0.0
    %2322 = vmatpush2.msra.mxu0 0.0
    %2323 = vmatprep.subr.mxu0 0.0
    %2324 = vmatpush2.msra.mxu0 0.0
    %2325 = vmatprep.subr.mxu0 0.0
    %2326 = vmatpush2.msra.mxu0 0.0
    %2327 = vmatprep.subr.mxu0 0.0
    %2328 = vmatpush2.msra.mxu0 0.0
    %2329 = vmatprep.subr.mxu0 0.0
    %2330 = vmatpush2.msra.mxu0 0.0
    %2331 = vmatprep.subr.mxu0 0.0
    %2332 = vmatpush2.msra.mxu0 0.0
    %2333 = vmatprep.subr.mxu0 0.0
    %2334 = vmatpush2.msra.mxu0 0.0
    %2335 = vmatprep.subr.mxu0 0.0
    %2336 = vmatpush2.msra.mxu0 0.0
    %2337 = vmatprep.subr.mxu0 0.0
    %2338 = vmatpush2.msra.mxu0 0.0
    %2339 = vmatprep.subr.mxu0 0.0
    %2340 = vmatpush2.msra.mxu0 0.0
    %2341 = vmatprep.mubr.f32.mxu0 0.0
    %2342 = vmatmul.mubr.f32.gmra.mxu0 %v1925
    %v2343 = vpop.f32.mrf.mxu0
    %v2344 = vadd.f32 0.0, %v2343
    %v2345 = vpop.f32.mrf.mxu0
    %2346 = vdwg.mxu0
    %2347 = vmatprep.subr.mxu0 0.0
    %2348 = vmatpush1.msra.mxu0 0.0
    %2349 = vmatprep.subr.mxu0 0.0
    %2350 = vmatpush1.msra.mxu0 0.0
    %2351 = vmatprep.subr.mxu0 0.0
    %2352 = vmatpush1.msra.mxu0 0.0
    %2353 = vmatprep.subr.mxu0 0.0
    %2354 = vmatpush1.msra.mxu0 0.0
    %2355 = vmatprep.subr.mxu0 0.0
    %2356 = vmatpush1.msra.mxu0 0.0
    %2357 = vmatprep.subr.mxu0 0.0
    %2358 = vmatpush1.msra.mxu0 0.0
    %2359 = vmatprep.subr.mxu0 0.0
    %2360 = vmatpush1.msra.mxu0 0.0
    %2361 = vmatprep.subr.mxu0 0.0
    %2362 = vmatpush1.msra.mxu0 0.0
    %2363 = vmatprep.subr.mxu0 0.0
    %2364 = vmatpush1.msra.mxu0 0.0
    %2365 = vmatprep.subr.mxu0 0.0
    %2366 = vmatpush1.msra.mxu0 0.0
    %2367 = vmatprep.subr.mxu0 0.0
    %2368 = vmatpush1.msra.mxu0 0.0
    %2369 = vmatprep.subr.mxu0 0.0
    %2370 = vmatpush1.msra.mxu0 0.0
    %2371 = vmatprep.subr.mxu0 0.0
    %2372 = vmatpush1.msra.mxu0 0.0
    %2373 = vmatprep.subr.mxu0 0.0
    %2374 = vmatpush1.msra.mxu0 0.0
    %2375 = vmatprep.subr.mxu0 0.0
    %2376 = vmatpush1.msra.mxu0 0.0
    %2377 = vmatprep.subr.mxu0 0.0
    %2378 = vmatpush1.msra.mxu0 %v1874
    %2379 = vmatprep.subr.mxu0 0.0
    %2380 = vmatpush2.msra.mxu0 0.0
    %2381 = vmatprep.subr.mxu0 0.0
    %2382 = vmatpush2.msra.mxu0 0.0
    %2383 = vmatprep.subr.mxu0 0.0
    %2384 = vmatpush2.msra.mxu0 0.0
    %2385 = vmatprep.subr.mxu0 0.0
    %2386 = vmatpush2.msra.mxu0 0.0
    %2387 = vmatprep.subr.mxu0 0.0
    %2388 = vmatpush2.msra.mxu0 0.0
    %2389 = vmatprep.subr.mxu0 0.0
    %2390 = vmatpush2.msra.mxu0 0.0
    %2391 = vmatprep.subr.mxu0 0.0
    %2392 = vmatpush2.msra.mxu0 0.0
    %2393 = vmatprep.subr.mxu0 0.0
    %2394 = vmatpush2.msra.mxu0 0.0
    %2395 = vmatprep.subr.mxu0 0.0
    %2396 = vmatpush2.msra.mxu0 0.0
    %2397 = vmatprep.subr.mxu0 0.0
    %2398 = vmatpush2.msra.mxu0 0.0
    %2399 = vmatprep.subr.mxu0 0.0
    %2400 = vmatpush2.msra.mxu0 0.0
    %2401 = vmatprep.subr.mxu0 0.0
    %2402 = vmatpush2.msra.mxu0 0.0
    %2403 = vmatprep.subr.mxu0 0.0
    %2404 = vmatpush2.msra.mxu0 0.0
    %2405 = vmatprep.subr.mxu0 0.0
    %2406 = vmatpush2.msra.mxu0 0.0
    %2407 = vmatprep.subr.mxu0 0.0
    %2408 = vmatpush2.msra.mxu0 0.0
    %2409 = vmatprep.subr.mxu0 0.0
    %2410 = vmatpush2.msra.mxu0 0.0
    %2411 = vmatprep.mubr.f32.mxu0 0.0
    %2412 = vmatmul.mubr.f32.gmra.mxu0 %v1925
    %v2413 = vpop.f32.mrf.mxu0
    %v2414 = vadd.f32 0.0, %v2413
    %v2415 = vpop.f32.mrf.mxu0
    %2416 = vdwg.mxu0
    %2417 = vmatprep.subr.mxu0 0.0
    %2418 = vmatpush1.msra.mxu0 0.0
    %2419 = vmatprep.subr.mxu0 0.0
    %2420 = vmatpush1.msra.mxu0 0.0
    %2421 = vmatprep.subr.mxu0 0.0
    %2422 = vmatpush1.msra.mxu0 0.0
    %2423 = vmatprep.subr.mxu0 0.0
    %2424 = vmatpush1.msra.mxu0 0.0
    %2425 = vmatprep.subr.mxu0 0.0
    %2426 = vmatpush1.msra.mxu0 0.0
    %2427 = vmatprep.subr.mxu0 0.0
    %2428 = vmatpush1.msra.mxu0 0.0
    %2429 = vmatprep.subr.mxu0 0.0
    %2430 = vmatpush1.msra.mxu0 0.0
    %2431 = vmatprep.subr.mxu0 0.0
    %2432 = vmatpush1.msra.mxu0 0.0
    %2433 = vmatprep.subr.mxu0 0.0
    %2434 = vmatpush1.msra.mxu0 0.0
    %2435 = vmatprep.subr.mxu0 0.0
    %2436 = vmatpush1.msra.mxu0 0.0
    %2437 = vmatprep.subr.mxu0 0.0
    %2438 = vmatpush1.msra.mxu0 0.0
    %2439 = vmatprep.subr.mxu0 0.0
    %2440 = vmatpush1.msra.mxu0 0.0
    %2441 = vmatprep.subr.mxu0 0.0
    %2442 = vmatpush1.msra.mxu0 0.0
    %2443 = vmatprep.subr.mxu0 0.0
    %2444 = vmatpush1.msra.mxu0 0.0
    %2445 = vmatprep.subr.mxu0 0.0
    %2446 = vmatpush1.msra.mxu0 0.0
    %2447 = vmatprep.subr.mxu0 0.0
    %2448 = vmatpush1.msra.mxu0 %v1875
    %2449 = vmatprep.subr.mxu0 0.0
    %2450 = vmatpush2.msra.mxu0 0.0
    %2451 = vmatprep.subr.mxu0 0.0
    %2452 = vmatpush2.msra.mxu0 0.0
    %2453 = vmatprep.subr.mxu0 0.0
    %2454 = vmatpush2.msra.mxu0 0.0
    %2455 = vmatprep.subr.mxu0 0.0
    %2456 = vmatpush2.msra.mxu0 0.0
    %2457 = vmatprep.subr.mxu0 0.0
    %2458 = vmatpush2.msra.mxu0 0.0
    %2459 = vmatprep.subr.mxu0 0.0
    %2460 = vmatpush2.msra.mxu0 0.0
    %2461 = vmatprep.subr.mxu0 0.0
    %2462 = vmatpush2.msra.mxu0 0.0
    %2463 = vmatprep.subr.mxu0 0.0
    %2464 = vmatpush2.msra.mxu0 0.0
    %2465 = vmatprep.subr.mxu0 0.0
    %2466 = vmatpush2.msra.mxu0 0.0
    %2467 = vmatprep.subr.mxu0 0.0
    %2468 = vmatpush2.msra.mxu0 0.0
    %2469 = vmatprep.subr.mxu0 0.0
    %2470 = vmatpush2.msra.mxu0 0.0
    %2471 = vmatprep.subr.mxu0 0.0
    %2472 = vmatpush2.msra.mxu0 0.0
    %2473 = vmatprep.subr.mxu0 0.0
    %2474 = vmatpush2.msra.mxu0 0.0
    %2475 = vmatprep.subr.mxu0 0.0
    %2476 = vmatpush2.msra.mxu0 0.0
    %2477 = vmatprep.subr.mxu0 0.0
    %2478 = vmatpush2.msra.mxu0 0.0
    %2479 = vmatprep.subr.mxu0 0.0
    %2480 = vmatpush2.msra.mxu0 0.0
    %2481 = vmatprep.mubr.f32.mxu0 0.0
    %2482 = vmatmul.mubr.f32.gmra.mxu0 %v1925
    %v2483 = vpop.f32.mrf.mxu0
    %v2484 = vadd.f32 0.0, %v2483
    %v2485 = vpop.f32.mrf.mxu0
    %2486 = vdwg.mxu0
    %v2487 = vmul.f32 %v1879, %v1994
    %v2488 = vmul.f32 %v1884, %v2064
    %v2489 = vmul.f32 %v1889, %v2134
    %v2490 = vmul.f32 %v1894, %v2204
    %v2491 = vmul.f32 %v1899, %v2274
    %v2492 = vmul.f32 %v1904, %v2344
    %v2493 = vmul.f32 %v1909, %v2414
    %v2494 = vmul.f32 %v1914, %v2484
    %v2495 = vadd.f32 %v2487, 0.0
    %v2496 = vadd.f32 %v2488, 0.0
    %v2497 = vadd.f32 %v2489, 0.0
    %v2498 = vadd.f32 %v2490, 0.0
    %v2499 = vadd.f32 %v2491, 0.0
    %v2500 = vadd.f32 %v2492, 0.0
    %v2501 = vadd.f32 %v2493, 0.0
    %v2502 = vadd.f32 %v2494, 0.0
    %2504 = vset.pattern.permute.xlu0 0
    %2505 = vperm.xlu0 %2504, %v842
    %v2506 = vpop.permute.xlu0 %2505
    %v2508 = vmul.f32 %v2506, %v2495
    %v2509 = vmul.f32 %v2506, %v2496
    %v2510 = vmul.f32 %v2506, %v2497
    %v2511 = vmul.f32 %v2506, %v2498
    %v2512 = vmul.f32 %v2506, %v2499
    %v2513 = vmul.f32 %v2506, %v2500
    %v2514 = vmul.f32 %v2506, %v2501
    %v2515 = vmul.f32 %v2506, %v2502
    %v2516 = vsub.f32 %v910, %v2508
    %v2517 = vsub.f32 %v914, %v2509
    %v2518 = vsub.f32 %v918, %v2510
    %v2519 = vsub.f32 %v922, %v2511
    %v2520 = vsub.f32 %v926, %v2512
    %v2521 = vsub.f32 %v930, %v2513
    %v2522 = vsub.f32 %v934, %v2514
    %v2523 = vsub.f32 %v938, %v2515
    %v2525 = vsel %vm565, %v867, 0
    %2527 = vmatprep.subr.mxu0 0.0
    %2528 = vmatpush1.xpose.msra.mxu0 0.0
    %2529 = vmatprep.subr.mxu0 0.0
    %2530 = vmatpush1.xpose.msra.mxu0 0.0
    %2531 = vmatprep.subr.mxu0 0.0
    %2532 = vmatpush1.xpose.msra.mxu0 0.0
    %2533 = vmatprep.subr.mxu0 0.0
    %2534 = vmatpush1.xpose.msra.mxu0 0.0
    %2535 = vmatprep.subr.mxu0 0.0
    %2536 = vmatpush1.xpose.msra.mxu0 0.0
    %2537 = vmatprep.subr.mxu0 0.0
    %2538 = vmatpush1.xpose.msra.mxu0 0.0
    %2539 = vmatprep.subr.mxu0 0.0
    %2540 = vmatpush1.xpose.msra.mxu0 0.0
    %2541 = vmatprep.subr.mxu0 0.0
    %2542 = vmatpush1.xpose.msra.mxu0 0.0
    %2543 = vmatprep.subr.mxu0 0.0
    %2544 = vmatpush1.xpose.msra.mxu0 0.0
    %2545 = vmatprep.subr.mxu0 0.0
    %2546 = vmatpush1.xpose.msra.mxu0 0.0
    %2547 = vmatprep.subr.mxu0 0.0
    %2548 = vmatpush1.xpose.msra.mxu0 0.0
    %2549 = vmatprep.subr.mxu0 0.0
    %2550 = vmatpush1.xpose.msra.mxu0 0.0
    %2551 = vmatprep.subr.mxu0 0.0
    %2552 = vmatpush1.xpose.msra.mxu0 0.0
    %2553 = vmatprep.subr.mxu0 0.0
    %2554 = vmatpush1.xpose.msra.mxu0 0.0
    %2555 = vmatprep.subr.mxu0 0.0
    %2556 = vmatpush1.xpose.msra.mxu0 0.0
    %2557 = vmatprep.subr.mxu0 0.0
    %2558 = vmatpush1.xpose.msra.mxu0 %v948
    %2559 = vmatprep.subr.mxu0 0.0
    %2560 = vmatpush2.xpose.msra.mxu0 0.0
    %2561 = vmatprep.subr.mxu0 0.0
    %2562 = vmatpush2.xpose.msra.mxu0 0.0
    %2563 = vmatprep.subr.mxu0 0.0
    %2564 = vmatpush2.xpose.msra.mxu0 0.0
    %2565 = vmatprep.subr.mxu0 0.0
    %2566 = vmatpush2.xpose.msra.mxu0 0.0
    %2567 = vmatprep.subr.mxu0 0.0
    %2568 = vmatpush2.xpose.msra.mxu0 0.0
    %2569 = vmatprep.subr.mxu0 0.0
    %2570 = vmatpush2.xpose.msra.mxu0 0.0
    %2571 = vmatprep.subr.mxu0 0.0
    %2572 = vmatpush2.xpose.msra.mxu0 0.0
    %2573 = vmatprep.subr.mxu0 0.0
    %2574 = vmatpush2.xpose.msra.mxu0 0.0
    %2575 = vmatprep.subr.mxu0 0.0
    %2576 = vmatpush2.xpose.msra.mxu0 0.0
    %2577 = vmatprep.subr.mxu0 0.0
    %2578 = vmatpush2.xpose.msra.mxu0 0.0
    %2579 = vmatprep.subr.mxu0 0.0
    %2580 = vmatpush2.xpose.msra.mxu0 0.0
    %2581 = vmatprep.subr.mxu0 0.0
    %2582 = vmatpush2.xpose.msra.mxu0 0.0
    %2583 = vmatprep.subr.mxu0 0.0
    %2584 = vmatpush2.xpose.msra.mxu0 0.0
    %2585 = vmatprep.subr.mxu0 0.0
    %2586 = vmatpush2.xpose.msra.mxu0 0.0
    %2587 = vmatprep.subr.mxu0 0.0
    %2588 = vmatpush2.xpose.msra.mxu0 0.0
    %2589 = vmatprep.subr.mxu0 0.0
    %2590 = vmatpush2.xpose.msra.mxu0 0.0
    %2591 = vmatprep.mubr.f32.mxu0 0.0
    %2592 = vmatmul.mubr.f32.gmra.mxu0 %v2525
    %v2593 = vpop.f32.mrf.mxu0
    %v2594 = vadd.f32 0.0, %v2593
    %v2595 = vpop.f32.mrf.mxu0
    %2596 = vdwg.mxu0
    %v2598 = vsel %vm565, %v868, 0
    %2600 = vmatprep.subr.mxu0 0.0
    %2601 = vmatpush1.xpose.msra.mxu0 0.0
    %2602 = vmatprep.subr.mxu0 0.0
    %2603 = vmatpush1.xpose.msra.mxu0 0.0
    %2604 = vmatprep.subr.mxu0 0.0
    %2605 = vmatpush1.xpose.msra.mxu0 0.0
    %2606 = vmatprep.subr.mxu0 0.0
    %2607 = vmatpush1.xpose.msra.mxu0 0.0
    %2608 = vmatprep.subr.mxu0 0.0
    %2609 = vmatpush1.xpose.msra.mxu0 0.0
    %2610 = vmatprep.subr.mxu0 0.0
    %2611 = vmatpush1.xpose.msra.mxu0 0.0
    %2612 = vmatprep.subr.mxu0 0.0
    %2613 = vmatpush1.xpose.msra.mxu0 0.0
    %2614 = vmatprep.subr.mxu0 0.0
    %2615 = vmatpush1.xpose.msra.mxu0 0.0
    %2616 = vmatprep.subr.mxu0 0.0
    %2617 = vmatpush1.xpose.msra.mxu0 0.0
    %2618 = vmatprep.subr.mxu0 0.0
    %2619 = vmatpush1.xpose.msra.mxu0 0.0
    %2620 = vmatprep.subr.mxu0 0.0
    %2621 = vmatpush1.xpose.msra.mxu0 0.0
    %2622 = vmatprep.subr.mxu0 0.0
    %2623 = vmatpush1.xpose.msra.mxu0 0.0
    %2624 = vmatprep.subr.mxu0 0.0
    %2625 = vmatpush1.xpose.msra.mxu0 0.0
    %2626 = vmatprep.subr.mxu0 0.0
    %2627 = vmatpush1.xpose.msra.mxu0 0.0
    %2628 = vmatprep.subr.mxu0 0.0
    %2629 = vmatpush1.xpose.msra.mxu0 0.0
    %2630 = vmatprep.subr.mxu0 0.0
    %2631 = vmatpush1.xpose.msra.mxu0 %v1021
    %2632 = vmatprep.subr.mxu0 0.0
    %2633 = vmatpush2.xpose.msra.mxu0 0.0
    %2634 = vmatprep.subr.mxu0 0.0
    %2635 = vmatpush2.xpose.msra.mxu0 0.0
    %2636 = vmatprep.subr.mxu0 0.0
    %2637 = vmatpush2.xpose.msra.mxu0 0.0
    %2638 = vmatprep.subr.mxu0 0.0
    %2639 = vmatpush2.xpose.msra.mxu0 0.0
    %2640 = vmatprep.subr.mxu0 0.0
    %2641 = vmatpush2.xpose.msra.mxu0 0.0
    %2642 = vmatprep.subr.mxu0 0.0
    %2643 = vmatpush2.xpose.msra.mxu0 0.0
    %2644 = vmatprep.subr.mxu0 0.0
    %2645 = vmatpush2.xpose.msra.mxu0 0.0
    %2646 = vmatprep.subr.mxu0 0.0
    %2647 = vmatpush2.xpose.msra.mxu0 0.0
    %2648 = vmatprep.subr.mxu0 0.0
    %2649 = vmatpush2.xpose.msra.mxu0 0.0
    %2650 = vmatprep.subr.mxu0 0.0
    %2651 = vmatpush2.xpose.msra.mxu0 0.0
    %2652 = vmatprep.subr.mxu0 0.0
    %2653 = vmatpush2.xpose.msra.mxu0 0.0
    %2654 = vmatprep.subr.mxu0 0.0
    %2655 = vmatpush2.xpose.msra.mxu0 0.0
    %2656 = vmatprep.subr.mxu0 0.0
    %2657 = vmatpush2.xpose.msra.mxu0 0.0
    %2658 = vmatprep.subr.mxu0 0.0
    %2659 = vmatpush2.xpose.msra.mxu0 0.0
    %2660 = vmatprep.subr.mxu0 0.0
    %2661 = vmatpush2.xpose.msra.mxu0 0.0
    %2662 = vmatprep.subr.mxu0 0.0
    %2663 = vmatpush2.xpose.msra.mxu0 0.0
    %2664 = vmatprep.mubr.f32.mxu0 0.0
    %2665 = vmatmul.mubr.f32.gmra.mxu0 %v2598
    %v2666 = vpop.f32.mrf.mxu0
    %v2667 = vadd.f32 0.0, %v2666
    %v2668 = vpop.f32.mrf.mxu0
    %2669 = vdwg.mxu0
    %v2671 = vsel %vm565, %v869, 0
    %2673 = vmatprep.subr.mxu0 0.0
    %2674 = vmatpush1.xpose.msra.mxu0 0.0
    %2675 = vmatprep.subr.mxu0 0.0
    %2676 = vmatpush1.xpose.msra.mxu0 0.0
    %2677 = vmatprep.subr.mxu0 0.0
    %2678 = vmatpush1.xpose.msra.mxu0 0.0
    %2679 = vmatprep.subr.mxu0 0.0
    %2680 = vmatpush1.xpose.msra.mxu0 0.0
    %2681 = vmatprep.subr.mxu0 0.0
    %2682 = vmatpush1.xpose.msra.mxu0 0.0
    %2683 = vmatprep.subr.mxu0 0.0
    %2684 = vmatpush1.xpose.msra.mxu0 0.0
    %2685 = vmatprep.subr.mxu0 0.0
    %2686 = vmatpush1.xpose.msra.mxu0 0.0
    %2687 = vmatprep.subr.mxu0 0.0
    %2688 = vmatpush1.xpose.msra.mxu0 0.0
    %2689 = vmatprep.subr.mxu0 0.0
    %2690 = vmatpush1.xpose.msra.mxu0 0.0
    %2691 = vmatprep.subr.mxu0 0.0
    %2692 = vmatpush1.xpose.msra.mxu0 0.0
    %2693 = vmatprep.subr.mxu0 0.0
    %2694 = vmatpush1.xpose.msra.mxu0 0.0
    %2695 = vmatprep.subr.mxu0 0.0
    %2696 = vmatpush1.xpose.msra.mxu0 0.0
    %2697 = vmatprep.subr.mxu0 0.0
    %2698 = vmatpush1.xpose.msra.mxu0 0.0
    %2699 = vmatprep.subr.mxu0 0.0
    %2700 = vmatpush1.xpose.msra.mxu0 0.0
    %2701 = vmatprep.subr.mxu0 0.0
    %2702 = vmatpush1.xpose.msra.mxu0 0.0
    %2703 = vmatprep.subr.mxu0 0.0
    %2704 = vmatpush1.xpose.msra.mxu0 %v1094
    %2705 = vmatprep.subr.mxu0 0.0
    %2706 = vmatpush2.xpose.msra.mxu0 0.0
    %2707 = vmatprep.subr.mxu0 0.0
    %2708 = vmatpush2.xpose.msra.mxu0 0.0
    %2709 = vmatprep.subr.mxu0 0.0
    %2710 = vmatpush2.xpose.msra.mxu0 0.0
    %2711 = vmatprep.subr.mxu0 0.0
    %2712 = vmatpush2.xpose.msra.mxu0 0.0
    %2713 = vmatprep.subr.mxu0 0.0
    %2714 = vmatpush2.xpose.msra.mxu0 0.0
    %2715 = vmatprep.subr.mxu0 0.0
    %2716 = vmatpush2.xpose.msra.mxu0 0.0
    %2717 = vmatprep.subr.mxu0 0.0
    %2718 = vmatpush2.xpose.msra.mxu0 0.0
    %2719 = vmatprep.subr.mxu0 0.0
    %2720 = vmatpush2.xpose.msra.mxu0 0.0
    %2721 = vmatprep.subr.mxu0 0.0
    %2722 = vmatpush2.xpose.msra.mxu0 0.0
    %2723 = vmatprep.subr.mxu0 0.0
    %2724 = vmatpush2.xpose.msra.mxu0 0.0
    %2725 = vmatprep.subr.mxu0 0.0
    %2726 = vmatpush2.xpose.msra.mxu0 0.0
    %2727 = vmatprep.subr.mxu0 0.0
    %2728 = vmatpush2.xpose.msra.mxu0 0.0
    %2729 = vmatprep.subr.mxu0 0.0
    %2730 = vmatpush2.xpose.msra.mxu0 0.0
    %2731 = vmatprep.subr.mxu0 0.0
    %2732 = vmatpush2.xpose.msra.mxu0 0.0
    %2733 = vmatprep.subr.mxu0 0.0
    %2734 = vmatpush2.xpose.msra.mxu0 0.0
    %2735 = vmatprep.subr.mxu0 0.0
    %2736 = vmatpush2.xpose.msra.mxu0 0.0
    %2737 = vmatprep.mubr.f32.mxu0 0.0
    %2738 = vmatmul.mubr.f32.gmra.mxu0 %v2671
    %v2739 = vpop.f32.mrf.mxu0
    %v2740 = vadd.f32 0.0, %v2739
    %v2741 = vpop.f32.mrf.mxu0
    %2742 = vdwg.mxu0
    %v2744 = vsel %vm565, %v870, 0
    %2746 = vmatprep.subr.mxu0 0.0
    %2747 = vmatpush1.xpose.msra.mxu0 0.0
    %2748 = vmatprep.subr.mxu0 0.0
    %2749 = vmatpush1.xpose.msra.mxu0 0.0
    %2750 = vmatprep.subr.mxu0 0.0
    %2751 = vmatpush1.xpose.msra.mxu0 0.0
    %2752 = vmatprep.subr.mxu0 0.0
    %2753 = vmatpush1.xpose.msra.mxu0 0.0
    %2754 = vmatprep.subr.mxu0 0.0
    %2755 = vmatpush1.xpose.msra.mxu0 0.0
    %2756 = vmatprep.subr.mxu0 0.0
    %2757 = vmatpush1.xpose.msra.mxu0 0.0
    %2758 = vmatprep.subr.mxu0 0.0
    %2759 = vmatpush1.xpose.msra.mxu0 0.0
    %2760 = vmatprep.subr.mxu0 0.0
    %2761 = vmatpush1.xpose.msra.mxu0 0.0
    %2762 = vmatprep.subr.mxu0 0.0
    %2763 = vmatpush1.xpose.msra.mxu0 0.0
    %2764 = vmatprep.subr.mxu0 0.0
    %2765 = vmatpush1.xpose.msra.mxu0 0.0
    %2766 = vmatprep.subr.mxu0 0.0
    %2767 = vmatpush1.xpose.msra.mxu0 0.0
    %2768 = vmatprep.subr.mxu0 0.0
    %2769 = vmatpush1.xpose.msra.mxu0 0.0
    %2770 = vmatprep.subr.mxu0 0.0
    %2771 = vmatpush1.xpose.msra.mxu0 0.0
    %2772 = vmatprep.subr.mxu0 0.0
    %2773 = vmatpush1.xpose.msra.mxu0 0.0
    %2774 = vmatprep.subr.mxu0 0.0
    %2775 = vmatpush1.xpose.msra.mxu0 0.0
    %2776 = vmatprep.subr.mxu0 0.0
    %2777 = vmatpush1.xpose.msra.mxu0 %v1167
    %2778 = vmatprep.subr.mxu0 0.0
    %2779 = vmatpush2.xpose.msra.mxu0 0.0
    %2780 = vmatprep.subr.mxu0 0.0
    %2781 = vmatpush2.xpose.msra.mxu0 0.0
    %2782 = vmatprep.subr.mxu0 0.0
    %2783 = vmatpush2.xpose.msra.mxu0 0.0
    %2784 = vmatprep.subr.mxu0 0.0
    %2785 = vmatpush2.xpose.msra.mxu0 0.0
    %2786 = vmatprep.subr.mxu0 0.0
    %2787 = vmatpush2.xpose.msra.mxu0 0.0
    %2788 = vmatprep.subr.mxu0 0.0
    %2789 = vmatpush2.xpose.msra.mxu0 0.0
    %2790 = vmatprep.subr.mxu0 0.0
    %2791 = vmatpush2.xpose.msra.mxu0 0.0
    %2792 = vmatprep.subr.mxu0 0.0
    %2793 = vmatpush2.xpose.msra.mxu0 0.0
    %2794 = vmatprep.subr.mxu0 0.0
    %2795 = vmatpush2.xpose.msra.mxu0 0.0
    %2796 = vmatprep.subr.mxu0 0.0
    %2797 = vmatpush2.xpose.msra.mxu0 0.0
    %2798 = vmatprep.subr.mxu0 0.0
    %2799 = vmatpush2.xpose.msra.mxu0 0.0
    %2800 = vmatprep.subr.mxu0 0.0
    %2801 = vmatpush2.xpose.msra.mxu0 0.0
    %2802 = vmatprep.subr.mxu0 0.0
    %2803 = vmatpush2.xpose.msra.mxu0 0.0
    %2804 = vmatprep.subr.mxu0 0.0
    %2805 = vmatpush2.xpose.msra.mxu0 0.0
    %2806 = vmatprep.subr.mxu0 0.0
    %2807 = vmatpush2.xpose.msra.mxu0 0.0
    %2808 = vmatprep.subr.mxu0 0.0
    %2809 = vmatpush2.xpose.msra.mxu0 0.0
    %2810 = vmatprep.mubr.f32.mxu0 0.0
    %2811 = vmatmul.mubr.f32.gmra.mxu0 %v2744
    %v2812 = vpop.f32.mrf.mxu0
    %v2813 = vadd.f32 0.0, %v2812
    %v2814 = vpop.f32.mrf.mxu0
    %2815 = vdwg.mxu0
    %v2817 = vsel %vm565, %v871, 0
    %2819 = vmatprep.subr.mxu0 0.0
    %2820 = vmatpush1.xpose.msra.mxu0 0.0
    %2821 = vmatprep.subr.mxu0 0.0
    %2822 = vmatpush1.xpose.msra.mxu0 0.0
    %2823 = vmatprep.subr.mxu0 0.0
    %2824 = vmatpush1.xpose.msra.mxu0 0.0
    %2825 = vmatprep.subr.mxu0 0.0
    %2826 = vmatpush1.xpose.msra.mxu0 0.0
    %2827 = vmatprep.subr.mxu0 0.0
    %2828 = vmatpush1.xpose.msra.mxu0 0.0
    %2829 = vmatprep.subr.mxu0 0.0
    %2830 = vmatpush1.xpose.msra.mxu0 0.0
    %2831 = vmatprep.subr.mxu0 0.0
    %2832 = vmatpush1.xpose.msra.mxu0 0.0
    %2833 = vmatprep.subr.mxu0 0.0
    %2834 = vmatpush1.xpose.msra.mxu0 0.0
    %2835 = vmatprep.subr.mxu0 0.0
    %2836 = vmatpush1.xpose.msra.mxu0 0.0
    %2837 = vmatprep.subr.mxu0 0.0
    %2838 = vmatpush1.xpose.msra.mxu0 0.0
    %2839 = vmatprep.subr.mxu0 0.0
    %2840 = vmatpush1.xpose.msra.mxu0 0.0
    %2841 = vmatprep.subr.mxu0 0.0
    %2842 = vmatpush1.xpose.msra.mxu0 0.0
    %2843 = vmatprep.subr.mxu0 0.0
    %2844 = vmatpush1.xpose.msra.mxu0 0.0
    %2845 = vmatprep.subr.mxu0 0.0
    %2846 = vmatpush1.xpose.msra.mxu0 0.0
    %2847 = vmatprep.subr.mxu0 0.0
    %2848 = vmatpush1.xpose.msra.mxu0 0.0
    %2849 = vmatprep.subr.mxu0 0.0
    %2850 = vmatpush1.xpose.msra.mxu0 %v1240
    %2851 = vmatprep.subr.mxu0 0.0
    %2852 = vmatpush2.xpose.msra.mxu0 0.0
    %2853 = vmatprep.subr.mxu0 0.0
    %2854 = vmatpush2.xpose.msra.mxu0 0.0
    %2855 = vmatprep.subr.mxu0 0.0
    %2856 = vmatpush2.xpose.msra.mxu0 0.0
    %2857 = vmatprep.subr.mxu0 0.0
    %2858 = vmatpush2.xpose.msra.mxu0 0.0
    %2859 = vmatprep.subr.mxu0 0.0
    %2860 = vmatpush2.xpose.msra.mxu0 0.0
    %2861 = vmatprep.subr.mxu0 0.0
    %2862 = vmatpush2.xpose.msra.mxu0 0.0
    %2863 = vmatprep.subr.mxu0 0.0
    %2864 = vmatpush2.xpose.msra.mxu0 0.0
    %2865 = vmatprep.subr.mxu0 0.0
    %2866 = vmatpush2.xpose.msra.mxu0 0.0
    %2867 = vmatprep.subr.mxu0 0.0
    %2868 = vmatpush2.xpose.msra.mxu0 0.0
    %2869 = vmatprep.subr.mxu0 0.0
    %2870 = vmatpush2.xpose.msra.mxu0 0.0
    %2871 = vmatprep.subr.mxu0 0.0
    %2872 = vmatpush2.xpose.msra.mxu0 0.0
    %2873 = vmatprep.subr.mxu0 0.0
    %2874 = vmatpush2.xpose.msra.mxu0 0.0
    %2875 = vmatprep.subr.mxu0 0.0
    %2876 = vmatpush2.xpose.msra.mxu0 0.0
    %2877 = vmatprep.subr.mxu0 0.0
    %2878 = vmatpush2.xpose.msra.mxu0 0.0
    %2879 = vmatprep.subr.mxu0 0.0
    %2880 = vmatpush2.xpose.msra.mxu0 0.0
    %2881 = vmatprep.subr.mxu0 0.0
    %2882 = vmatpush2.xpose.msra.mxu0 0.0
    %2883 = vmatprep.mubr.f32.mxu0 0.0
    %2884 = vmatmul.mubr.f32.gmra.mxu0 %v2817
    %v2885 = vpop.f32.mrf.mxu0
    %v2886 = vadd.f32 0.0, %v2885
    %v2887 = vpop.f32.mrf.mxu0
    %2888 = vdwg.mxu0
    %v2890 = vsel %vm565, %v872, 0
    %2892 = vmatprep.subr.mxu0 0.0
    %2893 = vmatpush1.xpose.msra.mxu0 0.0
    %2894 = vmatprep.subr.mxu0 0.0
    %2895 = vmatpush1.xpose.msra.mxu0 0.0
    %2896 = vmatprep.subr.mxu0 0.0
    %2897 = vmatpush1.xpose.msra.mxu0 0.0
    %2898 = vmatprep.subr.mxu0 0.0
    %2899 = vmatpush1.xpose.msra.mxu0 0.0
    %2900 = vmatprep.subr.mxu0 0.0
    %2901 = vmatpush1.xpose.msra.mxu0 0.0
    %2902 = vmatprep.subr.mxu0 0.0
    %2903 = vmatpush1.xpose.msra.mxu0 0.0
    %2904 = vmatprep.subr.mxu0 0.0
    %2905 = vmatpush1.xpose.msra.mxu0 0.0
    %2906 = vmatprep.subr.mxu0 0.0
    %2907 = vmatpush1.xpose.msra.mxu0 0.0
    %2908 = vmatprep.subr.mxu0 0.0
    %2909 = vmatpush1.xpose.msra.mxu0 0.0
    %2910 = vmatprep.subr.mxu0 0.0
    %2911 = vmatpush1.xpose.msra.mxu0 0.0
    %2912 = vmatprep.subr.mxu0 0.0
    %2913 = vmatpush1.xpose.msra.mxu0 0.0
    %2914 = vmatprep.subr.mxu0 0.0
    %2915 = vmatpush1.xpose.msra.mxu0 0.0
    %2916 = vmatprep.subr.mxu0 0.0
    %2917 = vmatpush1.xpose.msra.mxu0 0.0
    %2918 = vmatprep.subr.mxu0 0.0
    %2919 = vmatpush1.xpose.msra.mxu0 0.0
    %2920 = vmatprep.subr.mxu0 0.0
    %2921 = vmatpush1.xpose.msra.mxu0 0.0
    %2922 = vmatprep.subr.mxu0 0.0
    %2923 = vmatpush1.xpose.msra.mxu0 %v1313
    %2924 = vmatprep.subr.mxu0 0.0
    %2925 = vmatpush2.xpose.msra.mxu0 0.0
    %2926 = vmatprep.subr.mxu0 0.0
    %2927 = vmatpush2.xpose.msra.mxu0 0.0
    %2928 = vmatprep.subr.mxu0 0.0
    %2929 = vmatpush2.xpose.msra.mxu0 0.0
    %2930 = vmatprep.subr.mxu0 0.0
    %2931 = vmatpush2.xpose.msra.mxu0 0.0
    %2932 = vmatprep.subr.mxu0 0.0
    %2933 = vmatpush2.xpose.msra.mxu0 0.0
    %2934 = vmatprep.subr.mxu0 0.0
    %2935 = vmatpush2.xpose.msra.mxu0 0.0
    %2936 = vmatprep.subr.mxu0 0.0
    %2937 = vmatpush2.xpose.msra.mxu0 0.0
    %2938 = vmatprep.subr.mxu0 0.0
    %2939 = vmatpush2.xpose.msra.mxu0 0.0
    %2940 = vmatprep.subr.mxu0 0.0
    %2941 = vmatpush2.xpose.msra.mxu0 0.0
    %2942 = vmatprep.subr.mxu0 0.0
    %2943 = vmatpush2.xpose.msra.mxu0 0.0
    %2944 = vmatprep.subr.mxu0 0.0
    %2945 = vmatpush2.xpose.msra.mxu0 0.0
    %2946 = vmatprep.subr.mxu0 0.0
    %2947 = vmatpush2.xpose.msra.mxu0 0.0
    %2948 = vmatprep.subr.mxu0 0.0
    %2949 = vmatpush2.xpose.msra.mxu0 0.0
    %2950 = vmatprep.subr.mxu0 0.0
    %2951 = vmatpush2.xpose.msra.mxu0 0.0
    %2952 = vmatprep.subr.mxu0 0.0
    %2953 = vmatpush2.xpose.msra.mxu0 0.0
    %2954 = vmatprep.subr.mxu0 0.0
    %2955 = vmatpush2.xpose.msra.mxu0 0.0
    %2956 = vmatprep.mubr.f32.mxu0 0.0
    %2957 = vmatmul.mubr.f32.gmra.mxu0 %v2890
    %v2958 = vpop.f32.mrf.mxu0
    %v2959 = vadd.f32 0.0, %v2958
    %v2960 = vpop.f32.mrf.mxu0
    %2961 = vdwg.mxu0
    %v2963 = vsel %vm565, %v873, 0
    %2965 = vmatprep.subr.mxu0 0.0
    %2966 = vmatpush1.xpose.msra.mxu0 0.0
    %2967 = vmatprep.subr.mxu0 0.0
    %2968 = vmatpush1.xpose.msra.mxu0 0.0
    %2969 = vmatprep.subr.mxu0 0.0
    %2970 = vmatpush1.xpose.msra.mxu0 0.0
    %2971 = vmatprep.subr.mxu0 0.0
    %2972 = vmatpush1.xpose.msra.mxu0 0.0
    %2973 = vmatprep.subr.mxu0 0.0
    %2974 = vmatpush1.xpose.msra.mxu0 0.0
    %2975 = vmatprep.subr.mxu0 0.0
    %2976 = vmatpush1.xpose.msra.mxu0 0.0
    %2977 = vmatprep.subr.mxu0 0.0
    %2978 = vmatpush1.xpose.msra.mxu0 0.0
    %2979 = vmatprep.subr.mxu0 0.0
    %2980 = vmatpush1.xpose.msra.mxu0 0.0
    %2981 = vmatprep.subr.mxu0 0.0
    %2982 = vmatpush1.xpose.msra.mxu0 0.0
    %2983 = vmatprep.subr.mxu0 0.0
    %2984 = vmatpush1.xpose.msra.mxu0 0.0
    %2985 = vmatprep.subr.mxu0 0.0
    %2986 = vmatpush1.xpose.msra.mxu0 0.0
    %2987 = vmatprep.subr.mxu0 0.0
    %2988 = vmatpush1.xpose.msra.mxu0 0.0
    %2989 = vmatprep.subr.mxu0 0.0
    %2990 = vmatpush1.xpose.msra.mxu0 0.0
    %2991 = vmatprep.subr.mxu0 0.0
    %2992 = vmatpush1.xpose.msra.mxu0 0.0
    %2993 = vmatprep.subr.mxu0 0.0
    %2994 = vmatpush1.xpose.msra.mxu0 0.0
    %2995 = vmatprep.subr.mxu0 0.0
    %2996 = vmatpush1.xpose.msra.mxu0 %v1386
    %2997 = vmatprep.subr.mxu0 0.0
    %2998 = vmatpush2.xpose.msra.mxu0 0.0
    %2999 = vmatprep.subr.mxu0 0.0
    %3000 = vmatpush2.xpose.msra.mxu0 0.0
    %3001 = vmatprep.subr.mxu0 0.0
    %3002 = vmatpush2.xpose.msra.mxu0 0.0
    %3003 = vmatprep.subr.mxu0 0.0
    %3004 = vmatpush2.xpose.msra.mxu0 0.0
    %3005 = vmatprep.subr.mxu0 0.0
    %3006 = vmatpush2.xpose.msra.mxu0 0.0
    %3007 = vmatprep.subr.mxu0 0.0
    %3008 = vmatpush2.xpose.msra.mxu0 0.0
    %3009 = vmatprep.subr.mxu0 0.0
    %3010 = vmatpush2.xpose.msra.mxu0 0.0
    %3011 = vmatprep.subr.mxu0 0.0
    %3012 = vmatpush2.xpose.msra.mxu0 0.0
    %3013 = vmatprep.subr.mxu0 0.0
    %3014 = vmatpush2.xpose.msra.mxu0 0.0
    %3015 = vmatprep.subr.mxu0 0.0
    %3016 = vmatpush2.xpose.msra.mxu0 0.0
    %3017 = vmatprep.subr.mxu0 0.0
    %3018 = vmatpush2.xpose.msra.mxu0 0.0
    %3019 = vmatprep.subr.mxu0 0.0
    %3020 = vmatpush2.xpose.msra.mxu0 0.0
    %3021 = vmatprep.subr.mxu0 0.0
    %3022 = vmatpush2.xpose.msra.mxu0 0.0
    %3023 = vmatprep.subr.mxu0 0.0
    %3024 = vmatpush2.xpose.msra.mxu0 0.0
    %3025 = vmatprep.subr.mxu0 0.0
    %3026 = vmatpush2.xpose.msra.mxu0 0.0
    %3027 = vmatprep.subr.mxu0 0.0
    %3028 = vmatpush2.xpose.msra.mxu0 0.0
    %3029 = vmatprep.mubr.f32.mxu0 0.0
    %3030 = vmatmul.mubr.f32.gmra.mxu0 %v2963
    %v3031 = vpop.f32.mrf.mxu0
    %v3032 = vadd.f32 0.0, %v3031
    %v3033 = vpop.f32.mrf.mxu0
    %3034 = vdwg.mxu0
    %v3036 = vsel %vm565, %v874, 0
    %3038 = vmatprep.subr.mxu0 0.0
    %3039 = vmatpush1.xpose.msra.mxu0 0.0
    %3040 = vmatprep.subr.mxu0 0.0
    %3041 = vmatpush1.xpose.msra.mxu0 0.0
    %3042 = vmatprep.subr.mxu0 0.0
    %3043 = vmatpush1.xpose.msra.mxu0 0.0
    %3044 = vmatprep.subr.mxu0 0.0
    %3045 = vmatpush1.xpose.msra.mxu0 0.0
    %3046 = vmatprep.subr.mxu0 0.0
    %3047 = vmatpush1.xpose.msra.mxu0 0.0
    %3048 = vmatprep.subr.mxu0 0.0
    %3049 = vmatpush1.xpose.msra.mxu0 0.0
    %3050 = vmatprep.subr.mxu0 0.0
    %3051 = vmatpush1.xpose.msra.mxu0 0.0
    %3052 = vmatprep.subr.mxu0 0.0
    %3053 = vmatpush1.xpose.msra.mxu0 0.0
    %3054 = vmatprep.subr.mxu0 0.0
    %3055 = vmatpush1.xpose.msra.mxu0 0.0
    %3056 = vmatprep.subr.mxu0 0.0
    %3057 = vmatpush1.xpose.msra.mxu0 0.0
    %3058 = vmatprep.subr.mxu0 0.0
    %3059 = vmatpush1.xpose.msra.mxu0 0.0
    %3060 = vmatprep.subr.mxu0 0.0
    %3061 = vmatpush1.xpose.msra.mxu0 0.0
    %3062 = vmatprep.subr.mxu0 0.0
    %3063 = vmatpush1.xpose.msra.mxu0 0.0
    %3064 = vmatprep.subr.mxu0 0.0
    %3065 = vmatpush1.xpose.msra.mxu0 0.0
    %3066 = vmatprep.subr.mxu0 0.0
    %3067 = vmatpush1.xpose.msra.mxu0 0.0
    %3068 = vmatprep.subr.mxu0 0.0
    %3069 = vmatpush1.xpose.msra.mxu0 %v1459
    %3070 = vmatprep.subr.mxu0 0.0
    %3071 = vmatpush2.xpose.msra.mxu0 0.0
    %3072 = vmatprep.subr.mxu0 0.0
    %3073 = vmatpush2.xpose.msra.mxu0 0.0
    %3074 = vmatprep.subr.mxu0 0.0
    %3075 = vmatpush2.xpose.msra.mxu0 0.0
    %3076 = vmatprep.subr.mxu0 0.0
    %3077 = vmatpush2.xpose.msra.mxu0 0.0
    %3078 = vmatprep.subr.mxu0 0.0
    %3079 = vmatpush2.xpose.msra.mxu0 0.0
    %3080 = vmatprep.subr.mxu0 0.0
    %3081 = vmatpush2.xpose.msra.mxu0 0.0
    %3082 = vmatprep.subr.mxu0 0.0
    %3083 = vmatpush2.xpose.msra.mxu0 0.0
    %3084 = vmatprep.subr.mxu0 0.0
    %3085 = vmatpush2.xpose.msra.mxu0 0.0
    %3086 = vmatprep.subr.mxu0 0.0
    %3087 = vmatpush2.xpose.msra.mxu0 0.0
    %3088 = vmatprep.subr.mxu0 0.0
    %3089 = vmatpush2.xpose.msra.mxu0 0.0
    %3090 = vmatprep.subr.mxu0 0.0
    %3091 = vmatpush2.xpose.msra.mxu0 0.0
    %3092 = vmatprep.subr.mxu0 0.0
    %3093 = vmatpush2.xpose.msra.mxu0 0.0
    %3094 = vmatprep.subr.mxu0 0.0
    %3095 = vmatpush2.xpose.msra.mxu0 0.0
    %3096 = vmatprep.subr.mxu0 0.0
    %3097 = vmatpush2.xpose.msra.mxu0 0.0
    %3098 = vmatprep.subr.mxu0 0.0
    %3099 = vmatpush2.xpose.msra.mxu0 0.0
    %3100 = vmatprep.subr.mxu0 0.0
    %3101 = vmatpush2.xpose.msra.mxu0 0.0
    %3102 = vmatprep.mubr.f32.mxu0 0.0
    %3103 = vmatmul.mubr.f32.gmra.mxu0 %v3036
    %v3104 = vpop.f32.mrf.mxu0
    %v3105 = vadd.f32 0.0, %v3104
    %v3106 = vpop.f32.mrf.mxu0
    %3107 = vdwg.mxu0
    %v3108 = vmul.f32 %v847, %v2594
    %v3109 = vmul.f32 %v847, %v2667
    %v3110 = vmul.f32 %v847, %v2740
    %v3111 = vmul.f32 %v847, %v2813
    %v3112 = vmul.f32 %v847, %v2886
    %v3113 = vmul.f32 %v847, %v2959
    %v3114 = vmul.f32 %v847, %v3032
    %v3115 = vmul.f32 %v847, %v3105
    %3116 = vmatprep.subr.mxu0 0.0
    %3117 = vmatpush1.msra.mxu0 0.0
    %3118 = vmatprep.subr.mxu0 0.0
    %3119 = vmatpush1.msra.mxu0 0.0
    %3120 = vmatprep.subr.mxu0 0.0
    %3121 = vmatpush1.msra.mxu0 0.0
    %3122 = vmatprep.subr.mxu0 0.0
    %3123 = vmatpush1.msra.mxu0 0.0
    %3124 = vmatprep.subr.mxu0 0.0
    %3125 = vmatpush1.msra.mxu0 0.0
    %3126 = vmatprep.subr.mxu0 0.0
    %3127 = vmatpush1.msra.mxu0 0.0
    %3128 = vmatprep.subr.mxu0 0.0
    %3129 = vmatpush1.msra.mxu0 0.0
    %3130 = vmatprep.subr.mxu0 0.0
    %3131 = vmatpush1.msra.mxu0 0.0
    %3132 = vmatprep.subr.mxu0 0.0
    %3133 = vmatpush1.msra.mxu0 0.0
    %3134 = vmatprep.subr.mxu0 0.0
    %3135 = vmatpush1.msra.mxu0 0.0
    %3136 = vmatprep.subr.mxu0 0.0
    %3137 = vmatpush1.msra.mxu0 0.0
    %3138 = vmatprep.subr.mxu0 0.0
    %3139 = vmatpush1.msra.mxu0 0.0
    %3140 = vmatprep.subr.mxu0 0.0
    %3141 = vmatpush1.msra.mxu0 0.0
    %3142 = vmatprep.subr.mxu0 0.0
    %3143 = vmatpush1.msra.mxu0 0.0
    %3144 = vmatprep.subr.mxu0 0.0
    %3145 = vmatpush1.msra.mxu0 0.0
    %3146 = vmatprep.subr.mxu0 0.0
    %3147 = vmatpush1.msra.mxu0 %v851
    %3148 = vmatprep.subr.mxu0 0.0
    %3149 = vmatpush2.msra.mxu0 0.0
    %3150 = vmatprep.subr.mxu0 0.0
    %3151 = vmatpush2.msra.mxu0 0.0
    %3152 = vmatprep.subr.mxu0 0.0
    %3153 = vmatpush2.msra.mxu0 0.0
    %3154 = vmatprep.subr.mxu0 0.0
    %3155 = vmatpush2.msra.mxu0 0.0
    %3156 = vmatprep.subr.mxu0 0.0
    %3157 = vmatpush2.msra.mxu0 0.0
    %3158 = vmatprep.subr.mxu0 0.0
    %3159 = vmatpush2.msra.mxu0 0.0
    %3160 = vmatprep.subr.mxu0 0.0
    %3161 = vmatpush2.msra.mxu0 0.0
    %3162 = vmatprep.subr.mxu0 0.0
    %3163 = vmatpush2.msra.mxu0 0.0
    %3164 = vmatprep.subr.mxu0 0.0
    %3165 = vmatpush2.msra.mxu0 0.0
    %3166 = vmatprep.subr.mxu0 0.0
    %3167 = vmatpush2.msra.mxu0 0.0
    %3168 = vmatprep.subr.mxu0 0.0
    %3169 = vmatpush2.msra.mxu0 0.0
    %3170 = vmatprep.subr.mxu0 0.0
    %3171 = vmatpush2.msra.mxu0 0.0
    %3172 = vmatprep.subr.mxu0 0.0
    %3173 = vmatpush2.msra.mxu0 0.0
    %3174 = vmatprep.subr.mxu0 0.0
    %3175 = vmatpush2.msra.mxu0 0.0
    %3176 = vmatprep.subr.mxu0 0.0
    %3177 = vmatpush2.msra.mxu0 0.0
    %3178 = vmatprep.subr.mxu0 0.0
    %3179 = vmatpush2.msra.mxu0 0.0
    %3180 = vmatprep.mubr.f32.mxu0 0.0
    %3181 = vmatmul.mubr.f32.gmra.mxu0 %v2525
    %v3182 = vpop.f32.mrf.mxu0
    %v3183 = vadd.f32 0.0, %v3182
    %v3184 = vpop.f32.mrf.mxu0
    %3185 = vdwg.mxu0
    %3186 = vmatprep.subr.mxu0 0.0
    %3187 = vmatpush1.msra.mxu0 0.0
    %3188 = vmatprep.subr.mxu0 0.0
    %3189 = vmatpush1.msra.mxu0 0.0
    %3190 = vmatprep.subr.mxu0 0.0
    %3191 = vmatpush1.msra.mxu0 0.0
    %3192 = vmatprep.subr.mxu0 0.0
    %3193 = vmatpush1.msra.mxu0 0.0
    %3194 = vmatprep.subr.mxu0 0.0
    %3195 = vmatpush1.msra.mxu0 0.0
    %3196 = vmatprep.subr.mxu0 0.0
    %3197 = vmatpush1.msra.mxu0 0.0
    %3198 = vmatprep.subr.mxu0 0.0
    %3199 = vmatpush1.msra.mxu0 0.0
    %3200 = vmatprep.subr.mxu0 0.0
    %3201 = vmatpush1.msra.mxu0 0.0
    %3202 = vmatprep.subr.mxu0 0.0
    %3203 = vmatpush1.msra.mxu0 0.0
    %3204 = vmatprep.subr.mxu0 0.0
    %3205 = vmatpush1.msra.mxu0 0.0
    %3206 = vmatprep.subr.mxu0 0.0
    %3207 = vmatpush1.msra.mxu0 0.0
    %3208 = vmatprep.subr.mxu0 0.0
    %3209 = vmatpush1.msra.mxu0 0.0
    %3210 = vmatprep.subr.mxu0 0.0
    %3211 = vmatpush1.msra.mxu0 0.0
    %3212 = vmatprep.subr.mxu0 0.0
    %3213 = vmatpush1.msra.mxu0 0.0
    %3214 = vmatprep.subr.mxu0 0.0
    %3215 = vmatpush1.msra.mxu0 0.0
    %3216 = vmatprep.subr.mxu0 0.0
    %3217 = vmatpush1.msra.mxu0 %v852
    %3218 = vmatprep.subr.mxu0 0.0
    %3219 = vmatpush2.msra.mxu0 0.0
    %3220 = vmatprep.subr.mxu0 0.0
    %3221 = vmatpush2.msra.mxu0 0.0
    %3222 = vmatprep.subr.mxu0 0.0
    %3223 = vmatpush2.msra.mxu0 0.0
    %3224 = vmatprep.subr.mxu0 0.0
    %3225 = vmatpush2.msra.mxu0 0.0
    %3226 = vmatprep.subr.mxu0 0.0
    %3227 = vmatpush2.msra.mxu0 0.0
    %3228 = vmatprep.subr.mxu0 0.0
    %3229 = vmatpush2.msra.mxu0 0.0
    %3230 = vmatprep.subr.mxu0 0.0
    %3231 = vmatpush2.msra.mxu0 0.0
    %3232 = vmatprep.subr.mxu0 0.0
    %3233 = vmatpush2.msra.mxu0 0.0
    %3234 = vmatprep.subr.mxu0 0.0
    %3235 = vmatpush2.msra.mxu0 0.0
    %3236 = vmatprep.subr.mxu0 0.0
    %3237 = vmatpush2.msra.mxu0 0.0
    %3238 = vmatprep.subr.mxu0 0.0
    %3239 = vmatpush2.msra.mxu0 0.0
    %3240 = vmatprep.subr.mxu0 0.0
    %3241 = vmatpush2.msra.mxu0 0.0
    %3242 = vmatprep.subr.mxu0 0.0
    %3243 = vmatpush2.msra.mxu0 0.0
    %3244 = vmatprep.subr.mxu0 0.0
    %3245 = vmatpush2.msra.mxu0 0.0
    %3246 = vmatprep.subr.mxu0 0.0
    %3247 = vmatpush2.msra.mxu0 0.0
    %3248 = vmatprep.subr.mxu0 0.0
    %3249 = vmatpush2.msra.mxu0 0.0
    %3250 = vmatprep.mubr.f32.mxu0 0.0
    %3251 = vmatmul.mubr.f32.gmra.mxu0 %v2598
    %v3252 = vpop.f32.mrf.mxu0
    %v3253 = vadd.f32 0.0, %v3252
    %v3254 = vpop.f32.mrf.mxu0
    %3255 = vdwg.mxu0
    %3256 = vmatprep.subr.mxu0 0.0
    %3257 = vmatpush1.msra.mxu0 0.0
    %3258 = vmatprep.subr.mxu0 0.0
    %3259 = vmatpush1.msra.mxu0 0.0
    %3260 = vmatprep.subr.mxu0 0.0
    %3261 = vmatpush1.msra.mxu0 0.0
    %3262 = vmatprep.subr.mxu0 0.0
    %3263 = vmatpush1.msra.mxu0 0.0
    %3264 = vmatprep.subr.mxu0 0.0
    %3265 = vmatpush1.msra.mxu0 0.0
    %3266 = vmatprep.subr.mxu0 0.0
    %3267 = vmatpush1.msra.mxu0 0.0
    %3268 = vmatprep.subr.mxu0 0.0
    %3269 = vmatpush1.msra.mxu0 0.0
    %3270 = vmatprep.subr.mxu0 0.0
    %3271 = vmatpush1.msra.mxu0 0.0
    %3272 = vmatprep.subr.mxu0 0.0
    %3273 = vmatpush1.msra.mxu0 0.0
    %3274 = vmatprep.subr.mxu0 0.0
    %3275 = vmatpush1.msra.mxu0 0.0
    %3276 = vmatprep.subr.mxu0 0.0
    %3277 = vmatpush1.msra.mxu0 0.0
    %3278 = vmatprep.subr.mxu0 0.0
    %3279 = vmatpush1.msra.mxu0 0.0
    %3280 = vmatprep.subr.mxu0 0.0
    %3281 = vmatpush1.msra.mxu0 0.0
    %3282 = vmatprep.subr.mxu0 0.0
    %3283 = vmatpush1.msra.mxu0 0.0
    %3284 = vmatprep.subr.mxu0 0.0
    %3285 = vmatpush1.msra.mxu0 0.0
    %3286 = vmatprep.subr.mxu0 0.0
    %3287 = vmatpush1.msra.mxu0 %v853
    %3288 = vmatprep.subr.mxu0 0.0
    %3289 = vmatpush2.msra.mxu0 0.0
    %3290 = vmatprep.subr.mxu0 0.0
    %3291 = vmatpush2.msra.mxu0 0.0
    %3292 = vmatprep.subr.mxu0 0.0
    %3293 = vmatpush2.msra.mxu0 0.0
    %3294 = vmatprep.subr.mxu0 0.0
    %3295 = vmatpush2.msra.mxu0 0.0
    %3296 = vmatprep.subr.mxu0 0.0
    %3297 = vmatpush2.msra.mxu0 0.0
    %3298 = vmatprep.subr.mxu0 0.0
    %3299 = vmatpush2.msra.mxu0 0.0
    %3300 = vmatprep.subr.mxu0 0.0
    %3301 = vmatpush2.msra.mxu0 0.0
    %3302 = vmatprep.subr.mxu0 0.0
    %3303 = vmatpush2.msra.mxu0 0.0
    %3304 = vmatprep.subr.mxu0 0.0
    %3305 = vmatpush2.msra.mxu0 0.0
    %3306 = vmatprep.subr.mxu0 0.0
    %3307 = vmatpush2.msra.mxu0 0.0
    %3308 = vmatprep.subr.mxu0 0.0
    %3309 = vmatpush2.msra.mxu0 0.0
    %3310 = vmatprep.subr.mxu0 0.0
    %3311 = vmatpush2.msra.mxu0 0.0
    %3312 = vmatprep.subr.mxu0 0.0
    %3313 = vmatpush2.msra.mxu0 0.0
    %3314 = vmatprep.subr.mxu0 0.0
    %3315 = vmatpush2.msra.mxu0 0.0
    %3316 = vmatprep.subr.mxu0 0.0
    %3317 = vmatpush2.msra.mxu0 0.0
    %3318 = vmatprep.subr.mxu0 0.0
    %3319 = vmatpush2.msra.mxu0 0.0
    %3320 = vmatprep.mubr.f32.mxu0 0.0
    %3321 = vmatmul.mubr.f32.gmra.mxu0 %v2671
    %v3322 = vpop.f32.mrf.mxu0
    %v3323 = vadd.f32 0.0, %v3322
    %v3324 = vpop.f32.mrf.mxu0
    %3325 = vdwg.mxu0
    %3326 = vmatprep.subr.mxu0 0.0
    %3327 = vmatpush1.msra.mxu0 0.0
    %3328 = vmatprep.subr.mxu0 0.0
    %3329 = vmatpush1.msra.mxu0 0.0
    %3330 = vmatprep.subr.mxu0 0.0
    %3331 = vmatpush1.msra.mxu0 0.0
    %3332 = vmatprep.subr.mxu0 0.0
    %3333 = vmatpush1.msra.mxu0 0.0
    %3334 = vmatprep.subr.mxu0 0.0
    %3335 = vmatpush1.msra.mxu0 0.0
    %3336 = vmatprep.subr.mxu0 0.0
    %3337 = vmatpush1.msra.mxu0 0.0
    %3338 = vmatprep.subr.mxu0 0.0
    %3339 = vmatpush1.msra.mxu0 0.0
    %3340 = vmatprep.subr.mxu0 0.0
    %3341 = vmatpush1.msra.mxu0 0.0
    %3342 = vmatprep.subr.mxu0 0.0
    %3343 = vmatpush1.msra.mxu0 0.0
    %3344 = vmatprep.subr.mxu0 0.0
    %3345 = vmatpush1.msra.mxu0 0.0
    %3346 = vmatprep.subr.mxu0 0.0
    %3347 = vmatpush1.msra.mxu0 0.0
    %3348 = vmatprep.subr.mxu0 0.0
    %3349 = vmatpush1.msra.mxu0 0.0
    %3350 = vmatprep.subr.mxu0 0.0
    %3351 = vmatpush1.msra.mxu0 0.0
    %3352 = vmatprep.subr.mxu0 0.0
    %3353 = vmatpush1.msra.mxu0 0.0
    %3354 = vmatprep.subr.mxu0 0.0
    %3355 = vmatpush1.msra.mxu0 0.0
    %3356 = vmatprep.subr.mxu0 0.0
    %3357 = vmatpush1.msra.mxu0 %v854
    %3358 = vmatprep.subr.mxu0 0.0
    %3359 = vmatpush2.msra.mxu0 0.0
    %3360 = vmatprep.subr.mxu0 0.0
    %3361 = vmatpush2.msra.mxu0 0.0
    %3362 = vmatprep.subr.mxu0 0.0
    %3363 = vmatpush2.msra.mxu0 0.0
    %3364 = vmatprep.subr.mxu0 0.0
    %3365 = vmatpush2.msra.mxu0 0.0
    %3366 = vmatprep.subr.mxu0 0.0
    %3367 = vmatpush2.msra.mxu0 0.0
    %3368 = vmatprep.subr.mxu0 0.0
    %3369 = vmatpush2.msra.mxu0 0.0
    %3370 = vmatprep.subr.mxu0 0.0
    %3371 = vmatpush2.msra.mxu0 0.0
    %3372 = vmatprep.subr.mxu0 0.0
    %3373 = vmatpush2.msra.mxu0 0.0
    %3374 = vmatprep.subr.mxu0 0.0
    %3375 = vmatpush2.msra.mxu0 0.0
    %3376 = vmatprep.subr.mxu0 0.0
    %3377 = vmatpush2.msra.mxu0 0.0
    %3378 = vmatprep.subr.mxu0 0.0
    %3379 = vmatpush2.msra.mxu0 0.0
    %3380 = vmatprep.subr.mxu0 0.0
    %3381 = vmatpush2.msra.mxu0 0.0
    %3382 = vmatprep.subr.mxu0 0.0
    %3383 = vmatpush2.msra.mxu0 0.0
    %3384 = vmatprep.subr.mxu0 0.0
    %3385 = vmatpush2.msra.mxu0 0.0
    %3386 = vmatprep.subr.mxu0 0.0
    %3387 = vmatpush2.msra.mxu0 0.0
    %3388 = vmatprep.subr.mxu0 0.0
    %3389 = vmatpush2.msra.mxu0 0.0
    %3390 = vmatprep.mubr.f32.mxu0 0.0
    %3391 = vmatmul.mubr.f32.gmra.mxu0 %v2744
    %v3392 = vpop.f32.mrf.mxu0
    %v3393 = vadd.f32 0.0, %v3392
    %v3394 = vpop.f32.mrf.mxu0
    %3395 = vdwg.mxu0
    %3396 = vmatprep.subr.mxu0 0.0
    %3397 = vmatpush1.msra.mxu0 0.0
    %3398 = vmatprep.subr.mxu0 0.0
    %3399 = vmatpush1.msra.mxu0 0.0
    %3400 = vmatprep.subr.mxu0 0.0
    %3401 = vmatpush1.msra.mxu0 0.0
    %3402 = vmatprep.subr.mxu0 0.0
    %3403 = vmatpush1.msra.mxu0 0.0
    %3404 = vmatprep.subr.mxu0 0.0
    %3405 = vmatpush1.msra.mxu0 0.0
    %3406 = vmatprep.subr.mxu0 0.0
    %3407 = vmatpush1.msra.mxu0 0.0
    %3408 = vmatprep.subr.mxu0 0.0
    %3409 = vmatpush1.msra.mxu0 0.0
    %3410 = vmatprep.subr.mxu0 0.0
    %3411 = vmatpush1.msra.mxu0 0.0
    %3412 = vmatprep.subr.mxu0 0.0
    %3413 = vmatpush1.msra.mxu0 0.0
    %3414 = vmatprep.subr.mxu0 0.0
    %3415 = vmatpush1.msra.mxu0 0.0
    %3416 = vmatprep.subr.mxu0 0.0
    %3417 = vmatpush1.msra.mxu0 0.0
    %3418 = vmatprep.subr.mxu0 0.0
    %3419 = vmatpush1.msra.mxu0 0.0
    %3420 = vmatprep.subr.mxu0 0.0
    %3421 = vmatpush1.msra.mxu0 0.0
    %3422 = vmatprep.subr.mxu0 0.0
    %3423 = vmatpush1.msra.mxu0 0.0
    %3424 = vmatprep.subr.mxu0 0.0
    %3425 = vmatpush1.msra.mxu0 0.0
    %3426 = vmatprep.subr.mxu0 0.0
    %3427 = vmatpush1.msra.mxu0 %v855
    %3428 = vmatprep.subr.mxu0 0.0
    %3429 = vmatpush2.msra.mxu0 0.0
    %3430 = vmatprep.subr.mxu0 0.0
    %3431 = vmatpush2.msra.mxu0 0.0
    %3432 = vmatprep.subr.mxu0 0.0
    %3433 = vmatpush2.msra.mxu0 0.0
    %3434 = vmatprep.subr.mxu0 0.0
    %3435 = vmatpush2.msra.mxu0 0.0
    %3436 = vmatprep.subr.mxu0 0.0
    %3437 = vmatpush2.msra.mxu0 0.0
    %3438 = vmatprep.subr.mxu0 0.0
    %3439 = vmatpush2.msra.mxu0 0.0
    %3440 = vmatprep.subr.mxu0 0.0
    %3441 = vmatpush2.msra.mxu0 0.0
    %3442 = vmatprep.subr.mxu0 0.0
    %3443 = vmatpush2.msra.mxu0 0.0
    %3444 = vmatprep.subr.mxu0 0.0
    %3445 = vmatpush2.msra.mxu0 0.0
    %3446 = vmatprep.subr.mxu0 0.0
    %3447 = vmatpush2.msra.mxu0 0.0
    %3448 = vmatprep.subr.mxu0 0.0
    %3449 = vmatpush2.msra.mxu0 0.0
    %3450 = vmatprep.subr.mxu0 0.0
    %3451 = vmatpush2.msra.mxu0 0.0
    %3452 = vmatprep.subr.mxu0 0.0
    %3453 = vmatpush2.msra.mxu0 0.0
    %3454 = vmatprep.subr.mxu0 0.0
    %3455 = vmatpush2.msra.mxu0 0.0
    %3456 = vmatprep.subr.mxu0 0.0
    %3457 = vmatpush2.msra.mxu0 0.0
    %3458 = vmatprep.subr.mxu0 0.0
    %3459 = vmatpush2.msra.mxu0 0.0
    %3460 = vmatprep.mubr.f32.mxu0 0.0
    %3461 = vmatmul.mubr.f32.gmra.mxu0 %v2817
    %v3462 = vpop.f32.mrf.mxu0
    %v3463 = vadd.f32 0.0, %v3462
    %v3464 = vpop.f32.mrf.mxu0
    %3465 = vdwg.mxu0
    %3466 = vmatprep.subr.mxu0 0.0
    %3467 = vmatpush1.msra.mxu0 0.0
    %3468 = vmatprep.subr.mxu0 0.0
    %3469 = vmatpush1.msra.mxu0 0.0
    %3470 = vmatprep.subr.mxu0 0.0
    %3471 = vmatpush1.msra.mxu0 0.0
    %3472 = vmatprep.subr.mxu0 0.0
    %3473 = vmatpush1.msra.mxu0 0.0
    %3474 = vmatprep.subr.mxu0 0.0
    %3475 = vmatpush1.msra.mxu0 0.0
    %3476 = vmatprep.subr.mxu0 0.0
    %3477 = vmatpush1.msra.mxu0 0.0
    %3478 = vmatprep.subr.mxu0 0.0
    %3479 = vmatpush1.msra.mxu0 0.0
    %3480 = vmatprep.subr.mxu0 0.0
    %3481 = vmatpush1.msra.mxu0 0.0
    %3482 = vmatprep.subr.mxu0 0.0
    %3483 = vmatpush1.msra.mxu0 0.0
    %3484 = vmatprep.subr.mxu0 0.0
    %3485 = vmatpush1.msra.mxu0 0.0
    %3486 = vmatprep.subr.mxu0 0.0
    %3487 = vmatpush1.msra.mxu0 0.0
    %3488 = vmatprep.subr.mxu0 0.0
    %3489 = vmatpush1.msra.mxu0 0.0
    %3490 = vmatprep.subr.mxu0 0.0
    %3491 = vmatpush1.msra.mxu0 0.0
    %3492 = vmatprep.subr.mxu0 0.0
    %3493 = vmatpush1.msra.mxu0 0.0
    %3494 = vmatprep.subr.mxu0 0.0
    %3495 = vmatpush1.msra.mxu0 0.0
    %3496 = vmatprep.subr.mxu0 0.0
    %3497 = vmatpush1.msra.mxu0 %v856
    %3498 = vmatprep.subr.mxu0 0.0
    %3499 = vmatpush2.msra.mxu0 0.0
    %3500 = vmatprep.subr.mxu0 0.0
    %3501 = vmatpush2.msra.mxu0 0.0
    %3502 = vmatprep.subr.mxu0 0.0
    %3503 = vmatpush2.msra.mxu0 0.0
    %3504 = vmatprep.subr.mxu0 0.0
    %3505 = vmatpush2.msra.mxu0 0.0
    %3506 = vmatprep.subr.mxu0 0.0
    %3507 = vmatpush2.msra.mxu0 0.0
    %3508 = vmatprep.subr.mxu0 0.0
    %3509 = vmatpush2.msra.mxu0 0.0
    %3510 = vmatprep.subr.mxu0 0.0
    %3511 = vmatpush2.msra.mxu0 0.0
    %3512 = vmatprep.subr.mxu0 0.0
    %3513 = vmatpush2.msra.mxu0 0.0
    %3514 = vmatprep.subr.mxu0 0.0
    %3515 = vmatpush2.msra.mxu0 0.0
    %3516 = vmatprep.subr.mxu0 0.0
    %3517 = vmatpush2.msra.mxu0 0.0
    %3518 = vmatprep.subr.mxu0 0.0
    %3519 = vmatpush2.msra.mxu0 0.0
    %3520 = vmatprep.subr.mxu0 0.0
    %3521 = vmatpush2.msra.mxu0 0.0
    %3522 = vmatprep.subr.mxu0 0.0
    %3523 = vmatpush2.msra.mxu0 0.0
    %3524 = vmatprep.subr.mxu0 0.0
    %3525 = vmatpush2.msra.mxu0 0.0
    %3526 = vmatprep.subr.mxu0 0.0
    %3527 = vmatpush2.msra.mxu0 0.0
    %3528 = vmatprep.subr.mxu0 0.0
    %3529 = vmatpush2.msra.mxu0 0.0
    %3530 = vmatprep.mubr.f32.mxu0 0.0
    %3531 = vmatmul.mubr.f32.gmra.mxu0 %v2890
    %v3532 = vpop.f32.mrf.mxu0
    %v3533 = vadd.f32 0.0, %v3532
    %v3534 = vpop.f32.mrf.mxu0
    %3535 = vdwg.mxu0
    %3536 = vmatprep.subr.mxu0 0.0
    %3537 = vmatpush1.msra.mxu0 0.0
    %3538 = vmatprep.subr.mxu0 0.0
    %3539 = vmatpush1.msra.mxu0 0.0
    %3540 = vmatprep.subr.mxu0 0.0
    %3541 = vmatpush1.msra.mxu0 0.0
    %3542 = vmatprep.subr.mxu0 0.0
    %3543 = vmatpush1.msra.mxu0 0.0
    %3544 = vmatprep.subr.mxu0 0.0
    %3545 = vmatpush1.msra.mxu0 0.0
    %3546 = vmatprep.subr.mxu0 0.0
    %3547 = vmatpush1.msra.mxu0 0.0
    %3548 = vmatprep.subr.mxu0 0.0
    %3549 = vmatpush1.msra.mxu0 0.0
    %3550 = vmatprep.subr.mxu0 0.0
    %3551 = vmatpush1.msra.mxu0 0.0
    %3552 = vmatprep.subr.mxu0 0.0
    %3553 = vmatpush1.msra.mxu0 0.0
    %3554 = vmatprep.subr.mxu0 0.0
    %3555 = vmatpush1.msra.mxu0 0.0
    %3556 = vmatprep.subr.mxu0 0.0
    %3557 = vmatpush1.msra.mxu0 0.0
    %3558 = vmatprep.subr.mxu0 0.0
    %3559 = vmatpush1.msra.mxu0 0.0
    %3560 = vmatprep.subr.mxu0 0.0
    %3561 = vmatpush1.msra.mxu0 0.0
    %3562 = vmatprep.subr.mxu0 0.0
    %3563 = vmatpush1.msra.mxu0 0.0
    %3564 = vmatprep.subr.mxu0 0.0
    %3565 = vmatpush1.msra.mxu0 0.0
    %3566 = vmatprep.subr.mxu0 0.0
    %3567 = vmatpush1.msra.mxu0 %v857
    %3568 = vmatprep.subr.mxu0 0.0
    %3569 = vmatpush2.msra.mxu0 0.0
    %3570 = vmatprep.subr.mxu0 0.0
    %3571 = vmatpush2.msra.mxu0 0.0
    %3572 = vmatprep.subr.mxu0 0.0
    %3573 = vmatpush2.msra.mxu0 0.0
    %3574 = vmatprep.subr.mxu0 0.0
    %3575 = vmatpush2.msra.mxu0 0.0
    %3576 = vmatprep.subr.mxu0 0.0
    %3577 = vmatpush2.msra.mxu0 0.0
    %3578 = vmatprep.subr.mxu0 0.0
    %3579 = vmatpush2.msra.mxu0 0.0
    %3580 = vmatprep.subr.mxu0 0.0
    %3581 = vmatpush2.msra.mxu0 0.0
    %3582 = vmatprep.subr.mxu0 0.0
    %3583 = vmatpush2.msra.mxu0 0.0
    %3584 = vmatprep.subr.mxu0 0.0
    %3585 = vmatpush2.msra.mxu0 0.0
    %3586 = vmatprep.subr.mxu0 0.0
    %3587 = vmatpush2.msra.mxu0 0.0
    %3588 = vmatprep.subr.mxu0 0.0
    %3589 = vmatpush2.msra.mxu0 0.0
    %3590 = vmatprep.subr.mxu0 0.0
    %3591 = vmatpush2.msra.mxu0 0.0
    %3592 = vmatprep.subr.mxu0 0.0
    %3593 = vmatpush2.msra.mxu0 0.0
    %3594 = vmatprep.subr.mxu0 0.0
    %3595 = vmatpush2.msra.mxu0 0.0
    %3596 = vmatprep.subr.mxu0 0.0
    %3597 = vmatpush2.msra.mxu0 0.0
    %3598 = vmatprep.subr.mxu0 0.0
    %3599 = vmatpush2.msra.mxu0 0.0
    %3600 = vmatprep.mubr.f32.mxu0 0.0
    %3601 = vmatmul.mubr.f32.gmra.mxu0 %v2963
    %v3602 = vpop.f32.mrf.mxu0
    %v3603 = vadd.f32 0.0, %v3602
    %v3604 = vpop.f32.mrf.mxu0
    %3605 = vdwg.mxu0
    %3606 = vmatprep.subr.mxu0 0.0
    %3607 = vmatpush1.msra.mxu0 0.0
    %3608 = vmatprep.subr.mxu0 0.0
    %3609 = vmatpush1.msra.mxu0 0.0
    %3610 = vmatprep.subr.mxu0 0.0
    %3611 = vmatpush1.msra.mxu0 0.0
    %3612 = vmatprep.subr.mxu0 0.0
    %3613 = vmatpush1.msra.mxu0 0.0
    %3614 = vmatprep.subr.mxu0 0.0
    %3615 = vmatpush1.msra.mxu0 0.0
    %3616 = vmatprep.subr.mxu0 0.0
    %3617 = vmatpush1.msra.mxu0 0.0
    %3618 = vmatprep.subr.mxu0 0.0
    %3619 = vmatpush1.msra.mxu0 0.0
    %3620 = vmatprep.subr.mxu0 0.0
    %3621 = vmatpush1.msra.mxu0 0.0
    %3622 = vmatprep.subr.mxu0 0.0
    %3623 = vmatpush1.msra.mxu0 0.0
    %3624 = vmatprep.subr.mxu0 0.0
    %3625 = vmatpush1.msra.mxu0 0.0
    %3626 = vmatprep.subr.mxu0 0.0
    %3627 = vmatpush1.msra.mxu0 0.0
    %3628 = vmatprep.subr.mxu0 0.0
    %3629 = vmatpush1.msra.mxu0 0.0
    %3630 = vmatprep.subr.mxu0 0.0
    %3631 = vmatpush1.msra.mxu0 0.0
    %3632 = vmatprep.subr.mxu0 0.0
    %3633 = vmatpush1.msra.mxu0 0.0
    %3634 = vmatprep.subr.mxu0 0.0
    %3635 = vmatpush1.msra.mxu0 0.0
    %3636 = vmatprep.subr.mxu0 0.0
    %3637 = vmatpush1.msra.mxu0 %v858
    %3638 = vmatprep.subr.mxu0 0.0
    %3639 = vmatpush2.msra.mxu0 0.0
    %3640 = vmatprep.subr.mxu0 0.0
    %3641 = vmatpush2.msra.mxu0 0.0
    %3642 = vmatprep.subr.mxu0 0.0
    %3643 = vmatpush2.msra.mxu0 0.0
    %3644 = vmatprep.subr.mxu0 0.0
    %3645 = vmatpush2.msra.mxu0 0.0
    %3646 = vmatprep.subr.mxu0 0.0
    %3647 = vmatpush2.msra.mxu0 0.0
    %3648 = vmatprep.subr.mxu0 0.0
    %3649 = vmatpush2.msra.mxu0 0.0
    %3650 = vmatprep.subr.mxu0 0.0
    %3651 = vmatpush2.msra.mxu0 0.0
    %3652 = vmatprep.subr.mxu0 0.0
    %3653 = vmatpush2.msra.mxu0 0.0
    %3654 = vmatprep.subr.mxu0 0.0
    %3655 = vmatpush2.msra.mxu0 0.0
    %3656 = vmatprep.subr.mxu0 0.0
    %3657 = vmatpush2.msra.mxu0 0.0
    %3658 = vmatprep.subr.mxu0 0.0
    %3659 = vmatpush2.msra.mxu0 0.0
    %3660 = vmatprep.subr.mxu0 0.0
    %3661 = vmatpush2.msra.mxu0 0.0
    %3662 = vmatprep.subr.mxu0 0.0
    %3663 = vmatpush2.msra.mxu0 0.0
    %3664 = vmatprep.subr.mxu0 0.0
    %3665 = vmatpush2.msra.mxu0 0.0
    %3666 = vmatprep.subr.mxu0 0.0
    %3667 = vmatpush2.msra.mxu0 0.0
    %3668 = vmatprep.subr.mxu0 0.0
    %3669 = vmatpush2.msra.mxu0 0.0
    %3670 = vmatprep.mubr.f32.mxu0 0.0
    %3671 = vmatmul.mubr.f32.gmra.mxu0 %v3036
    %v3672 = vpop.f32.mrf.mxu0
    %v3673 = vadd.f32 0.0, %v3672
    %v3674 = vpop.f32.mrf.mxu0
    %3675 = vdwg.mxu0
    %3676 = vmatprep.subr.mxu0 0.0
    %3677 = vmatpush1.msra.mxu0 0.0
    %3678 = vmatprep.subr.mxu0 0.0
    %3679 = vmatpush1.msra.mxu0 0.0
    %3680 = vmatprep.subr.mxu0 0.0
    %3681 = vmatpush1.msra.mxu0 0.0
    %3682 = vmatprep.subr.mxu0 0.0
    %3683 = vmatpush1.msra.mxu0 0.0
    %3684 = vmatprep.subr.mxu0 0.0
    %3685 = vmatpush1.msra.mxu0 0.0
    %3686 = vmatprep.subr.mxu0 0.0
    %3687 = vmatpush1.msra.mxu0 0.0
    %3688 = vmatprep.subr.mxu0 0.0
    %3689 = vmatpush1.msra.mxu0 0.0
    %3690 = vmatprep.subr.mxu0 0.0
    %3691 = vmatpush1.msra.mxu0 0.0
    %3692 = vmatprep.subr.mxu0 0.0
    %3693 = vmatpush1.msra.mxu0 0.0
    %3694 = vmatprep.subr.mxu0 0.0
    %3695 = vmatpush1.msra.mxu0 0.0
    %3696 = vmatprep.subr.mxu0 0.0
    %3697 = vmatpush1.msra.mxu0 0.0
    %3698 = vmatprep.subr.mxu0 0.0
    %3699 = vmatpush1.msra.mxu0 0.0
    %3700 = vmatprep.subr.mxu0 0.0
    %3701 = vmatpush1.msra.mxu0 0.0
    %3702 = vmatprep.subr.mxu0 0.0
    %3703 = vmatpush1.msra.mxu0 0.0
    %3704 = vmatprep.subr.mxu0 0.0
    %3705 = vmatpush1.msra.mxu0 0.0
    %3706 = vmatprep.subr.mxu0 0.0
    %3707 = vmatpush1.msra.mxu0 0.0
    %3708 = vmatprep.subr.mxu0 0.0
    %3709 = vmatpush2.msra.mxu0 0.0
    %3710 = vmatprep.subr.mxu0 0.0
    %3711 = vmatpush2.msra.mxu0 0.0
    %3712 = vmatprep.subr.mxu0 0.0
    %3713 = vmatpush2.msra.mxu0 0.0
    %3714 = vmatprep.subr.mxu0 0.0
    %3715 = vmatpush2.msra.mxu0 0.0
    %3716 = vmatprep.subr.mxu0 0.0
    %3717 = vmatpush2.msra.mxu0 0.0
    %3718 = vmatprep.subr.mxu0 0.0
    %3719 = vmatpush2.msra.mxu0 0.0
    %3720 = vmatprep.subr.mxu0 0.0
    %3721 = vmatpush2.msra.mxu0 0.0
    %3722 = vmatprep.subr.mxu0 0.0
    %3723 = vmatpush2.msra.mxu0 0.0
    %3724 = vmatprep.subr.mxu0 0.0
    %3725 = vmatpush2.msra.mxu0 0.0
    %3726 = vmatprep.subr.mxu0 0.0
    %3727 = vmatpush2.msra.mxu0 0.0
    %3728 = vmatprep.subr.mxu0 0.0
    %3729 = vmatpush2.msra.mxu0 0.0
    %3730 = vmatprep.subr.mxu0 0.0
    %3731 = vmatpush2.msra.mxu0 0.0
    %3732 = vmatprep.subr.mxu0 0.0
    %3733 = vmatpush2.msra.mxu0 0.0
    %3734 = vmatprep.subr.mxu0 0.0
    %3735 = vmatpush2.msra.mxu0 0.0
    %3736 = vmatprep.subr.mxu0 0.0
    %3737 = vmatpush2.msra.mxu0 0.0
    %3738 = vmatprep.subr.mxu0 0.0
    %3739 = vmatpush2.msra.mxu0 0.0
    %3740 = vmatprep.mubr.f32.mxu0 0.0
    %3741 = vmatmul.mubr.f32.gmra.mxu0 %v2525
    %v3742 = vpop.f32.mrf.mxu0
    %v3743 = vadd.f32 0.0, %v3742
    %v3744 = vpop.f32.mrf.mxu0
    %3745 = vdwg.mxu0
    %3746 = vmatprep.subr.mxu0 0.0
    %3747 = vmatpush1.msra.mxu0 0.0
    %3748 = vmatprep.subr.mxu0 0.0
    %3749 = vmatpush1.msra.mxu0 0.0
    %3750 = vmatprep.subr.mxu0 0.0
    %3751 = vmatpush1.msra.mxu0 0.0
    %3752 = vmatprep.subr.mxu0 0.0
    %3753 = vmatpush1.msra.mxu0 0.0
    %3754 = vmatprep.subr.mxu0 0.0
    %3755 = vmatpush1.msra.mxu0 0.0
    %3756 = vmatprep.subr.mxu0 0.0
    %3757 = vmatpush1.msra.mxu0 0.0
    %3758 = vmatprep.subr.mxu0 0.0
    %3759 = vmatpush1.msra.mxu0 0.0
    %3760 = vmatprep.subr.mxu0 0.0
    %3761 = vmatpush1.msra.mxu0 0.0
    %3762 = vmatprep.subr.mxu0 0.0
    %3763 = vmatpush1.msra.mxu0 0.0
    %3764 = vmatprep.subr.mxu0 0.0
    %3765 = vmatpush1.msra.mxu0 0.0
    %3766 = vmatprep.subr.mxu0 0.0
    %3767 = vmatpush1.msra.mxu0 0.0
    %3768 = vmatprep.subr.mxu0 0.0
    %3769 = vmatpush1.msra.mxu0 0.0
    %3770 = vmatprep.subr.mxu0 0.0
    %3771 = vmatpush1.msra.mxu0 0.0
    %3772 = vmatprep.subr.mxu0 0.0
    %3773 = vmatpush1.msra.mxu0 0.0
    %3774 = vmatprep.subr.mxu0 0.0
    %3775 = vmatpush1.msra.mxu0 0.0
    %3776 = vmatprep.subr.mxu0 0.0
    %3777 = vmatpush1.msra.mxu0 0.0
    %3778 = vmatprep.subr.mxu0 0.0
    %3779 = vmatpush2.msra.mxu0 0.0
    %3780 = vmatprep.subr.mxu0 0.0
    %3781 = vmatpush2.msra.mxu0 0.0
    %3782 = vmatprep.subr.mxu0 0.0
    %3783 = vmatpush2.msra.mxu0 0.0
    %3784 = vmatprep.subr.mxu0 0.0
    %3785 = vmatpush2.msra.mxu0 0.0
    %3786 = vmatprep.subr.mxu0 0.0
    %3787 = vmatpush2.msra.mxu0 0.0
    %3788 = vmatprep.subr.mxu0 0.0
    %3789 = vmatpush2.msra.mxu0 0.0
    %3790 = vmatprep.subr.mxu0 0.0
    %3791 = vmatpush2.msra.mxu0 0.0
    %3792 = vmatprep.subr.mxu0 0.0
    %3793 = vmatpush2.msra.mxu0 0.0
    %3794 = vmatprep.subr.mxu0 0.0
    %3795 = vmatpush2.msra.mxu0 0.0
    %3796 = vmatprep.subr.mxu0 0.0
    %3797 = vmatpush2.msra.mxu0 0.0
    %3798 = vmatprep.subr.mxu0 0.0
    %3799 = vmatpush2.msra.mxu0 0.0
    %3800 = vmatprep.subr.mxu0 0.0
    %3801 = vmatpush2.msra.mxu0 0.0
    %3802 = vmatprep.subr.mxu0 0.0
    %3803 = vmatpush2.msra.mxu0 0.0
    %3804 = vmatprep.subr.mxu0 0.0
    %3805 = vmatpush2.msra.mxu0 0.0
    %3806 = vmatprep.subr.mxu0 0.0
    %3807 = vmatpush2.msra.mxu0 0.0
    %3808 = vmatprep.subr.mxu0 0.0
    %3809 = vmatpush2.msra.mxu0 0.0
    %3810 = vmatprep.mubr.f32.mxu0 0.0
    %3811 = vmatmul.mubr.f32.gmra.mxu0 %v2598
    %v3812 = vpop.f32.mrf.mxu0
    %v3813 = vadd.f32 0.0, %v3812
    %v3814 = vpop.f32.mrf.mxu0
    %3815 = vdwg.mxu0
    %3816 = vmatprep.subr.mxu0 0.0
    %3817 = vmatpush1.msra.mxu0 0.0
    %3818 = vmatprep.subr.mxu0 0.0
    %3819 = vmatpush1.msra.mxu0 0.0
    %3820 = vmatprep.subr.mxu0 0.0
    %3821 = vmatpush1.msra.mxu0 0.0
    %3822 = vmatprep.subr.mxu0 0.0
    %3823 = vmatpush1.msra.mxu0 0.0
    %3824 = vmatprep.subr.mxu0 0.0
    %3825 = vmatpush1.msra.mxu0 0.0
    %3826 = vmatprep.subr.mxu0 0.0
    %3827 = vmatpush1.msra.mxu0 0.0
    %3828 = vmatprep.subr.mxu0 0.0
    %3829 = vmatpush1.msra.mxu0 0.0
    %3830 = vmatprep.subr.mxu0 0.0
    %3831 = vmatpush1.msra.mxu0 0.0
    %3832 = vmatprep.subr.mxu0 0.0
    %3833 = vmatpush1.msra.mxu0 0.0
    %3834 = vmatprep.subr.mxu0 0.0
    %3835 = vmatpush1.msra.mxu0 0.0
    %3836 = vmatprep.subr.mxu0 0.0
    %3837 = vmatpush1.msra.mxu0 0.0
    %3838 = vmatprep.subr.mxu0 0.0
    %3839 = vmatpush1.msra.mxu0 0.0
    %3840 = vmatprep.subr.mxu0 0.0
    %3841 = vmatpush1.msra.mxu0 0.0
    %3842 = vmatprep.subr.mxu0 0.0
    %3843 = vmatpush1.msra.mxu0 0.0
    %3844 = vmatprep.subr.mxu0 0.0
    %3845 = vmatpush1.msra.mxu0 0.0
    %3846 = vmatprep.subr.mxu0 0.0
    %3847 = vmatpush1.msra.mxu0 0.0
    %3848 = vmatprep.subr.mxu0 0.0
    %3849 = vmatpush2.msra.mxu0 0.0
    %3850 = vmatprep.subr.mxu0 0.0
    %3851 = vmatpush2.msra.mxu0 0.0
    %3852 = vmatprep.subr.mxu0 0.0
    %3853 = vmatpush2.msra.mxu0 0.0
    %3854 = vmatprep.subr.mxu0 0.0
    %3855 = vmatpush2.msra.mxu0 0.0
    %3856 = vmatprep.subr.mxu0 0.0
    %3857 = vmatpush2.msra.mxu0 0.0
    %3858 = vmatprep.subr.mxu0 0.0
    %3859 = vmatpush2.msra.mxu0 0.0
    %3860 = vmatprep.subr.mxu0 0.0
    %3861 = vmatpush2.msra.mxu0 0.0
    %3862 = vmatprep.subr.mxu0 0.0
    %3863 = vmatpush2.msra.mxu0 0.0
    %3864 = vmatprep.subr.mxu0 0.0
    %3865 = vmatpush2.msra.mxu0 0.0
    %3866 = vmatprep.subr.mxu0 0.0
    %3867 = vmatpush2.msra.mxu0 0.0
    %3868 = vmatprep.subr.mxu0 0.0
    %3869 = vmatpush2.msra.mxu0 0.0
    %3870 = vmatprep.subr.mxu0 0.0
    %3871 = vmatpush2.msra.mxu0 0.0
    %3872 = vmatprep.subr.mxu0 0.0
    %3873 = vmatpush2.msra.mxu0 0.0
    %3874 = vmatprep.subr.mxu0 0.0
    %3875 = vmatpush2.msra.mxu0 0.0
    %3876 = vmatprep.subr.mxu0 0.0
    %3877 = vmatpush2.msra.mxu0 0.0
    %3878 = vmatprep.subr.mxu0 0.0
    %3879 = vmatpush2.msra.mxu0 0.0
    %3880 = vmatprep.mubr.f32.mxu0 0.0
    %3881 = vmatmul.mubr.f32.gmra.mxu0 %v2671
    %v3882 = vpop.f32.mrf.mxu0
    %v3883 = vadd.f32 0.0, %v3882
    %v3884 = vpop.f32.mrf.mxu0
    %3885 = vdwg.mxu0
    %3886 = vmatprep.subr.mxu0 0.0
    %3887 = vmatpush1.msra.mxu0 0.0
    %3888 = vmatprep.subr.mxu0 0.0
    %3889 = vmatpush1.msra.mxu0 0.0
    %3890 = vmatprep.subr.mxu0 0.0
    %3891 = vmatpush1.msra.mxu0 0.0
    %3892 = vmatprep.subr.mxu0 0.0
    %3893 = vmatpush1.msra.mxu0 0.0
    %3894 = vmatprep.subr.mxu0 0.0
    %3895 = vmatpush1.msra.mxu0 0.0
    %3896 = vmatprep.subr.mxu0 0.0
    %3897 = vmatpush1.msra.mxu0 0.0
    %3898 = vmatprep.subr.mxu0 0.0
    %3899 = vmatpush1.msra.mxu0 0.0
    %3900 = vmatprep.subr.mxu0 0.0
    %3901 = vmatpush1.msra.mxu0 0.0
    %3902 = vmatprep.subr.mxu0 0.0
    %3903 = vmatpush1.msra.mxu0 0.0
    %3904 = vmatprep.subr.mxu0 0.0
    %3905 = vmatpush1.msra.mxu0 0.0
    %3906 = vmatprep.subr.mxu0 0.0
    %3907 = vmatpush1.msra.mxu0 0.0
    %3908 = vmatprep.subr.mxu0 0.0
    %3909 = vmatpush1.msra.mxu0 0.0
    %3910 = vmatprep.subr.mxu0 0.0
    %3911 = vmatpush1.msra.mxu0 0.0
    %3912 = vmatprep.subr.mxu0 0.0
    %3913 = vmatpush1.msra.mxu0 0.0
    %3914 = vmatprep.subr.mxu0 0.0
    %3915 = vmatpush1.msra.mxu0 0.0
    %3916 = vmatprep.subr.mxu0 0.0
    %3917 = vmatpush1.msra.mxu0 0.0
    %3918 = vmatprep.subr.mxu0 0.0
    %3919 = vmatpush2.msra.mxu0 0.0
    %3920 = vmatprep.subr.mxu0 0.0
    %3921 = vmatpush2.msra.mxu0 0.0
    %3922 = vmatprep.subr.mxu0 0.0
    %3923 = vmatpush2.msra.mxu0 0.0
    %3924 = vmatprep.subr.mxu0 0.0
    %3925 = vmatpush2.msra.mxu0 0.0
    %3926 = vmatprep.subr.mxu0 0.0
    %3927 = vmatpush2.msra.mxu0 0.0
    %3928 = vmatprep.subr.mxu0 0.0
    %3929 = vmatpush2.msra.mxu0 0.0
    %3930 = vmatprep.subr.mxu0 0.0
    %3931 = vmatpush2.msra.mxu0 0.0
    %3932 = vmatprep.subr.mxu0 0.0
    %3933 = vmatpush2.msra.mxu0 0.0
    %3934 = vmatprep.subr.mxu0 0.0
    %3935 = vmatpush2.msra.mxu0 0.0
    %3936 = vmatprep.subr.mxu0 0.0
    %3937 = vmatpush2.msra.mxu0 0.0
    %3938 = vmatprep.subr.mxu0 0.0
    %3939 = vmatpush2.msra.mxu0 0.0
    %3940 = vmatprep.subr.mxu0 0.0
    %3941 = vmatpush2.msra.mxu0 0.0
    %3942 = vmatprep.subr.mxu0 0.0
    %3943 = vmatpush2.msra.mxu0 0.0
    %3944 = vmatprep.subr.mxu0 0.0
    %3945 = vmatpush2.msra.mxu0 0.0
    %3946 = vmatprep.subr.mxu0 0.0
    %3947 = vmatpush2.msra.mxu0 0.0
    %3948 = vmatprep.subr.mxu0 0.0
    %3949 = vmatpush2.msra.mxu0 0.0
    %3950 = vmatprep.mubr.f32.mxu0 0.0
    %3951 = vmatmul.mubr.f32.gmra.mxu0 %v2744
    %v3952 = vpop.f32.mrf.mxu0
    %v3953 = vadd.f32 0.0, %v3952
    %v3954 = vpop.f32.mrf.mxu0
    %3955 = vdwg.mxu0
    %3956 = vmatprep.subr.mxu0 0.0
    %3957 = vmatpush1.msra.mxu0 0.0
    %3958 = vmatprep.subr.mxu0 0.0
    %3959 = vmatpush1.msra.mxu0 0.0
    %3960 = vmatprep.subr.mxu0 0.0
    %3961 = vmatpush1.msra.mxu0 0.0
    %3962 = vmatprep.subr.mxu0 0.0
    %3963 = vmatpush1.msra.mxu0 0.0
    %3964 = vmatprep.subr.mxu0 0.0
    %3965 = vmatpush1.msra.mxu0 0.0
    %3966 = vmatprep.subr.mxu0 0.0
    %3967 = vmatpush1.msra.mxu0 0.0
    %3968 = vmatprep.subr.mxu0 0.0
    %3969 = vmatpush1.msra.mxu0 0.0
    %3970 = vmatprep.subr.mxu0 0.0
    %3971 = vmatpush1.msra.mxu0 0.0
    %3972 = vmatprep.subr.mxu0 0.0
    %3973 = vmatpush1.msra.mxu0 0.0
    %3974 = vmatprep.subr.mxu0 0.0
    %3975 = vmatpush1.msra.mxu0 0.0
    %3976 = vmatprep.subr.mxu0 0.0
    %3977 = vmatpush1.msra.mxu0 0.0
    %3978 = vmatprep.subr.mxu0 0.0
    %3979 = vmatpush1.msra.mxu0 0.0
    %3980 = vmatprep.subr.mxu0 0.0
    %3981 = vmatpush1.msra.mxu0 0.0
    %3982 = vmatprep.subr.mxu0 0.0
    %3983 = vmatpush1.msra.mxu0 0.0
    %3984 = vmatprep.subr.mxu0 0.0
    %3985 = vmatpush1.msra.mxu0 0.0
    %3986 = vmatprep.subr.mxu0 0.0
    %3987 = vmatpush1.msra.mxu0 0.0
    %3988 = vmatprep.subr.mxu0 0.0
    %3989 = vmatpush2.msra.mxu0 0.0
    %3990 = vmatprep.subr.mxu0 0.0
    %3991 = vmatpush2.msra.mxu0 0.0
    %3992 = vmatprep.subr.mxu0 0.0
    %3993 = vmatpush2.msra.mxu0 0.0
    %3994 = vmatprep.subr.mxu0 0.0
    %3995 = vmatpush2.msra.mxu0 0.0
    %3996 = vmatprep.subr.mxu0 0.0
    %3997 = vmatpush2.msra.mxu0 0.0
    %3998 = vmatprep.subr.mxu0 0.0
    %3999 = vmatpush2.msra.mxu0 0.0
    %4000 = vmatprep.subr.mxu0 0.0
    %4001 = vmatpush2.msra.mxu0 0.0
    %4002 = vmatprep.subr.mxu0 0.0
    %4003 = vmatpush2.msra.mxu0 0.0
    %4004 = vmatprep.subr.mxu0 0.0
    %4005 = vmatpush2.msra.mxu0 0.0
    %4006 = vmatprep.subr.mxu0 0.0
    %4007 = vmatpush2.msra.mxu0 0.0
    %4008 = vmatprep.subr.mxu0 0.0
    %4009 = vmatpush2.msra.mxu0 0.0
    %4010 = vmatprep.subr.mxu0 0.0
    %4011 = vmatpush2.msra.mxu0 0.0
    %4012 = vmatprep.subr.mxu0 0.0
    %4013 = vmatpush2.msra.mxu0 0.0
    %4014 = vmatprep.subr.mxu0 0.0
    %4015 = vmatpush2.msra.mxu0 0.0
    %4016 = vmatprep.subr.mxu0 0.0
    %4017 = vmatpush2.msra.mxu0 0.0
    %4018 = vmatprep.subr.mxu0 0.0
    %4019 = vmatpush2.msra.mxu0 0.0
    %4020 = vmatprep.mubr.f32.mxu0 0.0
    %4021 = vmatmul.mubr.f32.gmra.mxu0 %v2817
    %v4022 = vpop.f32.mrf.mxu0
    %v4023 = vadd.f32 0.0, %v4022
    %v4024 = vpop.f32.mrf.mxu0
    %4025 = vdwg.mxu0
    %4026 = vmatprep.subr.mxu0 0.0
    %4027 = vmatpush1.msra.mxu0 0.0
    %4028 = vmatprep.subr.mxu0 0.0
    %4029 = vmatpush1.msra.mxu0 0.0
    %4030 = vmatprep.subr.mxu0 0.0
    %4031 = vmatpush1.msra.mxu0 0.0
    %4032 = vmatprep.subr.mxu0 0.0
    %4033 = vmatpush1.msra.mxu0 0.0
    %4034 = vmatprep.subr.mxu0 0.0
    %4035 = vmatpush1.msra.mxu0 0.0
    %4036 = vmatprep.subr.mxu0 0.0
    %4037 = vmatpush1.msra.mxu0 0.0
    %4038 = vmatprep.subr.mxu0 0.0
    %4039 = vmatpush1.msra.mxu0 0.0
    %4040 = vmatprep.subr.mxu0 0.0
    %4041 = vmatpush1.msra.mxu0 0.0
    %4042 = vmatprep.subr.mxu0 0.0
    %4043 = vmatpush1.msra.mxu0 0.0
    %4044 = vmatprep.subr.mxu0 0.0
    %4045 = vmatpush1.msra.mxu0 0.0
    %4046 = vmatprep.subr.mxu0 0.0
    %4047 = vmatpush1.msra.mxu0 0.0
    %4048 = vmatprep.subr.mxu0 0.0
    %4049 = vmatpush1.msra.mxu0 0.0
    %4050 = vmatprep.subr.mxu0 0.0
    %4051 = vmatpush1.msra.mxu0 0.0
    %4052 = vmatprep.subr.mxu0 0.0
    %4053 = vmatpush1.msra.mxu0 0.0
    %4054 = vmatprep.subr.mxu0 0.0
    %4055 = vmatpush1.msra.mxu0 0.0
    %4056 = vmatprep.subr.mxu0 0.0
    %4057 = vmatpush1.msra.mxu0 0.0
    %4058 = vmatprep.subr.mxu0 0.0
    %4059 = vmatpush2.msra.mxu0 0.0
    %4060 = vmatprep.subr.mxu0 0.0
    %4061 = vmatpush2.msra.mxu0 0.0
    %4062 = vmatprep.subr.mxu0 0.0
    %4063 = vmatpush2.msra.mxu0 0.0
    %4064 = vmatprep.subr.mxu0 0.0
    %4065 = vmatpush2.msra.mxu0 0.0
    %4066 = vmatprep.subr.mxu0 0.0
    %4067 = vmatpush2.msra.mxu0 0.0
    %4068 = vmatprep.subr.mxu0 0.0
    %4069 = vmatpush2.msra.mxu0 0.0
    %4070 = vmatprep.subr.mxu0 0.0
    %4071 = vmatpush2.msra.mxu0 0.0
    %4072 = vmatprep.subr.mxu0 0.0
    %4073 = vmatpush2.msra.mxu0 0.0
    %4074 = vmatprep.subr.mxu0 0.0
    %4075 = vmatpush2.msra.mxu0 0.0
    %4076 = vmatprep.subr.mxu0 0.0
    %4077 = vmatpush2.msra.mxu0 0.0
    %4078 = vmatprep.subr.mxu0 0.0
    %4079 = vmatpush2.msra.mxu0 0.0
    %4080 = vmatprep.subr.mxu0 0.0
    %4081 = vmatpush2.msra.mxu0 0.0
    %4082 = vmatprep.subr.mxu0 0.0
    %4083 = vmatpush2.msra.mxu0 0.0
    %4084 = vmatprep.subr.mxu0 0.0
    %4085 = vmatpush2.msra.mxu0 0.0
    %4086 = vmatprep.subr.mxu0 0.0
    %4087 = vmatpush2.msra.mxu0 0.0
    %4088 = vmatprep.subr.mxu0 0.0
    %4089 = vmatpush2.msra.mxu0 0.0
    %4090 = vmatprep.mubr.f32.mxu0 0.0
    %4091 = vmatmul.mubr.f32.gmra.mxu0 %v2890
    %v4092 = vpop.f32.mrf.mxu0
    %v4093 = vadd.f32 0.0, %v4092
    %v4094 = vpop.f32.mrf.mxu0
    %4095 = vdwg.mxu0
    %4096 = vmatprep.subr.mxu0 0.0
    %4097 = vmatpush1.msra.mxu0 0.0
    %4098 = vmatprep.subr.mxu0 0.0
    %4099 = vmatpush1.msra.mxu0 0.0
    %4100 = vmatprep.subr.mxu0 0.0
    %4101 = vmatpush1.msra.mxu0 0.0
    %4102 = vmatprep.subr.mxu0 0.0
    %4103 = vmatpush1.msra.mxu0 0.0
    %4104 = vmatprep.subr.mxu0 0.0
    %4105 = vmatpush1.msra.mxu0 0.0
    %4106 = vmatprep.subr.mxu0 0.0
    %4107 = vmatpush1.msra.mxu0 0.0
    %4108 = vmatprep.subr.mxu0 0.0
    %4109 = vmatpush1.msra.mxu0 0.0
    %4110 = vmatprep.subr.mxu0 0.0
    %4111 = vmatpush1.msra.mxu0 0.0
    %4112 = vmatprep.subr.mxu0 0.0
    %4113 = vmatpush1.msra.mxu0 0.0
    %4114 = vmatprep.subr.mxu0 0.0
    %4115 = vmatpush1.msra.mxu0 0.0
    %4116 = vmatprep.subr.mxu0 0.0
    %4117 = vmatpush1.msra.mxu0 0.0
    %4118 = vmatprep.subr.mxu0 0.0
    %4119 = vmatpush1.msra.mxu0 0.0
    %4120 = vmatprep.subr.mxu0 0.0
    %4121 = vmatpush1.msra.mxu0 0.0
    %4122 = vmatprep.subr.mxu0 0.0
    %4123 = vmatpush1.msra.mxu0 0.0
    %4124 = vmatprep.subr.mxu0 0.0
    %4125 = vmatpush1.msra.mxu0 0.0
    %4126 = vmatprep.subr.mxu0 0.0
    %4127 = vmatpush1.msra.mxu0 0.0
    %4128 = vmatprep.subr.mxu0 0.0
    %4129 = vmatpush2.msra.mxu0 0.0
    %4130 = vmatprep.subr.mxu0 0.0
    %4131 = vmatpush2.msra.mxu0 0.0
    %4132 = vmatprep.subr.mxu0 0.0
    %4133 = vmatpush2.msra.mxu0 0.0
    %4134 = vmatprep.subr.mxu0 0.0
    %4135 = vmatpush2.msra.mxu0 0.0
    %4136 = vmatprep.subr.mxu0 0.0
    %4137 = vmatpush2.msra.mxu0 0.0
    %4138 = vmatprep.subr.mxu0 0.0
    %4139 = vmatpush2.msra.mxu0 0.0
    %4140 = vmatprep.subr.mxu0 0.0
    %4141 = vmatpush2.msra.mxu0 0.0
    %4142 = vmatprep.subr.mxu0 0.0
    %4143 = vmatpush2.msra.mxu0 0.0
    %4144 = vmatprep.subr.mxu0 0.0
    %4145 = vmatpush2.msra.mxu0 0.0
    %4146 = vmatprep.subr.mxu0 0.0
    %4147 = vmatpush2.msra.mxu0 0.0
    %4148 = vmatprep.subr.mxu0 0.0
    %4149 = vmatpush2.msra.mxu0 0.0
    %4150 = vmatprep.subr.mxu0 0.0
    %4151 = vmatpush2.msra.mxu0 0.0
    %4152 = vmatprep.subr.mxu0 0.0
    %4153 = vmatpush2.msra.mxu0 0.0
    %4154 = vmatprep.subr.mxu0 0.0
    %4155 = vmatpush2.msra.mxu0 0.0
    %4156 = vmatprep.subr.mxu0 0.0
    %4157 = vmatpush2.msra.mxu0 0.0
    %4158 = vmatprep.subr.mxu0 0.0
    %4159 = vmatpush2.msra.mxu0 0.0
    %4160 = vmatprep.mubr.f32.mxu0 0.0
    %4161 = vmatmul.mubr.f32.gmra.mxu0 %v2963
    %v4162 = vpop.f32.mrf.mxu0
    %v4163 = vadd.f32 0.0, %v4162
    %v4164 = vpop.f32.mrf.mxu0
    %4165 = vdwg.mxu0
    %4166 = vmatprep.subr.mxu0 0.0
    %4167 = vmatpush1.msra.mxu0 0.0
    %4168 = vmatprep.subr.mxu0 0.0
    %4169 = vmatpush1.msra.mxu0 0.0
    %4170 = vmatprep.subr.mxu0 0.0
    %4171 = vmatpush1.msra.mxu0 0.0
    %4172 = vmatprep.subr.mxu0 0.0
    %4173 = vmatpush1.msra.mxu0 0.0
    %4174 = vmatprep.subr.mxu0 0.0
    %4175 = vmatpush1.msra.mxu0 0.0
    %4176 = vmatprep.subr.mxu0 0.0
    %4177 = vmatpush1.msra.mxu0 0.0
    %4178 = vmatprep.subr.mxu0 0.0
    %4179 = vmatpush1.msra.mxu0 0.0
    %4180 = vmatprep.subr.mxu0 0.0
    %4181 = vmatpush1.msra.mxu0 0.0
    %4182 = vmatprep.subr.mxu0 0.0
    %4183 = vmatpush1.msra.mxu0 0.0
    %4184 = vmatprep.subr.mxu0 0.0
    %4185 = vmatpush1.msra.mxu0 0.0
    %4186 = vmatprep.subr.mxu0 0.0
    %4187 = vmatpush1.msra.mxu0 0.0
    %4188 = vmatprep.subr.mxu0 0.0
    %4189 = vmatpush1.msra.mxu0 0.0
    %4190 = vmatprep.subr.mxu0 0.0
    %4191 = vmatpush1.msra.mxu0 0.0
    %4192 = vmatprep.subr.mxu0 0.0
    %4193 = vmatpush1.msra.mxu0 0.0
    %4194 = vmatprep.subr.mxu0 0.0
    %4195 = vmatpush1.msra.mxu0 0.0
    %4196 = vmatprep.subr.mxu0 0.0
    %4197 = vmatpush1.msra.mxu0 0.0
    %4198 = vmatprep.subr.mxu0 0.0
    %4199 = vmatpush2.msra.mxu0 0.0
    %4200 = vmatprep.subr.mxu0 0.0
    %4201 = vmatpush2.msra.mxu0 0.0
    %4202 = vmatprep.subr.mxu0 0.0
    %4203 = vmatpush2.msra.mxu0 0.0
    %4204 = vmatprep.subr.mxu0 0.0
    %4205 = vmatpush2.msra.mxu0 0.0
    %4206 = vmatprep.subr.mxu0 0.0
    %4207 = vmatpush2.msra.mxu0 0.0
    %4208 = vmatprep.subr.mxu0 0.0
    %4209 = vmatpush2.msra.mxu0 0.0
    %4210 = vmatprep.subr.mxu0 0.0
    %4211 = vmatpush2.msra.mxu0 0.0
    %4212 = vmatprep.subr.mxu0 0.0
    %4213 = vmatpush2.msra.mxu0 0.0
    %4214 = vmatprep.subr.mxu0 0.0
    %4215 = vmatpush2.msra.mxu0 0.0
    %4216 = vmatprep.subr.mxu0 0.0
    %4217 = vmatpush2.msra.mxu0 0.0
    %4218 = vmatprep.subr.mxu0 0.0
    %4219 = vmatpush2.msra.mxu0 0.0
    %4220 = vmatprep.subr.mxu0 0.0
    %4221 = vmatpush2.msra.mxu0 0.0
    %4222 = vmatprep.subr.mxu0 0.0
    %4223 = vmatpush2.msra.mxu0 0.0
    %4224 = vmatprep.subr.mxu0 0.0
    %4225 = vmatpush2.msra.mxu0 0.0
    %4226 = vmatprep.subr.mxu0 0.0
    %4227 = vmatpush2.msra.mxu0 0.0
    %4228 = vmatprep.subr.mxu0 0.0
    %4229 = vmatpush2.msra.mxu0 0.0
    %4230 = vmatprep.mubr.f32.mxu0 0.0
    %4231 = vmatmul.mubr.f32.gmra.mxu0 %v3036
    %v4232 = vpop.f32.mrf.mxu0
    %v4233 = vadd.f32 0.0, %v4232
    %v4234 = vpop.f32.mrf.mxu0
    %4235 = vdwg.mxu0
    %v4237 = vsel %vm565, %v3108, 0
    %4239 = vmatprep.subr.mxu0 0.0
    %4240 = vmatpush1.msra.mxu0 0.0
    %4241 = vmatprep.subr.mxu0 0.0
    %4242 = vmatpush1.msra.mxu0 0.0
    %4243 = vmatprep.subr.mxu0 0.0
    %4244 = vmatpush1.msra.mxu0 0.0
    %4245 = vmatprep.subr.mxu0 0.0
    %4246 = vmatpush1.msra.mxu0 0.0
    %4247 = vmatprep.subr.mxu0 0.0
    %4248 = vmatpush1.msra.mxu0 0.0
    %4249 = vmatprep.subr.mxu0 0.0
    %4250 = vmatpush1.msra.mxu0 0.0
    %4251 = vmatprep.subr.mxu0 0.0
    %4252 = vmatpush1.msra.mxu0 0.0
    %4253 = vmatprep.subr.mxu0 0.0
    %4254 = vmatpush1.msra.mxu0 0.0
    %4255 = vmatprep.subr.mxu0 0.0
    %4256 = vmatpush1.msra.mxu0 0.0
    %4257 = vmatprep.subr.mxu0 0.0
    %4258 = vmatpush1.msra.mxu0 0.0
    %4259 = vmatprep.subr.mxu0 0.0
    %4260 = vmatpush1.msra.mxu0 0.0
    %4261 = vmatprep.subr.mxu0 0.0
    %4262 = vmatpush1.msra.mxu0 0.0
    %4263 = vmatprep.subr.mxu0 0.0
    %4264 = vmatpush1.msra.mxu0 0.0
    %4265 = vmatprep.subr.mxu0 0.0
    %4266 = vmatpush1.msra.mxu0 0.0
    %4267 = vmatprep.subr.mxu0 0.0
    %4268 = vmatpush1.msra.mxu0 0.0
    %4269 = vmatprep.subr.mxu0 0.0
    %4270 = vmatpush1.msra.mxu0 %v1916
    %4271 = vmatprep.subr.mxu0 0.0
    %4272 = vmatpush2.msra.mxu0 0.0
    %4273 = vmatprep.subr.mxu0 0.0
    %4274 = vmatpush2.msra.mxu0 0.0
    %4275 = vmatprep.subr.mxu0 0.0
    %4276 = vmatpush2.msra.mxu0 0.0
    %4277 = vmatprep.subr.mxu0 0.0
    %4278 = vmatpush2.msra.mxu0 0.0
    %4279 = vmatprep.subr.mxu0 0.0
    %4280 = vmatpush2.msra.mxu0 0.0
    %4281 = vmatprep.subr.mxu0 0.0
    %4282 = vmatpush2.msra.mxu0 0.0
    %4283 = vmatprep.subr.mxu0 0.0
    %4284 = vmatpush2.msra.mxu0 0.0
    %4285 = vmatprep.subr.mxu0 0.0
    %4286 = vmatpush2.msra.mxu0 0.0
    %4287 = vmatprep.subr.mxu0 0.0
    %4288 = vmatpush2.msra.mxu0 0.0
    %4289 = vmatprep.subr.mxu0 0.0
    %4290 = vmatpush2.msra.mxu0 0.0
    %4291 = vmatprep.subr.mxu0 0.0
    %4292 = vmatpush2.msra.mxu0 0.0
    %4293 = vmatprep.subr.mxu0 0.0
    %4294 = vmatpush2.msra.mxu0 0.0
    %4295 = vmatprep.subr.mxu0 0.0
    %4296 = vmatpush2.msra.mxu0 0.0
    %4297 = vmatprep.subr.mxu0 0.0
    %4298 = vmatpush2.msra.mxu0 0.0
    %4299 = vmatprep.subr.mxu0 0.0
    %4300 = vmatpush2.msra.mxu0 0.0
    %4301 = vmatprep.subr.mxu0 0.0
    %4302 = vmatpush2.msra.mxu0 0.0
    %4303 = vmatprep.mubr.f32.mxu0 0.0
    %4304 = vmatmul.mubr.f32.gmra.mxu0 %v4237
    %v4305 = vpop.f32.mrf.mxu0
    %v4306 = vadd.f32 %v3743, %v4305
    %v4307 = vpop.f32.mrf.mxu0
    %4308 = vdwg.mxu0
    %v4310 = vsel %vm565, %v3109, 0
    %4312 = vmatprep.subr.mxu0 0.0
    %4313 = vmatpush1.msra.mxu0 0.0
    %4314 = vmatprep.subr.mxu0 0.0
    %4315 = vmatpush1.msra.mxu0 0.0
    %4316 = vmatprep.subr.mxu0 0.0
    %4317 = vmatpush1.msra.mxu0 0.0
    %4318 = vmatprep.subr.mxu0 0.0
    %4319 = vmatpush1.msra.mxu0 0.0
    %4320 = vmatprep.subr.mxu0 0.0
    %4321 = vmatpush1.msra.mxu0 0.0
    %4322 = vmatprep.subr.mxu0 0.0
    %4323 = vmatpush1.msra.mxu0 0.0
    %4324 = vmatprep.subr.mxu0 0.0
    %4325 = vmatpush1.msra.mxu0 0.0
    %4326 = vmatprep.subr.mxu0 0.0
    %4327 = vmatpush1.msra.mxu0 0.0
    %4328 = vmatprep.subr.mxu0 0.0
    %4329 = vmatpush1.msra.mxu0 0.0
    %4330 = vmatprep.subr.mxu0 0.0
    %4331 = vmatpush1.msra.mxu0 0.0
    %4332 = vmatprep.subr.mxu0 0.0
    %4333 = vmatpush1.msra.mxu0 0.0
    %4334 = vmatprep.subr.mxu0 0.0
    %4335 = vmatpush1.msra.mxu0 0.0
    %4336 = vmatprep.subr.mxu0 0.0
    %4337 = vmatpush1.msra.mxu0 0.0
    %4338 = vmatprep.subr.mxu0 0.0
    %4339 = vmatpush1.msra.mxu0 0.0
    %4340 = vmatprep.subr.mxu0 0.0
    %4341 = vmatpush1.msra.mxu0 0.0
    %4342 = vmatprep.subr.mxu0 0.0
    %4343 = vmatpush1.msra.mxu0 %v1917
    %4344 = vmatprep.subr.mxu0 0.0
    %4345 = vmatpush2.msra.mxu0 0.0
    %4346 = vmatprep.subr.mxu0 0.0
    %4347 = vmatpush2.msra.mxu0 0.0
    %4348 = vmatprep.subr.mxu0 0.0
    %4349 = vmatpush2.msra.mxu0 0.0
    %4350 = vmatprep.subr.mxu0 0.0
    %4351 = vmatpush2.msra.mxu0 0.0
    %4352 = vmatprep.subr.mxu0 0.0
    %4353 = vmatpush2.msra.mxu0 0.0
    %4354 = vmatprep.subr.mxu0 0.0
    %4355 = vmatpush2.msra.mxu0 0.0
    %4356 = vmatprep.subr.mxu0 0.0
    %4357 = vmatpush2.msra.mxu0 0.0
    %4358 = vmatprep.subr.mxu0 0.0
    %4359 = vmatpush2.msra.mxu0 0.0
    %4360 = vmatprep.subr.mxu0 0.0
    %4361 = vmatpush2.msra.mxu0 0.0
    %4362 = vmatprep.subr.mxu0 0.0
    %4363 = vmatpush2.msra.mxu0 0.0
    %4364 = vmatprep.subr.mxu0 0.0
    %4365 = vmatpush2.msra.mxu0 0.0
    %4366 = vmatprep.subr.mxu0 0.0
    %4367 = vmatpush2.msra.mxu0 0.0
    %4368 = vmatprep.subr.mxu0 0.0
    %4369 = vmatpush2.msra.mxu0 0.0
    %4370 = vmatprep.subr.mxu0 0.0
    %4371 = vmatpush2.msra.mxu0 0.0
    %4372 = vmatprep.subr.mxu0 0.0
    %4373 = vmatpush2.msra.mxu0 0.0
    %4374 = vmatprep.subr.mxu0 0.0
    %4375 = vmatpush2.msra.mxu0 0.0
    %4376 = vmatprep.mubr.f32.mxu0 0.0
    %4377 = vmatmul.mubr.f32.gmra.mxu0 %v4310
    %v4378 = vpop.f32.mrf.mxu0
    %v4379 = vadd.f32 %v3813, %v4378
    %v4380 = vpop.f32.mrf.mxu0
    %4381 = vdwg.mxu0
    %v4383 = vsel %vm565, %v3110, 0
    %4385 = vmatprep.subr.mxu0 0.0
    %4386 = vmatpush1.msra.mxu0 0.0
    %4387 = vmatprep.subr.mxu0 0.0
    %4388 = vmatpush1.msra.mxu0 0.0
    %4389 = vmatprep.subr.mxu0 0.0
    %4390 = vmatpush1.msra.mxu0 0.0
    %4391 = vmatprep.subr.mxu0 0.0
    %4392 = vmatpush1.msra.mxu0 0.0
    %4393 = vmatprep.subr.mxu0 0.0
    %4394 = vmatpush1.msra.mxu0 0.0
    %4395 = vmatprep.subr.mxu0 0.0
    %4396 = vmatpush1.msra.mxu0 0.0
    %4397 = vmatprep.subr.mxu0 0.0
    %4398 = vmatpush1.msra.mxu0 0.0
    %4399 = vmatprep.subr.mxu0 0.0
    %4400 = vmatpush1.msra.mxu0 0.0
    %4401 = vmatprep.subr.mxu0 0.0
    %4402 = vmatpush1.msra.mxu0 0.0
    %4403 = vmatprep.subr.mxu0 0.0
    %4404 = vmatpush1.msra.mxu0 0.0
    %4405 = vmatprep.subr.mxu0 0.0
    %4406 = vmatpush1.msra.mxu0 0.0
    %4407 = vmatprep.subr.mxu0 0.0
    %4408 = vmatpush1.msra.mxu0 0.0
    %4409 = vmatprep.subr.mxu0 0.0
    %4410 = vmatpush1.msra.mxu0 0.0
    %4411 = vmatprep.subr.mxu0 0.0
    %4412 = vmatpush1.msra.mxu0 0.0
    %4413 = vmatprep.subr.mxu0 0.0
    %4414 = vmatpush1.msra.mxu0 0.0
    %4415 = vmatprep.subr.mxu0 0.0
    %4416 = vmatpush1.msra.mxu0 %v1918
    %4417 = vmatprep.subr.mxu0 0.0
    %4418 = vmatpush2.msra.mxu0 0.0
    %4419 = vmatprep.subr.mxu0 0.0
    %4420 = vmatpush2.msra.mxu0 0.0
    %4421 = vmatprep.subr.mxu0 0.0
    %4422 = vmatpush2.msra.mxu0 0.0
    %4423 = vmatprep.subr.mxu0 0.0
    %4424 = vmatpush2.msra.mxu0 0.0
    %4425 = vmatprep.subr.mxu0 0.0
    %4426 = vmatpush2.msra.mxu0 0.0
    %4427 = vmatprep.subr.mxu0 0.0
    %4428 = vmatpush2.msra.mxu0 0.0
    %4429 = vmatprep.subr.mxu0 0.0
    %4430 = vmatpush2.msra.mxu0 0.0
    %4431 = vmatprep.subr.mxu0 0.0
    %4432 = vmatpush2.msra.mxu0 0.0
    %4433 = vmatprep.subr.mxu0 0.0
    %4434 = vmatpush2.msra.mxu0 0.0
    %4435 = vmatprep.subr.mxu0 0.0
    %4436 = vmatpush2.msra.mxu0 0.0
    %4437 = vmatprep.subr.mxu0 0.0
    %4438 = vmatpush2.msra.mxu0 0.0
    %4439 = vmatprep.subr.mxu0 0.0
    %4440 = vmatpush2.msra.mxu0 0.0
    %4441 = vmatprep.subr.mxu0 0.0
    %4442 = vmatpush2.msra.mxu0 0.0
    %4443 = vmatprep.subr.mxu0 0.0
    %4444 = vmatpush2.msra.mxu0 0.0
    %4445 = vmatprep.subr.mxu0 0.0
    %4446 = vmatpush2.msra.mxu0 0.0
    %4447 = vmatprep.subr.mxu0 0.0
    %4448 = vmatpush2.msra.mxu0 0.0
    %4449 = vmatprep.mubr.f32.mxu0 0.0
    %4450 = vmatmul.mubr.f32.gmra.mxu0 %v4383
    %v4451 = vpop.f32.mrf.mxu0
    %v4452 = vadd.f32 %v3883, %v4451
    %v4453 = vpop.f32.mrf.mxu0
    %4454 = vdwg.mxu0
    %v4456 = vsel %vm565, %v3111, 0
    %4458 = vmatprep.subr.mxu0 0.0
    %4459 = vmatpush1.msra.mxu0 0.0
    %4460 = vmatprep.subr.mxu0 0.0
    %4461 = vmatpush1.msra.mxu0 0.0
    %4462 = vmatprep.subr.mxu0 0.0
    %4463 = vmatpush1.msra.mxu0 0.0
    %4464 = vmatprep.subr.mxu0 0.0
    %4465 = vmatpush1.msra.mxu0 0.0
    %4466 = vmatprep.subr.mxu0 0.0
    %4467 = vmatpush1.msra.mxu0 0.0
    %4468 = vmatprep.subr.mxu0 0.0
    %4469 = vmatpush1.msra.mxu0 0.0
    %4470 = vmatprep.subr.mxu0 0.0
    %4471 = vmatpush1.msra.mxu0 0.0
    %4472 = vmatprep.subr.mxu0 0.0
    %4473 = vmatpush1.msra.mxu0 0.0
    %4474 = vmatprep.subr.mxu0 0.0
    %4475 = vmatpush1.msra.mxu0 0.0
    %4476 = vmatprep.subr.mxu0 0.0
    %4477 = vmatpush1.msra.mxu0 0.0
    %4478 = vmatprep.subr.mxu0 0.0
    %4479 = vmatpush1.msra.mxu0 0.0
    %4480 = vmatprep.subr.mxu0 0.0
    %4481 = vmatpush1.msra.mxu0 0.0
    %4482 = vmatprep.subr.mxu0 0.0
    %4483 = vmatpush1.msra.mxu0 0.0
    %4484 = vmatprep.subr.mxu0 0.0
    %4485 = vmatpush1.msra.mxu0 0.0
    %4486 = vmatprep.subr.mxu0 0.0
    %4487 = vmatpush1.msra.mxu0 0.0
    %4488 = vmatprep.subr.mxu0 0.0
    %4489 = vmatpush1.msra.mxu0 %v1919
    %4490 = vmatprep.subr.mxu0 0.0
    %4491 = vmatpush2.msra.mxu0 0.0
    %4492 = vmatprep.subr.mxu0 0.0
    %4493 = vmatpush2.msra.mxu0 0.0
    %4494 = vmatprep.subr.mxu0 0.0
    %4495 = vmatpush2.msra.mxu0 0.0
    %4496 = vmatprep.subr.mxu0 0.0
    %4497 = vmatpush2.msra.mxu0 0.0
    %4498 = vmatprep.subr.mxu0 0.0
    %4499 = vmatpush2.msra.mxu0 0.0
    %4500 = vmatprep.subr.mxu0 0.0
    %4501 = vmatpush2.msra.mxu0 0.0
    %4502 = vmatprep.subr.mxu0 0.0
    %4503 = vmatpush2.msra.mxu0 0.0
    %4504 = vmatprep.subr.mxu0 0.0
    %4505 = vmatpush2.msra.mxu0 0.0
    %4506 = vmatprep.subr.mxu0 0.0
    %4507 = vmatpush2.msra.mxu0 0.0
    %4508 = vmatprep.subr.mxu0 0.0
    %4509 = vmatpush2.msra.mxu0 0.0
    %4510 = vmatprep.subr.mxu0 0.0
    %4511 = vmatpush2.msra.mxu0 0.0
    %4512 = vmatprep.subr.mxu0 0.0
    %4513 = vmatpush2.msra.mxu0 0.0
    %4514 = vmatprep.subr.mxu0 0.0
    %4515 = vmatpush2.msra.mxu0 0.0
    %4516 = vmatprep.subr.mxu0 0.0
    %4517 = vmatpush2.msra.mxu0 0.0
    %4518 = vmatprep.subr.mxu0 0.0
    %4519 = vmatpush2.msra.mxu0 0.0
    %4520 = vmatprep.subr.mxu0 0.0
    %4521 = vmatpush2.msra.mxu0 0.0
    %4522 = vmatprep.mubr.f32.mxu0 0.0
    %4523 = vmatmul.mubr.f32.gmra.mxu0 %v4456
    %v4524 = vpop.f32.mrf.mxu0
    %v4525 = vadd.f32 %v3953, %v4524
    %v4526 = vpop.f32.mrf.mxu0
    %4527 = vdwg.mxu0
    %v4529 = vsel %vm565, %v3112, 0
    %4531 = vmatprep.subr.mxu0 0.0
    %4532 = vmatpush1.msra.mxu0 0.0
    %4533 = vmatprep.subr.mxu0 0.0
    %4534 = vmatpush1.msra.mxu0 0.0
    %4535 = vmatprep.subr.mxu0 0.0
    %4536 = vmatpush1.msra.mxu0 0.0
    %4537 = vmatprep.subr.mxu0 0.0
    %4538 = vmatpush1.msra.mxu0 0.0
    %4539 = vmatprep.subr.mxu0 0.0
    %4540 = vmatpush1.msra.mxu0 0.0
    %4541 = vmatprep.subr.mxu0 0.0
    %4542 = vmatpush1.msra.mxu0 0.0
    %4543 = vmatprep.subr.mxu0 0.0
    %4544 = vmatpush1.msra.mxu0 0.0
    %4545 = vmatprep.subr.mxu0 0.0
    %4546 = vmatpush1.msra.mxu0 0.0
    %4547 = vmatprep.subr.mxu0 0.0
    %4548 = vmatpush1.msra.mxu0 0.0
    %4549 = vmatprep.subr.mxu0 0.0
    %4550 = vmatpush1.msra.mxu0 0.0
    %4551 = vmatprep.subr.mxu0 0.0
    %4552 = vmatpush1.msra.mxu0 0.0
    %4553 = vmatprep.subr.mxu0 0.0
    %4554 = vmatpush1.msra.mxu0 0.0
    %4555 = vmatprep.subr.mxu0 0.0
    %4556 = vmatpush1.msra.mxu0 0.0
    %4557 = vmatprep.subr.mxu0 0.0
    %4558 = vmatpush1.msra.mxu0 0.0
    %4559 = vmatprep.subr.mxu0 0.0
    %4560 = vmatpush1.msra.mxu0 0.0
    %4561 = vmatprep.subr.mxu0 0.0
    %4562 = vmatpush1.msra.mxu0 %v1920
    %4563 = vmatprep.subr.mxu0 0.0
    %4564 = vmatpush2.msra.mxu0 0.0
    %4565 = vmatprep.subr.mxu0 0.0
    %4566 = vmatpush2.msra.mxu0 0.0
    %4567 = vmatprep.subr.mxu0 0.0
    %4568 = vmatpush2.msra.mxu0 0.0
    %4569 = vmatprep.subr.mxu0 0.0
    %4570 = vmatpush2.msra.mxu0 0.0
    %4571 = vmatprep.subr.mxu0 0.0
    %4572 = vmatpush2.msra.mxu0 0.0
    %4573 = vmatprep.subr.mxu0 0.0
    %4574 = vmatpush2.msra.mxu0 0.0
    %4575 = vmatprep.subr.mxu0 0.0
    %4576 = vmatpush2.msra.mxu0 0.0
    %4577 = vmatprep.subr.mxu0 0.0
    %4578 = vmatpush2.msra.mxu0 0.0
    %4579 = vmatprep.subr.mxu0 0.0
    %4580 = vmatpush2.msra.mxu0 0.0
    %4581 = vmatprep.subr.mxu0 0.0
    %4582 = vmatpush2.msra.mxu0 0.0
    %4583 = vmatprep.subr.mxu0 0.0
    %4584 = vmatpush2.msra.mxu0 0.0
    %4585 = vmatprep.subr.mxu0 0.0
    %4586 = vmatpush2.msra.mxu0 0.0
    %4587 = vmatprep.subr.mxu0 0.0
    %4588 = vmatpush2.msra.mxu0 0.0
    %4589 = vmatprep.subr.mxu0 0.0
    %4590 = vmatpush2.msra.mxu0 0.0
    %4591 = vmatprep.subr.mxu0 0.0
    %4592 = vmatpush2.msra.mxu0 0.0
    %4593 = vmatprep.subr.mxu0 0.0
    %4594 = vmatpush2.msra.mxu0 0.0
    %4595 = vmatprep.mubr.f32.mxu0 0.0
    %4596 = vmatmul.mubr.f32.gmra.mxu0 %v4529
    %v4597 = vpop.f32.mrf.mxu0
    %v4598 = vadd.f32 %v4023, %v4597
    %v4599 = vpop.f32.mrf.mxu0
    %4600 = vdwg.mxu0
    %v4602 = vsel %vm565, %v3113, 0
    %4604 = vmatprep.subr.mxu0 0.0
    %4605 = vmatpush1.msra.mxu0 0.0
    %4606 = vmatprep.subr.mxu0 0.0
    %4607 = vmatpush1.msra.mxu0 0.0
    %4608 = vmatprep.subr.mxu0 0.0
    %4609 = vmatpush1.msra.mxu0 0.0
    %4610 = vmatprep.subr.mxu0 0.0
    %4611 = vmatpush1.msra.mxu0 0.0
    %4612 = vmatprep.subr.mxu0 0.0
    %4613 = vmatpush1.msra.mxu0 0.0
    %4614 = vmatprep.subr.mxu0 0.0
    %4615 = vmatpush1.msra.mxu0 0.0
    %4616 = vmatprep.subr.mxu0 0.0
    %4617 = vmatpush1.msra.mxu0 0.0
    %4618 = vmatprep.subr.mxu0 0.0
    %4619 = vmatpush1.msra.mxu0 0.0
    %4620 = vmatprep.subr.mxu0 0.0
    %4621 = vmatpush1.msra.mxu0 0.0
    %4622 = vmatprep.subr.mxu0 0.0
    %4623 = vmatpush1.msra.mxu0 0.0
    %4624 = vmatprep.subr.mxu0 0.0
    %4625 = vmatpush1.msra.mxu0 0.0
    %4626 = vmatprep.subr.mxu0 0.0
    %4627 = vmatpush1.msra.mxu0 0.0
    %4628 = vmatprep.subr.mxu0 0.0
    %4629 = vmatpush1.msra.mxu0 0.0
    %4630 = vmatprep.subr.mxu0 0.0
    %4631 = vmatpush1.msra.mxu0 0.0
    %4632 = vmatprep.subr.mxu0 0.0
    %4633 = vmatpush1.msra.mxu0 0.0
    %4634 = vmatprep.subr.mxu0 0.0
    %4635 = vmatpush1.msra.mxu0 %v1921
    %4636 = vmatprep.subr.mxu0 0.0
    %4637 = vmatpush2.msra.mxu0 0.0
    %4638 = vmatprep.subr.mxu0 0.0
    %4639 = vmatpush2.msra.mxu0 0.0
    %4640 = vmatprep.subr.mxu0 0.0
    %4641 = vmatpush2.msra.mxu0 0.0
    %4642 = vmatprep.subr.mxu0 0.0
    %4643 = vmatpush2.msra.mxu0 0.0
    %4644 = vmatprep.subr.mxu0 0.0
    %4645 = vmatpush2.msra.mxu0 0.0
    %4646 = vmatprep.subr.mxu0 0.0
    %4647 = vmatpush2.msra.mxu0 0.0
    %4648 = vmatprep.subr.mxu0 0.0
    %4649 = vmatpush2.msra.mxu0 0.0
    %4650 = vmatprep.subr.mxu0 0.0
    %4651 = vmatpush2.msra.mxu0 0.0
    %4652 = vmatprep.subr.mxu0 0.0
    %4653 = vmatpush2.msra.mxu0 0.0
    %4654 = vmatprep.subr.mxu0 0.0
    %4655 = vmatpush2.msra.mxu0 0.0
    %4656 = vmatprep.subr.mxu0 0.0
    %4657 = vmatpush2.msra.mxu0 0.0
    %4658 = vmatprep.subr.mxu0 0.0
    %4659 = vmatpush2.msra.mxu0 0.0
    %4660 = vmatprep.subr.mxu0 0.0
    %4661 = vmatpush2.msra.mxu0 0.0
    %4662 = vmatprep.subr.mxu0 0.0
    %4663 = vmatpush2.msra.mxu0 0.0
    %4664 = vmatprep.subr.mxu0 0.0
    %4665 = vmatpush2.msra.mxu0 0.0
    %4666 = vmatprep.subr.mxu0 0.0
    %4667 = vmatpush2.msra.mxu0 0.0
    %4668 = vmatprep.mubr.f32.mxu0 0.0
    %4669 = vmatmul.mubr.f32.gmra.mxu0 %v4602
    %v4670 = vpop.f32.mrf.mxu0
    %v4671 = vadd.f32 %v4093, %v4670
    %v4672 = vpop.f32.mrf.mxu0
    %4673 = vdwg.mxu0
    %v4675 = vsel %vm565, %v3114, 0
    %4677 = vmatprep.subr.mxu0 0.0
    %4678 = vmatpush1.msra.mxu0 0.0
    %4679 = vmatprep.subr.mxu0 0.0
    %4680 = vmatpush1.msra.mxu0 0.0
    %4681 = vmatprep.subr.mxu0 0.0
    %4682 = vmatpush1.msra.mxu0 0.0
    %4683 = vmatprep.subr.mxu0 0.0
    %4684 = vmatpush1.msra.mxu0 0.0
    %4685 = vmatprep.subr.mxu0 0.0
    %4686 = vmatpush1.msra.mxu0 0.0
    %4687 = vmatprep.subr.mxu0 0.0
    %4688 = vmatpush1.msra.mxu0 0.0
    %4689 = vmatprep.subr.mxu0 0.0
    %4690 = vmatpush1.msra.mxu0 0.0
    %4691 = vmatprep.subr.mxu0 0.0
    %4692 = vmatpush1.msra.mxu0 0.0
    %4693 = vmatprep.subr.mxu0 0.0
    %4694 = vmatpush1.msra.mxu0 0.0
    %4695 = vmatprep.subr.mxu0 0.0
    %4696 = vmatpush1.msra.mxu0 0.0
    %4697 = vmatprep.subr.mxu0 0.0
    %4698 = vmatpush1.msra.mxu0 0.0
    %4699 = vmatprep.subr.mxu0 0.0
    %4700 = vmatpush1.msra.mxu0 0.0
    %4701 = vmatprep.subr.mxu0 0.0
    %4702 = vmatpush1.msra.mxu0 0.0
    %4703 = vmatprep.subr.mxu0 0.0
    %4704 = vmatpush1.msra.mxu0 0.0
    %4705 = vmatprep.subr.mxu0 0.0
    %4706 = vmatpush1.msra.mxu0 0.0
    %4707 = vmatprep.subr.mxu0 0.0
    %4708 = vmatpush1.msra.mxu0 %v1922
    %4709 = vmatprep.subr.mxu0 0.0
    %4710 = vmatpush2.msra.mxu0 0.0
    %4711 = vmatprep.subr.mxu0 0.0
    %4712 = vmatpush2.msra.mxu0 0.0
    %4713 = vmatprep.subr.mxu0 0.0
    %4714 = vmatpush2.msra.mxu0 0.0
    %4715 = vmatprep.subr.mxu0 0.0
    %4716 = vmatpush2.msra.mxu0 0.0
    %4717 = vmatprep.subr.mxu0 0.0
    %4718 = vmatpush2.msra.mxu0 0.0
    %4719 = vmatprep.subr.mxu0 0.0
    %4720 = vmatpush2.msra.mxu0 0.0
    %4721 = vmatprep.subr.mxu0 0.0
    %4722 = vmatpush2.msra.mxu0 0.0
    %4723 = vmatprep.subr.mxu0 0.0
    %4724 = vmatpush2.msra.mxu0 0.0
    %4725 = vmatprep.subr.mxu0 0.0
    %4726 = vmatpush2.msra.mxu0 0.0
    %4727 = vmatprep.subr.mxu0 0.0
    %4728 = vmatpush2.msra.mxu0 0.0
    %4729 = vmatprep.subr.mxu0 0.0
    %4730 = vmatpush2.msra.mxu0 0.0
    %4731 = vmatprep.subr.mxu0 0.0
    %4732 = vmatpush2.msra.mxu0 0.0
    %4733 = vmatprep.subr.mxu0 0.0
    %4734 = vmatpush2.msra.mxu0 0.0
    %4735 = vmatprep.subr.mxu0 0.0
    %4736 = vmatpush2.msra.mxu0 0.0
    %4737 = vmatprep.subr.mxu0 0.0
    %4738 = vmatpush2.msra.mxu0 0.0
    %4739 = vmatprep.subr.mxu0 0.0
    %4740 = vmatpush2.msra.mxu0 0.0
    %4741 = vmatprep.mubr.f32.mxu0 0.0
    %4742 = vmatmul.mubr.f32.gmra.mxu0 %v4675
    %v4743 = vpop.f32.mrf.mxu0
    %v4744 = vadd.f32 %v4163, %v4743
    %v4745 = vpop.f32.mrf.mxu0
    %4746 = vdwg.mxu0
    %v4748 = vsel %vm565, %v3115, 0
    %4750 = vmatprep.subr.mxu0 0.0
    %4751 = vmatpush1.msra.mxu0 0.0
    %4752 = vmatprep.subr.mxu0 0.0
    %4753 = vmatpush1.msra.mxu0 0.0
    %4754 = vmatprep.subr.mxu0 0.0
    %4755 = vmatpush1.msra.mxu0 0.0
    %4756 = vmatprep.subr.mxu0 0.0
    %4757 = vmatpush1.msra.mxu0 0.0
    %4758 = vmatprep.subr.mxu0 0.0
    %4759 = vmatpush1.msra.mxu0 0.0
    %4760 = vmatprep.subr.mxu0 0.0
    %4761 = vmatpush1.msra.mxu0 0.0
    %4762 = vmatprep.subr.mxu0 0.0
    %4763 = vmatpush1.msra.mxu0 0.0
    %4764 = vmatprep.subr.mxu0 0.0
    %4765 = vmatpush1.msra.mxu0 0.0
    %4766 = vmatprep.subr.mxu0 0.0
    %4767 = vmatpush1.msra.mxu0 0.0
    %4768 = vmatprep.subr.mxu0 0.0
    %4769 = vmatpush1.msra.mxu0 0.0
    %4770 = vmatprep.subr.mxu0 0.0
    %4771 = vmatpush1.msra.mxu0 0.0
    %4772 = vmatprep.subr.mxu0 0.0
    %4773 = vmatpush1.msra.mxu0 0.0
    %4774 = vmatprep.subr.mxu0 0.0
    %4775 = vmatpush1.msra.mxu0 0.0
    %4776 = vmatprep.subr.mxu0 0.0
    %4777 = vmatpush1.msra.mxu0 0.0
    %4778 = vmatprep.subr.mxu0 0.0
    %4779 = vmatpush1.msra.mxu0 0.0
    %4780 = vmatprep.subr.mxu0 0.0
    %4781 = vmatpush1.msra.mxu0 %v1923
    %4782 = vmatprep.subr.mxu0 0.0
    %4783 = vmatpush2.msra.mxu0 0.0
    %4784 = vmatprep.subr.mxu0 0.0
    %4785 = vmatpush2.msra.mxu0 0.0
    %4786 = vmatprep.subr.mxu0 0.0
    %4787 = vmatpush2.msra.mxu0 0.0
    %4788 = vmatprep.subr.mxu0 0.0
    %4789 = vmatpush2.msra.mxu0 0.0
    %4790 = vmatprep.subr.mxu0 0.0
    %4791 = vmatpush2.msra.mxu0 0.0
    %4792 = vmatprep.subr.mxu0 0.0
    %4793 = vmatpush2.msra.mxu0 0.0
    %4794 = vmatprep.subr.mxu0 0.0
    %4795 = vmatpush2.msra.mxu0 0.0
    %4796 = vmatprep.subr.mxu0 0.0
    %4797 = vmatpush2.msra.mxu0 0.0
    %4798 = vmatprep.subr.mxu0 0.0
    %4799 = vmatpush2.msra.mxu0 0.0
    %4800 = vmatprep.subr.mxu0 0.0
    %4801 = vmatpush2.msra.mxu0 0.0
    %4802 = vmatprep.subr.mxu0 0.0
    %4803 = vmatpush2.msra.mxu0 0.0
    %4804 = vmatprep.subr.mxu0 0.0
    %4805 = vmatpush2.msra.mxu0 0.0
    %4806 = vmatprep.subr.mxu0 0.0
    %4807 = vmatpush2.msra.mxu0 0.0
    %4808 = vmatprep.subr.mxu0 0.0
    %4809 = vmatpush2.msra.mxu0 0.0
    %4810 = vmatprep.subr.mxu0 0.0
    %4811 = vmatpush2.msra.mxu0 0.0
    %4812 = vmatprep.subr.mxu0 0.0
    %4813 = vmatpush2.msra.mxu0 0.0
    %4814 = vmatprep.mubr.f32.mxu0 0.0
    %4815 = vmatmul.mubr.f32.gmra.mxu0 %v4748
    %v4816 = vpop.f32.mrf.mxu0
    %v4817 = vadd.f32 %v4233, %v4816
    %v4818 = vpop.f32.mrf.mxu0
    %4819 = vdwg.mxu0
    %v4820 = vmul.f32 %v2506, %v4306
    %v4821 = vmul.f32 %v2506, %v4379
    %v4822 = vmul.f32 %v2506, %v4452
    %v4823 = vmul.f32 %v2506, %v4525
    %v4824 = vmul.f32 %v2506, %v4598
    %v4825 = vmul.f32 %v2506, %v4671
    %v4826 = vmul.f32 %v2506, %v4744
    %v4827 = vmul.f32 %v2506, %v4817
    %v4828 = vsub.f32 %v3183, %v4820
    %v4829 = vsub.f32 %v3253, %v4821
    %v4830 = vsub.f32 %v3323, %v4822
    %v4831 = vsub.f32 %v3393, %v4823
    %v4832 = vsub.f32 %v3463, %v4824
    %v4833 = vsub.f32 %v3533, %v4825
    %v4834 = vsub.f32 %v3603, %v4826
    %v4835 = vsub.f32 %v3673, %v4827
    %v4836 = vadd.f32 %v4828, %v2516
    %v4837 = vadd.f32 %v4829, %v2517
    %v4838 = vadd.f32 %v4830, %v2518
    %v4839 = vadd.f32 %v4831, %v2519
    %v4840 = vadd.f32 %v4832, %v2520
    %v4841 = vadd.f32 %v4833, %v2521
    %v4842 = vadd.f32 %v4834, %v2522
    %v4843 = vadd.f32 %v4835, %v2523
    %v4844 = vsel %vm565, %v4836, 0.0
    %4845 = vadd.xlane.f32.xlu0 %v4844
    %v4846 = vpop.xlane.xlu0 %4845
    %v4847 = vsel %vm565, %v4837, 0.0
    %4848 = vadd.xlane.f32.xlu0 %v4847
    %v4849 = vpop.xlane.xlu0 %4848
    %v4850 = vsel %vm565, %v4838, 0.0
    %4851 = vadd.xlane.f32.xlu0 %v4850
    %v4852 = vpop.xlane.xlu0 %4851
    %v4853 = vsel %vm565, %v4839, 0.0
    %4854 = vadd.xlane.f32.xlu0 %v4853
    %v4855 = vpop.xlane.xlu0 %4854
    %v4856 = vsel %vm565, %v4840, 0.0
    %4857 = vadd.xlane.f32.xlu0 %v4856
    %v4858 = vpop.xlane.xlu0 %4857
    %v4859 = vsel %vm565, %v4841, 0.0
    %4860 = vadd.xlane.f32.xlu0 %v4859
    %v4861 = vpop.xlane.xlu0 %4860
    %v4862 = vsel %vm565, %v4842, 0.0
    %4863 = vadd.xlane.f32.xlu0 %v4862
    %v4864 = vpop.xlane.xlu0 %4863
    %v4865 = vsel %vm565, %v4843, 0.0
    %4866 = vadd.xlane.f32.xlu0 %v4865
    %v4867 = vpop.xlane.xlu0 %4866
    %v4868 = vmul.f32 %v4846, %v1563
    %v4869 = vmul.f32 %v4849, %v1563
    %v4870 = vmul.f32 %v4852, %v1563
    %v4871 = vmul.f32 %v4855, %v1563
    %v4872 = vmul.f32 %v4858, %v1563
    %v4873 = vmul.f32 %v4861, %v1563
    %v4874 = vmul.f32 %v4864, %v1563
    %v4875 = vmul.f32 %v4867, %v1563
    %v4876 = vsub.f32 %v4836, %v4868
    %v4877 = vsub.f32 %v4837, %v4869
    %v4878 = vsub.f32 %v4838, %v4870
    %v4879 = vsub.f32 %v4839, %v4871
    %v4880 = vsub.f32 %v4840, %v4872
    %v4881 = vsub.f32 %v4841, %v4873
    %v4882 = vsub.f32 %v4842, %v4874
    %v4883 = vsub.f32 %v4843, %v4875
    %v4884 = vmul.f32 %v4876, %v4876
    %v4885 = vmul.f32 %v4877, %v4877
    %v4886 = vmul.f32 %v4878, %v4878
    %v4887 = vmul.f32 %v4879, %v4879
    %v4888 = vmul.f32 %v4880, %v4880
    %v4889 = vmul.f32 %v4881, %v4881
    %v4890 = vmul.f32 %v4882, %v4882
    %v4891 = vmul.f32 %v4883, %v4883
    %v4892 = vsel %vm565, %v4884, 0.0
    %4893 = vadd.xlane.f32.xlu0 %v4892
    %v4894 = vpop.xlane.xlu0 %4893
    %v4895 = vsel %vm565, %v4885, 0.0
    %4896 = vadd.xlane.f32.xlu0 %v4895
    %v4897 = vpop.xlane.xlu0 %4896
    %v4898 = vsel %vm565, %v4886, 0.0
    %4899 = vadd.xlane.f32.xlu0 %v4898
    %v4900 = vpop.xlane.xlu0 %4899
    %v4901 = vsel %vm565, %v4887, 0.0
    %4902 = vadd.xlane.f32.xlu0 %v4901
    %v4903 = vpop.xlane.xlu0 %4902
    %v4904 = vsel %vm565, %v4888, 0.0
    %4905 = vadd.xlane.f32.xlu0 %v4904
    %v4906 = vpop.xlane.xlu0 %4905
    %v4907 = vsel %vm565, %v4889, 0.0
    %4908 = vadd.xlane.f32.xlu0 %v4907
    %v4909 = vpop.xlane.xlu0 %4908
    %v4910 = vsel %vm565, %v4890, 0.0
    %4911 = vadd.xlane.f32.xlu0 %v4910
    %v4912 = vpop.xlane.xlu0 %4911
    %v4913 = vsel %vm565, %v4891, 0.0
    %4914 = vadd.xlane.f32.xlu0 %v4913
    %v4915 = vpop.xlane.xlu0 %4914
    %v4916 = vmul.f32 %v4894, %v1563
    %v4917 = vmul.f32 %v4897, %v1563
    %v4918 = vmul.f32 %v4900, %v1563
    %v4919 = vmul.f32 %v4903, %v1563
    %v4920 = vmul.f32 %v4906, %v1563
    %v4921 = vmul.f32 %v4909, %v1563
    %v4922 = vmul.f32 %v4912, %v1563
    %v4923 = vmul.f32 %v4915, %v1563
    %v4924 = vmul.f32 %v1655, %v4876
    %v4925 = vmul.f32 %v1659, %v4877
    %v4926 = vmul.f32 %v1663, %v4878
    %v4927 = vmul.f32 %v1667, %v4879
    %v4928 = vmul.f32 %v1671, %v4880
    %v4929 = vmul.f32 %v1675, %v4881
    %v4930 = vmul.f32 %v1679, %v4882
    %v4931 = vmul.f32 %v1683, %v4883
    %v4932 = vadd.f32 %v4916, 1e-06
    %v4933 = vadd.f32 %v4917, 1e-06
    %v4934 = vadd.f32 %v4918, 1e-06
    %v4935 = vadd.f32 %v4919, 1e-06
    %v4936 = vadd.f32 %v4920, 1e-06
    %v4937 = vadd.f32 %v4921, 1e-06
    %v4938 = vadd.f32 %v4922, 1e-06
    %v4939 = vadd.f32 %v4923, 1e-06
    %v4940 = vrsqrt.pop %v4932
    %v4941 = vrsqrt.pop %v4933
    %v4942 = vrsqrt.pop %v4934
    %v4943 = vrsqrt.pop %v4935
    %v4944 = vrsqrt.pop %v4936
    %v4945 = vrsqrt.pop %v4937
    %v4946 = vrsqrt.pop %v4938
    %v4947 = vrsqrt.pop %v4939
    %v4948 = vmul.f32 %v4924, %v4940
    %v4949 = vmul.f32 %v4925, %v4941
    %v4950 = vmul.f32 %v4926, %v4942
    %v4951 = vmul.f32 %v4927, %v4943
    %v4952 = vmul.f32 %v4928, %v4944
    %v4953 = vmul.f32 %v4929, %v4945
    %v4954 = vmul.f32 %v4930, %v4946
    %v4955 = vmul.f32 %v4931, %v4947
    %v4956 = vadd.f32 %v4948, %v1711
    %v4957 = vadd.f32 %v4949, %v1715
    %v4958 = vadd.f32 %v4950, %v1719
    %v4959 = vadd.f32 %v4951, %v1723
    %v4960 = vadd.f32 %v4952, %v1727
    %v4961 = vadd.f32 %v4953, %v1731
    %v4962 = vadd.f32 %v4954, %v1735
    %v4963 = vadd.f32 %v4955, %v1739
    %v4964 = vadd.f32 %v867, %v4956
    %v4965 = vadd.f32 %v868, %v4957
    %v4966 = vadd.f32 %v869, %v4958
    %v4967 = vadd.f32 %v870, %v4959
    %v4968 = vadd.f32 %v871, %v4960
    %v4969 = vadd.f32 %v872, %v4961
    %v4970 = vadd.f32 %v873, %v4962
    %v4971 = vadd.f32 %v874, %v4963
    %4974 = vrot.lane.b32.xlu0 %v4966, 8
    %v4975 = vpop.permute.xlu0 %4974
    %4976 = vrot.lane.b32.xlu0 %v4967, 8
    %v4977 = vpop.permute.xlu0 %4976
    %4982 = vrot.lane.b32.xlu0 %v4968, 16
    %v4983 = vpop.permute.xlu0 %4982
    %4984 = vrot.lane.b32.xlu0 %v4969, 16
    %v4985 = vpop.permute.xlu0 %4984
    %4990 = vrot.lane.b32.xlu0 %v4970, 24
    %v4991 = vpop.permute.xlu0 %4990
    %4992 = vrot.lane.b32.xlu0 %v4971, 24
    %v4993 = vpop.permute.xlu0 %4992
    %v4996 = vsel %vm565, %v4964, %v4975
    %v4997 = vsel %vm565, %v4965, %v4977
    %vm4998 = vcmask 130048
    %v4999 = vsel %vm4998, %v4996, %v4983
    %v5000 = vsel %vm4998, %v4997, %v4985
    %vm5001 = vcmask 195584
    %v5002 = vsel %vm5001, %v4999, %v4991
    %v5003 = vsel %vm5001, %v5000, %v4993
    %5004 = vst.msk [vmem:[#allocation6] sm:$0xff] %vm71, %v5002
    %5005 = vst.msk [vmem:[#allocation6 + $0x10] sm:$0xff] %vm71, %v5003
    %5006 = vxpose.xlu0.b32.start [1/16] %v875, 128
    %5007 = vxpose.xlu0.b32.cont [2/16] 0.0, 128
    %5008 = vxpose.xlu0.b32.cont [3/16] 0.0, 128
    %5009 = vxpose.xlu0.b32.cont [4/16] 0.0, 128
    %5010 = vxpose.xlu0.b32.cont [5/16] 0.0, 128
    %5011 = vxpose.xlu0.b32.cont [6/16] 0.0, 128
    %5012 = vxpose.xlu0.b32.cont [7/16] 0.0, 128
    %5013 = vxpose.xlu0.b32.cont [8/16] 0.0, 128
    %5014 = vxpose.xlu0.b32.cont [9/16] 0.0, 128
    %5015 = vxpose.xlu0.b32.cont [10/16] 0.0, 128
    %5016 = vxpose.xlu0.b32.cont [11/16] 0.0, 128
    %5017 = vxpose.xlu0.b32.cont [12/16] 0.0, 128
    %5018 = vxpose.xlu0.b32.cont [13/16] 0.0, 128
    %5019 = vxpose.xlu0.b32.cont [14/16] 0.0, 128
    %5020 = vxpose.xlu0.b32.cont [15/16] 0.0, 128
    %5021 = vxpose.xlu0.b32.end [16/16] 0.0, 128
    %v5022 = vpop.trf.xlu0
    %v5023 = vpop.trf.xlu0
    %v5024 = vpop.trf.xlu0
    %v5025 = vpop.trf.xlu0
    %v5026 = vpop.trf.xlu0
    %v5027 = vpop.trf.xlu0
    %v5028 = vpop.trf.xlu0
    %v5029 = vpop.trf.xlu0
    %v5030 = vpop.trf.xlu0
    %v5031 = vpop.trf.xlu0
    %v5032 = vpop.trf.xlu0
    %v5033 = vpop.trf.xlu0
    %v5034 = vpop.trf.xlu0
    %v5035 = vpop.trf.xlu0
    %v5036 = vpop.trf.xlu0
    %v5037 = vpop.trf.xlu0
    %v5039 = vsel %vm565, %v5022, 0
    %5041 = vmatprep.subr.mxu0 0.0
    %5042 = vmatpush1.msra.mxu0 0.0
    %5043 = vmatprep.subr.mxu0 0.0
    %5044 = vmatpush1.msra.mxu0 0.0
    %5045 = vmatprep.subr.mxu0 0.0
    %5046 = vmatpush1.msra.mxu0 0.0
    %5047 = vmatprep.subr.mxu0 0.0
    %5048 = vmatpush1.msra.mxu0 0.0
    %5049 = vmatprep.subr.mxu0 0.0
    %5050 = vmatpush1.msra.mxu0 0.0
    %5051 = vmatprep.subr.mxu0 0.0
    %5052 = vmatpush1.msra.mxu0 0.0
    %5053 = vmatprep.subr.mxu0 0.0
    %5054 = vmatpush1.msra.mxu0 0.0
    %5055 = vmatprep.subr.mxu0 0.0
    %5056 = vmatpush1.msra.mxu0 0.0
    %5057 = vmatprep.subr.mxu0 0.0
    %5058 = vmatpush1.msra.mxu0 0.0
    %5059 = vmatprep.subr.mxu0 0.0
    %5060 = vmatpush1.msra.mxu0 0.0
    %5061 = vmatprep.subr.mxu0 0.0
    %5062 = vmatpush1.msra.mxu0 0.0
    %5063 = vmatprep.subr.mxu0 0.0
    %5064 = vmatpush1.msra.mxu0 0.0
    %5065 = vmatprep.subr.mxu0 0.0
    %5066 = vmatpush1.msra.mxu0 0.0
    %5067 = vmatprep.subr.mxu0 0.0
    %5068 = vmatpush1.msra.mxu0 0.0
    %5069 = vmatprep.subr.mxu0 0.0
    %5070 = vmatpush1.msra.mxu0 0.0
    %5071 = vmatprep.subr.mxu0 0.0
    %5072 = vmatpush1.msra.mxu0 %v1916
    %5073 = vmatprep.subr.mxu0 0.0
    %5074 = vmatpush2.msra.mxu0 0.0
    %5075 = vmatprep.subr.mxu0 0.0
    %5076 = vmatpush2.msra.mxu0 0.0
    %5077 = vmatprep.subr.mxu0 0.0
    %5078 = vmatpush2.msra.mxu0 0.0
    %5079 = vmatprep.subr.mxu0 0.0
    %5080 = vmatpush2.msra.mxu0 0.0
    %5081 = vmatprep.subr.mxu0 0.0
    %5082 = vmatpush2.msra.mxu0 0.0
    %5083 = vmatprep.subr.mxu0 0.0
    %5084 = vmatpush2.msra.mxu0 0.0
    %5085 = vmatprep.subr.mxu0 0.0
    %5086 = vmatpush2.msra.mxu0 0.0
    %5087 = vmatprep.subr.mxu0 0.0
    %5088 = vmatpush2.msra.mxu0 0.0
    %5089 = vmatprep.subr.mxu0 0.0
    %5090 = vmatpush2.msra.mxu0 0.0
    %5091 = vmatprep.subr.mxu0 0.0
    %5092 = vmatpush2.msra.mxu0 0.0
    %5093 = vmatprep.subr.mxu0 0.0
    %5094 = vmatpush2.msra.mxu0 0.0
    %5095 = vmatprep.subr.mxu0 0.0
    %5096 = vmatpush2.msra.mxu0 0.0
    %5097 = vmatprep.subr.mxu0 0.0
    %5098 = vmatpush2.msra.mxu0 0.0
    %5099 = vmatprep.subr.mxu0 0.0
    %5100 = vmatpush2.msra.mxu0 0.0
    %5101 = vmatprep.subr.mxu0 0.0
    %5102 = vmatpush2.msra.mxu0 0.0
    %5103 = vmatprep.subr.mxu0 0.0
    %5104 = vmatpush2.msra.mxu0 0.0
    %5105 = vmatprep.mubr.f32.mxu0 0.0
    %5106 = vmatmul.mubr.f32.gmra.mxu0 %v5039
    %v5107 = vpop.f32.mrf.mxu0
    %v5108 = vadd.f32 0.0, %v5107
    %v5109 = vpop.f32.mrf.mxu0
    %5110 = vdwg.mxu0
    %5111 = vxpose.xlu0.b32.start [1/16] %v876, 128
    %5112 = vxpose.xlu0.b32.cont [2/16] 0.0, 128
    %5113 = vxpose.xlu0.b32.cont [3/16] 0.0, 128
    %5114 = vxpose.xlu0.b32.cont [4/16] 0.0, 128
    %5115 = vxpose.xlu0.b32.cont [5/16] 0.0, 128
    %5116 = vxpose.xlu0.b32.cont [6/16] 0.0, 128
    %5117 = vxpose.xlu0.b32.cont [7/16] 0.0, 128
    %5118 = vxpose.xlu0.b32.cont [8/16] 0.0, 128
    %5119 = vxpose.xlu0.b32.cont [9/16] 0.0, 128
    %5120 = vxpose.xlu0.b32.cont [10/16] 0.0, 128
    %5121 = vxpose.xlu0.b32.cont [11/16] 0.0, 128
    %5122 = vxpose.xlu0.b32.cont [12/16] 0.0, 128
    %5123 = vxpose.xlu0.b32.cont [13/16] 0.0, 128
    %5124 = vxpose.xlu0.b32.cont [14/16] 0.0, 128
    %5125 = vxpose.xlu0.b32.cont [15/16] 0.0, 128
    %5126 = vxpose.xlu0.b32.end [16/16] 0.0, 128
    %v5127 = vpop.trf.xlu0
    %v5128 = vpop.trf.xlu0
    %v5129 = vpop.trf.xlu0
    %v5130 = vpop.trf.xlu0
    %v5131 = vpop.trf.xlu0
    %v5132 = vpop.trf.xlu0
    %v5133 = vpop.trf.xlu0
    %v5134 = vpop.trf.xlu0
    %v5135 = vpop.trf.xlu0
    %v5136 = vpop.trf.xlu0
    %v5137 = vpop.trf.xlu0
    %v5138 = vpop.trf.xlu0
    %v5139 = vpop.trf.xlu0
    %v5140 = vpop.trf.xlu0
    %v5141 = vpop.trf.xlu0
    %v5142 = vpop.trf.xlu0
    %v5144 = vsel %vm565, %v5127, 0
    %5146 = vmatprep.subr.mxu0 0.0
    %5147 = vmatpush1.msra.mxu0 0.0
    %5148 = vmatprep.subr.mxu0 0.0
    %5149 = vmatpush1.msra.mxu0 0.0
    %5150 = vmatprep.subr.mxu0 0.0
    %5151 = vmatpush1.msra.mxu0 0.0
    %5152 = vmatprep.subr.mxu0 0.0
    %5153 = vmatpush1.msra.mxu0 0.0
    %5154 = vmatprep.subr.mxu0 0.0
    %5155 = vmatpush1.msra.mxu0 0.0
    %5156 = vmatprep.subr.mxu0 0.0
    %5157 = vmatpush1.msra.mxu0 0.0
    %5158 = vmatprep.subr.mxu0 0.0
    %5159 = vmatpush1.msra.mxu0 0.0
    %5160 = vmatprep.subr.mxu0 0.0
    %5161 = vmatpush1.msra.mxu0 0.0
    %5162 = vmatprep.subr.mxu0 0.0
    %5163 = vmatpush1.msra.mxu0 0.0
    %5164 = vmatprep.subr.mxu0 0.0
    %5165 = vmatpush1.msra.mxu0 0.0
    %5166 = vmatprep.subr.mxu0 0.0
    %5167 = vmatpush1.msra.mxu0 0.0
    %5168 = vmatprep.subr.mxu0 0.0
    %5169 = vmatpush1.msra.mxu0 0.0
    %5170 = vmatprep.subr.mxu0 0.0
    %5171 = vmatpush1.msra.mxu0 0.0
    %5172 = vmatprep.subr.mxu0 0.0
    %5173 = vmatpush1.msra.mxu0 0.0
    %5174 = vmatprep.subr.mxu0 0.0
    %5175 = vmatpush1.msra.mxu0 0.0
    %5176 = vmatprep.subr.mxu0 0.0
    %5177 = vmatpush1.msra.mxu0 %v1917
    %5178 = vmatprep.subr.mxu0 0.0
    %5179 = vmatpush2.msra.mxu0 0.0
    %5180 = vmatprep.subr.mxu0 0.0
    %5181 = vmatpush2.msra.mxu0 0.0
    %5182 = vmatprep.subr.mxu0 0.0
    %5183 = vmatpush2.msra.mxu0 0.0
    %5184 = vmatprep.subr.mxu0 0.0
    %5185 = vmatpush2.msra.mxu0 0.0
    %5186 = vmatprep.subr.mxu0 0.0
    %5187 = vmatpush2.msra.mxu0 0.0
    %5188 = vmatprep.subr.mxu0 0.0
    %5189 = vmatpush2.msra.mxu0 0.0
    %5190 = vmatprep.subr.mxu0 0.0
    %5191 = vmatpush2.msra.mxu0 0.0
    %5192 = vmatprep.subr.mxu0 0.0
    %5193 = vmatpush2.msra.mxu0 0.0
    %5194 = vmatprep.subr.mxu0 0.0
    %5195 = vmatpush2.msra.mxu0 0.0
    %5196 = vmatprep.subr.mxu0 0.0
    %5197 = vmatpush2.msra.mxu0 0.0
    %5198 = vmatprep.subr.mxu0 0.0
    %5199 = vmatpush2.msra.mxu0 0.0
    %5200 = vmatprep.subr.mxu0 0.0
    %5201 = vmatpush2.msra.mxu0 0.0
    %5202 = vmatprep.subr.mxu0 0.0
    %5203 = vmatpush2.msra.mxu0 0.0
    %5204 = vmatprep.subr.mxu0 0.0
    %5205 = vmatpush2.msra.mxu0 0.0
    %5206 = vmatprep.subr.mxu0 0.0
    %5207 = vmatpush2.msra.mxu0 0.0
    %5208 = vmatprep.subr.mxu0 0.0
    %5209 = vmatpush2.msra.mxu0 0.0
    %5210 = vmatprep.mubr.f32.mxu0 0.0
    %5211 = vmatmul.mubr.f32.gmra.mxu0 %v5144
    %v5212 = vpop.f32.mrf.mxu0
    %v5213 = vadd.f32 0.0, %v5212
    %v5214 = vpop.f32.mrf.mxu0
    %5215 = vdwg.mxu0
    %5216 = vxpose.xlu0.b32.start [1/16] %v877, 128
    %5217 = vxpose.xlu0.b32.cont [2/16] 0.0, 128
    %5218 = vxpose.xlu0.b32.cont [3/16] 0.0, 128
    %5219 = vxpose.xlu0.b32.cont [4/16] 0.0, 128
    %5220 = vxpose.xlu0.b32.cont [5/16] 0.0, 128
    %5221 = vxpose.xlu0.b32.cont [6/16] 0.0, 128
    %5222 = vxpose.xlu0.b32.cont [7/16] 0.0, 128
    %5223 = vxpose.xlu0.b32.cont [8/16] 0.0, 128
    %5224 = vxpose.xlu0.b32.cont [9/16] 0.0, 128
    %5225 = vxpose.xlu0.b32.cont [10/16] 0.0, 128
    %5226 = vxpose.xlu0.b32.cont [11/16] 0.0, 128
    %5227 = vxpose.xlu0.b32.cont [12/16] 0.0, 128
    %5228 = vxpose.xlu0.b32.cont [13/16] 0.0, 128
    %5229 = vxpose.xlu0.b32.cont [14/16] 0.0, 128
    %5230 = vxpose.xlu0.b32.cont [15/16] 0.0, 128
    %5231 = vxpose.xlu0.b32.end [16/16] 0.0, 128
    %v5232 = vpop.trf.xlu0
    %v5233 = vpop.trf.xlu0
    %v5234 = vpop.trf.xlu0
    %v5235 = vpop.trf.xlu0
    %v5236 = vpop.trf.xlu0
    %v5237 = vpop.trf.xlu0
    %v5238 = vpop.trf.xlu0
    %v5239 = vpop.trf.xlu0
    %v5240 = vpop.trf.xlu0
    %v5241 = vpop.trf.xlu0
    %v5242 = vpop.trf.xlu0
    %v5243 = vpop.trf.xlu0
    %v5244 = vpop.trf.xlu0
    %v5245 = vpop.trf.xlu0
    %v5246 = vpop.trf.xlu0
    %v5247 = vpop.trf.xlu0
    %v5249 = vsel %vm565, %v5232, 0
    %5251 = vmatprep.subr.mxu0 0.0
    %5252 = vmatpush1.msra.mxu0 0.0
    %5253 = vmatprep.subr.mxu0 0.0
    %5254 = vmatpush1.msra.mxu0 0.0
    %5255 = vmatprep.subr.mxu0 0.0
    %5256 = vmatpush1.msra.mxu0 0.0
    %5257 = vmatprep.subr.mxu0 0.0
    %5258 = vmatpush1.msra.mxu0 0.0
    %5259 = vmatprep.subr.mxu0 0.0
    %5260 = vmatpush1.msra.mxu0 0.0
    %5261 = vmatprep.subr.mxu0 0.0
    %5262 = vmatpush1.msra.mxu0 0.0
    %5263 = vmatprep.subr.mxu0 0.0
    %5264 = vmatpush1.msra.mxu0 0.0
    %5265 = vmatprep.subr.mxu0 0.0
    %5266 = vmatpush1.msra.mxu0 0.0
    %5267 = vmatprep.subr.mxu0 0.0
    %5268 = vmatpush1.msra.mxu0 0.0
    %5269 = vmatprep.subr.mxu0 0.0
    %5270 = vmatpush1.msra.mxu0 0.0
    %5271 = vmatprep.subr.mxu0 0.0
    %5272 = vmatpush1.msra.mxu0 0.0
    %5273 = vmatprep.subr.mxu0 0.0
    %5274 = vmatpush1.msra.mxu0 0.0
    %5275 = vmatprep.subr.mxu0 0.0
    %5276 = vmatpush1.msra.mxu0 0.0
    %5277 = vmatprep.subr.mxu0 0.0
    %5278 = vmatpush1.msra.mxu0 0.0
    %5279 = vmatprep.subr.mxu0 0.0
    %5280 = vmatpush1.msra.mxu0 0.0
    %5281 = vmatprep.subr.mxu0 0.0
    %5282 = vmatpush1.msra.mxu0 %v1918
    %5283 = vmatprep.subr.mxu0 0.0
    %5284 = vmatpush2.msra.mxu0 0.0
    %5285 = vmatprep.subr.mxu0 0.0
    %5286 = vmatpush2.msra.mxu0 0.0
    %5287 = vmatprep.subr.mxu0 0.0
    %5288 = vmatpush2.msra.mxu0 0.0
    %5289 = vmatprep.subr.mxu0 0.0
    %5290 = vmatpush2.msra.mxu0 0.0
    %5291 = vmatprep.subr.mxu0 0.0
    %5292 = vmatpush2.msra.mxu0 0.0
    %5293 = vmatprep.subr.mxu0 0.0
    %5294 = vmatpush2.msra.mxu0 0.0
    %5295 = vmatprep.subr.mxu0 0.0
    %5296 = vmatpush2.msra.mxu0 0.0
    %5297 = vmatprep.subr.mxu0 0.0
    %5298 = vmatpush2.msra.mxu0 0.0
    %5299 = vmatprep.subr.mxu0 0.0
    %5300 = vmatpush2.msra.mxu0 0.0
    %5301 = vmatprep.subr.mxu0 0.0
    %5302 = vmatpush2.msra.mxu0 0.0
    %5303 = vmatprep.subr.mxu0 0.0
    %5304 = vmatpush2.msra.mxu0 0.0
    %5305 = vmatprep.subr.mxu0 0.0
    %5306 = vmatpush2.msra.mxu0 0.0
    %5307 = vmatprep.subr.mxu0 0.0
    %5308 = vmatpush2.msra.mxu0 0.0
    %5309 = vmatprep.subr.mxu0 0.0
    %5310 = vmatpush2.msra.mxu0 0.0
    %5311 = vmatprep.subr.mxu0 0.0
    %5312 = vmatpush2.msra.mxu0 0.0
    %5313 = vmatprep.subr.mxu0 0.0
    %5314 = vmatpush2.msra.mxu0 0.0
    %5315 = vmatprep.mubr.f32.mxu0 0.0
    %5316 = vmatmul.mubr.f32.gmra.mxu0 %v5249
    %v5317 = vpop.f32.mrf.mxu0
    %v5318 = vadd.f32 0.0, %v5317
    %v5319 = vpop.f32.mrf.mxu0
    %5320 = vdwg.mxu0
    %5321 = vxpose.xlu0.b32.start [1/16] %v878, 128
    %5322 = vxpose.xlu0.b32.cont [2/16] 0.0, 128
    %5323 = vxpose.xlu0.b32.cont [3/16] 0.0, 128
    %5324 = vxpose.xlu0.b32.cont [4/16] 0.0, 128
    %5325 = vxpose.xlu0.b32.cont [5/16] 0.0, 128
    %5326 = vxpose.xlu0.b32.cont [6/16] 0.0, 128
    %5327 = vxpose.xlu0.b32.cont [7/16] 0.0, 128
    %5328 = vxpose.xlu0.b32.cont [8/16] 0.0, 128
    %5329 = vxpose.xlu0.b32.cont [9/16] 0.0, 128
    %5330 = vxpose.xlu0.b32.cont [10/16] 0.0, 128
    %5331 = vxpose.xlu0.b32.cont [11/16] 0.0, 128
    %5332 = vxpose.xlu0.b32.cont [12/16] 0.0, 128
    %5333 = vxpose.xlu0.b32.cont [13/16] 0.0, 128
    %5334 = vxpose.xlu0.b32.cont [14/16] 0.0, 128
    %5335 = vxpose.xlu0.b32.cont [15/16] 0.0, 128
    %5336 = vxpose.xlu0.b32.end [16/16] 0.0, 128
    %v5337 = vpop.trf.xlu0
    %v5338 = vpop.trf.xlu0
    %v5339 = vpop.trf.xlu0
    %v5340 = vpop.trf.xlu0
    %v5341 = vpop.trf.xlu0
    %v5342 = vpop.trf.xlu0
    %v5343 = vpop.trf.xlu0
    %v5344 = vpop.trf.xlu0
    %v5345 = vpop.trf.xlu0
    %v5346 = vpop.trf.xlu0
    %v5347 = vpop.trf.xlu0
    %v5348 = vpop.trf.xlu0
    %v5349 = vpop.trf.xlu0
    %v5350 = vpop.trf.xlu0
    %v5351 = vpop.trf.xlu0
    %v5352 = vpop.trf.xlu0
    %v5354 = vsel %vm565, %v5337, 0
    %5356 = vmatprep.subr.mxu0 0.0
    %5357 = vmatpush1.msra.mxu0 0.0
    %5358 = vmatprep.subr.mxu0 0.0
    %5359 = vmatpush1.msra.mxu0 0.0
    %5360 = vmatprep.subr.mxu0 0.0
    %5361 = vmatpush1.msra.mxu0 0.0
    %5362 = vmatprep.subr.mxu0 0.0
    %5363 = vmatpush1.msra.mxu0 0.0
    %5364 = vmatprep.subr.mxu0 0.0
    %5365 = vmatpush1.msra.mxu0 0.0
    %5366 = vmatprep.subr.mxu0 0.0
    %5367 = vmatpush1.msra.mxu0 0.0
    %5368 = vmatprep.subr.mxu0 0.0
    %5369 = vmatpush1.msra.mxu0 0.0
    %5370 = vmatprep.subr.mxu0 0.0
    %5371 = vmatpush1.msra.mxu0 0.0
    %5372 = vmatprep.subr.mxu0 0.0
    %5373 = vmatpush1.msra.mxu0 0.0
    %5374 = vmatprep.subr.mxu0 0.0
    %5375 = vmatpush1.msra.mxu0 0.0
    %5376 = vmatprep.subr.mxu0 0.0
    %5377 = vmatpush1.msra.mxu0 0.0
    %5378 = vmatprep.subr.mxu0 0.0
    %5379 = vmatpush1.msra.mxu0 0.0
    %5380 = vmatprep.subr.mxu0 0.0
    %5381 = vmatpush1.msra.mxu0 0.0
    %5382 = vmatprep.subr.mxu0 0.0
    %5383 = vmatpush1.msra.mxu0 0.0
    %5384 = vmatprep.subr.mxu0 0.0
    %5385 = vmatpush1.msra.mxu0 0.0
    %5386 = vmatprep.subr.mxu0 0.0
    %5387 = vmatpush1.msra.mxu0 %v1919
    %5388 = vmatprep.subr.mxu0 0.0
    %5389 = vmatpush2.msra.mxu0 0.0
    %5390 = vmatprep.subr.mxu0 0.0
    %5391 = vmatpush2.msra.mxu0 0.0
    %5392 = vmatprep.subr.mxu0 0.0
    %5393 = vmatpush2.msra.mxu0 0.0
    %5394 = vmatprep.subr.mxu0 0.0
    %5395 = vmatpush2.msra.mxu0 0.0
    %5396 = vmatprep.subr.mxu0 0.0
    %5397 = vmatpush2.msra.mxu0 0.0
    %5398 = vmatprep.subr.mxu0 0.0
    %5399 = vmatpush2.msra.mxu0 0.0
    %5400 = vmatprep.subr.mxu0 0.0
    %5401 = vmatpush2.msra.mxu0 0.0
    %5402 = vmatprep.subr.mxu0 0.0
    %5403 = vmatpush2.msra.mxu0 0.0
    %5404 = vmatprep.subr.mxu0 0.0
    %5405 = vmatpush2.msra.mxu0 0.0
    %5406 = vmatprep.subr.mxu0 0.0
    %5407 = vmatpush2.msra.mxu0 0.0
    %5408 = vmatprep.subr.mxu0 0.0
    %5409 = vmatpush2.msra.mxu0 0.0
    %5410 = vmatprep.subr.mxu0 0.0
    %5411 = vmatpush2.msra.mxu0 0.0
    %5412 = vmatprep.subr.mxu0 0.0
    %5413 = vmatpush2.msra.mxu0 0.0
    %5414 = vmatprep.subr.mxu0 0.0
    %5415 = vmatpush2.msra.mxu0 0.0
    %5416 = vmatprep.subr.mxu0 0.0
    %5417 = vmatpush2.msra.mxu0 0.0
    %5418 = vmatprep.subr.mxu0 0.0
    %5419 = vmatpush2.msra.mxu0 0.0
    %5420 = vmatprep.mubr.f32.mxu0 0.0
    %5421 = vmatmul.mubr.f32.gmra.mxu0 %v5354
    %v5422 = vpop.f32.mrf.mxu0
    %v5423 = vadd.f32 0.0, %v5422
    %v5424 = vpop.f32.mrf.mxu0
    %5425 = vdwg.mxu0
    %5426 = vxpose.xlu0.b32.start [1/16] %v879, 128
    %5427 = vxpose.xlu0.b32.cont [2/16] 0.0, 128
    %5428 = vxpose.xlu0.b32.cont [3/16] 0.0, 128
    %5429 = vxpose.xlu0.b32.cont [4/16] 0.0, 128
    %5430 = vxpose.xlu0.b32.cont [5/16] 0.0, 128
    %5431 = vxpose.xlu0.b32.cont [6/16] 0.0, 128
    %5432 = vxpose.xlu0.b32.cont [7/16] 0.0, 128
    %5433 = vxpose.xlu0.b32.cont [8/16] 0.0, 128
    %5434 = vxpose.xlu0.b32.cont [9/16] 0.0, 128
    %5435 = vxpose.xlu0.b32.cont [10/16] 0.0, 128
    %5436 = vxpose.xlu0.b32.cont [11/16] 0.0, 128
    %5437 = vxpose.xlu0.b32.cont [12/16] 0.0, 128
    %5438 = vxpose.xlu0.b32.cont [13/16] 0.0, 128
    %5439 = vxpose.xlu0.b32.cont [14/16] 0.0, 128
    %5440 = vxpose.xlu0.b32.cont [15/16] 0.0, 128
    %5441 = vxpose.xlu0.b32.end [16/16] 0.0, 128
    %v5442 = vpop.trf.xlu0
    %v5443 = vpop.trf.xlu0
    %v5444 = vpop.trf.xlu0
    %v5445 = vpop.trf.xlu0
    %v5446 = vpop.trf.xlu0
    %v5447 = vpop.trf.xlu0
    %v5448 = vpop.trf.xlu0
    %v5449 = vpop.trf.xlu0
    %v5450 = vpop.trf.xlu0
    %v5451 = vpop.trf.xlu0
    %v5452 = vpop.trf.xlu0
    %v5453 = vpop.trf.xlu0
    %v5454 = vpop.trf.xlu0
    %v5455 = vpop.trf.xlu0
    %v5456 = vpop.trf.xlu0
    %v5457 = vpop.trf.xlu0
    %v5459 = vsel %vm565, %v5442, 0
    %5461 = vmatprep.subr.mxu0 0.0
    %5462 = vmatpush1.msra.mxu0 0.0
    %5463 = vmatprep.subr.mxu0 0.0
    %5464 = vmatpush1.msra.mxu0 0.0
    %5465 = vmatprep.subr.mxu0 0.0
    %5466 = vmatpush1.msra.mxu0 0.0
    %5467 = vmatprep.subr.mxu0 0.0
    %5468 = vmatpush1.msra.mxu0 0.0
    %5469 = vmatprep.subr.mxu0 0.0
    %5470 = vmatpush1.msra.mxu0 0.0
    %5471 = vmatprep.subr.mxu0 0.0
    %5472 = vmatpush1.msra.mxu0 0.0
    %5473 = vmatprep.subr.mxu0 0.0
    %5474 = vmatpush1.msra.mxu0 0.0
    %5475 = vmatprep.subr.mxu0 0.0
    %5476 = vmatpush1.msra.mxu0 0.0
    %5477 = vmatprep.subr.mxu0 0.0
    %5478 = vmatpush1.msra.mxu0 0.0
    %5479 = vmatprep.subr.mxu0 0.0
    %5480 = vmatpush1.msra.mxu0 0.0
    %5481 = vmatprep.subr.mxu0 0.0
    %5482 = vmatpush1.msra.mxu0 0.0
    %5483 = vmatprep.subr.mxu0 0.0
    %5484 = vmatpush1.msra.mxu0 0.0
    %5485 = vmatprep.subr.mxu0 0.0
    %5486 = vmatpush1.msra.mxu0 0.0
    %5487 = vmatprep.subr.mxu0 0.0
    %5488 = vmatpush1.msra.mxu0 0.0
    %5489 = vmatprep.subr.mxu0 0.0
    %5490 = vmatpush1.msra.mxu0 0.0
    %5491 = vmatprep.subr.mxu0 0.0
    %5492 = vmatpush1.msra.mxu0 %v1920
    %5493 = vmatprep.subr.mxu0 0.0
    %5494 = vmatpush2.msra.mxu0 0.0
    %5495 = vmatprep.subr.mxu0 0.0
    %5496 = vmatpush2.msra.mxu0 0.0
    %5497 = vmatprep.subr.mxu0 0.0
    %5498 = vmatpush2.msra.mxu0 0.0
    %5499 = vmatprep.subr.mxu0 0.0
    %5500 = vmatpush2.msra.mxu0 0.0
    %5501 = vmatprep.subr.mxu0 0.0
    %5502 = vmatpush2.msra.mxu0 0.0
    %5503 = vmatprep.subr.mxu0 0.0
    %5504 = vmatpush2.msra.mxu0 0.0
    %5505 = vmatprep.subr.mxu0 0.0
    %5506 = vmatpush2.msra.mxu0 0.0
    %5507 = vmatprep.subr.mxu0 0.0
    %5508 = vmatpush2.msra.mxu0 0.0
    %5509 = vmatprep.subr.mxu0 0.0
    %5510 = vmatpush2.msra.mxu0 0.0
    %5511 = vmatprep.subr.mxu0 0.0
    %5512 = vmatpush2.msra.mxu0 0.0
    %5513 = vmatprep.subr.mxu0 0.0
    %5514 = vmatpush2.msra.mxu0 0.0
    %5515 = vmatprep.subr.mxu0 0.0
    %5516 = vmatpush2.msra.mxu0 0.0
    %5517 = vmatprep.subr.mxu0 0.0
    %5518 = vmatpush2.msra.mxu0 0.0
    %5519 = vmatprep.subr.mxu0 0.0
    %5520 = vmatpush2.msra.mxu0 0.0
    %5521 = vmatprep.subr.mxu0 0.0
    %5522 = vmatpush2.msra.mxu0 0.0
    %5523 = vmatprep.subr.mxu0 0.0
    %5524 = vmatpush2.msra.mxu0 0.0
    %5525 = vmatprep.mubr.f32.mxu0 0.0
    %5526 = vmatmul.mubr.f32.gmra.mxu0 %v5459
    %v5527 = vpop.f32.mrf.mxu0
    %v5528 = vadd.f32 0.0, %v5527
    %v5529 = vpop.f32.mrf.mxu0
    %5530 = vdwg.mxu0
    %5531 = vxpose.xlu0.b32.start [1/16] %v880, 128
    %5532 = vxpose.xlu0.b32.cont [2/16] 0.0, 128
    %5533 = vxpose.xlu0.b32.cont [3/16] 0.0, 128
    %5534 = vxpose.xlu0.b32.cont [4/16] 0.0, 128
    %5535 = vxpose.xlu0.b32.cont [5/16] 0.0, 128
    %5536 = vxpose.xlu0.b32.cont [6/16] 0.0, 128
    %5537 = vxpose.xlu0.b32.cont [7/16] 0.0, 128
    %5538 = vxpose.xlu0.b32.cont [8/16] 0.0, 128
    %5539 = vxpose.xlu0.b32.cont [9/16] 0.0, 128
    %5540 = vxpose.xlu0.b32.cont [10/16] 0.0, 128
    %5541 = vxpose.xlu0.b32.cont [11/16] 0.0, 128
    %5542 = vxpose.xlu0.b32.cont [12/16] 0.0, 128
    %5543 = vxpose.xlu0.b32.cont [13/16] 0.0, 128
    %5544 = vxpose.xlu0.b32.cont [14/16] 0.0, 128
    %5545 = vxpose.xlu0.b32.cont [15/16] 0.0, 128
    %5546 = vxpose.xlu0.b32.end [16/16] 0.0, 128
    %v5547 = vpop.trf.xlu0
    %v5548 = vpop.trf.xlu0
    %v5549 = vpop.trf.xlu0
    %v5550 = vpop.trf.xlu0
    %v5551 = vpop.trf.xlu0
    %v5552 = vpop.trf.xlu0
    %v5553 = vpop.trf.xlu0
    %v5554 = vpop.trf.xlu0
    %v5555 = vpop.trf.xlu0
    %v5556 = vpop.trf.xlu0
    %v5557 = vpop.trf.xlu0
    %v5558 = vpop.trf.xlu0
    %v5559 = vpop.trf.xlu0
    %v5560 = vpop.trf.xlu0
    %v5561 = vpop.trf.xlu0
    %v5562 = vpop.trf.xlu0
    %v5564 = vsel %vm565, %v5547, 0
    %5566 = vmatprep.subr.mxu0 0.0
    %5567 = vmatpush1.msra.mxu0 0.0
    %5568 = vmatprep.subr.mxu0 0.0
    %5569 = vmatpush1.msra.mxu0 0.0
    %5570 = vmatprep.subr.mxu0 0.0
    %5571 = vmatpush1.msra.mxu0 0.0
    %5572 = vmatprep.subr.mxu0 0.0
    %5573 = vmatpush1.msra.mxu0 0.0
    %5574 = vmatprep.subr.mxu0 0.0
    %5575 = vmatpush1.msra.mxu0 0.0
    %5576 = vmatprep.subr.mxu0 0.0
    %5577 = vmatpush1.msra.mxu0 0.0
    %5578 = vmatprep.subr.mxu0 0.0
    %5579 = vmatpush1.msra.mxu0 0.0
    %5580 = vmatprep.subr.mxu0 0.0
    %5581 = vmatpush1.msra.mxu0 0.0
    %5582 = vmatprep.subr.mxu0 0.0
    %5583 = vmatpush1.msra.mxu0 0.0
    %5584 = vmatprep.subr.mxu0 0.0
    %5585 = vmatpush1.msra.mxu0 0.0
    %5586 = vmatprep.subr.mxu0 0.0
    %5587 = vmatpush1.msra.mxu0 0.0
    %5588 = vmatprep.subr.mxu0 0.0
    %5589 = vmatpush1.msra.mxu0 0.0
    %5590 = vmatprep.subr.mxu0 0.0
    %5591 = vmatpush1.msra.mxu0 0.0
    %5592 = vmatprep.subr.mxu0 0.0
    %5593 = vmatpush1.msra.mxu0 0.0
    %5594 = vmatprep.subr.mxu0 0.0
    %5595 = vmatpush1.msra.mxu0 0.0
    %5596 = vmatprep.subr.mxu0 0.0
    %5597 = vmatpush1.msra.mxu0 %v1921
    %5598 = vmatprep.subr.mxu0 0.0
    %5599 = vmatpush2.msra.mxu0 0.0
    %5600 = vmatprep.subr.mxu0 0.0
    %5601 = vmatpush2.msra.mxu0 0.0
    %5602 = vmatprep.subr.mxu0 0.0
    %5603 = vmatpush2.msra.mxu0 0.0
    %5604 = vmatprep.subr.mxu0 0.0
    %5605 = vmatpush2.msra.mxu0 0.0
    %5606 = vmatprep.subr.mxu0 0.0
    %5607 = vmatpush2.msra.mxu0 0.0
    %5608 = vmatprep.subr.mxu0 0.0
    %5609 = vmatpush2.msra.mxu0 0.0
    %5610 = vmatprep.subr.mxu0 0.0
    %5611 = vmatpush2.msra.mxu0 0.0
    %5612 = vmatprep.subr.mxu0 0.0
    %5613 = vmatpush2.msra.mxu0 0.0
    %5614 = vmatprep.subr.mxu0 0.0
    %5615 = vmatpush2.msra.mxu0 0.0
    %5616 = vmatprep.subr.mxu0 0.0
    %5617 = vmatpush2.msra.mxu0 0.0
    %5618 = vmatprep.subr.mxu0 0.0
    %5619 = vmatpush2.msra.mxu0 0.0
    %5620 = vmatprep.subr.mxu0 0.0
    %5621 = vmatpush2.msra.mxu0 0.0
    %5622 = vmatprep.subr.mxu0 0.0
    %5623 = vmatpush2.msra.mxu0 0.0
    %5624 = vmatprep.subr.mxu0 0.0
    %5625 = vmatpush2.msra.mxu0 0.0
    %5626 = vmatprep.subr.mxu0 0.0
    %5627 = vmatpush2.msra.mxu0 0.0
    %5628 = vmatprep.subr.mxu0 0.0
    %5629 = vmatpush2.msra.mxu0 0.0
    %5630 = vmatprep.mubr.f32.mxu0 0.0
    %5631 = vmatmul.mubr.f32.gmra.mxu0 %v5564
    %v5632 = vpop.f32.mrf.mxu0
    %v5633 = vadd.f32 0.0, %v5632
    %v5634 = vpop.f32.mrf.mxu0
    %5635 = vdwg.mxu0
    %5636 = vxpose.xlu0.b32.start [1/16] %v881, 128
    %5637 = vxpose.xlu0.b32.cont [2/16] 0.0, 128
    %5638 = vxpose.xlu0.b32.cont [3/16] 0.0, 128
    %5639 = vxpose.xlu0.b32.cont [4/16] 0.0, 128
    %5640 = vxpose.xlu0.b32.cont [5/16] 0.0, 128
    %5641 = vxpose.xlu0.b32.cont [6/16] 0.0, 128
    %5642 = vxpose.xlu0.b32.cont [7/16] 0.0, 128
    %5643 = vxpose.xlu0.b32.cont [8/16] 0.0, 128
    %5644 = vxpose.xlu0.b32.cont [9/16] 0.0, 128
    %5645 = vxpose.xlu0.b32.cont [10/16] 0.0, 128
    %5646 = vxpose.xlu0.b32.cont [11/16] 0.0, 128
    %5647 = vxpose.xlu0.b32.cont [12/16] 0.0, 128
    %5648 = vxpose.xlu0.b32.cont [13/16] 0.0, 128
    %5649 = vxpose.xlu0.b32.cont [14/16] 0.0, 128
    %5650 = vxpose.xlu0.b32.cont [15/16] 0.0, 128
    %5651 = vxpose.xlu0.b32.end [16/16] 0.0, 128
    %v5652 = vpop.trf.xlu0
    %v5653 = vpop.trf.xlu0
    %v5654 = vpop.trf.xlu0
    %v5655 = vpop.trf.xlu0
    %v5656 = vpop.trf.xlu0
    %v5657 = vpop.trf.xlu0
    %v5658 = vpop.trf.xlu0
    %v5659 = vpop.trf.xlu0
    %v5660 = vpop.trf.xlu0
    %v5661 = vpop.trf.xlu0
    %v5662 = vpop.trf.xlu0
    %v5663 = vpop.trf.xlu0
    %v5664 = vpop.trf.xlu0
    %v5665 = vpop.trf.xlu0
    %v5666 = vpop.trf.xlu0
    %v5667 = vpop.trf.xlu0
    %v5669 = vsel %vm565, %v5652, 0
    %5671 = vmatprep.subr.mxu0 0.0
    %5672 = vmatpush1.msra.mxu0 0.0
    %5673 = vmatprep.subr.mxu0 0.0
    %5674 = vmatpush1.msra.mxu0 0.0
    %5675 = vmatprep.subr.mxu0 0.0
    %5676 = vmatpush1.msra.mxu0 0.0
    %5677 = vmatprep.subr.mxu0 0.0
    %5678 = vmatpush1.msra.mxu0 0.0
    %5679 = vmatprep.subr.mxu0 0.0
    %5680 = vmatpush1.msra.mxu0 0.0
    %5681 = vmatprep.subr.mxu0 0.0
    %5682 = vmatpush1.msra.mxu0 0.0
    %5683 = vmatprep.subr.mxu0 0.0
    %5684 = vmatpush1.msra.mxu0 0.0
    %5685 = vmatprep.subr.mxu0 0.0
    %5686 = vmatpush1.msra.mxu0 0.0
    %5687 = vmatprep.subr.mxu0 0.0
    %5688 = vmatpush1.msra.mxu0 0.0
    %5689 = vmatprep.subr.mxu0 0.0
    %5690 = vmatpush1.msra.mxu0 0.0
    %5691 = vmatprep.subr.mxu0 0.0
    %5692 = vmatpush1.msra.mxu0 0.0
    %5693 = vmatprep.subr.mxu0 0.0
    %5694 = vmatpush1.msra.mxu0 0.0
    %5695 = vmatprep.subr.mxu0 0.0
    %5696 = vmatpush1.msra.mxu0 0.0
    %5697 = vmatprep.subr.mxu0 0.0
    %5698 = vmatpush1.msra.mxu0 0.0
    %5699 = vmatprep.subr.mxu0 0.0
    %5700 = vmatpush1.msra.mxu0 0.0
    %5701 = vmatprep.subr.mxu0 0.0
    %5702 = vmatpush1.msra.mxu0 %v1922
    %5703 = vmatprep.subr.mxu0 0.0
    %5704 = vmatpush2.msra.mxu0 0.0
    %5705 = vmatprep.subr.mxu0 0.0
    %5706 = vmatpush2.msra.mxu0 0.0
    %5707 = vmatprep.subr.mxu0 0.0
    %5708 = vmatpush2.msra.mxu0 0.0
    %5709 = vmatprep.subr.mxu0 0.0
    %5710 = vmatpush2.msra.mxu0 0.0
    %5711 = vmatprep.subr.mxu0 0.0
    %5712 = vmatpush2.msra.mxu0 0.0
    %5713 = vmatprep.subr.mxu0 0.0
    %5714 = vmatpush2.msra.mxu0 0.0
    %5715 = vmatprep.subr.mxu0 0.0
    %5716 = vmatpush2.msra.mxu0 0.0
    %5717 = vmatprep.subr.mxu0 0.0
    %5718 = vmatpush2.msra.mxu0 0.0
    %5719 = vmatprep.subr.mxu0 0.0
    %5720 = vmatpush2.msra.mxu0 0.0
    %5721 = vmatprep.subr.mxu0 0.0
    %5722 = vmatpush2.msra.mxu0 0.0
    %5723 = vmatprep.subr.mxu0 0.0
    %5724 = vmatpush2.msra.mxu0 0.0
    %5725 = vmatprep.subr.mxu0 0.0
    %5726 = vmatpush2.msra.mxu0 0.0
    %5727 = vmatprep.subr.mxu0 0.0
    %5728 = vmatpush2.msra.mxu0 0.0
    %5729 = vmatprep.subr.mxu0 0.0
    %5730 = vmatpush2.msra.mxu0 0.0
    %5731 = vmatprep.subr.mxu0 0.0
    %5732 = vmatpush2.msra.mxu0 0.0
    %5733 = vmatprep.subr.mxu0 0.0
    %5734 = vmatpush2.msra.mxu0 0.0
    %5735 = vmatprep.mubr.f32.mxu0 0.0
    %5736 = vmatmul.mubr.f32.gmra.mxu0 %v5669
    %v5737 = vpop.f32.mrf.mxu0
    %v5738 = vadd.f32 0.0, %v5737
    %v5739 = vpop.f32.mrf.mxu0
    %5740 = vdwg.mxu0
    %5741 = vxpose.xlu0.b32.start [1/16] %v882, 128
    %5742 = vxpose.xlu0.b32.cont [2/16] 0.0, 128
    %5743 = vxpose.xlu0.b32.cont [3/16] 0.0, 128
    %5744 = vxpose.xlu0.b32.cont [4/16] 0.0, 128
    %5745 = vxpose.xlu0.b32.cont [5/16] 0.0, 128
    %5746 = vxpose.xlu0.b32.cont [6/16] 0.0, 128
    %5747 = vxpose.xlu0.b32.cont [7/16] 0.0, 128
    %5748 = vxpose.xlu0.b32.cont [8/16] 0.0, 128
    %5749 = vxpose.xlu0.b32.cont [9/16] 0.0, 128
    %5750 = vxpose.xlu0.b32.cont [10/16] 0.0, 128
    %5751 = vxpose.xlu0.b32.cont [11/16] 0.0, 128
    %5752 = vxpose.xlu0.b32.cont [12/16] 0.0, 128
    %5753 = vxpose.xlu0.b32.cont [13/16] 0.0, 128
    %5754 = vxpose.xlu0.b32.cont [14/16] 0.0, 128
    %5755 = vxpose.xlu0.b32.cont [15/16] 0.0, 128
    %5756 = vxpose.xlu0.b32.end [16/16] 0.0, 128
    %v5757 = vpop.trf.xlu0
    %v5758 = vpop.trf.xlu0
    %v5759 = vpop.trf.xlu0
    %v5760 = vpop.trf.xlu0
    %v5761 = vpop.trf.xlu0
    %v5762 = vpop.trf.xlu0
    %v5763 = vpop.trf.xlu0
    %v5764 = vpop.trf.xlu0
    %v5765 = vpop.trf.xlu0
    %v5766 = vpop.trf.xlu0
    %v5767 = vpop.trf.xlu0
    %v5768 = vpop.trf.xlu0
    %v5769 = vpop.trf.xlu0
    %v5770 = vpop.trf.xlu0
    %v5771 = vpop.trf.xlu0
    %v5772 = vpop.trf.xlu0
    %v5774 = vsel %vm565, %v5757, 0
    %5776 = vmatprep.subr.mxu0 0.0
    %5777 = vmatpush1.msra.mxu0 0.0
    %5778 = vmatprep.subr.mxu0 0.0
    %5779 = vmatpush1.msra.mxu0 0.0
    %5780 = vmatprep.subr.mxu0 0.0
    %5781 = vmatpush1.msra.mxu0 0.0
    %5782 = vmatprep.subr.mxu0 0.0
    %5783 = vmatpush1.msra.mxu0 0.0
    %5784 = vmatprep.subr.mxu0 0.0
    %5785 = vmatpush1.msra.mxu0 0.0
    %5786 = vmatprep.subr.mxu0 0.0
    %5787 = vmatpush1.msra.mxu0 0.0
    %5788 = vmatprep.subr.mxu0 0.0
    %5789 = vmatpush1.msra.mxu0 0.0
    %5790 = vmatprep.subr.mxu0 0.0
    %5791 = vmatpush1.msra.mxu0 0.0
    %5792 = vmatprep.subr.mxu0 0.0
    %5793 = vmatpush1.msra.mxu0 0.0
    %5794 = vmatprep.subr.mxu0 0.0
    %5795 = vmatpush1.msra.mxu0 0.0
    %5796 = vmatprep.subr.mxu0 0.0
    %5797 = vmatpush1.msra.mxu0 0.0
    %5798 = vmatprep.subr.mxu0 0.0
    %5799 = vmatpush1.msra.mxu0 0.0
    %5800 = vmatprep.subr.mxu0 0.0
    %5801 = vmatpush1.msra.mxu0 0.0
    %5802 = vmatprep.subr.mxu0 0.0
    %5803 = vmatpush1.msra.mxu0 0.0
    %5804 = vmatprep.subr.mxu0 0.0
    %5805 = vmatpush1.msra.mxu0 0.0
    %5806 = vmatprep.subr.mxu0 0.0
    %5807 = vmatpush1.msra.mxu0 %v1923
    %5808 = vmatprep.subr.mxu0 0.0
    %5809 = vmatpush2.msra.mxu0 0.0
    %5810 = vmatprep.subr.mxu0 0.0
    %5811 = vmatpush2.msra.mxu0 0.0
    %5812 = vmatprep.subr.mxu0 0.0
    %5813 = vmatpush2.msra.mxu0 0.0
    %5814 = vmatprep.subr.mxu0 0.0
    %5815 = vmatpush2.msra.mxu0 0.0
    %5816 = vmatprep.subr.mxu0 0.0
    %5817 = vmatpush2.msra.mxu0 0.0
    %5818 = vmatprep.subr.mxu0 0.0
    %5819 = vmatpush2.msra.mxu0 0.0
    %5820 = vmatprep.subr.mxu0 0.0
    %5821 = vmatpush2.msra.mxu0 0.0
    %5822 = vmatprep.subr.mxu0 0.0
    %5823 = vmatpush2.msra.mxu0 0.0
    %5824 = vmatprep.subr.mxu0 0.0
    %5825 = vmatpush2.msra.mxu0 0.0
    %5826 = vmatprep.subr.mxu0 0.0
    %5827 = vmatpush2.msra.mxu0 0.0
    %5828 = vmatprep.subr.mxu0 0.0
    %5829 = vmatpush2.msra.mxu0 0.0
    %5830 = vmatprep.subr.mxu0 0.0
    %5831 = vmatpush2.msra.mxu0 0.0
    %5832 = vmatprep.subr.mxu0 0.0
    %5833 = vmatpush2.msra.mxu0 0.0
    %5834 = vmatprep.subr.mxu0 0.0
    %5835 = vmatpush2.msra.mxu0 0.0
    %5836 = vmatprep.subr.mxu0 0.0
    %5837 = vmatpush2.msra.mxu0 0.0
    %5838 = vmatprep.subr.mxu0 0.0
    %5839 = vmatpush2.msra.mxu0 0.0
    %5840 = vmatprep.mubr.f32.mxu0 0.0
    %5841 = vmatmul.mubr.f32.gmra.mxu0 %v5774
    %v5842 = vpop.f32.mrf.mxu0
    %v5843 = vadd.f32 0.0, %v5842
    %v5844 = vpop.f32.mrf.mxu0
    %5845 = vdwg.mxu0
    %v5846 = vrot.slane %v842, 7
    %s5847 = vtos %v5846
    %v5848 = vstv %s5847
    %v5850 = vmul.f32 %v5848, %v5108
    %v5851 = vmul.f32 %v5848, %v5213
    %v5852 = vmul.f32 %v5848, %v5318
    %v5853 = vmul.f32 %v5848, %v5423
    %v5854 = vmul.f32 %v5848, %v5528
    %v5855 = vmul.f32 %v5848, %v5633
    %v5856 = vmul.f32 %v5848, %v5738
    %v5857 = vmul.f32 %v5848, %v5843
    %v5858 = vsub.f32 %v851, %v5850
    %v5859 = vsub.f32 %v852, %v5851
    %v5860 = vsub.f32 %v853, %v5852
    %v5861 = vsub.f32 %v854, %v5853
    %v5862 = vsub.f32 %v855, %v5854
    %v5863 = vsub.f32 %v856, %v5855
    %v5864 = vsub.f32 %v857, %v5856
    %v5865 = vsub.f32 %v858, %v5857
    %s5866 = scalar_lea.vmem [#allocation2], 8
    %v5867 = vld [vmem:[%s5866] sm:$0xff]
    %v5868 = vld [vmem:[%s5866 + $0x10] sm:$0xff]
    %v5869 = vld [vmem:[%s5866 + $0x20] sm:$0xff]
    %v5870 = vld [vmem:[%s5866 + $0x30] sm:$0xff]
    %v5871 = vld [vmem:[%s5866 + $0x40] sm:$0xff]
    %v5872 = vld [vmem:[%s5866 + $0x50] sm:$0xff]
    %v5873 = vld [vmem:[%s5866 + $0x60] sm:$0xff]
    %v5874 = vld [vmem:[%s5866 + $0x70] sm:$0xff]
    %s5875 = scalar_lea.vmem [#allocation3], 8
    %v5876 = vld [vmem:[%s5875] sm:$0xff]
    %v5877 = vld [vmem:[%s5875 + $0x10] sm:$0xff]
    %v5878 = vld [vmem:[%s5875 + $0x20] sm:$0xff]
    %v5879 = vld [vmem:[%s5875 + $0x30] sm:$0xff]
    %v5880 = vld [vmem:[%s5875 + $0x40] sm:$0xff]
    %v5881 = vld [vmem:[%s5875 + $0x50] sm:$0xff]
    %v5882 = vld [vmem:[%s5875 + $0x60] sm:$0xff]
    %v5883 = vld [vmem:[%s5875 + $0x70] sm:$0xff]
    %s5884 = scalar_lea.vmem [#allocation4], 8
    %v5885 = vld [vmem:[%s5884] sm:$0xff]
    %v5886 = vld [vmem:[%s5884 + $0x10] sm:$0xff]
    %v5887 = vld [vmem:[%s5884 + $0x20] sm:$0xff]
    %v5888 = vld [vmem:[%s5884 + $0x30] sm:$0xff]
    %v5889 = vld [vmem:[%s5884 + $0x40] sm:$0xff]
    %v5890 = vld [vmem:[%s5884 + $0x50] sm:$0xff]
    %v5891 = vld [vmem:[%s5884 + $0x60] sm:$0xff]
    %v5892 = vld [vmem:[%s5884 + $0x70] sm:$0xff]
    %s5893 = scalar_lea.vmem [#allocation5], 8
    %v5894 = vld [vmem:[%s5893] sm:$0xff]
    %v5895 = vld [vmem:[%s5893 + $0x10] sm:$0xff]
    %v5896 = vld [vmem:[%s5893 + $0x20] sm:$0xff]
    %v5897 = vld [vmem:[%s5893 + $0x30] sm:$0xff]
    %v5898 = vld [vmem:[%s5893 + $0x40] sm:$0xff]
    %v5899 = vld [vmem:[%s5893 + $0x50] sm:$0xff]
    %v5900 = vld [vmem:[%s5893 + $0x60] sm:$0xff]
    %v5901 = vld [vmem:[%s5893 + $0x70] sm:$0xff]
    %v5902 = vlaneseq
    %v5903 = vshrl.u32 %v5902, 7
    %v5904 = vsub.s32 7, %v5903
    %v5905 = vrot.slane %v2516, %v5904
    %v5906 = vlaneseq
    %v5907 = vshrl.u32 %v5906, 7
    %v5908 = vsub.s32 7, %v5907
    %v5909 = vrot.slane %v2517, %v5908
    %v5910 = vlaneseq
    %v5911 = vshrl.u32 %v5910, 7
    %v5912 = vsub.s32 7, %v5911
    %v5913 = vrot.slane %v2518, %v5912
    %v5914 = vlaneseq
    %v5915 = vshrl.u32 %v5914, 7
    %v5916 = vsub.s32 7, %v5915
    %v5917 = vrot.slane %v2519, %v5916
    %v5918 = vlaneseq
    %v5919 = vshrl.u32 %v5918, 7
    %v5920 = vsub.s32 7, %v5919
    %v5921 = vrot.slane %v2520, %v5920
    %v5922 = vlaneseq
    %v5923 = vshrl.u32 %v5922, 7
    %v5924 = vsub.s32 7, %v5923
    %v5925 = vrot.slane %v2521, %v5924
    %v5926 = vlaneseq
    %v5927 = vshrl.u32 %v5926, 7
    %v5928 = vsub.s32 7, %v5927
    %v5929 = vrot.slane %v2522, %v5928
    %v5930 = vlaneseq
    %v5931 = vshrl.u32 %v5930, 7
    %v5932 = vsub.s32 7, %v5931
    %v5933 = vrot.slane %v2523, %v5932
    %v5935 = vsel %vm565, %v5876, 0
    %5937 = vmatprep.subr.mxu0 0.0
    %5938 = vmatpush1.msra.mxu0 0.0
    %5939 = vmatprep.subr.mxu0 0.0
    %5940 = vmatpush1.msra.mxu0 0.0
    %5941 = vmatprep.subr.mxu0 0.0
    %5942 = vmatpush1.msra.mxu0 0.0
    %5943 = vmatprep.subr.mxu0 0.0
    %5944 = vmatpush1.msra.mxu0 0.0
    %5945 = vmatprep.subr.mxu0 0.0
    %5946 = vmatpush1.msra.mxu0 0.0
    %5947 = vmatprep.subr.mxu0 0.0
    %5948 = vmatpush1.msra.mxu0 0.0
    %5949 = vmatprep.subr.mxu0 0.0
    %5950 = vmatpush1.msra.mxu0 0.0
    %5951 = vmatprep.subr.mxu0 0.0
    %5952 = vmatpush1.msra.mxu0 0.0
    %5953 = vmatprep.subr.mxu0 0.0
    %5954 = vmatpush1.msra.mxu0 0.0
    %5955 = vmatprep.subr.mxu0 0.0
    %5956 = vmatpush1.msra.mxu0 0.0
    %5957 = vmatprep.subr.mxu0 0.0
    %5958 = vmatpush1.msra.mxu0 0.0
    %5959 = vmatprep.subr.mxu0 0.0
    %5960 = vmatpush1.msra.mxu0 0.0
    %5961 = vmatprep.subr.mxu0 0.0
    %5962 = vmatpush1.msra.mxu0 0.0
    %5963 = vmatprep.subr.mxu0 0.0
    %5964 = vmatpush1.msra.mxu0 0.0
    %5965 = vmatprep.subr.mxu0 0.0
    %5966 = vmatpush1.msra.mxu0 0.0
    %5967 = vmatprep.subr.mxu0 0.0
    %5968 = vmatpush1.msra.mxu0 %v5858
    %5969 = vmatprep.subr.mxu0 0.0
    %5970 = vmatpush2.msra.mxu0 0.0
    %5971 = vmatprep.subr.mxu0 0.0
    %5972 = vmatpush2.msra.mxu0 0.0
    %5973 = vmatprep.subr.mxu0 0.0
    %5974 = vmatpush2.msra.mxu0 0.0
    %5975 = vmatprep.subr.mxu0 0.0
    %5976 = vmatpush2.msra.mxu0 0.0
    %5977 = vmatprep.subr.mxu0 0.0
    %5978 = vmatpush2.msra.mxu0 0.0
    %5979 = vmatprep.subr.mxu0 0.0
    %5980 = vmatpush2.msra.mxu0 0.0
    %5981 = vmatprep.subr.mxu0 0.0
    %5982 = vmatpush2.msra.mxu0 0.0
    %5983 = vmatprep.subr.mxu0 0.0
    %5984 = vmatpush2.msra.mxu0 0.0
    %5985 = vmatprep.subr.mxu0 0.0
    %5986 = vmatpush2.msra.mxu0 0.0
    %5987 = vmatprep.subr.mxu0 0.0
    %5988 = vmatpush2.msra.mxu0 0.0
    %5989 = vmatprep.subr.mxu0 0.0
    %5990 = vmatpush2.msra.mxu0 0.0
    %5991 = vmatprep.subr.mxu0 0.0
    %5992 = vmatpush2.msra.mxu0 0.0
    %5993 = vmatprep.subr.mxu0 0.0
    %5994 = vmatpush2.msra.mxu0 0.0
    %5995 = vmatprep.subr.mxu0 0.0
    %5996 = vmatpush2.msra.mxu0 0.0
    %5997 = vmatprep.subr.mxu0 0.0
    %5998 = vmatpush2.msra.mxu0 0.0
    %5999 = vmatprep.subr.mxu0 0.0
    %6000 = vmatpush2.msra.mxu0 0.0
    %6001 = vmatprep.mubr.f32.mxu0 0.0
    %6002 = vmatmul.mubr.f32.gmra.mxu0 %v5935
    %v6003 = vpop.f32.mrf.mxu0
    %v6004 = vadd.f32 %v5905, %v6003
    %v6005 = vpop.f32.mrf.mxu0
    %6006 = vdwg.mxu0
    %v6008 = vsel %vm565, %v5877, 0
    %6010 = vmatprep.subr.mxu0 0.0
    %6011 = vmatpush1.msra.mxu0 0.0
    %6012 = vmatprep.subr.mxu0 0.0
    %6013 = vmatpush1.msra.mxu0 0.0
    %6014 = vmatprep.subr.mxu0 0.0
    %6015 = vmatpush1.msra.mxu0 0.0
    %6016 = vmatprep.subr.mxu0 0.0
    %6017 = vmatpush1.msra.mxu0 0.0
    %6018 = vmatprep.subr.mxu0 0.0
    %6019 = vmatpush1.msra.mxu0 0.0
    %6020 = vmatprep.subr.mxu0 0.0
    %6021 = vmatpush1.msra.mxu0 0.0
    %6022 = vmatprep.subr.mxu0 0.0
    %6023 = vmatpush1.msra.mxu0 0.0
    %6024 = vmatprep.subr.mxu0 0.0
    %6025 = vmatpush1.msra.mxu0 0.0
    %6026 = vmatprep.subr.mxu0 0.0
    %6027 = vmatpush1.msra.mxu0 0.0
    %6028 = vmatprep.subr.mxu0 0.0
    %6029 = vmatpush1.msra.mxu0 0.0
    %6030 = vmatprep.subr.mxu0 0.0
    %6031 = vmatpush1.msra.mxu0 0.0
    %6032 = vmatprep.subr.mxu0 0.0
    %6033 = vmatpush1.msra.mxu0 0.0
    %6034 = vmatprep.subr.mxu0 0.0
    %6035 = vmatpush1.msra.mxu0 0.0
    %6036 = vmatprep.subr.mxu0 0.0
    %6037 = vmatpush1.msra.mxu0 0.0
    %6038 = vmatprep.subr.mxu0 0.0
    %6039 = vmatpush1.msra.mxu0 0.0
    %6040 = vmatprep.subr.mxu0 0.0
    %6041 = vmatpush1.msra.mxu0 %v5859
    %6042 = vmatprep.subr.mxu0 0.0
    %6043 = vmatpush2.msra.mxu0 0.0
    %6044 = vmatprep.subr.mxu0 0.0
    %6045 = vmatpush2.msra.mxu0 0.0
    %6046 = vmatprep.subr.mxu0 0.0
    %6047 = vmatpush2.msra.mxu0 0.0
    %6048 = vmatprep.subr.mxu0 0.0
    %6049 = vmatpush2.msra.mxu0 0.0
    %6050 = vmatprep.subr.mxu0 0.0
    %6051 = vmatpush2.msra.mxu0 0.0
    %6052 = vmatprep.subr.mxu0 0.0
    %6053 = vmatpush2.msra.mxu0 0.0
    %6054 = vmatprep.subr.mxu0 0.0
    %6055 = vmatpush2.msra.mxu0 0.0
    %6056 = vmatprep.subr.mxu0 0.0
    %6057 = vmatpush2.msra.mxu0 0.0
    %6058 = vmatprep.subr.mxu0 0.0
    %6059 = vmatpush2.msra.mxu0 0.0
    %6060 = vmatprep.subr.mxu0 0.0
    %6061 = vmatpush2.msra.mxu0 0.0
    %6062 = vmatprep.subr.mxu0 0.0
    %6063 = vmatpush2.msra.mxu0 0.0
    %6064 = vmatprep.subr.mxu0 0.0
    %6065 = vmatpush2.msra.mxu0 0.0
    %6066 = vmatprep.subr.mxu0 0.0
    %6067 = vmatpush2.msra.mxu0 0.0
    %6068 = vmatprep.subr.mxu0 0.0
    %6069 = vmatpush2.msra.mxu0 0.0
    %6070 = vmatprep.subr.mxu0 0.0
    %6071 = vmatpush2.msra.mxu0 0.0
    %6072 = vmatprep.subr.mxu0 0.0
    %6073 = vmatpush2.msra.mxu0 0.0
    %6074 = vmatprep.mubr.f32.mxu0 0.0
    %6075 = vmatmul.mubr.f32.gmra.mxu0 %v6008
    %v6076 = vpop.f32.mrf.mxu0
    %v6077 = vadd.f32 %v5909, %v6076
    %v6078 = vpop.f32.mrf.mxu0
    %6079 = vdwg.mxu0
    %v6081 = vsel %vm565, %v5878, 0
    %6083 = vmatprep.subr.mxu0 0.0
    %6084 = vmatpush1.msra.mxu0 0.0
    %6085 = vmatprep.subr.mxu0 0.0
    %6086 = vmatpush1.msra.mxu0 0.0
    %6087 = vmatprep.subr.mxu0 0.0
    %6088 = vmatpush1.msra.mxu0 0.0
    %6089 = vmatprep.subr.mxu0 0.0
    %6090 = vmatpush1.msra.mxu0 0.0
    %6091 = vmatprep.subr.mxu0 0.0
    %6092 = vmatpush1.msra.mxu0 0.0
    %6093 = vmatprep.subr.mxu0 0.0
    %6094 = vmatpush1.msra.mxu0 0.0
    %6095 = vmatprep.subr.mxu0 0.0
    %6096 = vmatpush1.msra.mxu0 0.0
    %6097 = vmatprep.subr.mxu0 0.0
    %6098 = vmatpush1.msra.mxu0 0.0
    %6099 = vmatprep.subr.mxu0 0.0
    %6100 = vmatpush1.msra.mxu0 0.0
    %6101 = vmatprep.subr.mxu0 0.0
    %6102 = vmatpush1.msra.mxu0 0.0
    %6103 = vmatprep.subr.mxu0 0.0
    %6104 = vmatpush1.msra.mxu0 0.0
    %6105 = vmatprep.subr.mxu0 0.0
    %6106 = vmatpush1.msra.mxu0 0.0
    %6107 = vmatprep.subr.mxu0 0.0
    %6108 = vmatpush1.msra.mxu0 0.0
    %6109 = vmatprep.subr.mxu0 0.0
    %6110 = vmatpush1.msra.mxu0 0.0
    %6111 = vmatprep.subr.mxu0 0.0
    %6112 = vmatpush1.msra.mxu0 0.0
    %6113 = vmatprep.subr.mxu0 0.0
    %6114 = vmatpush1.msra.mxu0 %v5860
    %6115 = vmatprep.subr.mxu0 0.0
    %6116 = vmatpush2.msra.mxu0 0.0
    %6117 = vmatprep.subr.mxu0 0.0
    %6118 = vmatpush2.msra.mxu0 0.0
    %6119 = vmatprep.subr.mxu0 0.0
    %6120 = vmatpush2.msra.mxu0 0.0
    %6121 = vmatprep.subr.mxu0 0.0
    %6122 = vmatpush2.msra.mxu0 0.0
    %6123 = vmatprep.subr.mxu0 0.0
    %6124 = vmatpush2.msra.mxu0 0.0
    %6125 = vmatprep.subr.mxu0 0.0
    %6126 = vmatpush2.msra.mxu0 0.0
    %6127 = vmatprep.subr.mxu0 0.0
    %6128 = vmatpush2.msra.mxu0 0.0
    %6129 = vmatprep.subr.mxu0 0.0
    %6130 = vmatpush2.msra.mxu0 0.0
    %6131 = vmatprep.subr.mxu0 0.0
    %6132 = vmatpush2.msra.mxu0 0.0
    %6133 = vmatprep.subr.mxu0 0.0
    %6134 = vmatpush2.msra.mxu0 0.0
    %6135 = vmatprep.subr.mxu0 0.0
    %6136 = vmatpush2.msra.mxu0 0.0
    %6137 = vmatprep.subr.mxu0 0.0
    %6138 = vmatpush2.msra.mxu0 0.0
    %6139 = vmatprep.subr.mxu0 0.0
    %6140 = vmatpush2.msra.mxu0 0.0
    %6141 = vmatprep.subr.mxu0 0.0
    %6142 = vmatpush2.msra.mxu0 0.0
    %6143 = vmatprep.subr.mxu0 0.0
    %6144 = vmatpush2.msra.mxu0 0.0
    %6145 = vmatprep.subr.mxu0 0.0
    %6146 = vmatpush2.msra.mxu0 0.0
    %6147 = vmatprep.mubr.f32.mxu0 0.0
    %6148 = vmatmul.mubr.f32.gmra.mxu0 %v6081
    %v6149 = vpop.f32.mrf.mxu0
    %v6150 = vadd.f32 %v5913, %v6149
    %v6151 = vpop.f32.mrf.mxu0
    %6152 = vdwg.mxu0
    %v6154 = vsel %vm565, %v5879, 0
    %6156 = vmatprep.subr.mxu0 0.0
    %6157 = vmatpush1.msra.mxu0 0.0
    %6158 = vmatprep.subr.mxu0 0.0
    %6159 = vmatpush1.msra.mxu0 0.0
    %6160 = vmatprep.subr.mxu0 0.0
    %6161 = vmatpush1.msra.mxu0 0.0
    %6162 = vmatprep.subr.mxu0 0.0
    %6163 = vmatpush1.msra.mxu0 0.0
    %6164 = vmatprep.subr.mxu0 0.0
    %6165 = vmatpush1.msra.mxu0 0.0
    %6166 = vmatprep.subr.mxu0 0.0
    %6167 = vmatpush1.msra.mxu0 0.0
    %6168 = vmatprep.subr.mxu0 0.0
    %6169 = vmatpush1.msra.mxu0 0.0
    %6170 = vmatprep.subr.mxu0 0.0
    %6171 = vmatpush1.msra.mxu0 0.0
    %6172 = vmatprep.subr.mxu0 0.0
    %6173 = vmatpush1.msra.mxu0 0.0
    %6174 = vmatprep.subr.mxu0 0.0
    %6175 = vmatpush1.msra.mxu0 0.0
    %6176 = vmatprep.subr.mxu0 0.0
    %6177 = vmatpush1.msra.mxu0 0.0
    %6178 = vmatprep.subr.mxu0 0.0
    %6179 = vmatpush1.msra.mxu0 0.0
    %6180 = vmatprep.subr.mxu0 0.0
    %6181 = vmatpush1.msra.mxu0 0.0
    %6182 = vmatprep.subr.mxu0 0.0
    %6183 = vmatpush1.msra.mxu0 0.0
    %6184 = vmatprep.subr.mxu0 0.0
    %6185 = vmatpush1.msra.mxu0 0.0
    %6186 = vmatprep.subr.mxu0 0.0
    %6187 = vmatpush1.msra.mxu0 %v5861
    %6188 = vmatprep.subr.mxu0 0.0
    %6189 = vmatpush2.msra.mxu0 0.0
    %6190 = vmatprep.subr.mxu0 0.0
    %6191 = vmatpush2.msra.mxu0 0.0
    %6192 = vmatprep.subr.mxu0 0.0
    %6193 = vmatpush2.msra.mxu0 0.0
    %6194 = vmatprep.subr.mxu0 0.0
    %6195 = vmatpush2.msra.mxu0 0.0
    %6196 = vmatprep.subr.mxu0 0.0
    %6197 = vmatpush2.msra.mxu0 0.0
    %6198 = vmatprep.subr.mxu0 0.0
    %6199 = vmatpush2.msra.mxu0 0.0
    %6200 = vmatprep.subr.mxu0 0.0
    %6201 = vmatpush2.msra.mxu0 0.0
    %6202 = vmatprep.subr.mxu0 0.0
    %6203 = vmatpush2.msra.mxu0 0.0
    %6204 = vmatprep.subr.mxu0 0.0
    %6205 = vmatpush2.msra.mxu0 0.0
    %6206 = vmatprep.subr.mxu0 0.0
    %6207 = vmatpush2.msra.mxu0 0.0
    %6208 = vmatprep.subr.mxu0 0.0
    %6209 = vmatpush2.msra.mxu0 0.0
    %6210 = vmatprep.subr.mxu0 0.0
    %6211 = vmatpush2.msra.mxu0 0.0
    %6212 = vmatprep.subr.mxu0 0.0
    %6213 = vmatpush2.msra.mxu0 0.0
    %6214 = vmatprep.subr.mxu0 0.0
    %6215 = vmatpush2.msra.mxu0 0.0
    %6216 = vmatprep.subr.mxu0 0.0
    %6217 = vmatpush2.msra.mxu0 0.0
    %6218 = vmatprep.subr.mxu0 0.0
    %6219 = vmatpush2.msra.mxu0 0.0
    %6220 = vmatprep.mubr.f32.mxu0 0.0
    %6221 = vmatmul.mubr.f32.gmra.mxu0 %v6154
    %v6222 = vpop.f32.mrf.mxu0
    %v6223 = vadd.f32 %v5917, %v6222
    %v6224 = vpop.f32.mrf.mxu0
    %6225 = vdwg.mxu0
    %v6227 = vsel %vm565, %v5880, 0
    %6229 = vmatprep.subr.mxu0 0.0
    %6230 = vmatpush1.msra.mxu0 0.0
    %6231 = vmatprep.subr.mxu0 0.0
    %6232 = vmatpush1.msra.mxu0 0.0
    %6233 = vmatprep.subr.mxu0 0.0
    %6234 = vmatpush1.msra.mxu0 0.0
    %6235 = vmatprep.subr.mxu0 0.0
    %6236 = vmatpush1.msra.mxu0 0.0
    %6237 = vmatprep.subr.mxu0 0.0
    %6238 = vmatpush1.msra.mxu0 0.0
    %6239 = vmatprep.subr.mxu0 0.0
    %6240 = vmatpush1.msra.mxu0 0.0
    %6241 = vmatprep.subr.mxu0 0.0
    %6242 = vmatpush1.msra.mxu0 0.0
    %6243 = vmatprep.subr.mxu0 0.0
    %6244 = vmatpush1.msra.mxu0 0.0
    %6245 = vmatprep.subr.mxu0 0.0
    %6246 = vmatpush1.msra.mxu0 0.0
    %6247 = vmatprep.subr.mxu0 0.0
    %6248 = vmatpush1.msra.mxu0 0.0
    %6249 = vmatprep.subr.mxu0 0.0
    %6250 = vmatpush1.msra.mxu0 0.0
    %6251 = vmatprep.subr.mxu0 0.0
    %6252 = vmatpush1.msra.mxu0 0.0
    %6253 = vmatprep.subr.mxu0 0.0
    %6254 = vmatpush1.msra.mxu0 0.0
    %6255 = vmatprep.subr.mxu0 0.0
    %6256 = vmatpush1.msra.mxu0 0.0
    %6257 = vmatprep.subr.mxu0 0.0
    %6258 = vmatpush1.msra.mxu0 0.0
    %6259 = vmatprep.subr.mxu0 0.0
    %6260 = vmatpush1.msra.mxu0 %v5862
    %6261 = vmatprep.subr.mxu0 0.0
    %6262 = vmatpush2.msra.mxu0 0.0
    %6263 = vmatprep.subr.mxu0 0.0
    %6264 = vmatpush2.msra.mxu0 0.0
    %6265 = vmatprep.subr.mxu0 0.0
    %6266 = vmatpush2.msra.mxu0 0.0
    %6267 = vmatprep.subr.mxu0 0.0
    %6268 = vmatpush2.msra.mxu0 0.0
    %6269 = vmatprep.subr.mxu0 0.0
    %6270 = vmatpush2.msra.mxu0 0.0
    %6271 = vmatprep.subr.mxu0 0.0
    %6272 = vmatpush2.msra.mxu0 0.0
    %6273 = vmatprep.subr.mxu0 0.0
    %6274 = vmatpush2.msra.mxu0 0.0
    %6275 = vmatprep.subr.mxu0 0.0
    %6276 = vmatpush2.msra.mxu0 0.0
    %6277 = vmatprep.subr.mxu0 0.0
    %6278 = vmatpush2.msra.mxu0 0.0
    %6279 = vmatprep.subr.mxu0 0.0
    %6280 = vmatpush2.msra.mxu0 0.0
    %6281 = vmatprep.subr.mxu0 0.0
    %6282 = vmatpush2.msra.mxu0 0.0
    %6283 = vmatprep.subr.mxu0 0.0
    %6284 = vmatpush2.msra.mxu0 0.0
    %6285 = vmatprep.subr.mxu0 0.0
    %6286 = vmatpush2.msra.mxu0 0.0
    %6287 = vmatprep.subr.mxu0 0.0
    %6288 = vmatpush2.msra.mxu0 0.0
    %6289 = vmatprep.subr.mxu0 0.0
    %6290 = vmatpush2.msra.mxu0 0.0
    %6291 = vmatprep.subr.mxu0 0.0
    %6292 = vmatpush2.msra.mxu0 0.0
    %6293 = vmatprep.mubr.f32.mxu0 0.0
    %6294 = vmatmul.mubr.f32.gmra.mxu0 %v6227
    %v6295 = vpop.f32.mrf.mxu0
    %v6296 = vadd.f32 %v5921, %v6295
    %v6297 = vpop.f32.mrf.mxu0
    %6298 = vdwg.mxu0
    %v6300 = vsel %vm565, %v5881, 0
    %6302 = vmatprep.subr.mxu0 0.0
    %6303 = vmatpush1.msra.mxu0 0.0
    %6304 = vmatprep.subr.mxu0 0.0
    %6305 = vmatpush1.msra.mxu0 0.0
    %6306 = vmatprep.subr.mxu0 0.0
    %6307 = vmatpush1.msra.mxu0 0.0
    %6308 = vmatprep.subr.mxu0 0.0
    %6309 = vmatpush1.msra.mxu0 0.0
    %6310 = vmatprep.subr.mxu0 0.0
    %6311 = vmatpush1.msra.mxu0 0.0
    %6312 = vmatprep.subr.mxu0 0.0
    %6313 = vmatpush1.msra.mxu0 0.0
    %6314 = vmatprep.subr.mxu0 0.0
    %6315 = vmatpush1.msra.mxu0 0.0
    %6316 = vmatprep.subr.mxu0 0.0
    %6317 = vmatpush1.msra.mxu0 0.0
    %6318 = vmatprep.subr.mxu0 0.0
    %6319 = vmatpush1.msra.mxu0 0.0
    %6320 = vmatprep.subr.mxu0 0.0
    %6321 = vmatpush1.msra.mxu0 0.0
    %6322 = vmatprep.subr.mxu0 0.0
    %6323 = vmatpush1.msra.mxu0 0.0
    %6324 = vmatprep.subr.mxu0 0.0
    %6325 = vmatpush1.msra.mxu0 0.0
    %6326 = vmatprep.subr.mxu0 0.0
    %6327 = vmatpush1.msra.mxu0 0.0
    %6328 = vmatprep.subr.mxu0 0.0
    %6329 = vmatpush1.msra.mxu0 0.0
    %6330 = vmatprep.subr.mxu0 0.0
    %6331 = vmatpush1.msra.mxu0 0.0
    %6332 = vmatprep.subr.mxu0 0.0
    %6333 = vmatpush1.msra.mxu0 %v5863
    %6334 = vmatprep.subr.mxu0 0.0
    %6335 = vmatpush2.msra.mxu0 0.0
    %6336 = vmatprep.subr.mxu0 0.0
    %6337 = vmatpush2.msra.mxu0 0.0
    %6338 = vmatprep.subr.mxu0 0.0
    %6339 = vmatpush2.msra.mxu0 0.0
    %6340 = vmatprep.subr.mxu0 0.0
    %6341 = vmatpush2.msra.mxu0 0.0
    %6342 = vmatprep.subr.mxu0 0.0
    %6343 = vmatpush2.msra.mxu0 0.0
    %6344 = vmatprep.subr.mxu0 0.0
    %6345 = vmatpush2.msra.mxu0 0.0
    %6346 = vmatprep.subr.mxu0 0.0
    %6347 = vmatpush2.msra.mxu0 0.0
    %6348 = vmatprep.subr.mxu0 0.0
    %6349 = vmatpush2.msra.mxu0 0.0
    %6350 = vmatprep.subr.mxu0 0.0
    %6351 = vmatpush2.msra.mxu0 0.0
    %6352 = vmatprep.subr.mxu0 0.0
    %6353 = vmatpush2.msra.mxu0 0.0
    %6354 = vmatprep.subr.mxu0 0.0
    %6355 = vmatpush2.msra.mxu0 0.0
    %6356 = vmatprep.subr.mxu0 0.0
    %6357 = vmatpush2.msra.mxu0 0.0
    %6358 = vmatprep.subr.mxu0 0.0
    %6359 = vmatpush2.msra.mxu0 0.0
    %6360 = vmatprep.subr.mxu0 0.0
    %6361 = vmatpush2.msra.mxu0 0.0
    %6362 = vmatprep.subr.mxu0 0.0
    %6363 = vmatpush2.msra.mxu0 0.0
    %6364 = vmatprep.subr.mxu0 0.0
    %6365 = vmatpush2.msra.mxu0 0.0
    %6366 = vmatprep.mubr.f32.mxu0 0.0
    %6367 = vmatmul.mubr.f32.gmra.mxu0 %v6300
    %v6368 = vpop.f32.mrf.mxu0
    %v6369 = vadd.f32 %v5925, %v6368
    %v6370 = vpop.f32.mrf.mxu0
    %6371 = vdwg.mxu0
    %v6373 = vsel %vm565, %v5882, 0
    %6375 = vmatprep.subr.mxu0 0.0
    %6376 = vmatpush1.msra.mxu0 0.0
    %6377 = vmatprep.subr.mxu0 0.0
    %6378 = vmatpush1.msra.mxu0 0.0
    %6379 = vmatprep.subr.mxu0 0.0
    %6380 = vmatpush1.msra.mxu0 0.0
    %6381 = vmatprep.subr.mxu0 0.0
    %6382 = vmatpush1.msra.mxu0 0.0
    %6383 = vmatprep.subr.mxu0 0.0
    %6384 = vmatpush1.msra.mxu0 0.0
    %6385 = vmatprep.subr.mxu0 0.0
    %6386 = vmatpush1.msra.mxu0 0.0
    %6387 = vmatprep.subr.mxu0 0.0
    %6388 = vmatpush1.msra.mxu0 0.0
    %6389 = vmatprep.subr.mxu0 0.0
    %6390 = vmatpush1.msra.mxu0 0.0
    %6391 = vmatprep.subr.mxu0 0.0
    %6392 = vmatpush1.msra.mxu0 0.0
    %6393 = vmatprep.subr.mxu0 0.0
    %6394 = vmatpush1.msra.mxu0 0.0
    %6395 = vmatprep.subr.mxu0 0.0
    %6396 = vmatpush1.msra.mxu0 0.0
    %6397 = vmatprep.subr.mxu0 0.0
    %6398 = vmatpush1.msra.mxu0 0.0
    %6399 = vmatprep.subr.mxu0 0.0
    %6400 = vmatpush1.msra.mxu0 0.0
    %6401 = vmatprep.subr.mxu0 0.0
    %6402 = vmatpush1.msra.mxu0 0.0
    %6403 = vmatprep.subr.mxu0 0.0
    %6404 = vmatpush1.msra.mxu0 0.0
    %6405 = vmatprep.subr.mxu0 0.0
    %6406 = vmatpush1.msra.mxu0 %v5864
    %6407 = vmatprep.subr.mxu0 0.0
    %6408 = vmatpush2.msra.mxu0 0.0
    %6409 = vmatprep.subr.mxu0 0.0
    %6410 = vmatpush2.msra.mxu0 0.0
    %6411 = vmatprep.subr.mxu0 0.0
    %6412 = vmatpush2.msra.mxu0 0.0
    %6413 = vmatprep.subr.mxu0 0.0
    %6414 = vmatpush2.msra.mxu0 0.0
    %6415 = vmatprep.subr.mxu0 0.0
    %6416 = vmatpush2.msra.mxu0 0.0
    %6417 = vmatprep.subr.mxu0 0.0
    %6418 = vmatpush2.msra.mxu0 0.0
    %6419 = vmatprep.subr.mxu0 0.0
    %6420 = vmatpush2.msra.mxu0 0.0
    %6421 = vmatprep.subr.mxu0 0.0
    %6422 = vmatpush2.msra.mxu0 0.0
    %6423 = vmatprep.subr.mxu0 0.0
    %6424 = vmatpush2.msra.mxu0 0.0
    %6425 = vmatprep.subr.mxu0 0.0
    %6426 = vmatpush2.msra.mxu0 0.0
    %6427 = vmatprep.subr.mxu0 0.0
    %6428 = vmatpush2.msra.mxu0 0.0
    %6429 = vmatprep.subr.mxu0 0.0
    %6430 = vmatpush2.msra.mxu0 0.0
    %6431 = vmatprep.subr.mxu0 0.0
    %6432 = vmatpush2.msra.mxu0 0.0
    %6433 = vmatprep.subr.mxu0 0.0
    %6434 = vmatpush2.msra.mxu0 0.0
    %6435 = vmatprep.subr.mxu0 0.0
    %6436 = vmatpush2.msra.mxu0 0.0
    %6437 = vmatprep.subr.mxu0 0.0
    %6438 = vmatpush2.msra.mxu0 0.0
    %6439 = vmatprep.mubr.f32.mxu0 0.0
    %6440 = vmatmul.mubr.f32.gmra.mxu0 %v6373
    %v6441 = vpop.f32.mrf.mxu0
    %v6442 = vadd.f32 %v5929, %v6441
    %v6443 = vpop.f32.mrf.mxu0
    %6444 = vdwg.mxu0
    %v6446 = vsel %vm565, %v5883, 0
    %6448 = vmatprep.subr.mxu0 0.0
    %6449 = vmatpush1.msra.mxu0 0.0
    %6450 = vmatprep.subr.mxu0 0.0
    %6451 = vmatpush1.msra.mxu0 0.0
    %6452 = vmatprep.subr.mxu0 0.0
    %6453 = vmatpush1.msra.mxu0 0.0
    %6454 = vmatprep.subr.mxu0 0.0
    %6455 = vmatpush1.msra.mxu0 0.0
    %6456 = vmatprep.subr.mxu0 0.0
    %6457 = vmatpush1.msra.mxu0 0.0
    %6458 = vmatprep.subr.mxu0 0.0
    %6459 = vmatpush1.msra.mxu0 0.0
    %6460 = vmatprep.subr.mxu0 0.0
    %6461 = vmatpush1.msra.mxu0 0.0
    %6462 = vmatprep.subr.mxu0 0.0
    %6463 = vmatpush1.msra.mxu0 0.0
    %6464 = vmatprep.subr.mxu0 0.0
    %6465 = vmatpush1.msra.mxu0 0.0
    %6466 = vmatprep.subr.mxu0 0.0
    %6467 = vmatpush1.msra.mxu0 0.0
    %6468 = vmatprep.subr.mxu0 0.0
    %6469 = vmatpush1.msra.mxu0 0.0
    %6470 = vmatprep.subr.mxu0 0.0
    %6471 = vmatpush1.msra.mxu0 0.0
    %6472 = vmatprep.subr.mxu0 0.0
    %6473 = vmatpush1.msra.mxu0 0.0
    %6474 = vmatprep.subr.mxu0 0.0
    %6475 = vmatpush1.msra.mxu0 0.0
    %6476 = vmatprep.subr.mxu0 0.0
    %6477 = vmatpush1.msra.mxu0 0.0
    %6478 = vmatprep.subr.mxu0 0.0
    %6479 = vmatpush1.msra.mxu0 %v5865
    %6480 = vmatprep.subr.mxu0 0.0
    %6481 = vmatpush2.msra.mxu0 0.0
    %6482 = vmatprep.subr.mxu0 0.0
    %6483 = vmatpush2.msra.mxu0 0.0
    %6484 = vmatprep.subr.mxu0 0.0
    %6485 = vmatpush2.msra.mxu0 0.0
    %6486 = vmatprep.subr.mxu0 0.0
    %6487 = vmatpush2.msra.mxu0 0.0
    %6488 = vmatprep.subr.mxu0 0.0
    %6489 = vmatpush2.msra.mxu0 0.0
    %6490 = vmatprep.subr.mxu0 0.0
    %6491 = vmatpush2.msra.mxu0 0.0
    %6492 = vmatprep.subr.mxu0 0.0
    %6493 = vmatpush2.msra.mxu0 0.0
    %6494 = vmatprep.subr.mxu0 0.0
    %6495 = vmatpush2.msra.mxu0 0.0
    %6496 = vmatprep.subr.mxu0 0.0
    %6497 = vmatpush2.msra.mxu0 0.0
    %6498 = vmatprep.subr.mxu0 0.0
    %6499 = vmatpush2.msra.mxu0 0.0
    %6500 = vmatprep.subr.mxu0 0.0
    %6501 = vmatpush2.msra.mxu0 0.0
    %6502 = vmatprep.subr.mxu0 0.0
    %6503 = vmatpush2.msra.mxu0 0.0
    %6504 = vmatprep.subr.mxu0 0.0
    %6505 = vmatpush2.msra.mxu0 0.0
    %6506 = vmatprep.subr.mxu0 0.0
    %6507 = vmatpush2.msra.mxu0 0.0
    %6508 = vmatprep.subr.mxu0 0.0
    %6509 = vmatpush2.msra.mxu0 0.0
    %6510 = vmatprep.subr.mxu0 0.0
    %6511 = vmatpush2.msra.mxu0 0.0
    %6512 = vmatprep.mubr.f32.mxu0 0.0
    %6513 = vmatmul.mubr.f32.gmra.mxu0 %v6446
    %v6514 = vpop.f32.mrf.mxu0
    %v6515 = vadd.f32 %v5933, %v6514
    %v6516 = vpop.f32.mrf.mxu0
    %6517 = vdwg.mxu0
    %v6518 = vsub.f32 %v5885, %v5876
    %v6519 = vsub.f32 %v5886, %v5877
    %v6520 = vsub.f32 %v5887, %v5878
    %v6521 = vsub.f32 %v5888, %v5879
    %v6522 = vsub.f32 %v5889, %v5880
    %v6523 = vsub.f32 %v5890, %v5881
    %v6524 = vsub.f32 %v5891, %v5882
    %v6525 = vsub.f32 %v5892, %v5883
    %v6526 = vsel %vm565, %v6004, 0.0
    %6527 = vadd.xlane.f32.xlu0 %v6526
    %v6528 = vpop.xlane.xlu0 %6527
    %v6529 = vsel %vm565, %v6077, 0.0
    %6530 = vadd.xlane.f32.xlu0 %v6529
    %v6531 = vpop.xlane.xlu0 %6530
    %v6532 = vsel %vm565, %v6150, 0.0
    %6533 = vadd.xlane.f32.xlu0 %v6532
    %v6534 = vpop.xlane.xlu0 %6533
    %v6535 = vsel %vm565, %v6223, 0.0
    %6536 = vadd.xlane.f32.xlu0 %v6535
    %v6537 = vpop.xlane.xlu0 %6536
    %v6538 = vsel %vm565, %v6296, 0.0
    %6539 = vadd.xlane.f32.xlu0 %v6538
    %v6540 = vpop.xlane.xlu0 %6539
    %v6541 = vsel %vm565, %v6369, 0.0
    %6542 = vadd.xlane.f32.xlu0 %v6541
    %v6543 = vpop.xlane.xlu0 %6542
    %v6544 = vsel %vm565, %v6442, 0.0
    %6545 = vadd.xlane.f32.xlu0 %v6544
    %v6546 = vpop.xlane.xlu0 %6545
    %v6547 = vsel %vm565, %v6515, 0.0
    %6548 = vadd.xlane.f32.xlu0 %v6547
    %v6549 = vpop.xlane.xlu0 %6548
    %v6550 = vmul.f32 %v6528, %v1563
    %v6551 = vmul.f32 %v6531, %v1563
    %v6552 = vmul.f32 %v6534, %v1563
    %v6553 = vmul.f32 %v6537, %v1563
    %v6554 = vmul.f32 %v6540, %v1563
    %v6555 = vmul.f32 %v6543, %v1563
    %v6556 = vmul.f32 %v6546, %v1563
    %v6557 = vmul.f32 %v6549, %v1563
    %v6558 = vsub.f32 %v6004, %v6550
    %v6559 = vsub.f32 %v6077, %v6551
    %v6560 = vsub.f32 %v6150, %v6552
    %v6561 = vsub.f32 %v6223, %v6553
    %v6562 = vsub.f32 %v6296, %v6554
    %v6563 = vsub.f32 %v6369, %v6555
    %v6564 = vsub.f32 %v6442, %v6556
    %v6565 = vsub.f32 %v6515, %v6557
    %v6566 = vmul.f32 %v6558, %v6558
    %v6567 = vmul.f32 %v6559, %v6559
    %v6568 = vmul.f32 %v6560, %v6560
    %v6569 = vmul.f32 %v6561, %v6561
    %v6570 = vmul.f32 %v6562, %v6562
    %v6571 = vmul.f32 %v6563, %v6563
    %v6572 = vmul.f32 %v6564, %v6564
    %v6573 = vmul.f32 %v6565, %v6565
    %v6574 = vsel %vm565, %v6566, 0.0
    %6575 = vadd.xlane.f32.xlu0 %v6574
    %v6576 = vpop.xlane.xlu0 %6575
    %v6577 = vsel %vm565, %v6567, 0.0
    %6578 = vadd.xlane.f32.xlu0 %v6577
    %v6579 = vpop.xlane.xlu0 %6578
    %v6580 = vsel %vm565, %v6568, 0.0
    %6581 = vadd.xlane.f32.xlu0 %v6580
    %v6582 = vpop.xlane.xlu0 %6581
    %v6583 = vsel %vm565, %v6569, 0.0
    %6584 = vadd.xlane.f32.xlu0 %v6583
    %v6585 = vpop.xlane.xlu0 %6584
    %v6586 = vsel %vm565, %v6570, 0.0
    %6587 = vadd.xlane.f32.xlu0 %v6586
    %v6588 = vpop.xlane.xlu0 %6587
    %v6589 = vsel %vm565, %v6571, 0.0
    %6590 = vadd.xlane.f32.xlu0 %v6589
    %v6591 = vpop.xlane.xlu0 %6590
    %v6592 = vsel %vm565, %v6572, 0.0
    %6593 = vadd.xlane.f32.xlu0 %v6592
    %v6594 = vpop.xlane.xlu0 %6593
    %v6595 = vsel %vm565, %v6573, 0.0
    %6596 = vadd.xlane.f32.xlu0 %v6595
    %v6597 = vpop.xlane.xlu0 %6596
    %v6598 = vmul.f32 %v6576, %v1563
    %v6599 = vmul.f32 %v6579, %v1563
    %v6600 = vmul.f32 %v6582, %v1563
    %v6601 = vmul.f32 %v6585, %v1563
    %v6602 = vmul.f32 %v6588, %v1563
    %v6603 = vmul.f32 %v6591, %v1563
    %v6604 = vmul.f32 %v6594, %v1563
    %v6605 = vmul.f32 %v6597, %v1563
    %v6606 = vadd.f32 %v6598, 1e-06
    %v6607 = vadd.f32 %v6599, 1e-06
    %v6608 = vadd.f32 %v6600, 1e-06
    %v6609 = vadd.f32 %v6601, 1e-06
    %v6610 = vadd.f32 %v6602, 1e-06
    %v6611 = vadd.f32 %v6603, 1e-06
    %v6612 = vadd.f32 %v6604, 1e-06
    %v6613 = vadd.f32 %v6605, 1e-06
    %v6614 = vrsqrt.pop %v6606
    %v6615 = vrsqrt.pop %v6607
    %v6616 = vrsqrt.pop %v6608
    %v6617 = vrsqrt.pop %v6609
    %v6618 = vrsqrt.pop %v6610
    %v6619 = vrsqrt.pop %v6611
    %v6620 = vrsqrt.pop %v6612
    %v6621 = vrsqrt.pop %v6613
    %v6622 = vmul.f32 %v6558, %v6614
    %v6623 = vmul.f32 %v6559, %v6615
    %v6624 = vmul.f32 %v6560, %v6616
    %v6625 = vmul.f32 %v6561, %v6617
    %v6626 = vmul.f32 %v6562, %v6618
    %v6627 = vmul.f32 %v6563, %v6619
    %v6628 = vmul.f32 %v6564, %v6620
    %v6629 = vmul.f32 %v6565, %v6621
    %v6630 = vmul.f32 %v1655, %v6622
    %v6631 = vmul.f32 %v1659, %v6623
    %v6632 = vmul.f32 %v1663, %v6624
    %v6633 = vmul.f32 %v1667, %v6625
    %v6634 = vmul.f32 %v1671, %v6626
    %v6635 = vmul.f32 %v1675, %v6627
    %v6636 = vmul.f32 %v1679, %v6628
    %v6637 = vmul.f32 %v1683, %v6629
    %v6638 = vadd.f32 %v6630, %v1711
    %v6639 = vadd.f32 %v6631, %v1715
    %v6640 = vadd.f32 %v6632, %v1719
    %v6641 = vadd.f32 %v6633, %v1723
    %v6642 = vadd.f32 %v6634, %v1727
    %v6643 = vadd.f32 %v6635, %v1731
    %v6644 = vadd.f32 %v6636, %v1735
    %v6645 = vadd.f32 %v6637, %v1739
    %v6646 = vsub.f32 %v6638, %v6518
    %v6647 = vsub.f32 %v6639, %v6519
    %v6648 = vsub.f32 %v6640, %v6520
    %v6649 = vsub.f32 %v6641, %v6521
    %v6650 = vsub.f32 %v6642, %v6522
    %v6651 = vsub.f32 %v6643, %v6523
    %v6652 = vsub.f32 %v6644, %v6524
    %v6653 = vsub.f32 %v6645, %v6525
    %v6654 = vmul.f32 %v6646, %v1655
    %v6655 = vmul.f32 %v6647, %v1659
    %v6656 = vmul.f32 %v6648, %v1663
    %v6657 = vmul.f32 %v6649, %v1667
    %v6658 = vmul.f32 %v6650, %v1671
    %v6659 = vmul.f32 %v6651, %v1675
    %v6660 = vmul.f32 %v6652, %v1679
    %v6661 = vmul.f32 %v6653, %v1683
    %v6662 = vmul.f32 %v6654, 8.0
    %v6663 = vmul.f32 %v6655, 8.0
    %v6664 = vmul.f32 %v6656, 8.0
    %v6665 = vmul.f32 %v6657, 8.0
    %v6666 = vmul.f32 %v6658, 8.0
    %v6667 = vmul.f32 %v6659, 8.0
    %v6668 = vmul.f32 %v6660, 8.0
    %v6669 = vmul.f32 %v6661, 8.0
    %v6670 = vsel %vm565, %v6654, 0.0
    %6671 = vadd.xlane.f32.xlu0 %v6670
    %v6672 = vpop.xlane.xlu0 %6671
    %v6673 = vsel %vm565, %v6655, 0.0
    %6674 = vadd.xlane.f32.xlu0 %v6673
    %v6675 = vpop.xlane.xlu0 %6674
    %v6676 = vsel %vm565, %v6656, 0.0
    %6677 = vadd.xlane.f32.xlu0 %v6676
    %v6678 = vpop.xlane.xlu0 %6677
    %v6679 = vsel %vm565, %v6657, 0.0
    %6680 = vadd.xlane.f32.xlu0 %v6679
    %v6681 = vpop.xlane.xlu0 %6680
    %v6682 = vsel %vm565, %v6658, 0.0
    %6683 = vadd.xlane.f32.xlu0 %v6682
    %v6684 = vpop.xlane.xlu0 %6683
    %v6685 = vsel %vm565, %v6659, 0.0
    %6686 = vadd.xlane.f32.xlu0 %v6685
    %v6687 = vpop.xlane.xlu0 %6686
    %v6688 = vsel %vm565, %v6660, 0.0
    %6689 = vadd.xlane.f32.xlu0 %v6688
    %v6690 = vpop.xlane.xlu0 %6689
    %v6691 = vsel %vm565, %v6661, 0.0
    %6692 = vadd.xlane.f32.xlu0 %v6691
    %v6693 = vpop.xlane.xlu0 %6692
    %v6694 = vsub.f32 %v6662, %v6672
    %v6695 = vsub.f32 %v6663, %v6675
    %v6696 = vsub.f32 %v6664, %v6678
    %v6697 = vsub.f32 %v6665, %v6681
    %v6698 = vsub.f32 %v6666, %v6684
    %v6699 = vsub.f32 %v6667, %v6687
    %v6700 = vsub.f32 %v6668, %v6690
    %v6701 = vsub.f32 %v6669, %v6693
    %v6702 = vmul.f32 %v6654, %v6622
    %v6703 = vmul.f32 %v6655, %v6623
    %v6704 = vmul.f32 %v6656, %v6624
    %v6705 = vmul.f32 %v6657, %v6625
    %v6706 = vmul.f32 %v6658, %v6626
    %v6707 = vmul.f32 %v6659, %v6627
    %v6708 = vmul.f32 %v6660, %v6628
    %v6709 = vmul.f32 %v6661, %v6629
    %v6710 = vsel %vm565, %v6702, 0.0
    %6711 = vadd.xlane.f32.xlu0 %v6710
    %v6712 = vpop.xlane.xlu0 %6711
    %v6713 = vsel %vm565, %v6703, 0.0
    %6714 = vadd.xlane.f32.xlu0 %v6713
    %v6715 = vpop.xlane.xlu0 %6714
    %v6716 = vsel %vm565, %v6704, 0.0
    %6717 = vadd.xlane.f32.xlu0 %v6716
    %v6718 = vpop.xlane.xlu0 %6717
    %v6719 = vsel %vm565, %v6705, 0.0
    %6720 = vadd.xlane.f32.xlu0 %v6719
    %v6721 = vpop.xlane.xlu0 %6720
    %v6722 = vsel %vm565, %v6706, 0.0
    %6723 = vadd.xlane.f32.xlu0 %v6722
    %v6724 = vpop.xlane.xlu0 %6723
    %v6725 = vsel %vm565, %v6707, 0.0
    %6726 = vadd.xlane.f32.xlu0 %v6725
    %v6727 = vpop.xlane.xlu0 %6726
    %v6728 = vsel %vm565, %v6708, 0.0
    %6729 = vadd.xlane.f32.xlu0 %v6728
    %v6730 = vpop.xlane.xlu0 %6729
    %v6731 = vsel %vm565, %v6709, 0.0
    %6732 = vadd.xlane.f32.xlu0 %v6731
    %v6733 = vpop.xlane.xlu0 %6732
    %v6734 = vmul.f32 %v6622, %v6712
    %v6735 = vmul.f32 %v6623, %v6715
    %v6736 = vmul.f32 %v6624, %v6718
    %v6737 = vmul.f32 %v6625, %v6721
    %v6738 = vmul.f32 %v6626, %v6724
    %v6739 = vmul.f32 %v6627, %v6727
    %v6740 = vmul.f32 %v6628, %v6730
    %v6741 = vmul.f32 %v6629, %v6733
    %v6742 = vsub.f32 %v6694, %v6734
    %v6743 = vsub.f32 %v6695, %v6735
    %v6744 = vsub.f32 %v6696, %v6736
    %v6745 = vsub.f32 %v6697, %v6737
    %v6746 = vsub.f32 %v6698, %v6738
    %v6747 = vsub.f32 %v6699, %v6739
    %v6748 = vsub.f32 %v6700, %v6740
    %v6749 = vsub.f32 %v6701, %v6741
    %v6750 = vmul.f32 %v6614, %v1563
    %v6751 = vmul.f32 %v6615, %v1563
    %v6752 = vmul.f32 %v6616, %v1563
    %v6753 = vmul.f32 %v6617, %v1563
    %v6754 = vmul.f32 %v6618, %v1563
    %v6755 = vmul.f32 %v6619, %v1563
    %v6756 = vmul.f32 %v6620, %v1563
    %v6757 = vmul.f32 %v6621, %v1563
    %v6758 = vmul.f32 %v6742, %v6750
    %v6759 = vmul.f32 %v6743, %v6751
    %v6760 = vmul.f32 %v6744, %v6752
    %v6761 = vmul.f32 %v6745, %v6753
    %v6762 = vmul.f32 %v6746, %v6754
    %v6763 = vmul.f32 %v6747, %v6755
    %v6764 = vmul.f32 %v6748, %v6756
    %v6765 = vmul.f32 %v6749, %v6757
    %6767 = vset.pattern.permute.xlu0 0
    %6768 = vperm.xlu0 %6767, %v5894
    %v6769 = vpop.permute.xlu0 %6768
    %6772 = vset.pattern.permute.xlu0 0
    %6773 = vperm.xlu0 %6772, %v5895
    %v6774 = vpop.permute.xlu0 %6773
    %6777 = vset.pattern.permute.xlu0 0
    %6778 = vperm.xlu0 %6777, %v5896
    %v6779 = vpop.permute.xlu0 %6778
    %6782 = vset.pattern.permute.xlu0 0
    %6783 = vperm.xlu0 %6782, %v5897
    %v6784 = vpop.permute.xlu0 %6783
    %6787 = vset.pattern.permute.xlu0 0
    %6788 = vperm.xlu0 %6787, %v5898
    %v6789 = vpop.permute.xlu0 %6788
    %6792 = vset.pattern.permute.xlu0 0
    %6793 = vperm.xlu0 %6792, %v5899
    %v6794 = vpop.permute.xlu0 %6793
    %6797 = vset.pattern.permute.xlu0 0
    %6798 = vperm.xlu0 %6797, %v5900
    %v6799 = vpop.permute.xlu0 %6798
    %6802 = vset.pattern.permute.xlu0 0
    %6803 = vperm.xlu0 %6802, %v5901
    %v6804 = vpop.permute.xlu0 %6803
    %v6806 = vmul.f32 %v6769, %v6758
    %v6807 = vmul.f32 %v6774, %v6759
    %v6808 = vmul.f32 %v6779, %v6760
    %v6809 = vmul.f32 %v6784, %v6761
    %v6810 = vmul.f32 %v6789, %v6762
    %v6811 = vmul.f32 %v6794, %v6763
    %v6812 = vmul.f32 %v6799, %v6764
    %v6813 = vmul.f32 %v6804, %v6765
    %6814 = vmatprep.subr.mxu0 0.0
    %6815 = vmatpush1.msra.mxu0 0.0
    %6816 = vmatprep.subr.mxu0 0.0
    %6817 = vmatpush1.msra.mxu0 0.0
    %6818 = vmatprep.subr.mxu0 0.0
    %6819 = vmatpush1.msra.mxu0 0.0
    %6820 = vmatprep.subr.mxu0 0.0
    %6821 = vmatpush1.msra.mxu0 0.0
    %6822 = vmatprep.subr.mxu0 0.0
    %6823 = vmatpush1.msra.mxu0 0.0
    %6824 = vmatprep.subr.mxu0 0.0
    %6825 = vmatpush1.msra.mxu0 0.0
    %6826 = vmatprep.subr.mxu0 0.0
    %6827 = vmatpush1.msra.mxu0 0.0
    %6828 = vmatprep.subr.mxu0 0.0
    %6829 = vmatpush1.msra.mxu0 0.0
    %6830 = vmatprep.subr.mxu0 0.0
    %6831 = vmatpush1.msra.mxu0 0.0
    %6832 = vmatprep.subr.mxu0 0.0
    %6833 = vmatpush1.msra.mxu0 0.0
    %6834 = vmatprep.subr.mxu0 0.0
    %6835 = vmatpush1.msra.mxu0 0.0
    %6836 = vmatprep.subr.mxu0 0.0
    %6837 = vmatpush1.msra.mxu0 0.0
    %6838 = vmatprep.subr.mxu0 0.0
    %6839 = vmatpush1.msra.mxu0 0.0
    %6840 = vmatprep.subr.mxu0 0.0
    %6841 = vmatpush1.msra.mxu0 0.0
    %6842 = vmatprep.subr.mxu0 0.0
    %6843 = vmatpush1.msra.mxu0 0.0
    %6844 = vmatprep.subr.mxu0 0.0
    %6845 = vmatpush1.msra.mxu0 %v6758
    %6846 = vmatprep.subr.mxu0 0.0
    %6847 = vmatpush2.msra.mxu0 0.0
    %6848 = vmatprep.subr.mxu0 0.0
    %6849 = vmatpush2.msra.mxu0 0.0
    %6850 = vmatprep.subr.mxu0 0.0
    %6851 = vmatpush2.msra.mxu0 0.0
    %6852 = vmatprep.subr.mxu0 0.0
    %6853 = vmatpush2.msra.mxu0 0.0
    %6854 = vmatprep.subr.mxu0 0.0
    %6855 = vmatpush2.msra.mxu0 0.0
    %6856 = vmatprep.subr.mxu0 0.0
    %6857 = vmatpush2.msra.mxu0 0.0
    %6858 = vmatprep.subr.mxu0 0.0
    %6859 = vmatpush2.msra.mxu0 0.0
    %6860 = vmatprep.subr.mxu0 0.0
    %6861 = vmatpush2.msra.mxu0 0.0
    %6862 = vmatprep.subr.mxu0 0.0
    %6863 = vmatpush2.msra.mxu0 0.0
    %6864 = vmatprep.subr.mxu0 0.0
    %6865 = vmatpush2.msra.mxu0 0.0
    %6866 = vmatprep.subr.mxu0 0.0
    %6867 = vmatpush2.msra.mxu0 0.0
    %6868 = vmatprep.subr.mxu0 0.0
    %6869 = vmatpush2.msra.mxu0 0.0
    %6870 = vmatprep.subr.mxu0 0.0
    %6871 = vmatpush2.msra.mxu0 0.0
    %6872 = vmatprep.subr.mxu0 0.0
    %6873 = vmatpush2.msra.mxu0 0.0
    %6874 = vmatprep.subr.mxu0 0.0
    %6875 = vmatpush2.msra.mxu0 0.0
    %6876 = vmatprep.subr.mxu0 0.0
    %6877 = vmatpush2.msra.mxu0 0.0
    %6878 = vmatprep.mubr.f32.mxu0 0.0
    %6879 = vmatmul.mubr.f32.gmra.mxu0 %v1925
    %v6880 = vpop.f32.mrf.mxu0
    %v6881 = vadd.f32 0.0, %v6880
    %v6882 = vpop.f32.mrf.mxu0
    %6883 = vdwg.mxu0
    %6884 = vmatprep.subr.mxu0 0.0
    %6885 = vmatpush1.msra.mxu0 0.0
    %6886 = vmatprep.subr.mxu0 0.0
    %6887 = vmatpush1.msra.mxu0 0.0
    %6888 = vmatprep.subr.mxu0 0.0
    %6889 = vmatpush1.msra.mxu0 0.0
    %6890 = vmatprep.subr.mxu0 0.0
    %6891 = vmatpush1.msra.mxu0 0.0
    %6892 = vmatprep.subr.mxu0 0.0
    %6893 = vmatpush1.msra.mxu0 0.0
    %6894 = vmatprep.subr.mxu0 0.0
    %6895 = vmatpush1.msra.mxu0 0.0
    %6896 = vmatprep.subr.mxu0 0.0
    %6897 = vmatpush1.msra.mxu0 0.0
    %6898 = vmatprep.subr.mxu0 0.0
    %6899 = vmatpush1.msra.mxu0 0.0
    %6900 = vmatprep.subr.mxu0 0.0
    %6901 = vmatpush1.msra.mxu0 0.0
    %6902 = vmatprep.subr.mxu0 0.0
    %6903 = vmatpush1.msra.mxu0 0.0
    %6904 = vmatprep.subr.mxu0 0.0
    %6905 = vmatpush1.msra.mxu0 0.0
    %6906 = vmatprep.subr.mxu0 0.0
    %6907 = vmatpush1.msra.mxu0 0.0
    %6908 = vmatprep.subr.mxu0 0.0
    %6909 = vmatpush1.msra.mxu0 0.0
    %6910 = vmatprep.subr.mxu0 0.0
    %6911 = vmatpush1.msra.mxu0 0.0
    %6912 = vmatprep.subr.mxu0 0.0
    %6913 = vmatpush1.msra.mxu0 0.0
    %6914 = vmatprep.subr.mxu0 0.0
    %6915 = vmatpush1.msra.mxu0 %v6759
    %6916 = vmatprep.subr.mxu0 0.0
    %6917 = vmatpush2.msra.mxu0 0.0
    %6918 = vmatprep.subr.mxu0 0.0
    %6919 = vmatpush2.msra.mxu0 0.0
    %6920 = vmatprep.subr.mxu0 0.0
    %6921 = vmatpush2.msra.mxu0 0.0
    %6922 = vmatprep.subr.mxu0 0.0
    %6923 = vmatpush2.msra.mxu0 0.0
    %6924 = vmatprep.subr.mxu0 0.0
    %6925 = vmatpush2.msra.mxu0 0.0
    %6926 = vmatprep.subr.mxu0 0.0
    %6927 = vmatpush2.msra.mxu0 0.0
    %6928 = vmatprep.subr.mxu0 0.0
    %6929 = vmatpush2.msra.mxu0 0.0
    %6930 = vmatprep.subr.mxu0 0.0
    %6931 = vmatpush2.msra.mxu0 0.0
    %6932 = vmatprep.subr.mxu0 0.0
    %6933 = vmatpush2.msra.mxu0 0.0
    %6934 = vmatprep.subr.mxu0 0.0
    %6935 = vmatpush2.msra.mxu0 0.0
    %6936 = vmatprep.subr.mxu0 0.0
    %6937 = vmatpush2.msra.mxu0 0.0
    %6938 = vmatprep.subr.mxu0 0.0
    %6939 = vmatpush2.msra.mxu0 0.0
    %6940 = vmatprep.subr.mxu0 0.0
    %6941 = vmatpush2.msra.mxu0 0.0
    %6942 = vmatprep.subr.mxu0 0.0
    %6943 = vmatpush2.msra.mxu0 0.0
    %6944 = vmatprep.subr.mxu0 0.0
    %6945 = vmatpush2.msra.mxu0 0.0
    %6946 = vmatprep.subr.mxu0 0.0
    %6947 = vmatpush2.msra.mxu0 0.0
    %6948 = vmatprep.mubr.f32.mxu0 0.0
    %6949 = vmatmul.mubr.f32.gmra.mxu0 %v1925
    %v6950 = vpop.f32.mrf.mxu0
    %v6951 = vadd.f32 0.0, %v6950
    %v6952 = vpop.f32.mrf.mxu0
    %6953 = vdwg.mxu0
    %6954 = vmatprep.subr.mxu0 0.0
    %6955 = vmatpush1.msra.mxu0 0.0
    %6956 = vmatprep.subr.mxu0 0.0
    %6957 = vmatpush1.msra.mxu0 0.0
    %6958 = vmatprep.subr.mxu0 0.0
    %6959 = vmatpush1.msra.mxu0 0.0
    %6960 = vmatprep.subr.mxu0 0.0
    %6961 = vmatpush1.msra.mxu0 0.0
    %6962 = vmatprep.subr.mxu0 0.0
    %6963 = vmatpush1.msra.mxu0 0.0
    %6964 = vmatprep.subr.mxu0 0.0
    %6965 = vmatpush1.msra.mxu0 0.0
    %6966 = vmatprep.subr.mxu0 0.0
    %6967 = vmatpush1.msra.mxu0 0.0
    %6968 = vmatprep.subr.mxu0 0.0
    %6969 = vmatpush1.msra.mxu0 0.0
    %6970 = vmatprep.subr.mxu0 0.0
    %6971 = vmatpush1.msra.mxu0 0.0
    %6972 = vmatprep.subr.mxu0 0.0
    %6973 = vmatpush1.msra.mxu0 0.0
    %6974 = vmatprep.subr.mxu0 0.0
    %6975 = vmatpush1.msra.mxu0 0.0
    %6976 = vmatprep.subr.mxu0 0.0
    %6977 = vmatpush1.msra.mxu0 0.0
    %6978 = vmatprep.subr.mxu0 0.0
    %6979 = vmatpush1.msra.mxu0 0.0
    %6980 = vmatprep.subr.mxu0 0.0
    %6981 = vmatpush1.msra.mxu0 0.0
    %6982 = vmatprep.subr.mxu0 0.0
    %6983 = vmatpush1.msra.mxu0 0.0
    %6984 = vmatprep.subr.mxu0 0.0
    %6985 = vmatpush1.msra.mxu0 %v6760
    %6986 = vmatprep.subr.mxu0 0.0
    %6987 = vmatpush2.msra.mxu0 0.0
    %6988 = vmatprep.subr.mxu0 0.0
    %6989 = vmatpush2.msra.mxu0 0.0
    %6990 = vmatprep.subr.mxu0 0.0
    %6991 = vmatpush2.msra.mxu0 0.0
    %6992 = vmatprep.subr.mxu0 0.0
    %6993 = vmatpush2.msra.mxu0 0.0
    %6994 = vmatprep.subr.mxu0 0.0
    %6995 = vmatpush2.msra.mxu0 0.0
    %6996 = vmatprep.subr.mxu0 0.0
    %6997 = vmatpush2.msra.mxu0 0.0
    %6998 = vmatprep.subr.mxu0 0.0
    %6999 = vmatpush2.msra.mxu0 0.0
    %7000 = vmatprep.subr.mxu0 0.0
    %7001 = vmatpush2.msra.mxu0 0.0
    %7002 = vmatprep.subr.mxu0 0.0
    %7003 = vmatpush2.msra.mxu0 0.0
    %7004 = vmatprep.subr.mxu0 0.0
    %7005 = vmatpush2.msra.mxu0 0.0
    %7006 = vmatprep.subr.mxu0 0.0
    %7007 = vmatpush2.msra.mxu0 0.0
    %7008 = vmatprep.subr.mxu0 0.0
    %7009 = vmatpush2.msra.mxu0 0.0
    %7010 = vmatprep.subr.mxu0 0.0
    %7011 = vmatpush2.msra.mxu0 0.0
    %7012 = vmatprep.subr.mxu0 0.0
    %7013 = vmatpush2.msra.mxu0 0.0
    %7014 = vmatprep.subr.mxu0 0.0
    %7015 = vmatpush2.msra.mxu0 0.0
    %7016 = vmatprep.subr.mxu0 0.0
    %7017 = vmatpush2.msra.mxu0 0.0
    %7018 = vmatprep.mubr.f32.mxu0 0.0
    %7019 = vmatmul.mubr.f32.gmra.mxu0 %v1925
    %v7020 = vpop.f32.mrf.mxu0
    %v7021 = vadd.f32 0.0, %v7020
    %v7022 = vpop.f32.mrf.mxu0
    %7023 = vdwg.mxu0
    %7024 = vmatprep.subr.mxu0 0.0
    %7025 = vmatpush1.msra.mxu0 0.0
    %7026 = vmatprep.subr.mxu0 0.0
    %7027 = vmatpush1.msra.mxu0 0.0
    %7028 = vmatprep.subr.mxu0 0.0
    %7029 = vmatpush1.msra.mxu0 0.0
    %7030 = vmatprep.subr.mxu0 0.0
    %7031 = vmatpush1.msra.mxu0 0.0
    %7032 = vmatprep.subr.mxu0 0.0
    %7033 = vmatpush1.msra.mxu0 0.0
    %7034 = vmatprep.subr.mxu0 0.0
    %7035 = vmatpush1.msra.mxu0 0.0
    %7036 = vmatprep.subr.mxu0 0.0
    %7037 = vmatpush1.msra.mxu0 0.0
    %7038 = vmatprep.subr.mxu0 0.0
    %7039 = vmatpush1.msra.mxu0 0.0
    %7040 = vmatprep.subr.mxu0 0.0
    %7041 = vmatpush1.msra.mxu0 0.0
    %7042 = vmatprep.subr.mxu0 0.0
    %7043 = vmatpush1.msra.mxu0 0.0
    %7044 = vmatprep.subr.mxu0 0.0
    %7045 = vmatpush1.msra.mxu0 0.0
    %7046 = vmatprep.subr.mxu0 0.0
    %7047 = vmatpush1.msra.mxu0 0.0
    %7048 = vmatprep.subr.mxu0 0.0
    %7049 = vmatpush1.msra.mxu0 0.0
    %7050 = vmatprep.subr.mxu0 0.0
    %7051 = vmatpush1.msra.mxu0 0.0
    %7052 = vmatprep.subr.mxu0 0.0
    %7053 = vmatpush1.msra.mxu0 0.0
    %7054 = vmatprep.subr.mxu0 0.0
    %7055 = vmatpush1.msra.mxu0 %v6761
    %7056 = vmatprep.subr.mxu0 0.0
    %7057 = vmatpush2.msra.mxu0 0.0
    %7058 = vmatprep.subr.mxu0 0.0
    %7059 = vmatpush2.msra.mxu0 0.0
    %7060 = vmatprep.subr.mxu0 0.0
    %7061 = vmatpush2.msra.mxu0 0.0
    %7062 = vmatprep.subr.mxu0 0.0
    %7063 = vmatpush2.msra.mxu0 0.0
    %7064 = vmatprep.subr.mxu0 0.0
    %7065 = vmatpush2.msra.mxu0 0.0
    %7066 = vmatprep.subr.mxu0 0.0
    %7067 = vmatpush2.msra.mxu0 0.0
    %7068 = vmatprep.subr.mxu0 0.0
    %7069 = vmatpush2.msra.mxu0 0.0
    %7070 = vmatprep.subr.mxu0 0.0
    %7071 = vmatpush2.msra.mxu0 0.0
    %7072 = vmatprep.subr.mxu0 0.0
    %7073 = vmatpush2.msra.mxu0 0.0
    %7074 = vmatprep.subr.mxu0 0.0
    %7075 = vmatpush2.msra.mxu0 0.0
    %7076 = vmatprep.subr.mxu0 0.0
    %7077 = vmatpush2.msra.mxu0 0.0
    %7078 = vmatprep.subr.mxu0 0.0
    %7079 = vmatpush2.msra.mxu0 0.0
    %7080 = vmatprep.subr.mxu0 0.0
    %7081 = vmatpush2.msra.mxu0 0.0
    %7082 = vmatprep.subr.mxu0 0.0
    %7083 = vmatpush2.msra.mxu0 0.0
    %7084 = vmatprep.subr.mxu0 0.0
    %7085 = vmatpush2.msra.mxu0 0.0
    %7086 = vmatprep.subr.mxu0 0.0
    %7087 = vmatpush2.msra.mxu0 0.0
    %7088 = vmatprep.mubr.f32.mxu0 0.0
    %7089 = vmatmul.mubr.f32.gmra.mxu0 %v1925
    %v7090 = vpop.f32.mrf.mxu0
    %v7091 = vadd.f32 0.0, %v7090
    %v7092 = vpop.f32.mrf.mxu0
    %7093 = vdwg.mxu0
    %7094 = vmatprep.subr.mxu0 0.0
    %7095 = vmatpush1.msra.mxu0 0.0
    %7096 = vmatprep.subr.mxu0 0.0
    %7097 = vmatpush1.msra.mxu0 0.0
    %7098 = vmatprep.subr.mxu0 0.0
    %7099 = vmatpush1.msra.mxu0 0.0
    %7100 = vmatprep.subr.mxu0 0.0
    %7101 = vmatpush1.msra.mxu0 0.0
    %7102 = vmatprep.subr.mxu0 0.0
    %7103 = vmatpush1.msra.mxu0 0.0
    %7104 = vmatprep.subr.mxu0 0.0
    %7105 = vmatpush1.msra.mxu0 0.0
    %7106 = vmatprep.subr.mxu0 0.0
    %7107 = vmatpush1.msra.mxu0 0.0
    %7108 = vmatprep.subr.mxu0 0.0
    %7109 = vmatpush1.msra.mxu0 0.0
    %7110 = vmatprep.subr.mxu0 0.0
    %7111 = vmatpush1.msra.mxu0 0.0
    %7112 = vmatprep.subr.mxu0 0.0
    %7113 = vmatpush1.msra.mxu0 0.0
    %7114 = vmatprep.subr.mxu0 0.0
    %7115 = vmatpush1.msra.mxu0 0.0
    %7116 = vmatprep.subr.mxu0 0.0
    %7117 = vmatpush1.msra.mxu0 0.0
    %7118 = vmatprep.subr.mxu0 0.0
    %7119 = vmatpush1.msra.mxu0 0.0
    %7120 = vmatprep.subr.mxu0 0.0
    %7121 = vmatpush1.msra.mxu0 0.0
    %7122 = vmatprep.subr.mxu0 0.0
    %7123 = vmatpush1.msra.mxu0 0.0
    %7124 = vmatprep.subr.mxu0 0.0
    %7125 = vmatpush1.msra.mxu0 %v6762
    %7126 = vmatprep.subr.mxu0 0.0
    %7127 = vmatpush2.msra.mxu0 0.0
    %7128 = vmatprep.subr.mxu0 0.0
    %7129 = vmatpush2.msra.mxu0 0.0
    %7130 = vmatprep.subr.mxu0 0.0
    %7131 = vmatpush2.msra.mxu0 0.0
    %7132 = vmatprep.subr.mxu0 0.0
    %7133 = vmatpush2.msra.mxu0 0.0
    %7134 = vmatprep.subr.mxu0 0.0
    %7135 = vmatpush2.msra.mxu0 0.0
    %7136 = vmatprep.subr.mxu0 0.0
    %7137 = vmatpush2.msra.mxu0 0.0
    %7138 = vmatprep.subr.mxu0 0.0
    %7139 = vmatpush2.msra.mxu0 0.0
    %7140 = vmatprep.subr.mxu0 0.0
    %7141 = vmatpush2.msra.mxu0 0.0
    %7142 = vmatprep.subr.mxu0 0.0
    %7143 = vmatpush2.msra.mxu0 0.0
    %7144 = vmatprep.subr.mxu0 0.0
    %7145 = vmatpush2.msra.mxu0 0.0
    %7146 = vmatprep.subr.mxu0 0.0
    %7147 = vmatpush2.msra.mxu0 0.0
    %7148 = vmatprep.subr.mxu0 0.0
    %7149 = vmatpush2.msra.mxu0 0.0
    %7150 = vmatprep.subr.mxu0 0.0
    %7151 = vmatpush2.msra.mxu0 0.0
    %7152 = vmatprep.subr.mxu0 0.0
    %7153 = vmatpush2.msra.mxu0 0.0
    %7154 = vmatprep.subr.mxu0 0.0
    %7155 = vmatpush2.msra.mxu0 0.0
    %7156 = vmatprep.subr.mxu0 0.0
    %7157 = vmatpush2.msra.mxu0 0.0
    %7158 = vmatprep.mubr.f32.mxu0 0.0
    %7159 = vmatmul.mubr.f32.gmra.mxu0 %v1925
    %v7160 = vpop.f32.mrf.mxu0
    %v7161 = vadd.f32 0.0, %v7160
    %v7162 = vpop.f32.mrf.mxu0
    %7163 = vdwg.mxu0
    %7164 = vmatprep.subr.mxu0 0.0
    %7165 = vmatpush1.msra.mxu0 0.0
    %7166 = vmatprep.subr.mxu0 0.0
    %7167 = vmatpush1.msra.mxu0 0.0
    %7168 = vmatprep.subr.mxu0 0.0
    %7169 = vmatpush1.msra.mxu0 0.0
    %7170 = vmatprep.subr.mxu0 0.0
    %7171 = vmatpush1.msra.mxu0 0.0
    %7172 = vmatprep.subr.mxu0 0.0
    %7173 = vmatpush1.msra.mxu0 0.0
    %7174 = vmatprep.subr.mxu0 0.0
    %7175 = vmatpush1.msra.mxu0 0.0
    %7176 = vmatprep.subr.mxu0 0.0
    %7177 = vmatpush1.msra.mxu0 0.0
    %7178 = vmatprep.subr.mxu0 0.0
    %7179 = vmatpush1.msra.mxu0 0.0
    %7180 = vmatprep.subr.mxu0 0.0
    %7181 = vmatpush1.msra.mxu0 0.0
    %7182 = vmatprep.subr.mxu0 0.0
    %7183 = vmatpush1.msra.mxu0 0.0
    %7184 = vmatprep.subr.mxu0 0.0
    %7185 = vmatpush1.msra.mxu0 0.0
    %7186 = vmatprep.subr.mxu0 0.0
    %7187 = vmatpush1.msra.mxu0 0.0
    %7188 = vmatprep.subr.mxu0 0.0
    %7189 = vmatpush1.msra.mxu0 0.0
    %7190 = vmatprep.subr.mxu0 0.0
    %7191 = vmatpush1.msra.mxu0 0.0
    %7192 = vmatprep.subr.mxu0 0.0
    %7193 = vmatpush1.msra.mxu0 0.0
    %7194 = vmatprep.subr.mxu0 0.0
    %7195 = vmatpush1.msra.mxu0 %v6763
    %7196 = vmatprep.subr.mxu0 0.0
    %7197 = vmatpush2.msra.mxu0 0.0
    %7198 = vmatprep.subr.mxu0 0.0
    %7199 = vmatpush2.msra.mxu0 0.0
    %7200 = vmatprep.subr.mxu0 0.0
    %7201 = vmatpush2.msra.mxu0 0.0
    %7202 = vmatprep.subr.mxu0 0.0
    %7203 = vmatpush2.msra.mxu0 0.0
    %7204 = vmatprep.subr.mxu0 0.0
    %7205 = vmatpush2.msra.mxu0 0.0
    %7206 = vmatprep.subr.mxu0 0.0
    %7207 = vmatpush2.msra.mxu0 0.0
    %7208 = vmatprep.subr.mxu0 0.0
    %7209 = vmatpush2.msra.mxu0 0.0
    %7210 = vmatprep.subr.mxu0 0.0
    %7211 = vmatpush2.msra.mxu0 0.0
    %7212 = vmatprep.subr.mxu0 0.0
    %7213 = vmatpush2.msra.mxu0 0.0
    %7214 = vmatprep.subr.mxu0 0.0
    %7215 = vmatpush2.msra.mxu0 0.0
    %7216 = vmatprep.subr.mxu0 0.0
    %7217 = vmatpush2.msra.mxu0 0.0
    %7218 = vmatprep.subr.mxu0 0.0
    %7219 = vmatpush2.msra.mxu0 0.0
    %7220 = vmatprep.subr.mxu0 0.0
    %7221 = vmatpush2.msra.mxu0 0.0
    %7222 = vmatprep.subr.mxu0 0.0
    %7223 = vmatpush2.msra.mxu0 0.0
    %7224 = vmatprep.subr.mxu0 0.0
    %7225 = vmatpush2.msra.mxu0 0.0
    %7226 = vmatprep.subr.mxu0 0.0
    %7227 = vmatpush2.msra.mxu0 0.0
    %7228 = vmatprep.mubr.f32.mxu0 0.0
    %7229 = vmatmul.mubr.f32.gmra.mxu0 %v1925
    %v7230 = vpop.f32.mrf.mxu0
    %v7231 = vadd.f32 0.0, %v7230
    %v7232 = vpop.f32.mrf.mxu0
    %7233 = vdwg.mxu0
    %7234 = vmatprep.subr.mxu0 0.0
    %7235 = vmatpush1.msra.mxu0 0.0
    %7236 = vmatprep.subr.mxu0 0.0
    %7237 = vmatpush1.msra.mxu0 0.0
    %7238 = vmatprep.subr.mxu0 0.0
    %7239 = vmatpush1.msra.mxu0 0.0
    %7240 = vmatprep.subr.mxu0 0.0
    %7241 = vmatpush1.msra.mxu0 0.0
    %7242 = vmatprep.subr.mxu0 0.0
    %7243 = vmatpush1.msra.mxu0 0.0
    %7244 = vmatprep.subr.mxu0 0.0
    %7245 = vmatpush1.msra.mxu0 0.0
    %7246 = vmatprep.subr.mxu0 0.0
    %7247 = vmatpush1.msra.mxu0 0.0
    %7248 = vmatprep.subr.mxu0 0.0
    %7249 = vmatpush1.msra.mxu0 0.0
    %7250 = vmatprep.subr.mxu0 0.0
    %7251 = vmatpush1.msra.mxu0 0.0
    %7252 = vmatprep.subr.mxu0 0.0
    %7253 = vmatpush1.msra.mxu0 0.0
    %7254 = vmatprep.subr.mxu0 0.0
    %7255 = vmatpush1.msra.mxu0 0.0
    %7256 = vmatprep.subr.mxu0 0.0
    %7257 = vmatpush1.msra.mxu0 0.0
    %7258 = vmatprep.subr.mxu0 0.0
    %7259 = vmatpush1.msra.mxu0 0.0
    %7260 = vmatprep.subr.mxu0 0.0
    %7261 = vmatpush1.msra.mxu0 0.0
    %7262 = vmatprep.subr.mxu0 0.0
    %7263 = vmatpush1.msra.mxu0 0.0
    %7264 = vmatprep.subr.mxu0 0.0
    %7265 = vmatpush1.msra.mxu0 %v6764
    %7266 = vmatprep.subr.mxu0 0.0
    %7267 = vmatpush2.msra.mxu0 0.0
    %7268 = vmatprep.subr.mxu0 0.0
    %7269 = vmatpush2.msra.mxu0 0.0
    %7270 = vmatprep.subr.mxu0 0.0
    %7271 = vmatpush2.msra.mxu0 0.0
    %7272 = vmatprep.subr.mxu0 0.0
    %7273 = vmatpush2.msra.mxu0 0.0
    %7274 = vmatprep.subr.mxu0 0.0
    %7275 = vmatpush2.msra.mxu0 0.0
    %7276 = vmatprep.subr.mxu0 0.0
    %7277 = vmatpush2.msra.mxu0 0.0
    %7278 = vmatprep.subr.mxu0 0.0
    %7279 = vmatpush2.msra.mxu0 0.0
    %7280 = vmatprep.subr.mxu0 0.0
    %7281 = vmatpush2.msra.mxu0 0.0
    %7282 = vmatprep.subr.mxu0 0.0
    %7283 = vmatpush2.msra.mxu0 0.0
    %7284 = vmatprep.subr.mxu0 0.0
    %7285 = vmatpush2.msra.mxu0 0.0
    %7286 = vmatprep.subr.mxu0 0.0
    %7287 = vmatpush2.msra.mxu0 0.0
    %7288 = vmatprep.subr.mxu0 0.0
    %7289 = vmatpush2.msra.mxu0 0.0
    %7290 = vmatprep.subr.mxu0 0.0
    %7291 = vmatpush2.msra.mxu0 0.0
    %7292 = vmatprep.subr.mxu0 0.0
    %7293 = vmatpush2.msra.mxu0 0.0
    %7294 = vmatprep.subr.mxu0 0.0
    %7295 = vmatpush2.msra.mxu0 0.0
    %7296 = vmatprep.subr.mxu0 0.0
    %7297 = vmatpush2.msra.mxu0 0.0
    %7298 = vmatprep.mubr.f32.mxu0 0.0
    %7299 = vmatmul.mubr.f32.gmra.mxu0 %v1925
    %v7300 = vpop.f32.mrf.mxu0
    %v7301 = vadd.f32 0.0, %v7300
    %v7302 = vpop.f32.mrf.mxu0
    %7303 = vdwg.mxu0
    %7304 = vmatprep.subr.mxu0 0.0
    %7305 = vmatpush1.msra.mxu0 0.0
    %7306 = vmatprep.subr.mxu0 0.0
    %7307 = vmatpush1.msra.mxu0 0.0
    %7308 = vmatprep.subr.mxu0 0.0
    %7309 = vmatpush1.msra.mxu0 0.0
    %7310 = vmatprep.subr.mxu0 0.0
    %7311 = vmatpush1.msra.mxu0 0.0
    %7312 = vmatprep.subr.mxu0 0.0
    %7313 = vmatpush1.msra.mxu0 0.0
    %7314 = vmatprep.subr.mxu0 0.0
    %7315 = vmatpush1.msra.mxu0 0.0
    %7316 = vmatprep.subr.mxu0 0.0
    %7317 = vmatpush1.msra.mxu0 0.0
    %7318 = vmatprep.subr.mxu0 0.0
    %7319 = vmatpush1.msra.mxu0 0.0
    %7320 = vmatprep.subr.mxu0 0.0
    %7321 = vmatpush1.msra.mxu0 0.0
    %7322 = vmatprep.subr.mxu0 0.0
    %7323 = vmatpush1.msra.mxu0 0.0
    %7324 = vmatprep.subr.mxu0 0.0
    %7325 = vmatpush1.msra.mxu0 0.0
    %7326 = vmatprep.subr.mxu0 0.0
    %7327 = vmatpush1.msra.mxu0 0.0
    %7328 = vmatprep.subr.mxu0 0.0
    %7329 = vmatpush1.msra.mxu0 0.0
    %7330 = vmatprep.subr.mxu0 0.0
    %7331 = vmatpush1.msra.mxu0 0.0
    %7332 = vmatprep.subr.mxu0 0.0
    %7333 = vmatpush1.msra.mxu0 0.0
    %7334 = vmatprep.subr.mxu0 0.0
    %7335 = vmatpush1.msra.mxu0 %v6765
    %7336 = vmatprep.subr.mxu0 0.0
    %7337 = vmatpush2.msra.mxu0 0.0
    %7338 = vmatprep.subr.mxu0 0.0
    %7339 = vmatpush2.msra.mxu0 0.0
    %7340 = vmatprep.subr.mxu0 0.0
    %7341 = vmatpush2.msra.mxu0 0.0
    %7342 = vmatprep.subr.mxu0 0.0
    %7343 = vmatpush2.msra.mxu0 0.0
    %7344 = vmatprep.subr.mxu0 0.0
    %7345 = vmatpush2.msra.mxu0 0.0
    %7346 = vmatprep.subr.mxu0 0.0
    %7347 = vmatpush2.msra.mxu0 0.0
    %7348 = vmatprep.subr.mxu0 0.0
    %7349 = vmatpush2.msra.mxu0 0.0
    %7350 = vmatprep.subr.mxu0 0.0
    %7351 = vmatpush2.msra.mxu0 0.0
    %7352 = vmatprep.subr.mxu0 0.0
    %7353 = vmatpush2.msra.mxu0 0.0
    %7354 = vmatprep.subr.mxu0 0.0
    %7355 = vmatpush2.msra.mxu0 0.0
    %7356 = vmatprep.subr.mxu0 0.0
    %7357 = vmatpush2.msra.mxu0 0.0
    %7358 = vmatprep.subr.mxu0 0.0
    %7359 = vmatpush2.msra.mxu0 0.0
    %7360 = vmatprep.subr.mxu0 0.0
    %7361 = vmatpush2.msra.mxu0 0.0
    %7362 = vmatprep.subr.mxu0 0.0
    %7363 = vmatpush2.msra.mxu0 0.0
    %7364 = vmatprep.subr.mxu0 0.0
    %7365 = vmatpush2.msra.mxu0 0.0
    %7366 = vmatprep.subr.mxu0 0.0
    %7367 = vmatpush2.msra.mxu0 0.0
    %7368 = vmatprep.mubr.f32.mxu0 0.0
    %7369 = vmatmul.mubr.f32.gmra.mxu0 %v1925
    %v7370 = vpop.f32.mrf.mxu0
    %v7371 = vadd.f32 0.0, %v7370
    %v7372 = vpop.f32.mrf.mxu0
    %7373 = vdwg.mxu0
    %v7374 = vmul.f32 %v6769, %v6881
    %v7375 = vmul.f32 %v6774, %v6951
    %v7376 = vmul.f32 %v6779, %v7021
    %v7377 = vmul.f32 %v6784, %v7091
    %v7378 = vmul.f32 %v6789, %v7161
    %v7379 = vmul.f32 %v6794, %v7231
    %v7380 = vmul.f32 %v6799, %v7301
    %v7381 = vmul.f32 %v6804, %v7371
    %v7382 = vlaneseq
    %v7383 = vshrl.u32 %v7382, 7
    %v7384 = vsub.s32 7, %v7383
    %v7385 = vrot.slane %v2495, %v7384
    %v7386 = vlaneseq
    %v7387 = vshrl.u32 %v7386, 7
    %v7388 = vsub.s32 7, %v7387
    %v7389 = vrot.slane %v2496, %v7388
    %v7390 = vlaneseq
    %v7391 = vshrl.u32 %v7390, 7
    %v7392 = vsub.s32 7, %v7391
    %v7393 = vrot.slane %v2497, %v7392
    %v7394 = vlaneseq
    %v7395 = vshrl.u32 %v7394, 7
    %v7396 = vsub.s32 7, %v7395
    %v7397 = vrot.slane %v2498, %v7396
    %v7398 = vlaneseq
    %v7399 = vshrl.u32 %v7398, 7
    %v7400 = vsub.s32 7, %v7399
    %v7401 = vrot.slane %v2499, %v7400
    %v7402 = vlaneseq
    %v7403 = vshrl.u32 %v7402, 7
    %v7404 = vsub.s32 7, %v7403
    %v7405 = vrot.slane %v2500, %v7404
    %v7406 = vlaneseq
    %v7407 = vshrl.u32 %v7406, 7
    %v7408 = vsub.s32 7, %v7407
    %v7409 = vrot.slane %v2501, %v7408
    %v7410 = vlaneseq
    %v7411 = vshrl.u32 %v7410, 7
    %v7412 = vsub.s32 7, %v7411
    %v7413 = vrot.slane %v2502, %v7412
    %v7414 = vadd.f32 %v7374, %v7385
    %v7415 = vadd.f32 %v7375, %v7389
    %v7416 = vadd.f32 %v7376, %v7393
    %v7417 = vadd.f32 %v7377, %v7397
    %v7418 = vadd.f32 %v7378, %v7401
    %v7419 = vadd.f32 %v7379, %v7405
    %v7420 = vadd.f32 %v7380, %v7409
    %v7421 = vadd.f32 %v7381, %v7413
    %v7422 = vmul.f32 %v2506, %v7414
    %v7423 = vmul.f32 %v2506, %v7415
    %v7424 = vmul.f32 %v2506, %v7416
    %v7425 = vmul.f32 %v2506, %v7417
    %v7426 = vmul.f32 %v2506, %v7418
    %v7427 = vmul.f32 %v2506, %v7419
    %v7428 = vmul.f32 %v2506, %v7420
    %v7429 = vmul.f32 %v2506, %v7421
    %v7430 = vsub.f32 %v5905, %v7422
    %v7431 = vsub.f32 %v5909, %v7423
    %v7432 = vsub.f32 %v5913, %v7424
    %v7433 = vsub.f32 %v5917, %v7425
    %v7434 = vsub.f32 %v5921, %v7426
    %v7435 = vsub.f32 %v5925, %v7427
    %v7436 = vsub.f32 %v5929, %v7428
    %v7437 = vsub.f32 %v5933, %v7429
    %v7439 = vsel %vm565, %v5867, 0
    %7441 = vmatprep.subr.mxu0 0.0
    %7442 = vmatpush1.xpose.msra.mxu0 0.0
    %7443 = vmatprep.subr.mxu0 0.0
    %7444 = vmatpush1.xpose.msra.mxu0 0.0
    %7445 = vmatprep.subr.mxu0 0.0
    %7446 = vmatpush1.xpose.msra.mxu0 0.0
    %7447 = vmatprep.subr.mxu0 0.0
    %7448 = vmatpush1.xpose.msra.mxu0 0.0
    %7449 = vmatprep.subr.mxu0 0.0
    %7450 = vmatpush1.xpose.msra.mxu0 0.0
    %7451 = vmatprep.subr.mxu0 0.0
    %7452 = vmatpush1.xpose.msra.mxu0 0.0
    %7453 = vmatprep.subr.mxu0 0.0
    %7454 = vmatpush1.xpose.msra.mxu0 0.0
    %7455 = vmatprep.subr.mxu0 0.0
    %7456 = vmatpush1.xpose.msra.mxu0 0.0
    %7457 = vmatprep.subr.mxu0 0.0
    %7458 = vmatpush1.xpose.msra.mxu0 0.0
    %7459 = vmatprep.subr.mxu0 0.0
    %7460 = vmatpush1.xpose.msra.mxu0 0.0
    %7461 = vmatprep.subr.mxu0 0.0
    %7462 = vmatpush1.xpose.msra.mxu0 0.0
    %7463 = vmatprep.subr.mxu0 0.0
    %7464 = vmatpush1.xpose.msra.mxu0 0.0
    %7465 = vmatprep.subr.mxu0 0.0
    %7466 = vmatpush1.xpose.msra.mxu0 0.0
    %7467 = vmatprep.subr.mxu0 0.0
    %7468 = vmatpush1.xpose.msra.mxu0 0.0
    %7469 = vmatprep.subr.mxu0 0.0
    %7470 = vmatpush1.xpose.msra.mxu0 0.0
    %7471 = vmatprep.subr.mxu0 0.0
    %7472 = vmatpush1.xpose.msra.mxu0 %v5935
    %7473 = vmatprep.subr.mxu0 0.0
    %7474 = vmatpush2.xpose.msra.mxu0 0.0
    %7475 = vmatprep.subr.mxu0 0.0
    %7476 = vmatpush2.xpose.msra.mxu0 0.0
    %7477 = vmatprep.subr.mxu0 0.0
    %7478 = vmatpush2.xpose.msra.mxu0 0.0
    %7479 = vmatprep.subr.mxu0 0.0
    %7480 = vmatpush2.xpose.msra.mxu0 0.0
    %7481 = vmatprep.subr.mxu0 0.0
    %7482 = vmatpush2.xpose.msra.mxu0 0.0
    %7483 = vmatprep.subr.mxu0 0.0
    %7484 = vmatpush2.xpose.msra.mxu0 0.0
    %7485 = vmatprep.subr.mxu0 0.0
    %7486 = vmatpush2.xpose.msra.mxu0 0.0
    %7487 = vmatprep.subr.mxu0 0.0
    %7488 = vmatpush2.xpose.msra.mxu0 0.0
    %7489 = vmatprep.subr.mxu0 0.0
    %7490 = vmatpush2.xpose.msra.mxu0 0.0
    %7491 = vmatprep.subr.mxu0 0.0
    %7492 = vmatpush2.xpose.msra.mxu0 0.0
    %7493 = vmatprep.subr.mxu0 0.0
    %7494 = vmatpush2.xpose.msra.mxu0 0.0
    %7495 = vmatprep.subr.mxu0 0.0
    %7496 = vmatpush2.xpose.msra.mxu0 0.0
    %7497 = vmatprep.subr.mxu0 0.0
    %7498 = vmatpush2.xpose.msra.mxu0 0.0
    %7499 = vmatprep.subr.mxu0 0.0
    %7500 = vmatpush2.xpose.msra.mxu0 0.0
    %7501 = vmatprep.subr.mxu0 0.0
    %7502 = vmatpush2.xpose.msra.mxu0 0.0
    %7503 = vmatprep.subr.mxu0 0.0
    %7504 = vmatpush2.xpose.msra.mxu0 0.0
    %7505 = vmatprep.mubr.f32.mxu0 0.0
    %7506 = vmatmul.mubr.f32.gmra.mxu0 %v7439
    %v7507 = vpop.f32.mrf.mxu0
    %v7508 = vadd.f32 0.0, %v7507
    %v7509 = vpop.f32.mrf.mxu0
    %7510 = vdwg.mxu0
    %v7512 = vsel %vm565, %v5868, 0
    %7514 = vmatprep.subr.mxu0 0.0
    %7515 = vmatpush1.xpose.msra.mxu0 0.0
    %7516 = vmatprep.subr.mxu0 0.0
    %7517 = vmatpush1.xpose.msra.mxu0 0.0
    %7518 = vmatprep.subr.mxu0 0.0
    %7519 = vmatpush1.xpose.msra.mxu0 0.0
    %7520 = vmatprep.subr.mxu0 0.0
    %7521 = vmatpush1.xpose.msra.mxu0 0.0
    %7522 = vmatprep.subr.mxu0 0.0
    %7523 = vmatpush1.xpose.msra.mxu0 0.0
    %7524 = vmatprep.subr.mxu0 0.0
    %7525 = vmatpush1.xpose.msra.mxu0 0.0
    %7526 = vmatprep.subr.mxu0 0.0
    %7527 = vmatpush1.xpose.msra.mxu0 0.0
    %7528 = vmatprep.subr.mxu0 0.0
    %7529 = vmatpush1.xpose.msra.mxu0 0.0
    %7530 = vmatprep.subr.mxu0 0.0
    %7531 = vmatpush1.xpose.msra.mxu0 0.0
    %7532 = vmatprep.subr.mxu0 0.0
    %7533 = vmatpush1.xpose.msra.mxu0 0.0
    %7534 = vmatprep.subr.mxu0 0.0
    %7535 = vmatpush1.xpose.msra.mxu0 0.0
    %7536 = vmatprep.subr.mxu0 0.0
    %7537 = vmatpush1.xpose.msra.mxu0 0.0
    %7538 = vmatprep.subr.mxu0 0.0
    %7539 = vmatpush1.xpose.msra.mxu0 0.0
    %7540 = vmatprep.subr.mxu0 0.0
    %7541 = vmatpush1.xpose.msra.mxu0 0.0
    %7542 = vmatprep.subr.mxu0 0.0
    %7543 = vmatpush1.xpose.msra.mxu0 0.0
    %7544 = vmatprep.subr.mxu0 0.0
    %7545 = vmatpush1.xpose.msra.mxu0 %v6008
    %7546 = vmatprep.subr.mxu0 0.0
    %7547 = vmatpush2.xpose.msra.mxu0 0.0
    %7548 = vmatprep.subr.mxu0 0.0
    %7549 = vmatpush2.xpose.msra.mxu0 0.0
    %7550 = vmatprep.subr.mxu0 0.0
    %7551 = vmatpush2.xpose.msra.mxu0 0.0
    %7552 = vmatprep.subr.mxu0 0.0
    %7553 = vmatpush2.xpose.msra.mxu0 0.0
    %7554 = vmatprep.subr.mxu0 0.0
    %7555 = vmatpush2.xpose.msra.mxu0 0.0
    %7556 = vmatprep.subr.mxu0 0.0
    %7557 = vmatpush2.xpose.msra.mxu0 0.0
    %7558 = vmatprep.subr.mxu0 0.0
    %7559 = vmatpush2.xpose.msra.mxu0 0.0
    %7560 = vmatprep.subr.mxu0 0.0
    %7561 = vmatpush2.xpose.msra.mxu0 0.0
    %7562 = vmatprep.subr.mxu0 0.0
    %7563 = vmatpush2.xpose.msra.mxu0 0.0
    %7564 = vmatprep.subr.mxu0 0.0
    %7565 = vmatpush2.xpose.msra.mxu0 0.0
    %7566 = vmatprep.subr.mxu0 0.0
    %7567 = vmatpush2.xpose.msra.mxu0 0.0
    %7568 = vmatprep.subr.mxu0 0.0
    %7569 = vmatpush2.xpose.msra.mxu0 0.0
    %7570 = vmatprep.subr.mxu0 0.0
    %7571 = vmatpush2.xpose.msra.mxu0 0.0
    %7572 = vmatprep.subr.mxu0 0.0
    %7573 = vmatpush2.xpose.msra.mxu0 0.0
    %7574 = vmatprep.subr.mxu0 0.0
    %7575 = vmatpush2.xpose.msra.mxu0 0.0
    %7576 = vmatprep.subr.mxu0 0.0
    %7577 = vmatpush2.xpose.msra.mxu0 0.0
    %7578 = vmatprep.mubr.f32.mxu0 0.0
    %7579 = vmatmul.mubr.f32.gmra.mxu0 %v7512
    %v7580 = vpop.f32.mrf.mxu0
    %v7581 = vadd.f32 0.0, %v7580
    %v7582 = vpop.f32.mrf.mxu0
    %7583 = vdwg.mxu0
    %v7585 = vsel %vm565, %v5869, 0
    %7587 = vmatprep.subr.mxu0 0.0
    %7588 = vmatpush1.xpose.msra.mxu0 0.0
    %7589 = vmatprep.subr.mxu0 0.0
    %7590 = vmatpush1.xpose.msra.mxu0 0.0
    %7591 = vmatprep.subr.mxu0 0.0
    %7592 = vmatpush1.xpose.msra.mxu0 0.0
    %7593 = vmatprep.subr.mxu0 0.0
    %7594 = vmatpush1.xpose.msra.mxu0 0.0
    %7595 = vmatprep.subr.mxu0 0.0
    %7596 = vmatpush1.xpose.msra.mxu0 0.0
    %7597 = vmatprep.subr.mxu0 0.0
    %7598 = vmatpush1.xpose.msra.mxu0 0.0
    %7599 = vmatprep.subr.mxu0 0.0
    %7600 = vmatpush1.xpose.msra.mxu0 0.0
    %7601 = vmatprep.subr.mxu0 0.0
    %7602 = vmatpush1.xpose.msra.mxu0 0.0
    %7603 = vmatprep.subr.mxu0 0.0
    %7604 = vmatpush1.xpose.msra.mxu0 0.0
    %7605 = vmatprep.subr.mxu0 0.0
    %7606 = vmatpush1.xpose.msra.mxu0 0.0
    %7607 = vmatprep.subr.mxu0 0.0
    %7608 = vmatpush1.xpose.msra.mxu0 0.0
    %7609 = vmatprep.subr.mxu0 0.0
    %7610 = vmatpush1.xpose.msra.mxu0 0.0
    %7611 = vmatprep.subr.mxu0 0.0
    %7612 = vmatpush1.xpose.msra.mxu0 0.0
    %7613 = vmatprep.subr.mxu0 0.0
    %7614 = vmatpush1.xpose.msra.mxu0 0.0
    %7615 = vmatprep.subr.mxu0 0.0
    %7616 = vmatpush1.xpose.msra.mxu0 0.0
    %7617 = vmatprep.subr.mxu0 0.0
    %7618 = vmatpush1.xpose.msra.mxu0 %v6081
    %7619 = vmatprep.subr.mxu0 0.0
    %7620 = vmatpush2.xpose.msra.mxu0 0.0
    %7621 = vmatprep.subr.mxu0 0.0
    %7622 = vmatpush2.xpose.msra.mxu0 0.0
    %7623 = vmatprep.subr.mxu0 0.0
    %7624 = vmatpush2.xpose.msra.mxu0 0.0
    %7625 = vmatprep.subr.mxu0 0.0
    %7626 = vmatpush2.xpose.msra.mxu0 0.0
    %7627 = vmatprep.subr.mxu0 0.0
    %7628 = vmatpush2.xpose.msra.mxu0 0.0
    %7629 = vmatprep.subr.mxu0 0.0
    %7630 = vmatpush2.xpose.msra.mxu0 0.0
    %7631 = vmatprep.subr.mxu0 0.0
    %7632 = vmatpush2.xpose.msra.mxu0 0.0
    %7633 = vmatprep.subr.mxu0 0.0
    %7634 = vmatpush2.xpose.msra.mxu0 0.0
    %7635 = vmatprep.subr.mxu0 0.0
    %7636 = vmatpush2.xpose.msra.mxu0 0.0
    %7637 = vmatprep.subr.mxu0 0.0
    %7638 = vmatpush2.xpose.msra.mxu0 0.0
    %7639 = vmatprep.subr.mxu0 0.0
    %7640 = vmatpush2.xpose.msra.mxu0 0.0
    %7641 = vmatprep.subr.mxu0 0.0
    %7642 = vmatpush2.xpose.msra.mxu0 0.0
    %7643 = vmatprep.subr.mxu0 0.0
    %7644 = vmatpush2.xpose.msra.mxu0 0.0
    %7645 = vmatprep.subr.mxu0 0.0
    %7646 = vmatpush2.xpose.msra.mxu0 0.0
    %7647 = vmatprep.subr.mxu0 0.0
    %7648 = vmatpush2.xpose.msra.mxu0 0.0
    %7649 = vmatprep.subr.mxu0 0.0
    %7650 = vmatpush2.xpose.msra.mxu0 0.0
    %7651 = vmatprep.mubr.f32.mxu0 0.0
    %7652 = vmatmul.mubr.f32.gmra.mxu0 %v7585
    %v7653 = vpop.f32.mrf.mxu0
    %v7654 = vadd.f32 0.0, %v7653
    %v7655 = vpop.f32.mrf.mxu0
    %7656 = vdwg.mxu0
    %v7658 = vsel %vm565, %v5870, 0
    %7660 = vmatprep.subr.mxu0 0.0
    %7661 = vmatpush1.xpose.msra.mxu0 0.0
    %7662 = vmatprep.subr.mxu0 0.0
    %7663 = vmatpush1.xpose.msra.mxu0 0.0
    %7664 = vmatprep.subr.mxu0 0.0
    %7665 = vmatpush1.xpose.msra.mxu0 0.0
    %7666 = vmatprep.subr.mxu0 0.0
    %7667 = vmatpush1.xpose.msra.mxu0 0.0
    %7668 = vmatprep.subr.mxu0 0.0
    %7669 = vmatpush1.xpose.msra.mxu0 0.0
    %7670 = vmatprep.subr.mxu0 0.0
    %7671 = vmatpush1.xpose.msra.mxu0 0.0
    %7672 = vmatprep.subr.mxu0 0.0
    %7673 = vmatpush1.xpose.msra.mxu0 0.0
    %7674 = vmatprep.subr.mxu0 0.0
    %7675 = vmatpush1.xpose.msra.mxu0 0.0
    %7676 = vmatprep.subr.mxu0 0.0
    %7677 = vmatpush1.xpose.msra.mxu0 0.0
    %7678 = vmatprep.subr.mxu0 0.0
    %7679 = vmatpush1.xpose.msra.mxu0 0.0
    %7680 = vmatprep.subr.mxu0 0.0
    %7681 = vmatpush1.xpose.msra.mxu0 0.0
    %7682 = vmatprep.subr.mxu0 0.0
    %7683 = vmatpush1.xpose.msra.mxu0 0.0
    %7684 = vmatprep.subr.mxu0 0.0
    %7685 = vmatpush1.xpose.msra.mxu0 0.0
    %7686 = vmatprep.subr.mxu0 0.0
    %7687 = vmatpush1.xpose.msra.mxu0 0.0
    %7688 = vmatprep.subr.mxu0 0.0
    %7689 = vmatpush1.xpose.msra.mxu0 0.0
    %7690 = vmatprep.subr.mxu0 0.0
    %7691 = vmatpush1.xpose.msra.mxu0 %v6154
    %7692 = vmatprep.subr.mxu0 0.0
    %7693 = vmatpush2.xpose.msra.mxu0 0.0
    %7694 = vmatprep.subr.mxu0 0.0
    %7695 = vmatpush2.xpose.msra.mxu0 0.0
    %7696 = vmatprep.subr.mxu0 0.0
    %7697 = vmatpush2.xpose.msra.mxu0 0.0
    %7698 = vmatprep.subr.mxu0 0.0
    %7699 = vmatpush2.xpose.msra.mxu0 0.0
    %7700 = vmatprep.subr.mxu0 0.0
    %7701 = vmatpush2.xpose.msra.mxu0 0.0
    %7702 = vmatprep.subr.mxu0 0.0
    %7703 = vmatpush2.xpose.msra.mxu0 0.0
    %7704 = vmatprep.subr.mxu0 0.0
    %7705 = vmatpush2.xpose.msra.mxu0 0.0
    %7706 = vmatprep.subr.mxu0 0.0
    %7707 = vmatpush2.xpose.msra.mxu0 0.0
    %7708 = vmatprep.subr.mxu0 0.0
    %7709 = vmatpush2.xpose.msra.mxu0 0.0
    %7710 = vmatprep.subr.mxu0 0.0
    %7711 = vmatpush2.xpose.msra.mxu0 0.0
    %7712 = vmatprep.subr.mxu0 0.0
    %7713 = vmatpush2.xpose.msra.mxu0 0.0
    %7714 = vmatprep.subr.mxu0 0.0
    %7715 = vmatpush2.xpose.msra.mxu0 0.0
    %7716 = vmatprep.subr.mxu0 0.0
    %7717 = vmatpush2.xpose.msra.mxu0 0.0
    %7718 = vmatprep.subr.mxu0 0.0
    %7719 = vmatpush2.xpose.msra.mxu0 0.0
    %7720 = vmatprep.subr.mxu0 0.0
    %7721 = vmatpush2.xpose.msra.mxu0 0.0
    %7722 = vmatprep.subr.mxu0 0.0
    %7723 = vmatpush2.xpose.msra.mxu0 0.0
    %7724 = vmatprep.mubr.f32.mxu0 0.0
    %7725 = vmatmul.mubr.f32.gmra.mxu0 %v7658
    %v7726 = vpop.f32.mrf.mxu0
    %v7727 = vadd.f32 0.0, %v7726
    %v7728 = vpop.f32.mrf.mxu0
    %7729 = vdwg.mxu0
    %v7731 = vsel %vm565, %v5871, 0
    %7733 = vmatprep.subr.mxu0 0.0
    %7734 = vmatpush1.xpose.msra.mxu0 0.0
    %7735 = vmatprep.subr.mxu0 0.0
    %7736 = vmatpush1.xpose.msra.mxu0 0.0
    %7737 = vmatprep.subr.mxu0 0.0
    %7738 = vmatpush1.xpose.msra.mxu0 0.0
    %7739 = vmatprep.subr.mxu0 0.0
    %7740 = vmatpush1.xpose.msra.mxu0 0.0
    %7741 = vmatprep.subr.mxu0 0.0
    %7742 = vmatpush1.xpose.msra.mxu0 0.0
    %7743 = vmatprep.subr.mxu0 0.0
    %7744 = vmatpush1.xpose.msra.mxu0 0.0
    %7745 = vmatprep.subr.mxu0 0.0
    %7746 = vmatpush1.xpose.msra.mxu0 0.0
    %7747 = vmatprep.subr.mxu0 0.0
    %7748 = vmatpush1.xpose.msra.mxu0 0.0
    %7749 = vmatprep.subr.mxu0 0.0
    %7750 = vmatpush1.xpose.msra.mxu0 0.0
    %7751 = vmatprep.subr.mxu0 0.0
    %7752 = vmatpush1.xpose.msra.mxu0 0.0
    %7753 = vmatprep.subr.mxu0 0.0
    %7754 = vmatpush1.xpose.msra.mxu0 0.0
    %7755 = vmatprep.subr.mxu0 0.0
    %7756 = vmatpush1.xpose.msra.mxu0 0.0
    %7757 = vmatprep.subr.mxu0 0.0
    %7758 = vmatpush1.xpose.msra.mxu0 0.0
    %7759 = vmatprep.subr.mxu0 0.0
    %7760 = vmatpush1.xpose.msra.mxu0 0.0
    %7761 = vmatprep.subr.mxu0 0.0
    %7762 = vmatpush1.xpose.msra.mxu0 0.0
    %7763 = vmatprep.subr.mxu0 0.0
    %7764 = vmatpush1.xpose.msra.mxu0 %v6227
    %7765 = vmatprep.subr.mxu0 0.0
    %7766 = vmatpush2.xpose.msra.mxu0 0.0
    %7767 = vmatprep.subr.mxu0 0.0
    %7768 = vmatpush2.xpose.msra.mxu0 0.0
    %7769 = vmatprep.subr.mxu0 0.0
    %7770 = vmatpush2.xpose.msra.mxu0 0.0
    %7771 = vmatprep.subr.mxu0 0.0
    %7772 = vmatpush2.xpose.msra.mxu0 0.0
    %7773 = vmatprep.subr.mxu0 0.0
    %7774 = vmatpush2.xpose.msra.mxu0 0.0
    %7775 = vmatprep.subr.mxu0 0.0
    %7776 = vmatpush2.xpose.msra.mxu0 0.0
    %7777 = vmatprep.subr.mxu0 0.0
    %7778 = vmatpush2.xpose.msra.mxu0 0.0
    %7779 = vmatprep.subr.mxu0 0.0
    %7780 = vmatpush2.xpose.msra.mxu0 0.0
    %7781 = vmatprep.subr.mxu0 0.0
    %7782 = vmatpush2.xpose.msra.mxu0 0.0
    %7783 = vmatprep.subr.mxu0 0.0
    %7784 = vmatpush2.xpose.msra.mxu0 0.0
    %7785 = vmatprep.subr.mxu0 0.0
    %7786 = vmatpush2.xpose.msra.mxu0 0.0
    %7787 = vmatprep.subr.mxu0 0.0
    %7788 = vmatpush2.xpose.msra.mxu0 0.0
    %7789 = vmatprep.subr.mxu0 0.0
    %7790 = vmatpush2.xpose.msra.mxu0 0.0
    %7791 = vmatprep.subr.mxu0 0.0
    %7792 = vmatpush2.xpose.msra.mxu0 0.0
    %7793 = vmatprep.subr.mxu0 0.0
    %7794 = vmatpush2.xpose.msra.mxu0 0.0
    %7795 = vmatprep.subr.mxu0 0.0
    %7796 = vmatpush2.xpose.msra.mxu0 0.0
    %7797 = vmatprep.mubr.f32.mxu0 0.0
    %7798 = vmatmul.mubr.f32.gmra.mxu0 %v7731
    %v7799 = vpop.f32.mrf.mxu0
    %v7800 = vadd.f32 0.0, %v7799
    %v7801 = vpop.f32.mrf.mxu0
    %7802 = vdwg.mxu0
    %v7804 = vsel %vm565, %v5872, 0
    %7806 = vmatprep.subr.mxu0 0.0
    %7807 = vmatpush1.xpose.msra.mxu0 0.0
    %7808 = vmatprep.subr.mxu0 0.0
    %7809 = vmatpush1.xpose.msra.mxu0 0.0
    %7810 = vmatprep.subr.mxu0 0.0
    %7811 = vmatpush1.xpose.msra.mxu0 0.0
    %7812 = vmatprep.subr.mxu0 0.0
    %7813 = vmatpush1.xpose.msra.mxu0 0.0
    %7814 = vmatprep.subr.mxu0 0.0
    %7815 = vmatpush1.xpose.msra.mxu0 0.0
    %7816 = vmatprep.subr.mxu0 0.0
    %7817 = vmatpush1.xpose.msra.mxu0 0.0
    %7818 = vmatprep.subr.mxu0 0.0
    %7819 = vmatpush1.xpose.msra.mxu0 0.0
    %7820 = vmatprep.subr.mxu0 0.0
    %7821 = vmatpush1.xpose.msra.mxu0 0.0
    %7822 = vmatprep.subr.mxu0 0.0
    %7823 = vmatpush1.xpose.msra.mxu0 0.0
    %7824 = vmatprep.subr.mxu0 0.0
    %7825 = vmatpush1.xpose.msra.mxu0 0.0
    %7826 = vmatprep.subr.mxu0 0.0
    %7827 = vmatpush1.xpose.msra.mxu0 0.0
    %7828 = vmatprep.subr.mxu0 0.0
    %7829 = vmatpush1.xpose.msra.mxu0 0.0
    %7830 = vmatprep.subr.mxu0 0.0
    %7831 = vmatpush1.xpose.msra.mxu0 0.0
    %7832 = vmatprep.subr.mxu0 0.0
    %7833 = vmatpush1.xpose.msra.mxu0 0.0
    %7834 = vmatprep.subr.mxu0 0.0
    %7835 = vmatpush1.xpose.msra.mxu0 0.0
    %7836 = vmatprep.subr.mxu0 0.0
    %7837 = vmatpush1.xpose.msra.mxu0 %v6300
    %7838 = vmatprep.subr.mxu0 0.0
    %7839 = vmatpush2.xpose.msra.mxu0 0.0
    %7840 = vmatprep.subr.mxu0 0.0
    %7841 = vmatpush2.xpose.msra.mxu0 0.0
    %7842 = vmatprep.subr.mxu0 0.0
    %7843 = vmatpush2.xpose.msra.mxu0 0.0
    %7844 = vmatprep.subr.mxu0 0.0
    %7845 = vmatpush2.xpose.msra.mxu0 0.0
    %7846 = vmatprep.subr.mxu0 0.0
    %7847 = vmatpush2.xpose.msra.mxu0 0.0
    %7848 = vmatprep.subr.mxu0 0.0
    %7849 = vmatpush2.xpose.msra.mxu0 0.0
    %7850 = vmatprep.subr.mxu0 0.0
    %7851 = vmatpush2.xpose.msra.mxu0 0.0
    %7852 = vmatprep.subr.mxu0 0.0
    %7853 = vmatpush2.xpose.msra.mxu0 0.0
    %7854 = vmatprep.subr.mxu0 0.0
    %7855 = vmatpush2.xpose.msra.mxu0 0.0
    %7856 = vmatprep.subr.mxu0 0.0
    %7857 = vmatpush2.xpose.msra.mxu0 0.0
    %7858 = vmatprep.subr.mxu0 0.0
    %7859 = vmatpush2.xpose.msra.mxu0 0.0
    %7860 = vmatprep.subr.mxu0 0.0
    %7861 = vmatpush2.xpose.msra.mxu0 0.0
    %7862 = vmatprep.subr.mxu0 0.0
    %7863 = vmatpush2.xpose.msra.mxu0 0.0
    %7864 = vmatprep.subr.mxu0 0.0
    %7865 = vmatpush2.xpose.msra.mxu0 0.0
    %7866 = vmatprep.subr.mxu0 0.0
    %7867 = vmatpush2.xpose.msra.mxu0 0.0
    %7868 = vmatprep.subr.mxu0 0.0
    %7869 = vmatpush2.xpose.msra.mxu0 0.0
    %7870 = vmatprep.mubr.f32.mxu0 0.0
    %7871 = vmatmul.mubr.f32.gmra.mxu0 %v7804
    %v7872 = vpop.f32.mrf.mxu0
    %v7873 = vadd.f32 0.0, %v7872
    %v7874 = vpop.f32.mrf.mxu0
    %7875 = vdwg.mxu0
    %v7877 = vsel %vm565, %v5873, 0
    %7879 = vmatprep.subr.mxu0 0.0
    %7880 = vmatpush1.xpose.msra.mxu0 0.0
    %7881 = vmatprep.subr.mxu0 0.0
    %7882 = vmatpush1.xpose.msra.mxu0 0.0
    %7883 = vmatprep.subr.mxu0 0.0
    %7884 = vmatpush1.xpose.msra.mxu0 0.0
    %7885 = vmatprep.subr.mxu0 0.0
    %7886 = vmatpush1.xpose.msra.mxu0 0.0
    %7887 = vmatprep.subr.mxu0 0.0
    %7888 = vmatpush1.xpose.msra.mxu0 0.0
    %7889 = vmatprep.subr.mxu0 0.0
    %7890 = vmatpush1.xpose.msra.mxu0 0.0
    %7891 = vmatprep.subr.mxu0 0.0
    %7892 = vmatpush1.xpose.msra.mxu0 0.0
    %7893 = vmatprep.subr.mxu0 0.0
    %7894 = vmatpush1.xpose.msra.mxu0 0.0
    %7895 = vmatprep.subr.mxu0 0.0
    %7896 = vmatpush1.xpose.msra.mxu0 0.0
    %7897 = vmatprep.subr.mxu0 0.0
    %7898 = vmatpush1.xpose.msra.mxu0 0.0
    %7899 = vmatprep.subr.mxu0 0.0
    %7900 = vmatpush1.xpose.msra.mxu0 0.0
    %7901 = vmatprep.subr.mxu0 0.0
    %7902 = vmatpush1.xpose.msra.mxu0 0.0
    %7903 = vmatprep.subr.mxu0 0.0
    %7904 = vmatpush1.xpose.msra.mxu0 0.0
    %7905 = vmatprep.subr.mxu0 0.0
    %7906 = vmatpush1.xpose.msra.mxu0 0.0
    %7907 = vmatprep.subr.mxu0 0.0
    %7908 = vmatpush1.xpose.msra.mxu0 0.0
    %7909 = vmatprep.subr.mxu0 0.0
    %7910 = vmatpush1.xpose.msra.mxu0 %v6373
    %7911 = vmatprep.subr.mxu0 0.0
    %7912 = vmatpush2.xpose.msra.mxu0 0.0
    %7913 = vmatprep.subr.mxu0 0.0
    %7914 = vmatpush2.xpose.msra.mxu0 0.0
    %7915 = vmatprep.subr.mxu0 0.0
    %7916 = vmatpush2.xpose.msra.mxu0 0.0
    %7917 = vmatprep.subr.mxu0 0.0
    %7918 = vmatpush2.xpose.msra.mxu0 0.0
    %7919 = vmatprep.subr.mxu0 0.0
    %7920 = vmatpush2.xpose.msra.mxu0 0.0
    %7921 = vmatprep.subr.mxu0 0.0
    %7922 = vmatpush2.xpose.msra.mxu0 0.0
    %7923 = vmatprep.subr.mxu0 0.0
    %7924 = vmatpush2.xpose.msra.mxu0 0.0
    %7925 = vmatprep.subr.mxu0 0.0
    %7926 = vmatpush2.xpose.msra.mxu0 0.0
    %7927 = vmatprep.subr.mxu0 0.0
    %7928 = vmatpush2.xpose.msra.mxu0 0.0
    %7929 = vmatprep.subr.mxu0 0.0
    %7930 = vmatpush2.xpose.msra.mxu0 0.0
    %7931 = vmatprep.subr.mxu0 0.0
    %7932 = vmatpush2.xpose.msra.mxu0 0.0
    %7933 = vmatprep.subr.mxu0 0.0
    %7934 = vmatpush2.xpose.msra.mxu0 0.0
    %7935 = vmatprep.subr.mxu0 0.0
    %7936 = vmatpush2.xpose.msra.mxu0 0.0
    %7937 = vmatprep.subr.mxu0 0.0
    %7938 = vmatpush2.xpose.msra.mxu0 0.0
    %7939 = vmatprep.subr.mxu0 0.0
    %7940 = vmatpush2.xpose.msra.mxu0 0.0
    %7941 = vmatprep.subr.mxu0 0.0
    %7942 = vmatpush2.xpose.msra.mxu0 0.0
    %7943 = vmatprep.mubr.f32.mxu0 0.0
    %7944 = vmatmul.mubr.f32.gmra.mxu0 %v7877
    %v7945 = vpop.f32.mrf.mxu0
    %v7946 = vadd.f32 0.0, %v7945
    %v7947 = vpop.f32.mrf.mxu0
    %7948 = vdwg.mxu0
    %v7950 = vsel %vm565, %v5874, 0
    %7952 = vmatprep.subr.mxu0 0.0
    %7953 = vmatpush1.xpose.msra.mxu0 0.0
    %7954 = vmatprep.subr.mxu0 0.0
    %7955 = vmatpush1.xpose.msra.mxu0 0.0
    %7956 = vmatprep.subr.mxu0 0.0
    %7957 = vmatpush1.xpose.msra.mxu0 0.0
    %7958 = vmatprep.subr.mxu0 0.0
    %7959 = vmatpush1.xpose.msra.mxu0 0.0
    %7960 = vmatprep.subr.mxu0 0.0
    %7961 = vmatpush1.xpose.msra.mxu0 0.0
    %7962 = vmatprep.subr.mxu0 0.0
    %7963 = vmatpush1.xpose.msra.mxu0 0.0
    %7964 = vmatprep.subr.mxu0 0.0
    %7965 = vmatpush1.xpose.msra.mxu0 0.0
    %7966 = vmatprep.subr.mxu0 0.0
    %7967 = vmatpush1.xpose.msra.mxu0 0.0
    %7968 = vmatprep.subr.mxu0 0.0
    %7969 = vmatpush1.xpose.msra.mxu0 0.0
    %7970 = vmatprep.subr.mxu0 0.0
    %7971 = vmatpush1.xpose.msra.mxu0 0.0
    %7972 = vmatprep.subr.mxu0 0.0
    %7973 = vmatpush1.xpose.msra.mxu0 0.0
    %7974 = vmatprep.subr.mxu0 0.0
    %7975 = vmatpush1.xpose.msra.mxu0 0.0
    %7976 = vmatprep.subr.mxu0 0.0
    %7977 = vmatpush1.xpose.msra.mxu0 0.0
    %7978 = vmatprep.subr.mxu0 0.0
    %7979 = vmatpush1.xpose.msra.mxu0 0.0
    %7980 = vmatprep.subr.mxu0 0.0
    %7981 = vmatpush1.xpose.msra.mxu0 0.0
    %7982 = vmatprep.subr.mxu0 0.0
    %7983 = vmatpush1.xpose.msra.mxu0 %v6446
    %7984 = vmatprep.subr.mxu0 0.0
    %7985 = vmatpush2.xpose.msra.mxu0 0.0
    %7986 = vmatprep.subr.mxu0 0.0
    %7987 = vmatpush2.xpose.msra.mxu0 0.0
    %7988 = vmatprep.subr.mxu0 0.0
    %7989 = vmatpush2.xpose.msra.mxu0 0.0
    %7990 = vmatprep.subr.mxu0 0.0
    %7991 = vmatpush2.xpose.msra.mxu0 0.0
    %7992 = vmatprep.subr.mxu0 0.0
    %7993 = vmatpush2.xpose.msra.mxu0 0.0
    %7994 = vmatprep.subr.mxu0 0.0
    %7995 = vmatpush2.xpose.msra.mxu0 0.0
    %7996 = vmatprep.subr.mxu0 0.0
    %7997 = vmatpush2.xpose.msra.mxu0 0.0
    %7998 = vmatprep.subr.mxu0 0.0
    %7999 = vmatpush2.xpose.msra.mxu0 0.0
    %8000 = vmatprep.subr.mxu0 0.0
    %8001 = vmatpush2.xpose.msra.mxu0 0.0
    %8002 = vmatprep.subr.mxu0 0.0
    %8003 = vmatpush2.xpose.msra.mxu0 0.0
    %8004 = vmatprep.subr.mxu0 0.0
    %8005 = vmatpush2.xpose.msra.mxu0 0.0
    %8006 = vmatprep.subr.mxu0 0.0
    %8007 = vmatpush2.xpose.msra.mxu0 0.0
    %8008 = vmatprep.subr.mxu0 0.0
    %8009 = vmatpush2.xpose.msra.mxu0 0.0
    %8010 = vmatprep.subr.mxu0 0.0
    %8011 = vmatpush2.xpose.msra.mxu0 0.0
    %8012 = vmatprep.subr.mxu0 0.0
    %8013 = vmatpush2.xpose.msra.mxu0 0.0
    %8014 = vmatprep.subr.mxu0 0.0
    %8015 = vmatpush2.xpose.msra.mxu0 0.0
    %8016 = vmatprep.mubr.f32.mxu0 0.0
    %8017 = vmatmul.mubr.f32.gmra.mxu0 %v7950
    %v8018 = vpop.f32.mrf.mxu0
    %v8019 = vadd.f32 0.0, %v8018
    %v8020 = vpop.f32.mrf.mxu0
    %8021 = vdwg.mxu0
    %v8022 = vmul.f32 %v847, %v7508
    %v8023 = vmul.f32 %v847, %v7581
    %v8024 = vmul.f32 %v847, %v7654
    %v8025 = vmul.f32 %v847, %v7727
    %v8026 = vmul.f32 %v847, %v7800
    %v8027 = vmul.f32 %v847, %v7873
    %v8028 = vmul.f32 %v847, %v7946
    %v8029 = vmul.f32 %v847, %v8019
    %8030 = vmatprep.subr.mxu0 0.0
    %8031 = vmatpush1.msra.mxu0 0.0
    %8032 = vmatprep.subr.mxu0 0.0
    %8033 = vmatpush1.msra.mxu0 0.0
    %8034 = vmatprep.subr.mxu0 0.0
    %8035 = vmatpush1.msra.mxu0 0.0
    %8036 = vmatprep.subr.mxu0 0.0
    %8037 = vmatpush1.msra.mxu0 0.0
    %8038 = vmatprep.subr.mxu0 0.0
    %8039 = vmatpush1.msra.mxu0 0.0
    %8040 = vmatprep.subr.mxu0 0.0
    %8041 = vmatpush1.msra.mxu0 0.0
    %8042 = vmatprep.subr.mxu0 0.0
    %8043 = vmatpush1.msra.mxu0 0.0
    %8044 = vmatprep.subr.mxu0 0.0
    %8045 = vmatpush1.msra.mxu0 0.0
    %8046 = vmatprep.subr.mxu0 0.0
    %8047 = vmatpush1.msra.mxu0 0.0
    %8048 = vmatprep.subr.mxu0 0.0
    %8049 = vmatpush1.msra.mxu0 0.0
    %8050 = vmatprep.subr.mxu0 0.0
    %8051 = vmatpush1.msra.mxu0 0.0
    %8052 = vmatprep.subr.mxu0 0.0
    %8053 = vmatpush1.msra.mxu0 0.0
    %8054 = vmatprep.subr.mxu0 0.0
    %8055 = vmatpush1.msra.mxu0 0.0
    %8056 = vmatprep.subr.mxu0 0.0
    %8057 = vmatpush1.msra.mxu0 0.0
    %8058 = vmatprep.subr.mxu0 0.0
    %8059 = vmatpush1.msra.mxu0 0.0
    %8060 = vmatprep.subr.mxu0 0.0
    %8061 = vmatpush1.msra.mxu0 %v5858
    %8062 = vmatprep.subr.mxu0 0.0
    %8063 = vmatpush2.msra.mxu0 0.0
    %8064 = vmatprep.subr.mxu0 0.0
    %8065 = vmatpush2.msra.mxu0 0.0
    %8066 = vmatprep.subr.mxu0 0.0
    %8067 = vmatpush2.msra.mxu0 0.0
    %8068 = vmatprep.subr.mxu0 0.0
    %8069 = vmatpush2.msra.mxu0 0.0
    %8070 = vmatprep.subr.mxu0 0.0
    %8071 = vmatpush2.msra.mxu0 0.0
    %8072 = vmatprep.subr.mxu0 0.0
    %8073 = vmatpush2.msra.mxu0 0.0
    %8074 = vmatprep.subr.mxu0 0.0
    %8075 = vmatpush2.msra.mxu0 0.0
    %8076 = vmatprep.subr.mxu0 0.0
    %8077 = vmatpush2.msra.mxu0 0.0
    %8078 = vmatprep.subr.mxu0 0.0
    %8079 = vmatpush2.msra.mxu0 0.0
    %8080 = vmatprep.subr.mxu0 0.0
    %8081 = vmatpush2.msra.mxu0 0.0
    %8082 = vmatprep.subr.mxu0 0.0
    %8083 = vmatpush2.msra.mxu0 0.0
    %8084 = vmatprep.subr.mxu0 0.0
    %8085 = vmatpush2.msra.mxu0 0.0
    %8086 = vmatprep.subr.mxu0 0.0
    %8087 = vmatpush2.msra.mxu0 0.0
    %8088 = vmatprep.subr.mxu0 0.0
    %8089 = vmatpush2.msra.mxu0 0.0
    %8090 = vmatprep.subr.mxu0 0.0
    %8091 = vmatpush2.msra.mxu0 0.0
    %8092 = vmatprep.subr.mxu0 0.0
    %8093 = vmatpush2.msra.mxu0 0.0
    %8094 = vmatprep.mubr.f32.mxu0 0.0
    %8095 = vmatmul.mubr.f32.gmra.mxu0 %v7439
    %v8096 = vpop.f32.mrf.mxu0
    %v8097 = vadd.f32 0.0, %v8096
    %v8098 = vpop.f32.mrf.mxu0
    %8099 = vdwg.mxu0
    %8100 = vmatprep.subr.mxu0 0.0
    %8101 = vmatpush1.msra.mxu0 0.0
    %8102 = vmatprep.subr.mxu0 0.0
    %8103 = vmatpush1.msra.mxu0 0.0
    %8104 = vmatprep.subr.mxu0 0.0
    %8105 = vmatpush1.msra.mxu0 0.0
    %8106 = vmatprep.subr.mxu0 0.0
    %8107 = vmatpush1.msra.mxu0 0.0
    %8108 = vmatprep.subr.mxu0 0.0
    %8109 = vmatpush1.msra.mxu0 0.0
    %8110 = vmatprep.subr.mxu0 0.0
    %8111 = vmatpush1.msra.mxu0 0.0
    %8112 = vmatprep.subr.mxu0 0.0
    %8113 = vmatpush1.msra.mxu0 0.0
    %8114 = vmatprep.subr.mxu0 0.0
    %8115 = vmatpush1.msra.mxu0 0.0
    %8116 = vmatprep.subr.mxu0 0.0
    %8117 = vmatpush1.msra.mxu0 0.0
    %8118 = vmatprep.subr.mxu0 0.0
    %8119 = vmatpush1.msra.mxu0 0.0
    %8120 = vmatprep.subr.mxu0 0.0
    %8121 = vmatpush1.msra.mxu0 0.0
    %8122 = vmatprep.subr.mxu0 0.0
    %8123 = vmatpush1.msra.mxu0 0.0
    %8124 = vmatprep.subr.mxu0 0.0
    %8125 = vmatpush1.msra.mxu0 0.0
    %8126 = vmatprep.subr.mxu0 0.0
    %8127 = vmatpush1.msra.mxu0 0.0
    %8128 = vmatprep.subr.mxu0 0.0
    %8129 = vmatpush1.msra.mxu0 0.0
    %8130 = vmatprep.subr.mxu0 0.0
    %8131 = vmatpush1.msra.mxu0 %v5859
    %8132 = vmatprep.subr.mxu0 0.0
    %8133 = vmatpush2.msra.mxu0 0.0
    %8134 = vmatprep.subr.mxu0 0.0
    %8135 = vmatpush2.msra.mxu0 0.0
    %8136 = vmatprep.subr.mxu0 0.0
    %8137 = vmatpush2.msra.mxu0 0.0
    %8138 = vmatprep.subr.mxu0 0.0
    %8139 = vmatpush2.msra.mxu0 0.0
    %8140 = vmatprep.subr.mxu0 0.0
    %8141 = vmatpush2.msra.mxu0 0.0
    %8142 = vmatprep.subr.mxu0 0.0
    %8143 = vmatpush2.msra.mxu0 0.0
    %8144 = vmatprep.subr.mxu0 0.0
    %8145 = vmatpush2.msra.mxu0 0.0
    %8146 = vmatprep.subr.mxu0 0.0
    %8147 = vmatpush2.msra.mxu0 0.0
    %8148 = vmatprep.subr.mxu0 0.0
    %8149 = vmatpush2.msra.mxu0 0.0
    %8150 = vmatprep.subr.mxu0 0.0
    %8151 = vmatpush2.msra.mxu0 0.0
    %8152 = vmatprep.subr.mxu0 0.0
    %8153 = vmatpush2.msra.mxu0 0.0
    %8154 = vmatprep.subr.mxu0 0.0
    %8155 = vmatpush2.msra.mxu0 0.0
    %8156 = vmatprep.subr.mxu0 0.0
    %8157 = vmatpush2.msra.mxu0 0.0
    %8158 = vmatprep.subr.mxu0 0.0
    %8159 = vmatpush2.msra.mxu0 0.0
    %8160 = vmatprep.subr.mxu0 0.0
    %8161 = vmatpush2.msra.mxu0 0.0
    %8162 = vmatprep.subr.mxu0 0.0
    %8163 = vmatpush2.msra.mxu0 0.0
    %8164 = vmatprep.mubr.f32.mxu0 0.0
    %8165 = vmatmul.mubr.f32.gmra.mxu0 %v7512
    %v8166 = vpop.f32.mrf.mxu0
    %v8167 = vadd.f32 0.0, %v8166
    %v8168 = vpop.f32.mrf.mxu0
    %8169 = vdwg.mxu0
    %8170 = vmatprep.subr.mxu0 0.0
    %8171 = vmatpush1.msra.mxu0 0.0
    %8172 = vmatprep.subr.mxu0 0.0
    %8173 = vmatpush1.msra.mxu0 0.0
    %8174 = vmatprep.subr.mxu0 0.0
    %8175 = vmatpush1.msra.mxu0 0.0
    %8176 = vmatprep.subr.mxu0 0.0
    %8177 = vmatpush1.msra.mxu0 0.0
    %8178 = vmatprep.subr.mxu0 0.0
    %8179 = vmatpush1.msra.mxu0 0.0
    %8180 = vmatprep.subr.mxu0 0.0
    %8181 = vmatpush1.msra.mxu0 0.0
    %8182 = vmatprep.subr.mxu0 0.0
    %8183 = vmatpush1.msra.mxu0 0.0
    %8184 = vmatprep.subr.mxu0 0.0
    %8185 = vmatpush1.msra.mxu0 0.0
    %8186 = vmatprep.subr.mxu0 0.0
    %8187 = vmatpush1.msra.mxu0 0.0
    %8188 = vmatprep.subr.mxu0 0.0
    %8189 = vmatpush1.msra.mxu0 0.0
    %8190 = vmatprep.subr.mxu0 0.0
    %8191 = vmatpush1.msra.mxu0 0.0
    %8192 = vmatprep.subr.mxu0 0.0
    %8193 = vmatpush1.msra.mxu0 0.0
    %8194 = vmatprep.subr.mxu0 0.0
    %8195 = vmatpush1.msra.mxu0 0.0
    %8196 = vmatprep.subr.mxu0 0.0
    %8197 = vmatpush1.msra.mxu0 0.0
    %8198 = vmatprep.subr.mxu0 0.0
    %8199 = vmatpush1.msra.mxu0 0.0
    %8200 = vmatprep.subr.mxu0 0.0
    %8201 = vmatpush1.msra.mxu0 %v5860
    %8202 = vmatprep.subr.mxu0 0.0
    %8203 = vmatpush2.msra.mxu0 0.0
    %8204 = vmatprep.subr.mxu0 0.0
    %8205 = vmatpush2.msra.mxu0 0.0
    %8206 = vmatprep.subr.mxu0 0.0
    %8207 = vmatpush2.msra.mxu0 0.0
    %8208 = vmatprep.subr.mxu0 0.0
    %8209 = vmatpush2.msra.mxu0 0.0
    %8210 = vmatprep.subr.mxu0 0.0
    %8211 = vmatpush2.msra.mxu0 0.0
    %8212 = vmatprep.subr.mxu0 0.0
    %8213 = vmatpush2.msra.mxu0 0.0
    %8214 = vmatprep.subr.mxu0 0.0
    %8215 = vmatpush2.msra.mxu0 0.0
    %8216 = vmatprep.subr.mxu0 0.0
    %8217 = vmatpush2.msra.mxu0 0.0
    %8218 = vmatprep.subr.mxu0 0.0
    %8219 = vmatpush2.msra.mxu0 0.0
    %8220 = vmatprep.subr.mxu0 0.0
    %8221 = vmatpush2.msra.mxu0 0.0
    %8222 = vmatprep.subr.mxu0 0.0
    %8223 = vmatpush2.msra.mxu0 0.0
    %8224 = vmatprep.subr.mxu0 0.0
    %8225 = vmatpush2.msra.mxu0 0.0
    %8226 = vmatprep.subr.mxu0 0.0
    %8227 = vmatpush2.msra.mxu0 0.0
    %8228 = vmatprep.subr.mxu0 0.0
    %8229 = vmatpush2.msra.mxu0 0.0
    %8230 = vmatprep.subr.mxu0 0.0
    %8231 = vmatpush2.msra.mxu0 0.0
    %8232 = vmatprep.subr.mxu0 0.0
    %8233 = vmatpush2.msra.mxu0 0.0
    %8234 = vmatprep.mubr.f32.mxu0 0.0
    %8235 = vmatmul.mubr.f32.gmra.mxu0 %v7585
    %v8236 = vpop.f32.mrf.mxu0
    %v8237 = vadd.f32 0.0, %v8236
    %v8238 = vpop.f32.mrf.mxu0
    %8239 = vdwg.mxu0
    %8240 = vmatprep.subr.mxu0 0.0
    %8241 = vmatpush1.msra.mxu0 0.0
    %8242 = vmatprep.subr.mxu0 0.0
    %8243 = vmatpush1.msra.mxu0 0.0
    %8244 = vmatprep.subr.mxu0 0.0
    %8245 = vmatpush1.msra.mxu0 0.0
    %8246 = vmatprep.subr.mxu0 0.0
    %8247 = vmatpush1.msra.mxu0 0.0
    %8248 = vmatprep.subr.mxu0 0.0
    %8249 = vmatpush1.msra.mxu0 0.0
    %8250 = vmatprep.subr.mxu0 0.0
    %8251 = vmatpush1.msra.mxu0 0.0
    %8252 = vmatprep.subr.mxu0 0.0
    %8253 = vmatpush1.msra.mxu0 0.0
    %8254 = vmatprep.subr.mxu0 0.0
    %8255 = vmatpush1.msra.mxu0 0.0
    %8256 = vmatprep.subr.mxu0 0.0
    %8257 = vmatpush1.msra.mxu0 0.0
    %8258 = vmatprep.subr.mxu0 0.0
    %8259 = vmatpush1.msra.mxu0 0.0
    %8260 = vmatprep.subr.mxu0 0.0
    %8261 = vmatpush1.msra.mxu0 0.0
    %8262 = vmatprep.subr.mxu0 0.0
    %8263 = vmatpush1.msra.mxu0 0.0
    %8264 = vmatprep.subr.mxu0 0.0
    %8265 = vmatpush1.msra.mxu0 0.0
    %8266 = vmatprep.subr.mxu0 0.0
    %8267 = vmatpush1.msra.mxu0 0.0
    %8268 = vmatprep.subr.mxu0 0.0
    %8269 = vmatpush1.msra.mxu0 0.0
    %8270 = vmatprep.subr.mxu0 0.0
    %8271 = vmatpush1.msra.mxu0 %v5861
    %8272 = vmatprep.subr.mxu0 0.0
    %8273 = vmatpush2.msra.mxu0 0.0
    %8274 = vmatprep.subr.mxu0 0.0
    %8275 = vmatpush2.msra.mxu0 0.0
    %8276 = vmatprep.subr.mxu0 0.0
    %8277 = vmatpush2.msra.mxu0 0.0
    %8278 = vmatprep.subr.mxu0 0.0
    %8279 = vmatpush2.msra.mxu0 0.0
    %8280 = vmatprep.subr.mxu0 0.0
    %8281 = vmatpush2.msra.mxu0 0.0
    %8282 = vmatprep.subr.mxu0 0.0
    %8283 = vmatpush2.msra.mxu0 0.0
    %8284 = vmatprep.subr.mxu0 0.0
    %8285 = vmatpush2.msra.mxu0 0.0
    %8286 = vmatprep.subr.mxu0 0.0
    %8287 = vmatpush2.msra.mxu0 0.0
    %8288 = vmatprep.subr.mxu0 0.0
    %8289 = vmatpush2.msra.mxu0 0.0
    %8290 = vmatprep.subr.mxu0 0.0
    %8291 = vmatpush2.msra.mxu0 0.0
    %8292 = vmatprep.subr.mxu0 0.0
    %8293 = vmatpush2.msra.mxu0 0.0
    %8294 = vmatprep.subr.mxu0 0.0
    %8295 = vmatpush2.msra.mxu0 0.0
    %8296 = vmatprep.subr.mxu0 0.0
    %8297 = vmatpush2.msra.mxu0 0.0
    %8298 = vmatprep.subr.mxu0 0.0
    %8299 = vmatpush2.msra.mxu0 0.0
    %8300 = vmatprep.subr.mxu0 0.0
    %8301 = vmatpush2.msra.mxu0 0.0
    %8302 = vmatprep.subr.mxu0 0.0
    %8303 = vmatpush2.msra.mxu0 0.0
    %8304 = vmatprep.mubr.f32.mxu0 0.0
    %8305 = vmatmul.mubr.f32.gmra.mxu0 %v7658
    %v8306 = vpop.f32.mrf.mxu0
    %v8307 = vadd.f32 0.0, %v8306
    %v8308 = vpop.f32.mrf.mxu0
    %8309 = vdwg.mxu0
    %8310 = vmatprep.subr.mxu0 0.0
    %8311 = vmatpush1.msra.mxu0 0.0
    %8312 = vmatprep.subr.mxu0 0.0
    %8313 = vmatpush1.msra.mxu0 0.0
    %8314 = vmatprep.subr.mxu0 0.0
    %8315 = vmatpush1.msra.mxu0 0.0
    %8316 = vmatprep.subr.mxu0 0.0
    %8317 = vmatpush1.msra.mxu0 0.0
    %8318 = vmatprep.subr.mxu0 0.0
    %8319 = vmatpush1.msra.mxu0 0.0
    %8320 = vmatprep.subr.mxu0 0.0
    %8321 = vmatpush1.msra.mxu0 0.0
    %8322 = vmatprep.subr.mxu0 0.0
    %8323 = vmatpush1.msra.mxu0 0.0
    %8324 = vmatprep.subr.mxu0 0.0
    %8325 = vmatpush1.msra.mxu0 0.0
    %8326 = vmatprep.subr.mxu0 0.0
    %8327 = vmatpush1.msra.mxu0 0.0
    %8328 = vmatprep.subr.mxu0 0.0
    %8329 = vmatpush1.msra.mxu0 0.0
    %8330 = vmatprep.subr.mxu0 0.0
    %8331 = vmatpush1.msra.mxu0 0.0
    %8332 = vmatprep.subr.mxu0 0.0
    %8333 = vmatpush1.msra.mxu0 0.0
    %8334 = vmatprep.subr.mxu0 0.0
    %8335 = vmatpush1.msra.mxu0 0.0
    %8336 = vmatprep.subr.mxu0 0.0
    %8337 = vmatpush1.msra.mxu0 0.0
    %8338 = vmatprep.subr.mxu0 0.0
    %8339 = vmatpush1.msra.mxu0 0.0
    %8340 = vmatprep.subr.mxu0 0.0
    %8341 = vmatpush1.msra.mxu0 %v5862
    %8342 = vmatprep.subr.mxu0 0.0
    %8343 = vmatpush2.msra.mxu0 0.0
    %8344 = vmatprep.subr.mxu0 0.0
    %8345 = vmatpush2.msra.mxu0 0.0
    %8346 = vmatprep.subr.mxu0 0.0
    %8347 = vmatpush2.msra.mxu0 0.0
    %8348 = vmatprep.subr.mxu0 0.0
    %8349 = vmatpush2.msra.mxu0 0.0
    %8350 = vmatprep.subr.mxu0 0.0
    %8351 = vmatpush2.msra.mxu0 0.0
    %8352 = vmatprep.subr.mxu0 0.0
    %8353 = vmatpush2.msra.mxu0 0.0
    %8354 = vmatprep.subr.mxu0 0.0
    %8355 = vmatpush2.msra.mxu0 0.0
    %8356 = vmatprep.subr.mxu0 0.0
    %8357 = vmatpush2.msra.mxu0 0.0
    %8358 = vmatprep.subr.mxu0 0.0
    %8359 = vmatpush2.msra.mxu0 0.0
    %8360 = vmatprep.subr.mxu0 0.0
    %8361 = vmatpush2.msra.mxu0 0.0
    %8362 = vmatprep.subr.mxu0 0.0
    %8363 = vmatpush2.msra.mxu0 0.0
    %8364 = vmatprep.subr.mxu0 0.0
    %8365 = vmatpush2.msra.mxu0 0.0
    %8366 = vmatprep.subr.mxu0 0.0
    %8367 = vmatpush2.msra.mxu0 0.0
    %8368 = vmatprep.subr.mxu0 0.0
    %8369 = vmatpush2.msra.mxu0 0.0
    %8370 = vmatprep.subr.mxu0 0.0
    %8371 = vmatpush2.msra.mxu0 0.0
    %8372 = vmatprep.subr.mxu0 0.0
    %8373 = vmatpush2.msra.mxu0 0.0
    %8374 = vmatprep.mubr.f32.mxu0 0.0
    %8375 = vmatmul.mubr.f32.gmra.mxu0 %v7731
    %v8376 = vpop.f32.mrf.mxu0
    %v8377 = vadd.f32 0.0, %v8376
    %v8378 = vpop.f32.mrf.mxu0
    %8379 = vdwg.mxu0
    %8380 = vmatprep.subr.mxu0 0.0
    %8381 = vmatpush1.msra.mxu0 0.0
    %8382 = vmatprep.subr.mxu0 0.0
    %8383 = vmatpush1.msra.mxu0 0.0
    %8384 = vmatprep.subr.mxu0 0.0
    %8385 = vmatpush1.msra.mxu0 0.0
    %8386 = vmatprep.subr.mxu0 0.0
    %8387 = vmatpush1.msra.mxu0 0.0
    %8388 = vmatprep.subr.mxu0 0.0
    %8389 = vmatpush1.msra.mxu0 0.0
    %8390 = vmatprep.subr.mxu0 0.0
    %8391 = vmatpush1.msra.mxu0 0.0
    %8392 = vmatprep.subr.mxu0 0.0
    %8393 = vmatpush1.msra.mxu0 0.0
    %8394 = vmatprep.subr.mxu0 0.0
    %8395 = vmatpush1.msra.mxu0 0.0
    %8396 = vmatprep.subr.mxu0 0.0
    %8397 = vmatpush1.msra.mxu0 0.0
    %8398 = vmatprep.subr.mxu0 0.0
    %8399 = vmatpush1.msra.mxu0 0.0
    %8400 = vmatprep.subr.mxu0 0.0
    %8401 = vmatpush1.msra.mxu0 0.0
    %8402 = vmatprep.subr.mxu0 0.0
    %8403 = vmatpush1.msra.mxu0 0.0
    %8404 = vmatprep.subr.mxu0 0.0
    %8405 = vmatpush1.msra.mxu0 0.0
    %8406 = vmatprep.subr.mxu0 0.0
    %8407 = vmatpush1.msra.mxu0 0.0
    %8408 = vmatprep.subr.mxu0 0.0
    %8409 = vmatpush1.msra.mxu0 0.0
    %8410 = vmatprep.subr.mxu0 0.0
    %8411 = vmatpush1.msra.mxu0 %v5863
    %8412 = vmatprep.subr.mxu0 0.0
    %8413 = vmatpush2.msra.mxu0 0.0
    %8414 = vmatprep.subr.mxu0 0.0
    %8415 = vmatpush2.msra.mxu0 0.0
    %8416 = vmatprep.subr.mxu0 0.0
    %8417 = vmatpush2.msra.mxu0 0.0
    %8418 = vmatprep.subr.mxu0 0.0
    %8419 = vmatpush2.msra.mxu0 0.0
    %8420 = vmatprep.subr.mxu0 0.0
    %8421 = vmatpush2.msra.mxu0 0.0
    %8422 = vmatprep.subr.mxu0 0.0
    %8423 = vmatpush2.msra.mxu0 0.0
    %8424 = vmatprep.subr.mxu0 0.0
    %8425 = vmatpush2.msra.mxu0 0.0
    %8426 = vmatprep.subr.mxu0 0.0
    %8427 = vmatpush2.msra.mxu0 0.0
    %8428 = vmatprep.subr.mxu0 0.0
    %8429 = vmatpush2.msra.mxu0 0.0
    %8430 = vmatprep.subr.mxu0 0.0
    %8431 = vmatpush2.msra.mxu0 0.0
    %8432 = vmatprep.subr.mxu0 0.0
    %8433 = vmatpush2.msra.mxu0 0.0
    %8434 = vmatprep.subr.mxu0 0.0
    %8435 = vmatpush2.msra.mxu0 0.0
    %8436 = vmatprep.subr.mxu0 0.0
    %8437 = vmatpush2.msra.mxu0 0.0
    %8438 = vmatprep.subr.mxu0 0.0
    %8439 = vmatpush2.msra.mxu0 0.0
    %8440 = vmatprep.subr.mxu0 0.0
    %8441 = vmatpush2.msra.mxu0 0.0
    %8442 = vmatprep.subr.mxu0 0.0
    %8443 = vmatpush2.msra.mxu0 0.0
    %8444 = vmatprep.mubr.f32.mxu0 0.0
    %8445 = vmatmul.mubr.f32.gmra.mxu0 %v7804
    %v8446 = vpop.f32.mrf.mxu0
    %v8447 = vadd.f32 0.0, %v8446
    %v8448 = vpop.f32.mrf.mxu0
    %8449 = vdwg.mxu0
    %8450 = vmatprep.subr.mxu0 0.0
    %8451 = vmatpush1.msra.mxu0 0.0
    %8452 = vmatprep.subr.mxu0 0.0
    %8453 = vmatpush1.msra.mxu0 0.0
    %8454 = vmatprep.subr.mxu0 0.0
    %8455 = vmatpush1.msra.mxu0 0.0
    %8456 = vmatprep.subr.mxu0 0.0
    %8457 = vmatpush1.msra.mxu0 0.0
    %8458 = vmatprep.subr.mxu0 0.0
    %8459 = vmatpush1.msra.mxu0 0.0
    %8460 = vmatprep.subr.mxu0 0.0
    %8461 = vmatpush1.msra.mxu0 0.0
    %8462 = vmatprep.subr.mxu0 0.0
    %8463 = vmatpush1.msra.mxu0 0.0
    %8464 = vmatprep.subr.mxu0 0.0
    %8465 = vmatpush1.msra.mxu0 0.0
    %8466 = vmatprep.subr.mxu0 0.0
    %8467 = vmatpush1.msra.mxu0 0.0
    %8468 = vmatprep.subr.mxu0 0.0
    %8469 = vmatpush1.msra.mxu0 0.0
    %8470 = vmatprep.subr.mxu0 0.0
    %8471 = vmatpush1.msra.mxu0 0.0
    %8472 = vmatprep.subr.mxu0 0.0
    %8473 = vmatpush1.msra.mxu0 0.0
    %8474 = vmatprep.subr.mxu0 0.0
    %8475 = vmatpush1.msra.mxu0 0.0
    %8476 = vmatprep.subr.mxu0 0.0
    %8477 = vmatpush1.msra.mxu0 0.0
    %8478 = vmatprep.subr.mxu0 0.0
    %8479 = vmatpush1.msra.mxu0 0.0
    %8480 = vmatprep.subr.mxu0 0.0
    %8481 = vmatpush1.msra.mxu0 %v5864
    %8482 = vmatprep.subr.mxu0 0.0
    %8483 = vmatpush2.msra.mxu0 0.0
    %8484 = vmatprep.subr.mxu0 0.0
    %8485 = vmatpush2.msra.mxu0 0.0
    %8486 = vmatprep.subr.mxu0 0.0
    %8487 = vmatpush2.msra.mxu0 0.0
    %8488 = vmatprep.subr.mxu0 0.0
    %8489 = vmatpush2.msra.mxu0 0.0
    %8490 = vmatprep.subr.mxu0 0.0
    %8491 = vmatpush2.msra.mxu0 0.0
    %8492 = vmatprep.subr.mxu0 0.0
    %8493 = vmatpush2.msra.mxu0 0.0
    %8494 = vmatprep.subr.mxu0 0.0
    %8495 = vmatpush2.msra.mxu0 0.0
    %8496 = vmatprep.subr.mxu0 0.0
    %8497 = vmatpush2.msra.mxu0 0.0
    %8498 = vmatprep.subr.mxu0 0.0
    %8499 = vmatpush2.msra.mxu0 0.0
    %8500 = vmatprep.subr.mxu0 0.0
    %8501 = vmatpush2.msra.mxu0 0.0
    %8502 = vmatprep.subr.mxu0 0.0
    %8503 = vmatpush2.msra.mxu0 0.0
    %8504 = vmatprep.subr.mxu0 0.0
    %8505 = vmatpush2.msra.mxu0 0.0
    %8506 = vmatprep.subr.mxu0 0.0
    %8507 = vmatpush2.msra.mxu0 0.0
    %8508 = vmatprep.subr.mxu0 0.0
    %8509 = vmatpush2.msra.mxu0 0.0
    %8510 = vmatprep.subr.mxu0 0.0
    %8511 = vmatpush2.msra.mxu0 0.0
    %8512 = vmatprep.subr.mxu0 0.0
    %8513 = vmatpush2.msra.mxu0 0.0
    %8514 = vmatprep.mubr.f32.mxu0 0.0
    %8515 = vmatmul.mubr.f32.gmra.mxu0 %v7877
    %v8516 = vpop.f32.mrf.mxu0
    %v8517 = vadd.f32 0.0, %v8516
    %v8518 = vpop.f32.mrf.mxu0
    %8519 = vdwg.mxu0
    %8520 = vmatprep.subr.mxu0 0.0
    %8521 = vmatpush1.msra.mxu0 0.0
    %8522 = vmatprep.subr.mxu0 0.0
    %8523 = vmatpush1.msra.mxu0 0.0
    %8524 = vmatprep.subr.mxu0 0.0
    %8525 = vmatpush1.msra.mxu0 0.0
    %8526 = vmatprep.subr.mxu0 0.0
    %8527 = vmatpush1.msra.mxu0 0.0
    %8528 = vmatprep.subr.mxu0 0.0
    %8529 = vmatpush1.msra.mxu0 0.0
    %8530 = vmatprep.subr.mxu0 0.0
    %8531 = vmatpush1.msra.mxu0 0.0
    %8532 = vmatprep.subr.mxu0 0.0
    %8533 = vmatpush1.msra.mxu0 0.0
    %8534 = vmatprep.subr.mxu0 0.0
    %8535 = vmatpush1.msra.mxu0 0.0
    %8536 = vmatprep.subr.mxu0 0.0
    %8537 = vmatpush1.msra.mxu0 0.0
    %8538 = vmatprep.subr.mxu0 0.0
    %8539 = vmatpush1.msra.mxu0 0.0
    %8540 = vmatprep.subr.mxu0 0.0
    %8541 = vmatpush1.msra.mxu0 0.0
    %8542 = vmatprep.subr.mxu0 0.0
    %8543 = vmatpush1.msra.mxu0 0.0
    %8544 = vmatprep.subr.mxu0 0.0
    %8545 = vmatpush1.msra.mxu0 0.0
    %8546 = vmatprep.subr.mxu0 0.0
    %8547 = vmatpush1.msra.mxu0 0.0
    %8548 = vmatprep.subr.mxu0 0.0
    %8549 = vmatpush1.msra.mxu0 0.0
    %8550 = vmatprep.subr.mxu0 0.0
    %8551 = vmatpush1.msra.mxu0 %v5865
    %8552 = vmatprep.subr.mxu0 0.0
    %8553 = vmatpush2.msra.mxu0 0.0
    %8554 = vmatprep.subr.mxu0 0.0
    %8555 = vmatpush2.msra.mxu0 0.0
    %8556 = vmatprep.subr.mxu0 0.0
    %8557 = vmatpush2.msra.mxu0 0.0
    %8558 = vmatprep.subr.mxu0 0.0
    %8559 = vmatpush2.msra.mxu0 0.0
    %8560 = vmatprep.subr.mxu0 0.0
    %8561 = vmatpush2.msra.mxu0 0.0
    %8562 = vmatprep.subr.mxu0 0.0
    %8563 = vmatpush2.msra.mxu0 0.0
    %8564 = vmatprep.subr.mxu0 0.0
    %8565 = vmatpush2.msra.mxu0 0.0
    %8566 = vmatprep.subr.mxu0 0.0
    %8567 = vmatpush2.msra.mxu0 0.0
    %8568 = vmatprep.subr.mxu0 0.0
    %8569 = vmatpush2.msra.mxu0 0.0
    %8570 = vmatprep.subr.mxu0 0.0
    %8571 = vmatpush2.msra.mxu0 0.0
    %8572 = vmatprep.subr.mxu0 0.0
    %8573 = vmatpush2.msra.mxu0 0.0
    %8574 = vmatprep.subr.mxu0 0.0
    %8575 = vmatpush2.msra.mxu0 0.0
    %8576 = vmatprep.subr.mxu0 0.0
    %8577 = vmatpush2.msra.mxu0 0.0
    %8578 = vmatprep.subr.mxu0 0.0
    %8579 = vmatpush2.msra.mxu0 0.0
    %8580 = vmatprep.subr.mxu0 0.0
    %8581 = vmatpush2.msra.mxu0 0.0
    %8582 = vmatprep.subr.mxu0 0.0
    %8583 = vmatpush2.msra.mxu0 0.0
    %8584 = vmatprep.mubr.f32.mxu0 0.0
    %8585 = vmatmul.mubr.f32.gmra.mxu0 %v7950
    %v8586 = vpop.f32.mrf.mxu0
    %v8587 = vadd.f32 0.0, %v8586
    %v8588 = vpop.f32.mrf.mxu0
    %8589 = vdwg.mxu0
    %8590 = vmatprep.subr.mxu0 0.0
    %8591 = vmatpush1.msra.mxu0 0.0
    %8592 = vmatprep.subr.mxu0 0.0
    %8593 = vmatpush1.msra.mxu0 0.0
    %8594 = vmatprep.subr.mxu0 0.0
    %8595 = vmatpush1.msra.mxu0 0.0
    %8596 = vmatprep.subr.mxu0 0.0
    %8597 = vmatpush1.msra.mxu0 0.0
    %8598 = vmatprep.subr.mxu0 0.0
    %8599 = vmatpush1.msra.mxu0 0.0
    %8600 = vmatprep.subr.mxu0 0.0
    %8601 = vmatpush1.msra.mxu0 0.0
    %8602 = vmatprep.subr.mxu0 0.0
    %8603 = vmatpush1.msra.mxu0 0.0
    %8604 = vmatprep.subr.mxu0 0.0
    %8605 = vmatpush1.msra.mxu0 0.0
    %8606 = vmatprep.subr.mxu0 0.0
    %8607 = vmatpush1.msra.mxu0 0.0
    %8608 = vmatprep.subr.mxu0 0.0
    %8609 = vmatpush1.msra.mxu0 0.0
    %8610 = vmatprep.subr.mxu0 0.0
    %8611 = vmatpush1.msra.mxu0 0.0
    %8612 = vmatprep.subr.mxu0 0.0
    %8613 = vmatpush1.msra.mxu0 0.0
    %8614 = vmatprep.subr.mxu0 0.0
    %8615 = vmatpush1.msra.mxu0 0.0
    %8616 = vmatprep.subr.mxu0 0.0
    %8617 = vmatpush1.msra.mxu0 0.0
    %8618 = vmatprep.subr.mxu0 0.0
    %8619 = vmatpush1.msra.mxu0 0.0
    %8620 = vmatprep.subr.mxu0 0.0
    %8621 = vmatpush1.msra.mxu0 %v5108
    %8622 = vmatprep.subr.mxu0 0.0
    %8623 = vmatpush2.msra.mxu0 0.0
    %8624 = vmatprep.subr.mxu0 0.0
    %8625 = vmatpush2.msra.mxu0 0.0
    %8626 = vmatprep.subr.mxu0 0.0
    %8627 = vmatpush2.msra.mxu0 0.0
    %8628 = vmatprep.subr.mxu0 0.0
    %8629 = vmatpush2.msra.mxu0 0.0
    %8630 = vmatprep.subr.mxu0 0.0
    %8631 = vmatpush2.msra.mxu0 0.0
    %8632 = vmatprep.subr.mxu0 0.0
    %8633 = vmatpush2.msra.mxu0 0.0
    %8634 = vmatprep.subr.mxu0 0.0
    %8635 = vmatpush2.msra.mxu0 0.0
    %8636 = vmatprep.subr.mxu0 0.0
    %8637 = vmatpush2.msra.mxu0 0.0
    %8638 = vmatprep.subr.mxu0 0.0
    %8639 = vmatpush2.msra.mxu0 0.0
    %8640 = vmatprep.subr.mxu0 0.0
    %8641 = vmatpush2.msra.mxu0 0.0
    %8642 = vmatprep.subr.mxu0 0.0
    %8643 = vmatpush2.msra.mxu0 0.0
    %8644 = vmatprep.subr.mxu0 0.0
    %8645 = vmatpush2.msra.mxu0 0.0
    %8646 = vmatprep.subr.mxu0 0.0
    %8647 = vmatpush2.msra.mxu0 0.0
    %8648 = vmatprep.subr.mxu0 0.0
    %8649 = vmatpush2.msra.mxu0 0.0
    %8650 = vmatprep.subr.mxu0 0.0
    %8651 = vmatpush2.msra.mxu0 0.0
    %8652 = vmatprep.subr.mxu0 0.0
    %8653 = vmatpush2.msra.mxu0 0.0
    %8654 = vmatprep.mubr.f32.mxu0 0.0
    %8655 = vmatmul.mubr.f32.gmra.mxu0 %v7439
    %v8656 = vpop.f32.mrf.mxu0
    %v8657 = vadd.f32 0.0, %v8656
    %v8658 = vpop.f32.mrf.mxu0
    %8659 = vdwg.mxu0
    %8660 = vmatprep.subr.mxu0 0.0
    %8661 = vmatpush1.msra.mxu0 0.0
    %8662 = vmatprep.subr.mxu0 0.0
    %8663 = vmatpush1.msra.mxu0 0.0
    %8664 = vmatprep.subr.mxu0 0.0
    %8665 = vmatpush1.msra.mxu0 0.0
    %8666 = vmatprep.subr.mxu0 0.0
    %8667 = vmatpush1.msra.mxu0 0.0
    %8668 = vmatprep.subr.mxu0 0.0
    %8669 = vmatpush1.msra.mxu0 0.0
    %8670 = vmatprep.subr.mxu0 0.0
    %8671 = vmatpush1.msra.mxu0 0.0
    %8672 = vmatprep.subr.mxu0 0.0
    %8673 = vmatpush1.msra.mxu0 0.0
    %8674 = vmatprep.subr.mxu0 0.0
    %8675 = vmatpush1.msra.mxu0 0.0
    %8676 = vmatprep.subr.mxu0 0.0
    %8677 = vmatpush1.msra.mxu0 0.0
    %8678 = vmatprep.subr.mxu0 0.0
    %8679 = vmatpush1.msra.mxu0 0.0
    %8680 = vmatprep.subr.mxu0 0.0
    %8681 = vmatpush1.msra.mxu0 0.0
    %8682 = vmatprep.subr.mxu0 0.0
    %8683 = vmatpush1.msra.mxu0 0.0
    %8684 = vmatprep.subr.mxu0 0.0
    %8685 = vmatpush1.msra.mxu0 0.0
    %8686 = vmatprep.subr.mxu0 0.0
    %8687 = vmatpush1.msra.mxu0 0.0
    %8688 = vmatprep.subr.mxu0 0.0
    %8689 = vmatpush1.msra.mxu0 0.0
    %8690 = vmatprep.subr.mxu0 0.0
    %8691 = vmatpush1.msra.mxu0 %v5213
    %8692 = vmatprep.subr.mxu0 0.0
    %8693 = vmatpush2.msra.mxu0 0.0
    %8694 = vmatprep.subr.mxu0 0.0
    %8695 = vmatpush2.msra.mxu0 0.0
    %8696 = vmatprep.subr.mxu0 0.0
    %8697 = vmatpush2.msra.mxu0 0.0
    %8698 = vmatprep.subr.mxu0 0.0
    %8699 = vmatpush2.msra.mxu0 0.0
    %8700 = vmatprep.subr.mxu0 0.0
    %8701 = vmatpush2.msra.mxu0 0.0
    %8702 = vmatprep.subr.mxu0 0.0
    %8703 = vmatpush2.msra.mxu0 0.0
    %8704 = vmatprep.subr.mxu0 0.0
    %8705 = vmatpush2.msra.mxu0 0.0
    %8706 = vmatprep.subr.mxu0 0.0
    %8707 = vmatpush2.msra.mxu0 0.0
    %8708 = vmatprep.subr.mxu0 0.0
    %8709 = vmatpush2.msra.mxu0 0.0
    %8710 = vmatprep.subr.mxu0 0.0
    %8711 = vmatpush2.msra.mxu0 0.0
    %8712 = vmatprep.subr.mxu0 0.0
    %8713 = vmatpush2.msra.mxu0 0.0
    %8714 = vmatprep.subr.mxu0 0.0
    %8715 = vmatpush2.msra.mxu0 0.0
    %8716 = vmatprep.subr.mxu0 0.0
    %8717 = vmatpush2.msra.mxu0 0.0
    %8718 = vmatprep.subr.mxu0 0.0
    %8719 = vmatpush2.msra.mxu0 0.0
    %8720 = vmatprep.subr.mxu0 0.0
    %8721 = vmatpush2.msra.mxu0 0.0
    %8722 = vmatprep.subr.mxu0 0.0
    %8723 = vmatpush2.msra.mxu0 0.0
    %8724 = vmatprep.mubr.f32.mxu0 0.0
    %8725 = vmatmul.mubr.f32.gmra.mxu0 %v7512
    %v8726 = vpop.f32.mrf.mxu0
    %v8727 = vadd.f32 0.0, %v8726
    %v8728 = vpop.f32.mrf.mxu0
    %8729 = vdwg.mxu0
    %8730 = vmatprep.subr.mxu0 0.0
    %8731 = vmatpush1.msra.mxu0 0.0
    %8732 = vmatprep.subr.mxu0 0.0
    %8733 = vmatpush1.msra.mxu0 0.0
    %8734 = vmatprep.subr.mxu0 0.0
    %8735 = vmatpush1.msra.mxu0 0.0
    %8736 = vmatprep.subr.mxu0 0.0
    %8737 = vmatpush1.msra.mxu0 0.0
    %8738 = vmatprep.subr.mxu0 0.0
    %8739 = vmatpush1.msra.mxu0 0.0
    %8740 = vmatprep.subr.mxu0 0.0
    %8741 = vmatpush1.msra.mxu0 0.0
    %8742 = vmatprep.subr.mxu0 0.0
    %8743 = vmatpush1.msra.mxu0 0.0
    %8744 = vmatprep.subr.mxu0 0.0
    %8745 = vmatpush1.msra.mxu0 0.0
    %8746 = vmatprep.subr.mxu0 0.0
    %8747 = vmatpush1.msra.mxu0 0.0
    %8748 = vmatprep.subr.mxu0 0.0
    %8749 = vmatpush1.msra.mxu0 0.0
    %8750 = vmatprep.subr.mxu0 0.0
    %8751 = vmatpush1.msra.mxu0 0.0
    %8752 = vmatprep.subr.mxu0 0.0
    %8753 = vmatpush1.msra.mxu0 0.0
    %8754 = vmatprep.subr.mxu0 0.0
    %8755 = vmatpush1.msra.mxu0 0.0
    %8756 = vmatprep.subr.mxu0 0.0
    %8757 = vmatpush1.msra.mxu0 0.0
    %8758 = vmatprep.subr.mxu0 0.0
    %8759 = vmatpush1.msra.mxu0 0.0
    %8760 = vmatprep.subr.mxu0 0.0
    %8761 = vmatpush1.msra.mxu0 %v5318
    %8762 = vmatprep.subr.mxu0 0.0
    %8763 = vmatpush2.msra.mxu0 0.0
    %8764 = vmatprep.subr.mxu0 0.0
    %8765 = vmatpush2.msra.mxu0 0.0
    %8766 = vmatprep.subr.mxu0 0.0
    %8767 = vmatpush2.msra.mxu0 0.0
    %8768 = vmatprep.subr.mxu0 0.0
    %8769 = vmatpush2.msra.mxu0 0.0
    %8770 = vmatprep.subr.mxu0 0.0
    %8771 = vmatpush2.msra.mxu0 0.0
    %8772 = vmatprep.subr.mxu0 0.0
    %8773 = vmatpush2.msra.mxu0 0.0
    %8774 = vmatprep.subr.mxu0 0.0
    %8775 = vmatpush2.msra.mxu0 0.0
    %8776 = vmatprep.subr.mxu0 0.0
    %8777 = vmatpush2.msra.mxu0 0.0
    %8778 = vmatprep.subr.mxu0 0.0
    %8779 = vmatpush2.msra.mxu0 0.0
    %8780 = vmatprep.subr.mxu0 0.0
    %8781 = vmatpush2.msra.mxu0 0.0
    %8782 = vmatprep.subr.mxu0 0.0
    %8783 = vmatpush2.msra.mxu0 0.0
    %8784 = vmatprep.subr.mxu0 0.0
    %8785 = vmatpush2.msra.mxu0 0.0
    %8786 = vmatprep.subr.mxu0 0.0
    %8787 = vmatpush2.msra.mxu0 0.0
    %8788 = vmatprep.subr.mxu0 0.0
    %8789 = vmatpush2.msra.mxu0 0.0
    %8790 = vmatprep.subr.mxu0 0.0
    %8791 = vmatpush2.msra.mxu0 0.0
    %8792 = vmatprep.subr.mxu0 0.0
    %8793 = vmatpush2.msra.mxu0 0.0
    %8794 = vmatprep.mubr.f32.mxu0 0.0
    %8795 = vmatmul.mubr.f32.gmra.mxu0 %v7585
    %v8796 = vpop.f32.mrf.mxu0
    %v8797 = vadd.f32 0.0, %v8796
    %v8798 = vpop.f32.mrf.mxu0
    %8799 = vdwg.mxu0
    %8800 = vmatprep.subr.mxu0 0.0
    %8801 = vmatpush1.msra.mxu0 0.0
    %8802 = vmatprep.subr.mxu0 0.0
    %8803 = vmatpush1.msra.mxu0 0.0
    %8804 = vmatprep.subr.mxu0 0.0
    %8805 = vmatpush1.msra.mxu0 0.0
    %8806 = vmatprep.subr.mxu0 0.0
    %8807 = vmatpush1.msra.mxu0 0.0
    %8808 = vmatprep.subr.mxu0 0.0
    %8809 = vmatpush1.msra.mxu0 0.0
    %8810 = vmatprep.subr.mxu0 0.0
    %8811 = vmatpush1.msra.mxu0 0.0
    %8812 = vmatprep.subr.mxu0 0.0
    %8813 = vmatpush1.msra.mxu0 0.0
    %8814 = vmatprep.subr.mxu0 0.0
    %8815 = vmatpush1.msra.mxu0 0.0
    %8816 = vmatprep.subr.mxu0 0.0
    %8817 = vmatpush1.msra.mxu0 0.0
    %8818 = vmatprep.subr.mxu0 0.0
    %8819 = vmatpush1.msra.mxu0 0.0
    %8820 = vmatprep.subr.mxu0 0.0
    %8821 = vmatpush1.msra.mxu0 0.0
    %8822 = vmatprep.subr.mxu0 0.0
    %8823 = vmatpush1.msra.mxu0 0.0
    %8824 = vmatprep.subr.mxu0 0.0
    %8825 = vmatpush1.msra.mxu0 0.0
    %8826 = vmatprep.subr.mxu0 0.0
    %8827 = vmatpush1.msra.mxu0 0.0
    %8828 = vmatprep.subr.mxu0 0.0
    %8829 = vmatpush1.msra.mxu0 0.0
    %8830 = vmatprep.subr.mxu0 0.0
    %8831 = vmatpush1.msra.mxu0 %v5423
    %8832 = vmatprep.subr.mxu0 0.0
    %8833 = vmatpush2.msra.mxu0 0.0
    %8834 = vmatprep.subr.mxu0 0.0
    %8835 = vmatpush2.msra.mxu0 0.0
    %8836 = vmatprep.subr.mxu0 0.0
    %8837 = vmatpush2.msra.mxu0 0.0
    %8838 = vmatprep.subr.mxu0 0.0
    %8839 = vmatpush2.msra.mxu0 0.0
    %8840 = vmatprep.subr.mxu0 0.0
    %8841 = vmatpush2.msra.mxu0 0.0
    %8842 = vmatprep.subr.mxu0 0.0
    %8843 = vmatpush2.msra.mxu0 0.0
    %8844 = vmatprep.subr.mxu0 0.0
    %8845 = vmatpush2.msra.mxu0 0.0
    %8846 = vmatprep.subr.mxu0 0.0
    %8847 = vmatpush2.msra.mxu0 0.0
    %8848 = vmatprep.subr.mxu0 0.0
    %8849 = vmatpush2.msra.mxu0 0.0
    %8850 = vmatprep.subr.mxu0 0.0
    %8851 = vmatpush2.msra.mxu0 0.0
    %8852 = vmatprep.subr.mxu0 0.0
    %8853 = vmatpush2.msra.mxu0 0.0
    %8854 = vmatprep.subr.mxu0 0.0
    %8855 = vmatpush2.msra.mxu0 0.0
    %8856 = vmatprep.subr.mxu0 0.0
    %8857 = vmatpush2.msra.mxu0 0.0
    %8858 = vmatprep.subr.mxu0 0.0
    %8859 = vmatpush2.msra.mxu0 0.0
    %8860 = vmatprep.subr.mxu0 0.0
    %8861 = vmatpush2.msra.mxu0 0.0
    %8862 = vmatprep.subr.mxu0 0.0
    %8863 = vmatpush2.msra.mxu0 0.0
    %8864 = vmatprep.mubr.f32.mxu0 0.0
    %8865 = vmatmul.mubr.f32.gmra.mxu0 %v7658
    %v8866 = vpop.f32.mrf.mxu0
    %v8867 = vadd.f32 0.0, %v8866
    %v8868 = vpop.f32.mrf.mxu0
    %8869 = vdwg.mxu0
    %8870 = vmatprep.subr.mxu0 0.0
    %8871 = vmatpush1.msra.mxu0 0.0
    %8872 = vmatprep.subr.mxu0 0.0
    %8873 = vmatpush1.msra.mxu0 0.0
    %8874 = vmatprep.subr.mxu0 0.0
    %8875 = vmatpush1.msra.mxu0 0.0
    %8876 = vmatprep.subr.mxu0 0.0
    %8877 = vmatpush1.msra.mxu0 0.0
    %8878 = vmatprep.subr.mxu0 0.0
    %8879 = vmatpush1.msra.mxu0 0.0
    %8880 = vmatprep.subr.mxu0 0.0
    %8881 = vmatpush1.msra.mxu0 0.0
    %8882 = vmatprep.subr.mxu0 0.0
    %8883 = vmatpush1.msra.mxu0 0.0
    %8884 = vmatprep.subr.mxu0 0.0
    %8885 = vmatpush1.msra.mxu0 0.0
    %8886 = vmatprep.subr.mxu0 0.0
    %8887 = vmatpush1.msra.mxu0 0.0
    %8888 = vmatprep.subr.mxu0 0.0
    %8889 = vmatpush1.msra.mxu0 0.0
    %8890 = vmatprep.subr.mxu0 0.0
    %8891 = vmatpush1.msra.mxu0 0.0
    %8892 = vmatprep.subr.mxu0 0.0
    %8893 = vmatpush1.msra.mxu0 0.0
    %8894 = vmatprep.subr.mxu0 0.0
    %8895 = vmatpush1.msra.mxu0 0.0
    %8896 = vmatprep.subr.mxu0 0.0
    %8897 = vmatpush1.msra.mxu0 0.0
    %8898 = vmatprep.subr.mxu0 0.0
    %8899 = vmatpush1.msra.mxu0 0.0
    %8900 = vmatprep.subr.mxu0 0.0
    %8901 = vmatpush1.msra.mxu0 %v5528
    %8902 = vmatprep.subr.mxu0 0.0
    %8903 = vmatpush2.msra.mxu0 0.0
    %8904 = vmatprep.subr.mxu0 0.0
    %8905 = vmatpush2.msra.mxu0 0.0
    %8906 = vmatprep.subr.mxu0 0.0
    %8907 = vmatpush2.msra.mxu0 0.0
    %8908 = vmatprep.subr.mxu0 0.0
    %8909 = vmatpush2.msra.mxu0 0.0
    %8910 = vmatprep.subr.mxu0 0.0
    %8911 = vmatpush2.msra.mxu0 0.0
    %8912 = vmatprep.subr.mxu0 0.0
    %8913 = vmatpush2.msra.mxu0 0.0
    %8914 = vmatprep.subr.mxu0 0.0
    %8915 = vmatpush2.msra.mxu0 0.0
    %8916 = vmatprep.subr.mxu0 0.0
    %8917 = vmatpush2.msra.mxu0 0.0
    %8918 = vmatprep.subr.mxu0 0.0
    %8919 = vmatpush2.msra.mxu0 0.0
    %8920 = vmatprep.subr.mxu0 0.0
    %8921 = vmatpush2.msra.mxu0 0.0
    %8922 = vmatprep.subr.mxu0 0.0
    %8923 = vmatpush2.msra.mxu0 0.0
    %8924 = vmatprep.subr.mxu0 0.0
    %8925 = vmatpush2.msra.mxu0 0.0
    %8926 = vmatprep.subr.mxu0 0.0
    %8927 = vmatpush2.msra.mxu0 0.0
    %8928 = vmatprep.subr.mxu0 0.0
    %8929 = vmatpush2.msra.mxu0 0.0
    %8930 = vmatprep.subr.mxu0 0.0
    %8931 = vmatpush2.msra.mxu0 0.0
    %8932 = vmatprep.subr.mxu0 0.0
    %8933 = vmatpush2.msra.mxu0 0.0
    %8934 = vmatprep.mubr.f32.mxu0 0.0
    %8935 = vmatmul.mubr.f32.gmra.mxu0 %v7731
    %v8936 = vpop.f32.mrf.mxu0
    %v8937 = vadd.f32 0.0, %v8936
    %v8938 = vpop.f32.mrf.mxu0
    %8939 = vdwg.mxu0
    %8940 = vmatprep.subr.mxu0 0.0
    %8941 = vmatpush1.msra.mxu0 0.0
    %8942 = vmatprep.subr.mxu0 0.0
    %8943 = vmatpush1.msra.mxu0 0.0
    %8944 = vmatprep.subr.mxu0 0.0
    %8945 = vmatpush1.msra.mxu0 0.0
    %8946 = vmatprep.subr.mxu0 0.0
    %8947 = vmatpush1.msra.mxu0 0.0
    %8948 = vmatprep.subr.mxu0 0.0
    %8949 = vmatpush1.msra.mxu0 0.0
    %8950 = vmatprep.subr.mxu0 0.0
    %8951 = vmatpush1.msra.mxu0 0.0
    %8952 = vmatprep.subr.mxu0 0.0
    %8953 = vmatpush1.msra.mxu0 0.0
    %8954 = vmatprep.subr.mxu0 0.0
    %8955 = vmatpush1.msra.mxu0 0.0
    %8956 = vmatprep.subr.mxu0 0.0
    %8957 = vmatpush1.msra.mxu0 0.0
    %8958 = vmatprep.subr.mxu0 0.0
    %8959 = vmatpush1.msra.mxu0 0.0
    %8960 = vmatprep.subr.mxu0 0.0
    %8961 = vmatpush1.msra.mxu0 0.0
    %8962 = vmatprep.subr.mxu0 0.0
    %8963 = vmatpush1.msra.mxu0 0.0
    %8964 = vmatprep.subr.mxu0 0.0
    %8965 = vmatpush1.msra.mxu0 0.0
    %8966 = vmatprep.subr.mxu0 0.0
    %8967 = vmatpush1.msra.mxu0 0.0
    %8968 = vmatprep.subr.mxu0 0.0
    %8969 = vmatpush1.msra.mxu0 0.0
    %8970 = vmatprep.subr.mxu0 0.0
    %8971 = vmatpush1.msra.mxu0 %v5633
    %8972 = vmatprep.subr.mxu0 0.0
    %8973 = vmatpush2.msra.mxu0 0.0
    %8974 = vmatprep.subr.mxu0 0.0
    %8975 = vmatpush2.msra.mxu0 0.0
    %8976 = vmatprep.subr.mxu0 0.0
    %8977 = vmatpush2.msra.mxu0 0.0
    %8978 = vmatprep.subr.mxu0 0.0
    %8979 = vmatpush2.msra.mxu0 0.0
    %8980 = vmatprep.subr.mxu0 0.0
    %8981 = vmatpush2.msra.mxu0 0.0
    %8982 = vmatprep.subr.mxu0 0.0
    %8983 = vmatpush2.msra.mxu0 0.0
    %8984 = vmatprep.subr.mxu0 0.0
    %8985 = vmatpush2.msra.mxu0 0.0
    %8986 = vmatprep.subr.mxu0 0.0
    %8987 = vmatpush2.msra.mxu0 0.0
    %8988 = vmatprep.subr.mxu0 0.0
    %8989 = vmatpush2.msra.mxu0 0.0
    %8990 = vmatprep.subr.mxu0 0.0
    %8991 = vmatpush2.msra.mxu0 0.0
    %8992 = vmatprep.subr.mxu0 0.0
    %8993 = vmatpush2.msra.mxu0 0.0
    %8994 = vmatprep.subr.mxu0 0.0
    %8995 = vmatpush2.msra.mxu0 0.0
    %8996 = vmatprep.subr.mxu0 0.0
    %8997 = vmatpush2.msra.mxu0 0.0
    %8998 = vmatprep.subr.mxu0 0.0
    %8999 = vmatpush2.msra.mxu0 0.0
    %9000 = vmatprep.subr.mxu0 0.0
    %9001 = vmatpush2.msra.mxu0 0.0
    %9002 = vmatprep.subr.mxu0 0.0
    %9003 = vmatpush2.msra.mxu0 0.0
    %9004 = vmatprep.mubr.f32.mxu0 0.0
    %9005 = vmatmul.mubr.f32.gmra.mxu0 %v7804
    %v9006 = vpop.f32.mrf.mxu0
    %v9007 = vadd.f32 0.0, %v9006
    %v9008 = vpop.f32.mrf.mxu0
    %9009 = vdwg.mxu0
    %9010 = vmatprep.subr.mxu0 0.0
    %9011 = vmatpush1.msra.mxu0 0.0
    %9012 = vmatprep.subr.mxu0 0.0
    %9013 = vmatpush1.msra.mxu0 0.0
    %9014 = vmatprep.subr.mxu0 0.0
    %9015 = vmatpush1.msra.mxu0 0.0
    %9016 = vmatprep.subr.mxu0 0.0
    %9017 = vmatpush1.msra.mxu0 0.0
    %9018 = vmatprep.subr.mxu0 0.0
    %9019 = vmatpush1.msra.mxu0 0.0
    %9020 = vmatprep.subr.mxu0 0.0
    %9021 = vmatpush1.msra.mxu0 0.0
    %9022 = vmatprep.subr.mxu0 0.0
    %9023 = vmatpush1.msra.mxu0 0.0
    %9024 = vmatprep.subr.mxu0 0.0
    %9025 = vmatpush1.msra.mxu0 0.0
    %9026 = vmatprep.subr.mxu0 0.0
    %9027 = vmatpush1.msra.mxu0 0.0
    %9028 = vmatprep.subr.mxu0 0.0
    %9029 = vmatpush1.msra.mxu0 0.0
    %9030 = vmatprep.subr.mxu0 0.0
    %9031 = vmatpush1.msra.mxu0 0.0
    %9032 = vmatprep.subr.mxu0 0.0
    %9033 = vmatpush1.msra.mxu0 0.0
    %9034 = vmatprep.subr.mxu0 0.0
    %9035 = vmatpush1.msra.mxu0 0.0
    %9036 = vmatprep.subr.mxu0 0.0
    %9037 = vmatpush1.msra.mxu0 0.0
    %9038 = vmatprep.subr.mxu0 0.0
    %9039 = vmatpush1.msra.mxu0 0.0
    %9040 = vmatprep.subr.mxu0 0.0
    %9041 = vmatpush1.msra.mxu0 %v5738
    %9042 = vmatprep.subr.mxu0 0.0
    %9043 = vmatpush2.msra.mxu0 0.0
    %9044 = vmatprep.subr.mxu0 0.0
    %9045 = vmatpush2.msra.mxu0 0.0
    %9046 = vmatprep.subr.mxu0 0.0
    %9047 = vmatpush2.msra.mxu0 0.0
    %9048 = vmatprep.subr.mxu0 0.0
    %9049 = vmatpush2.msra.mxu0 0.0
    %9050 = vmatprep.subr.mxu0 0.0
    %9051 = vmatpush2.msra.mxu0 0.0
    %9052 = vmatprep.subr.mxu0 0.0
    %9053 = vmatpush2.msra.mxu0 0.0
    %9054 = vmatprep.subr.mxu0 0.0
    %9055 = vmatpush2.msra.mxu0 0.0
    %9056 = vmatprep.subr.mxu0 0.0
    %9057 = vmatpush2.msra.mxu0 0.0
    %9058 = vmatprep.subr.mxu0 0.0
    %9059 = vmatpush2.msra.mxu0 0.0
    %9060 = vmatprep.subr.mxu0 0.0
    %9061 = vmatpush2.msra.mxu0 0.0
    %9062 = vmatprep.subr.mxu0 0.0
    %9063 = vmatpush2.msra.mxu0 0.0
    %9064 = vmatprep.subr.mxu0 0.0
    %9065 = vmatpush2.msra.mxu0 0.0
    %9066 = vmatprep.subr.mxu0 0.0
    %9067 = vmatpush2.msra.mxu0 0.0
    %9068 = vmatprep.subr.mxu0 0.0
    %9069 = vmatpush2.msra.mxu0 0.0
    %9070 = vmatprep.subr.mxu0 0.0
    %9071 = vmatpush2.msra.mxu0 0.0
    %9072 = vmatprep.subr.mxu0 0.0
    %9073 = vmatpush2.msra.mxu0 0.0
    %9074 = vmatprep.mubr.f32.mxu0 0.0
    %9075 = vmatmul.mubr.f32.gmra.mxu0 %v7877
    %v9076 = vpop.f32.mrf.mxu0
    %v9077 = vadd.f32 0.0, %v9076
    %v9078 = vpop.f32.mrf.mxu0
    %9079 = vdwg.mxu0
    %9080 = vmatprep.subr.mxu0 0.0
    %9081 = vmatpush1.msra.mxu0 0.0
    %9082 = vmatprep.subr.mxu0 0.0
    %9083 = vmatpush1.msra.mxu0 0.0
    %9084 = vmatprep.subr.mxu0 0.0
    %9085 = vmatpush1.msra.mxu0 0.0
    %9086 = vmatprep.subr.mxu0 0.0
    %9087 = vmatpush1.msra.mxu0 0.0
    %9088 = vmatprep.subr.mxu0 0.0
    %9089 = vmatpush1.msra.mxu0 0.0
    %9090 = vmatprep.subr.mxu0 0.0
    %9091 = vmatpush1.msra.mxu0 0.0
    %9092 = vmatprep.subr.mxu0 0.0
    %9093 = vmatpush1.msra.mxu0 0.0
    %9094 = vmatprep.subr.mxu0 0.0
    %9095 = vmatpush1.msra.mxu0 0.0
    %9096 = vmatprep.subr.mxu0 0.0
    %9097 = vmatpush1.msra.mxu0 0.0
    %9098 = vmatprep.subr.mxu0 0.0
    %9099 = vmatpush1.msra.mxu0 0.0
    %9100 = vmatprep.subr.mxu0 0.0
    %9101 = vmatpush1.msra.mxu0 0.0
    %9102 = vmatprep.subr.mxu0 0.0
    %9103 = vmatpush1.msra.mxu0 0.0
    %9104 = vmatprep.subr.mxu0 0.0
    %9105 = vmatpush1.msra.mxu0 0.0
    %9106 = vmatprep.subr.mxu0 0.0
    %9107 = vmatpush1.msra.mxu0 0.0
    %9108 = vmatprep.subr.mxu0 0.0
    %9109 = vmatpush1.msra.mxu0 0.0
    %9110 = vmatprep.subr.mxu0 0.0
    %9111 = vmatpush1.msra.mxu0 %v5843
    %9112 = vmatprep.subr.mxu0 0.0
    %9113 = vmatpush2.msra.mxu0 0.0
    %9114 = vmatprep.subr.mxu0 0.0
    %9115 = vmatpush2.msra.mxu0 0.0
    %9116 = vmatprep.subr.mxu0 0.0
    %9117 = vmatpush2.msra.mxu0 0.0
    %9118 = vmatprep.subr.mxu0 0.0
    %9119 = vmatpush2.msra.mxu0 0.0
    %9120 = vmatprep.subr.mxu0 0.0
    %9121 = vmatpush2.msra.mxu0 0.0
    %9122 = vmatprep.subr.mxu0 0.0
    %9123 = vmatpush2.msra.mxu0 0.0
    %9124 = vmatprep.subr.mxu0 0.0
    %9125 = vmatpush2.msra.mxu0 0.0
    %9126 = vmatprep.subr.mxu0 0.0
    %9127 = vmatpush2.msra.mxu0 0.0
    %9128 = vmatprep.subr.mxu0 0.0
    %9129 = vmatpush2.msra.mxu0 0.0
    %9130 = vmatprep.subr.mxu0 0.0
    %9131 = vmatpush2.msra.mxu0 0.0
    %9132 = vmatprep.subr.mxu0 0.0
    %9133 = vmatpush2.msra.mxu0 0.0
    %9134 = vmatprep.subr.mxu0 0.0
    %9135 = vmatpush2.msra.mxu0 0.0
    %9136 = vmatprep.subr.mxu0 0.0
    %9137 = vmatpush2.msra.mxu0 0.0
    %9138 = vmatprep.subr.mxu0 0.0
    %9139 = vmatpush2.msra.mxu0 0.0
    %9140 = vmatprep.subr.mxu0 0.0
    %9141 = vmatpush2.msra.mxu0 0.0
    %9142 = vmatprep.subr.mxu0 0.0
    %9143 = vmatpush2.msra.mxu0 0.0
    %9144 = vmatprep.mubr.f32.mxu0 0.0
    %9145 = vmatmul.mubr.f32.gmra.mxu0 %v7950
    %v9146 = vpop.f32.mrf.mxu0
    %v9147 = vadd.f32 0.0, %v9146
    %v9148 = vpop.f32.mrf.mxu0
    %9149 = vdwg.mxu0
    %v9151 = vsel %vm565, %v8022, 0
    %9153 = vmatprep.subr.mxu0 0.0
    %9154 = vmatpush1.msra.mxu0 0.0
    %9155 = vmatprep.subr.mxu0 0.0
    %9156 = vmatpush1.msra.mxu0 0.0
    %9157 = vmatprep.subr.mxu0 0.0
    %9158 = vmatpush1.msra.mxu0 0.0
    %9159 = vmatprep.subr.mxu0 0.0
    %9160 = vmatpush1.msra.mxu0 0.0
    %9161 = vmatprep.subr.mxu0 0.0
    %9162 = vmatpush1.msra.mxu0 0.0
    %9163 = vmatprep.subr.mxu0 0.0
    %9164 = vmatpush1.msra.mxu0 0.0
    %9165 = vmatprep.subr.mxu0 0.0
    %9166 = vmatpush1.msra.mxu0 0.0
    %9167 = vmatprep.subr.mxu0 0.0
    %9168 = vmatpush1.msra.mxu0 0.0
    %9169 = vmatprep.subr.mxu0 0.0
    %9170 = vmatpush1.msra.mxu0 0.0
    %9171 = vmatprep.subr.mxu0 0.0
    %9172 = vmatpush1.msra.mxu0 0.0
    %9173 = vmatprep.subr.mxu0 0.0
    %9174 = vmatpush1.msra.mxu0 0.0
    %9175 = vmatprep.subr.mxu0 0.0
    %9176 = vmatpush1.msra.mxu0 0.0
    %9177 = vmatprep.subr.mxu0 0.0
    %9178 = vmatpush1.msra.mxu0 0.0
    %9179 = vmatprep.subr.mxu0 0.0
    %9180 = vmatpush1.msra.mxu0 0.0
    %9181 = vmatprep.subr.mxu0 0.0
    %9182 = vmatpush1.msra.mxu0 0.0
    %9183 = vmatprep.subr.mxu0 0.0
    %9184 = vmatpush1.msra.mxu0 %v6806
    %9185 = vmatprep.subr.mxu0 0.0
    %9186 = vmatpush2.msra.mxu0 0.0
    %9187 = vmatprep.subr.mxu0 0.0
    %9188 = vmatpush2.msra.mxu0 0.0
    %9189 = vmatprep.subr.mxu0 0.0
    %9190 = vmatpush2.msra.mxu0 0.0
    %9191 = vmatprep.subr.mxu0 0.0
    %9192 = vmatpush2.msra.mxu0 0.0
    %9193 = vmatprep.subr.mxu0 0.0
    %9194 = vmatpush2.msra.mxu0 0.0
    %9195 = vmatprep.subr.mxu0 0.0
    %9196 = vmatpush2.msra.mxu0 0.0
    %9197 = vmatprep.subr.mxu0 0.0
    %9198 = vmatpush2.msra.mxu0 0.0
    %9199 = vmatprep.subr.mxu0 0.0
    %9200 = vmatpush2.msra.mxu0 0.0
    %9201 = vmatprep.subr.mxu0 0.0
    %9202 = vmatpush2.msra.mxu0 0.0
    %9203 = vmatprep.subr.mxu0 0.0
    %9204 = vmatpush2.msra.mxu0 0.0
    %9205 = vmatprep.subr.mxu0 0.0
    %9206 = vmatpush2.msra.mxu0 0.0
    %9207 = vmatprep.subr.mxu0 0.0
    %9208 = vmatpush2.msra.mxu0 0.0
    %9209 = vmatprep.subr.mxu0 0.0
    %9210 = vmatpush2.msra.mxu0 0.0
    %9211 = vmatprep.subr.mxu0 0.0
    %9212 = vmatpush2.msra.mxu0 0.0
    %9213 = vmatprep.subr.mxu0 0.0
    %9214 = vmatpush2.msra.mxu0 0.0
    %9215 = vmatprep.subr.mxu0 0.0
    %9216 = vmatpush2.msra.mxu0 0.0
    %9217 = vmatprep.mubr.f32.mxu0 0.0
    %9218 = vmatmul.mubr.f32.gmra.mxu0 %v9151
    %v9219 = vpop.f32.mrf.mxu0
    %v9220 = vadd.f32 %v8657, %v9219
    %v9221 = vpop.f32.mrf.mxu0
    %9222 = vdwg.mxu0
    %v9224 = vsel %vm565, %v8023, 0
    %9226 = vmatprep.subr.mxu0 0.0
    %9227 = vmatpush1.msra.mxu0 0.0
    %9228 = vmatprep.subr.mxu0 0.0
    %9229 = vmatpush1.msra.mxu0 0.0
    %9230 = vmatprep.subr.mxu0 0.0
    %9231 = vmatpush1.msra.mxu0 0.0
    %9232 = vmatprep.subr.mxu0 0.0
    %9233 = vmatpush1.msra.mxu0 0.0
    %9234 = vmatprep.subr.mxu0 0.0
    %9235 = vmatpush1.msra.mxu0 0.0
    %9236 = vmatprep.subr.mxu0 0.0
    %9237 = vmatpush1.msra.mxu0 0.0
    %9238 = vmatprep.subr.mxu0 0.0
    %9239 = vmatpush1.msra.mxu0 0.0
    %9240 = vmatprep.subr.mxu0 0.0
    %9241 = vmatpush1.msra.mxu0 0.0
    %9242 = vmatprep.subr.mxu0 0.0
    %9243 = vmatpush1.msra.mxu0 0.0
    %9244 = vmatprep.subr.mxu0 0.0
    %9245 = vmatpush1.msra.mxu0 0.0
    %9246 = vmatprep.subr.mxu0 0.0
    %9247 = vmatpush1.msra.mxu0 0.0
    %9248 = vmatprep.subr.mxu0 0.0
    %9249 = vmatpush1.msra.mxu0 0.0
    %9250 = vmatprep.subr.mxu0 0.0
    %9251 = vmatpush1.msra.mxu0 0.0
    %9252 = vmatprep.subr.mxu0 0.0
    %9253 = vmatpush1.msra.mxu0 0.0
    %9254 = vmatprep.subr.mxu0 0.0
    %9255 = vmatpush1.msra.mxu0 0.0
    %9256 = vmatprep.subr.mxu0 0.0
    %9257 = vmatpush1.msra.mxu0 %v6807
    %9258 = vmatprep.subr.mxu0 0.0
    %9259 = vmatpush2.msra.mxu0 0.0
    %9260 = vmatprep.subr.mxu0 0.0
    %9261 = vmatpush2.msra.mxu0 0.0
    %9262 = vmatprep.subr.mxu0 0.0
    %9263 = vmatpush2.msra.mxu0 0.0
    %9264 = vmatprep.subr.mxu0 0.0
    %9265 = vmatpush2.msra.mxu0 0.0
    %9266 = vmatprep.subr.mxu0 0.0
    %9267 = vmatpush2.msra.mxu0 0.0
    %9268 = vmatprep.subr.mxu0 0.0
    %9269 = vmatpush2.msra.mxu0 0.0
    %9270 = vmatprep.subr.mxu0 0.0
    %9271 = vmatpush2.msra.mxu0 0.0
    %9272 = vmatprep.subr.mxu0 0.0
    %9273 = vmatpush2.msra.mxu0 0.0
    %9274 = vmatprep.subr.mxu0 0.0
    %9275 = vmatpush2.msra.mxu0 0.0
    %9276 = vmatprep.subr.mxu0 0.0
    %9277 = vmatpush2.msra.mxu0 0.0
    %9278 = vmatprep.subr.mxu0 0.0
    %9279 = vmatpush2.msra.mxu0 0.0
    %9280 = vmatprep.subr.mxu0 0.0
    %9281 = vmatpush2.msra.mxu0 0.0
    %9282 = vmatprep.subr.mxu0 0.0
    %9283 = vmatpush2.msra.mxu0 0.0
    %9284 = vmatprep.subr.mxu0 0.0
    %9285 = vmatpush2.msra.mxu0 0.0
    %9286 = vmatprep.subr.mxu0 0.0
    %9287 = vmatpush2.msra.mxu0 0.0
    %9288 = vmatprep.subr.mxu0 0.0
    %9289 = vmatpush2.msra.mxu0 0.0
    %9290 = vmatprep.mubr.f32.mxu0 0.0
    %9291 = vmatmul.mubr.f32.gmra.mxu0 %v9224
    %v9292 = vpop.f32.mrf.mxu0
    %v9293 = vadd.f32 %v8727, %v9292
    %v9294 = vpop.f32.mrf.mxu0
    %9295 = vdwg.mxu0
    %v9297 = vsel %vm565, %v8024, 0
    %9299 = vmatprep.subr.mxu0 0.0
    %9300 = vmatpush1.msra.mxu0 0.0
    %9301 = vmatprep.subr.mxu0 0.0
    %9302 = vmatpush1.msra.mxu0 0.0
    %9303 = vmatprep.subr.mxu0 0.0
    %9304 = vmatpush1.msra.mxu0 0.0
    %9305 = vmatprep.subr.mxu0 0.0
    %9306 = vmatpush1.msra.mxu0 0.0
    %9307 = vmatprep.subr.mxu0 0.0
    %9308 = vmatpush1.msra.mxu0 0.0
    %9309 = vmatprep.subr.mxu0 0.0
    %9310 = vmatpush1.msra.mxu0 0.0
    %9311 = vmatprep.subr.mxu0 0.0
    %9312 = vmatpush1.msra.mxu0 0.0
    %9313 = vmatprep.subr.mxu0 0.0
    %9314 = vmatpush1.msra.mxu0 0.0
    %9315 = vmatprep.subr.mxu0 0.0
    %9316 = vmatpush1.msra.mxu0 0.0
    %9317 = vmatprep.subr.mxu0 0.0
    %9318 = vmatpush1.msra.mxu0 0.0
    %9319 = vmatprep.subr.mxu0 0.0
    %9320 = vmatpush1.msra.mxu0 0.0
    %9321 = vmatprep.subr.mxu0 0.0
    %9322 = vmatpush1.msra.mxu0 0.0
    %9323 = vmatprep.subr.mxu0 0.0
    %9324 = vmatpush1.msra.mxu0 0.0
    %9325 = vmatprep.subr.mxu0 0.0
    %9326 = vmatpush1.msra.mxu0 0.0
    %9327 = vmatprep.subr.mxu0 0.0
    %9328 = vmatpush1.msra.mxu0 0.0
    %9329 = vmatprep.subr.mxu0 0.0
    %9330 = vmatpush1.msra.mxu0 %v6808
    %9331 = vmatprep.subr.mxu0 0.0
    %9332 = vmatpush2.msra.mxu0 0.0
    %9333 = vmatprep.subr.mxu0 0.0
    %9334 = vmatpush2.msra.mxu0 0.0
    %9335 = vmatprep.subr.mxu0 0.0
    %9336 = vmatpush2.msra.mxu0 0.0
    %9337 = vmatprep.subr.mxu0 0.0
    %9338 = vmatpush2.msra.mxu0 0.0
    %9339 = vmatprep.subr.mxu0 0.0
    %9340 = vmatpush2.msra.mxu0 0.0
    %9341 = vmatprep.subr.mxu0 0.0
    %9342 = vmatpush2.msra.mxu0 0.0
    %9343 = vmatprep.subr.mxu0 0.0
    %9344 = vmatpush2.msra.mxu0 0.0
    %9345 = vmatprep.subr.mxu0 0.0
    %9346 = vmatpush2.msra.mxu0 0.0
    %9347 = vmatprep.subr.mxu0 0.0
    %9348 = vmatpush2.msra.mxu0 0.0
    %9349 = vmatprep.subr.mxu0 0.0
    %9350 = vmatpush2.msra.mxu0 0.0
    %9351 = vmatprep.subr.mxu0 0.0
    %9352 = vmatpush2.msra.mxu0 0.0
    %9353 = vmatprep.subr.mxu0 0.0
    %9354 = vmatpush2.msra.mxu0 0.0
    %9355 = vmatprep.subr.mxu0 0.0
    %9356 = vmatpush2.msra.mxu0 0.0
    %9357 = vmatprep.subr.mxu0 0.0
    %9358 = vmatpush2.msra.mxu0 0.0
    %9359 = vmatprep.subr.mxu0 0.0
    %9360 = vmatpush2.msra.mxu0 0.0
    %9361 = vmatprep.subr.mxu0 0.0
    %9362 = vmatpush2.msra.mxu0 0.0
    %9363 = vmatprep.mubr.f32.mxu0 0.0
    %9364 = vmatmul.mubr.f32.gmra.mxu0 %v9297
    %v9365 = vpop.f32.mrf.mxu0
    %v9366 = vadd.f32 %v8797, %v9365
    %v9367 = vpop.f32.mrf.mxu0
    %9368 = vdwg.mxu0
    %v9370 = vsel %vm565, %v8025, 0
    %9372 = vmatprep.subr.mxu0 0.0
    %9373 = vmatpush1.msra.mxu0 0.0
    %9374 = vmatprep.subr.mxu0 0.0
    %9375 = vmatpush1.msra.mxu0 0.0
    %9376 = vmatprep.subr.mxu0 0.0
    %9377 = vmatpush1.msra.mxu0 0.0
    %9378 = vmatprep.subr.mxu0 0.0
    %9379 = vmatpush1.msra.mxu0 0.0
    %9380 = vmatprep.subr.mxu0 0.0
    %9381 = vmatpush1.msra.mxu0 0.0
    %9382 = vmatprep.subr.mxu0 0.0
    %9383 = vmatpush1.msra.mxu0 0.0
    %9384 = vmatprep.subr.mxu0 0.0
    %9385 = vmatpush1.msra.mxu0 0.0
    %9386 = vmatprep.subr.mxu0 0.0
    %9387 = vmatpush1.msra.mxu0 0.0
    %9388 = vmatprep.subr.mxu0 0.0
    %9389 = vmatpush1.msra.mxu0 0.0
    %9390 = vmatprep.subr.mxu0 0.0
    %9391 = vmatpush1.msra.mxu0 0.0
    %9392 = vmatprep.subr.mxu0 0.0
    %9393 = vmatpush1.msra.mxu0 0.0
    %9394 = vmatprep.subr.mxu0 0.0
    %9395 = vmatpush1.msra.mxu0 0.0
    %9396 = vmatprep.subr.mxu0 0.0
    %9397 = vmatpush1.msra.mxu0 0.0
    %9398 = vmatprep.subr.mxu0 0.0
    %9399 = vmatpush1.msra.mxu0 0.0
    %9400 = vmatprep.subr.mxu0 0.0
    %9401 = vmatpush1.msra.mxu0 0.0
    %9402 = vmatprep.subr.mxu0 0.0
    %9403 = vmatpush1.msra.mxu0 %v6809
    %9404 = vmatprep.subr.mxu0 0.0
    %9405 = vmatpush2.msra.mxu0 0.0
    %9406 = vmatprep.subr.mxu0 0.0
    %9407 = vmatpush2.msra.mxu0 0.0
    %9408 = vmatprep.subr.mxu0 0.0
    %9409 = vmatpush2.msra.mxu0 0.0
    %9410 = vmatprep.subr.mxu0 0.0
    %9411 = vmatpush2.msra.mxu0 0.0
    %9412 = vmatprep.subr.mxu0 0.0
    %9413 = vmatpush2.msra.mxu0 0.0
    %9414 = vmatprep.subr.mxu0 0.0
    %9415 = vmatpush2.msra.mxu0 0.0
    %9416 = vmatprep.subr.mxu0 0.0
    %9417 = vmatpush2.msra.mxu0 0.0
    %9418 = vmatprep.subr.mxu0 0.0
    %9419 = vmatpush2.msra.mxu0 0.0
    %9420 = vmatprep.subr.mxu0 0.0
    %9421 = vmatpush2.msra.mxu0 0.0
    %9422 = vmatprep.subr.mxu0 0.0
    %9423 = vmatpush2.msra.mxu0 0.0
    %9424 = vmatprep.subr.mxu0 0.0
    %9425 = vmatpush2.msra.mxu0 0.0
    %9426 = vmatprep.subr.mxu0 0.0
    %9427 = vmatpush2.msra.mxu0 0.0
    %9428 = vmatprep.subr.mxu0 0.0
    %9429 = vmatpush2.msra.mxu0 0.0
    %9430 = vmatprep.subr.mxu0 0.0
    %9431 = vmatpush2.msra.mxu0 0.0
    %9432 = vmatprep.subr.mxu0 0.0
    %9433 = vmatpush2.msra.mxu0 0.0
    %9434 = vmatprep.subr.mxu0 0.0
    %9435 = vmatpush2.msra.mxu0 0.0
    %9436 = vmatprep.mubr.f32.mxu0 0.0
    %9437 = vmatmul.mubr.f32.gmra.mxu0 %v9370
    %v9438 = vpop.f32.mrf.mxu0
    %v9439 = vadd.f32 %v8867, %v9438
    %v9440 = vpop.f32.mrf.mxu0
    %9441 = vdwg.mxu0
    %v9443 = vsel %vm565, %v8026, 0
    %9445 = vmatprep.subr.mxu0 0.0
    %9446 = vmatpush1.msra.mxu0 0.0
    %9447 = vmatprep.subr.mxu0 0.0
    %9448 = vmatpush1.msra.mxu0 0.0
    %9449 = vmatprep.subr.mxu0 0.0
    %9450 = vmatpush1.msra.mxu0 0.0
    %9451 = vmatprep.subr.mxu0 0.0
    %9452 = vmatpush1.msra.mxu0 0.0
    %9453 = vmatprep.subr.mxu0 0.0
    %9454 = vmatpush1.msra.mxu0 0.0
    %9455 = vmatprep.subr.mxu0 0.0
    %9456 = vmatpush1.msra.mxu0 0.0
    %9457 = vmatprep.subr.mxu0 0.0
    %9458 = vmatpush1.msra.mxu0 0.0
    %9459 = vmatprep.subr.mxu0 0.0
    %9460 = vmatpush1.msra.mxu0 0.0
    %9461 = vmatprep.subr.mxu0 0.0
    %9462 = vmatpush1.msra.mxu0 0.0
    %9463 = vmatprep.subr.mxu0 0.0
    %9464 = vmatpush1.msra.mxu0 0.0
    %9465 = vmatprep.subr.mxu0 0.0
    %9466 = vmatpush1.msra.mxu0 0.0
    %9467 = vmatprep.subr.mxu0 0.0
    %9468 = vmatpush1.msra.mxu0 0.0
    %9469 = vmatprep.subr.mxu0 0.0
    %9470 = vmatpush1.msra.mxu0 0.0
    %9471 = vmatprep.subr.mxu0 0.0
    %9472 = vmatpush1.msra.mxu0 0.0
    %9473 = vmatprep.subr.mxu0 0.0
    %9474 = vmatpush1.msra.mxu0 0.0
    %9475 = vmatprep.subr.mxu0 0.0
    %9476 = vmatpush1.msra.mxu0 %v6810
    %9477 = vmatprep.subr.mxu0 0.0
    %9478 = vmatpush2.msra.mxu0 0.0
    %9479 = vmatprep.subr.mxu0 0.0
    %9480 = vmatpush2.msra.mxu0 0.0
    %9481 = vmatprep.subr.mxu0 0.0
    %9482 = vmatpush2.msra.mxu0 0.0
    %9483 = vmatprep.subr.mxu0 0.0
    %9484 = vmatpush2.msra.mxu0 0.0
    %9485 = vmatprep.subr.mxu0 0.0
    %9486 = vmatpush2.msra.mxu0 0.0
    %9487 = vmatprep.subr.mxu0 0.0
    %9488 = vmatpush2.msra.mxu0 0.0
    %9489 = vmatprep.subr.mxu0 0.0
    %9490 = vmatpush2.msra.mxu0 0.0
    %9491 = vmatprep.subr.mxu0 0.0
    %9492 = vmatpush2.msra.mxu0 0.0
    %9493 = vmatprep.subr.mxu0 0.0
    %9494 = vmatpush2.msra.mxu0 0.0
    %9495 = vmatprep.subr.mxu0 0.0
    %9496 = vmatpush2.msra.mxu0 0.0
    %9497 = vmatprep.subr.mxu0 0.0
    %9498 = vmatpush2.msra.mxu0 0.0
    %9499 = vmatprep.subr.mxu0 0.0
    %9500 = vmatpush2.msra.mxu0 0.0
    %9501 = vmatprep.subr.mxu0 0.0
    %9502 = vmatpush2.msra.mxu0 0.0
    %9503 = vmatprep.subr.mxu0 0.0
    %9504 = vmatpush2.msra.mxu0 0.0
    %9505 = vmatprep.subr.mxu0 0.0
    %9506 = vmatpush2.msra.mxu0 0.0
    %9507 = vmatprep.subr.mxu0 0.0
    %9508 = vmatpush2.msra.mxu0 0.0
    %9509 = vmatprep.mubr.f32.mxu0 0.0
    %9510 = vmatmul.mubr.f32.gmra.mxu0 %v9443
    %v9511 = vpop.f32.mrf.mxu0
    %v9512 = vadd.f32 %v8937, %v9511
    %v9513 = vpop.f32.mrf.mxu0
    %9514 = vdwg.mxu0
    %v9516 = vsel %vm565, %v8027, 0
    %9518 = vmatprep.subr.mxu0 0.0
    %9519 = vmatpush1.msra.mxu0 0.0
    %9520 = vmatprep.subr.mxu0 0.0
    %9521 = vmatpush1.msra.mxu0 0.0
    %9522 = vmatprep.subr.mxu0 0.0
    %9523 = vmatpush1.msra.mxu0 0.0
    %9524 = vmatprep.subr.mxu0 0.0
    %9525 = vmatpush1.msra.mxu0 0.0
    %9526 = vmatprep.subr.mxu0 0.0
    %9527 = vmatpush1.msra.mxu0 0.0
    %9528 = vmatprep.subr.mxu0 0.0
    %9529 = vmatpush1.msra.mxu0 0.0
    %9530 = vmatprep.subr.mxu0 0.0
    %9531 = vmatpush1.msra.mxu0 0.0
    %9532 = vmatprep.subr.mxu0 0.0
    %9533 = vmatpush1.msra.mxu0 0.0
    %9534 = vmatprep.subr.mxu0 0.0
    %9535 = vmatpush1.msra.mxu0 0.0
    %9536 = vmatprep.subr.mxu0 0.0
    %9537 = vmatpush1.msra.mxu0 0.0
    %9538 = vmatprep.subr.mxu0 0.0
    %9539 = vmatpush1.msra.mxu0 0.0
    %9540 = vmatprep.subr.mxu0 0.0
    %9541 = vmatpush1.msra.mxu0 0.0
    %9542 = vmatprep.subr.mxu0 0.0
    %9543 = vmatpush1.msra.mxu0 0.0
    %9544 = vmatprep.subr.mxu0 0.0
    %9545 = vmatpush1.msra.mxu0 0.0
    %9546 = vmatprep.subr.mxu0 0.0
    %9547 = vmatpush1.msra.mxu0 0.0
    %9548 = vmatprep.subr.mxu0 0.0
    %9549 = vmatpush1.msra.mxu0 %v6811
    %9550 = vmatprep.subr.mxu0 0.0
    %9551 = vmatpush2.msra.mxu0 0.0
    %9552 = vmatprep.subr.mxu0 0.0
    %9553 = vmatpush2.msra.mxu0 0.0
    %9554 = vmatprep.subr.mxu0 0.0
    %9555 = vmatpush2.msra.mxu0 0.0
    %9556 = vmatprep.subr.mxu0 0.0
    %9557 = vmatpush2.msra.mxu0 0.0
    %9558 = vmatprep.subr.mxu0 0.0
    %9559 = vmatpush2.msra.mxu0 0.0
    %9560 = vmatprep.subr.mxu0 0.0
    %9561 = vmatpush2.msra.mxu0 0.0
    %9562 = vmatprep.subr.mxu0 0.0
    %9563 = vmatpush2.msra.mxu0 0.0
    %9564 = vmatprep.subr.mxu0 0.0
    %9565 = vmatpush2.msra.mxu0 0.0
    %9566 = vmatprep.subr.mxu0 0.0
    %9567 = vmatpush2.msra.mxu0 0.0
    %9568 = vmatprep.subr.mxu0 0.0
    %9569 = vmatpush2.msra.mxu0 0.0
    %9570 = vmatprep.subr.mxu0 0.0
    %9571 = vmatpush2.msra.mxu0 0.0
    %9572 = vmatprep.subr.mxu0 0.0
    %9573 = vmatpush2.msra.mxu0 0.0
    %9574 = vmatprep.subr.mxu0 0.0
    %9575 = vmatpush2.msra.mxu0 0.0
    %9576 = vmatprep.subr.mxu0 0.0
    %9577 = vmatpush2.msra.mxu0 0.0
    %9578 = vmatprep.subr.mxu0 0.0
    %9579 = vmatpush2.msra.mxu0 0.0
    %9580 = vmatprep.subr.mxu0 0.0
    %9581 = vmatpush2.msra.mxu0 0.0
    %9582 = vmatprep.mubr.f32.mxu0 0.0
    %9583 = vmatmul.mubr.f32.gmra.mxu0 %v9516
    %v9584 = vpop.f32.mrf.mxu0
    %v9585 = vadd.f32 %v9007, %v9584
    %v9586 = vpop.f32.mrf.mxu0
    %9587 = vdwg.mxu0
    %v9589 = vsel %vm565, %v8028, 0
    %9591 = vmatprep.subr.mxu0 0.0
    %9592 = vmatpush1.msra.mxu0 0.0
    %9593 = vmatprep.subr.mxu0 0.0
    %9594 = vmatpush1.msra.mxu0 0.0
    %9595 = vmatprep.subr.mxu0 0.0
    %9596 = vmatpush1.msra.mxu0 0.0
    %9597 = vmatprep.subr.mxu0 0.0
    %9598 = vmatpush1.msra.mxu0 0.0
    %9599 = vmatprep.subr.mxu0 0.0
    %9600 = vmatpush1.msra.mxu0 0.0
    %9601 = vmatprep.subr.mxu0 0.0
    %9602 = vmatpush1.msra.mxu0 0.0
    %9603 = vmatprep.subr.mxu0 0.0
    %9604 = vmatpush1.msra.mxu0 0.0
    %9605 = vmatprep.subr.mxu0 0.0
    %9606 = vmatpush1.msra.mxu0 0.0
    %9607 = vmatprep.subr.mxu0 0.0
    %9608 = vmatpush1.msra.mxu0 0.0
    %9609 = vmatprep.subr.mxu0 0.0
    %9610 = vmatpush1.msra.mxu0 0.0
    %9611 = vmatprep.subr.mxu0 0.0
    %9612 = vmatpush1.msra.mxu0 0.0
    %9613 = vmatprep.subr.mxu0 0.0
    %9614 = vmatpush1.msra.mxu0 0.0
    %9615 = vmatprep.subr.mxu0 0.0
    %9616 = vmatpush1.msra.mxu0 0.0
    %9617 = vmatprep.subr.mxu0 0.0
    %9618 = vmatpush1.msra.mxu0 0.0
    %9619 = vmatprep.subr.mxu0 0.0
    %9620 = vmatpush1.msra.mxu0 0.0
    %9621 = vmatprep.subr.mxu0 0.0
    %9622 = vmatpush1.msra.mxu0 %v6812
    %9623 = vmatprep.subr.mxu0 0.0
    %9624 = vmatpush2.msra.mxu0 0.0
    %9625 = vmatprep.subr.mxu0 0.0
    %9626 = vmatpush2.msra.mxu0 0.0
    %9627 = vmatprep.subr.mxu0 0.0
    %9628 = vmatpush2.msra.mxu0 0.0
    %9629 = vmatprep.subr.mxu0 0.0
    %9630 = vmatpush2.msra.mxu0 0.0
    %9631 = vmatprep.subr.mxu0 0.0
    %9632 = vmatpush2.msra.mxu0 0.0
    %9633 = vmatprep.subr.mxu0 0.0
    %9634 = vmatpush2.msra.mxu0 0.0
    %9635 = vmatprep.subr.mxu0 0.0
    %9636 = vmatpush2.msra.mxu0 0.0
    %9637 = vmatprep.subr.mxu0 0.0
    %9638 = vmatpush2.msra.mxu0 0.0
    %9639 = vmatprep.subr.mxu0 0.0
    %9640 = vmatpush2.msra.mxu0 0.0
    %9641 = vmatprep.subr.mxu0 0.0
    %9642 = vmatpush2.msra.mxu0 0.0
    %9643 = vmatprep.subr.mxu0 0.0
    %9644 = vmatpush2.msra.mxu0 0.0
    %9645 = vmatprep.subr.mxu0 0.0
    %9646 = vmatpush2.msra.mxu0 0.0
    %9647 = vmatprep.subr.mxu0 0.0
    %9648 = vmatpush2.msra.mxu0 0.0
    %9649 = vmatprep.subr.mxu0 0.0
    %9650 = vmatpush2.msra.mxu0 0.0
    %9651 = vmatprep.subr.mxu0 0.0
    %9652 = vmatpush2.msra.mxu0 0.0
    %9653 = vmatprep.subr.mxu0 0.0
    %9654 = vmatpush2.msra.mxu0 0.0
    %9655 = vmatprep.mubr.f32.mxu0 0.0
    %9656 = vmatmul.mubr.f32.gmra.mxu0 %v9589
    %v9657 = vpop.f32.mrf.mxu0
    %v9658 = vadd.f32 %v9077, %v9657
    %v9659 = vpop.f32.mrf.mxu0
    %9660 = vdwg.mxu0
    %v9662 = vsel %vm565, %v8029, 0
    %9664 = vmatprep.subr.mxu0 0.0
    %9665 = vmatpush1.msra.mxu0 0.0
    %9666 = vmatprep.subr.mxu0 0.0
    %9667 = vmatpush1.msra.mxu0 0.0
    %9668 = vmatprep.subr.mxu0 0.0
    %9669 = vmatpush1.msra.mxu0 0.0
    %9670 = vmatprep.subr.mxu0 0.0
    %9671 = vmatpush1.msra.mxu0 0.0
    %9672 = vmatprep.subr.mxu0 0.0
    %9673 = vmatpush1.msra.mxu0 0.0
    %9674 = vmatprep.subr.mxu0 0.0
    %9675 = vmatpush1.msra.mxu0 0.0
    %9676 = vmatprep.subr.mxu0 0.0
    %9677 = vmatpush1.msra.mxu0 0.0
    %9678 = vmatprep.subr.mxu0 0.0
    %9679 = vmatpush1.msra.mxu0 0.0
    %9680 = vmatprep.subr.mxu0 0.0
    %9681 = vmatpush1.msra.mxu0 0.0
    %9682 = vmatprep.subr.mxu0 0.0
    %9683 = vmatpush1.msra.mxu0 0.0
    %9684 = vmatprep.subr.mxu0 0.0
    %9685 = vmatpush1.msra.mxu0 0.0
    %9686 = vmatprep.subr.mxu0 0.0
    %9687 = vmatpush1.msra.mxu0 0.0
    %9688 = vmatprep.subr.mxu0 0.0
    %9689 = vmatpush1.msra.mxu0 0.0
    %9690 = vmatprep.subr.mxu0 0.0
    %9691 = vmatpush1.msra.mxu0 0.0
    %9692 = vmatprep.subr.mxu0 0.0
    %9693 = vmatpush1.msra.mxu0 0.0
    %9694 = vmatprep.subr.mxu0 0.0
    %9695 = vmatpush1.msra.mxu0 %v6813
    %9696 = vmatprep.subr.mxu0 0.0
    %9697 = vmatpush2.msra.mxu0 0.0
    %9698 = vmatprep.subr.mxu0 0.0
    %9699 = vmatpush2.msra.mxu0 0.0
    %9700 = vmatprep.subr.mxu0 0.0
    %9701 = vmatpush2.msra.mxu0 0.0
    %9702 = vmatprep.subr.mxu0 0.0
    %9703 = vmatpush2.msra.mxu0 0.0
    %9704 = vmatprep.subr.mxu0 0.0
    %9705 = vmatpush2.msra.mxu0 0.0
    %9706 = vmatprep.subr.mxu0 0.0
    %9707 = vmatpush2.msra.mxu0 0.0
    %9708 = vmatprep.subr.mxu0 0.0
    %9709 = vmatpush2.msra.mxu0 0.0
    %9710 = vmatprep.subr.mxu0 0.0
    %9711 = vmatpush2.msra.mxu0 0.0
    %9712 = vmatprep.subr.mxu0 0.0
    %9713 = vmatpush2.msra.mxu0 0.0
    %9714 = vmatprep.subr.mxu0 0.0
    %9715 = vmatpush2.msra.mxu0 0.0
    %9716 = vmatprep.subr.mxu0 0.0
    %9717 = vmatpush2.msra.mxu0 0.0
    %9718 = vmatprep.subr.mxu0 0.0
    %9719 = vmatpush2.msra.mxu0 0.0
    %9720 = vmatprep.subr.mxu0 0.0
    %9721 = vmatpush2.msra.mxu0 0.0
    %9722 = vmatprep.subr.mxu0 0.0
    %9723 = vmatpush2.msra.mxu0 0.0
    %9724 = vmatprep.subr.mxu0 0.0
    %9725 = vmatpush2.msra.mxu0 0.0
    %9726 = vmatprep.subr.mxu0 0.0
    %9727 = vmatpush2.msra.mxu0 0.0
    %9728 = vmatprep.mubr.f32.mxu0 0.0
    %9729 = vmatmul.mubr.f32.gmra.mxu0 %v9662
    %v9730 = vpop.f32.mrf.mxu0
    %v9731 = vadd.f32 %v9147, %v9730
    %v9732 = vpop.f32.mrf.mxu0
    %9733 = vdwg.mxu0
    %v9734 = vmul.f32 %v2506, %v9220
    %v9735 = vmul.f32 %v2506, %v9293
    %v9736 = vmul.f32 %v2506, %v9366
    %v9737 = vmul.f32 %v2506, %v9439
    %v9738 = vmul.f32 %v2506, %v9512
    %v9739 = vmul.f32 %v2506, %v9585
    %v9740 = vmul.f32 %v2506, %v9658
    %v9741 = vmul.f32 %v2506, %v9731
    %v9742 = vsub.f32 %v8097, %v9734
    %v9743 = vsub.f32 %v8167, %v9735
    %v9744 = vsub.f32 %v8237, %v9736
    %v9745 = vsub.f32 %v8307, %v9737
    %v9746 = vsub.f32 %v8377, %v9738
    %v9747 = vsub.f32 %v8447, %v9739
    %v9748 = vsub.f32 %v8517, %v9740
    %v9749 = vsub.f32 %v8587, %v9741
    %v9750 = vadd.f32 %v9742, %v7430
    %v9751 = vadd.f32 %v9743, %v7431
    %v9752 = vadd.f32 %v9744, %v7432
    %v9753 = vadd.f32 %v9745, %v7433
    %v9754 = vadd.f32 %v9746, %v7434
    %v9755 = vadd.f32 %v9747, %v7435
    %v9756 = vadd.f32 %v9748, %v7436
    %v9757 = vadd.f32 %v9749, %v7437
    %v9758 = vsel %vm565, %v9750, 0.0
    %9759 = vadd.xlane.f32.xlu0 %v9758
    %v9760 = vpop.xlane.xlu0 %9759
    %v9761 = vsel %vm565, %v9751, 0.0
    %9762 = vadd.xlane.f32.xlu0 %v9761
    %v9763 = vpop.xlane.xlu0 %9762
    %v9764 = vsel %vm565, %v9752, 0.0
    %9765 = vadd.xlane.f32.xlu0 %v9764
    %v9766 = vpop.xlane.xlu0 %9765
    %v9767 = vsel %vm565, %v9753, 0.0
    %9768 = vadd.xlane.f32.xlu0 %v9767
    %v9769 = vpop.xlane.xlu0 %9768
    %v9770 = vsel %vm565, %v9754, 0.0
    %9771 = vadd.xlane.f32.xlu0 %v9770
    %v9772 = vpop.xlane.xlu0 %9771
    %v9773 = vsel %vm565, %v9755, 0.0
    %9774 = vadd.xlane.f32.xlu0 %v9773
    %v9775 = vpop.xlane.xlu0 %9774
    %v9776 = vsel %vm565, %v9756, 0.0
    %9777 = vadd.xlane.f32.xlu0 %v9776
    %v9778 = vpop.xlane.xlu0 %9777
    %v9779 = vsel %vm565, %v9757, 0.0
    %9780 = vadd.xlane.f32.xlu0 %v9779
    %v9781 = vpop.xlane.xlu0 %9780
    %v9782 = vmul.f32 %v9760, %v1563
    %v9783 = vmul.f32 %v9763, %v1563
    %v9784 = vmul.f32 %v9766, %v1563
    %v9785 = vmul.f32 %v9769, %v1563
    %v9786 = vmul.f32 %v9772, %v1563
    %v9787 = vmul.f32 %v9775, %v1563
    %v9788 = vmul.f32 %v9778, %v1563
    %v9789 = vmul.f32 %v9781, %v1563
    %v9790 = vsub.f32 %v9750, %v9782
    %v9791 = vsub.f32 %v9751, %v9783
    %v9792 = vsub.f32 %v9752, %v9784
    %v9793 = vsub.f32 %v9753, %v9785
    %v9794 = vsub.f32 %v9754, %v9786
    %v9795 = vsub.f32 %v9755, %v9787
    %v9796 = vsub.f32 %v9756, %v9788
    %v9797 = vsub.f32 %v9757, %v9789
    %v9798 = vmul.f32 %v9790, %v9790
    %v9799 = vmul.f32 %v9791, %v9791
    %v9800 = vmul.f32 %v9792, %v9792
    %v9801 = vmul.f32 %v9793, %v9793
    %v9802 = vmul.f32 %v9794, %v9794
    %v9803 = vmul.f32 %v9795, %v9795
    %v9804 = vmul.f32 %v9796, %v9796
    %v9805 = vmul.f32 %v9797, %v9797
    %v9806 = vsel %vm565, %v9798, 0.0
    %9807 = vadd.xlane.f32.xlu0 %v9806
    %v9808 = vpop.xlane.xlu0 %9807
    %v9809 = vsel %vm565, %v9799, 0.0
    %9810 = vadd.xlane.f32.xlu0 %v9809
    %v9811 = vpop.xlane.xlu0 %9810
    %v9812 = vsel %vm565, %v9800, 0.0
    %9813 = vadd.xlane.f32.xlu0 %v9812
    %v9814 = vpop.xlane.xlu0 %9813
    %v9815 = vsel %vm565, %v9801, 0.0
    %9816 = vadd.xlane.f32.xlu0 %v9815
    %v9817 = vpop.xlane.xlu0 %9816
    %v9818 = vsel %vm565, %v9802, 0.0
    %9819 = vadd.xlane.f32.xlu0 %v9818
    %v9820 = vpop.xlane.xlu0 %9819
    %v9821 = vsel %vm565, %v9803, 0.0
    %9822 = vadd.xlane.f32.xlu0 %v9821
    %v9823 = vpop.xlane.xlu0 %9822
    %v9824 = vsel %vm565, %v9804, 0.0
    %9825 = vadd.xlane.f32.xlu0 %v9824
    %v9826 = vpop.xlane.xlu0 %9825
    %v9827 = vsel %vm565, %v9805, 0.0
    %9828 = vadd.xlane.f32.xlu0 %v9827
    %v9829 = vpop.xlane.xlu0 %9828
    %v9830 = vmul.f32 %v9808, %v1563
    %v9831 = vmul.f32 %v9811, %v1563
    %v9832 = vmul.f32 %v9814, %v1563
    %v9833 = vmul.f32 %v9817, %v1563
    %v9834 = vmul.f32 %v9820, %v1563
    %v9835 = vmul.f32 %v9823, %v1563
    %v9836 = vmul.f32 %v9826, %v1563
    %v9837 = vmul.f32 %v9829, %v1563
    %v9838 = vmul.f32 %v1655, %v9790
    %v9839 = vmul.f32 %v1659, %v9791
    %v9840 = vmul.f32 %v1663, %v9792
    %v9841 = vmul.f32 %v1667, %v9793
    %v9842 = vmul.f32 %v1671, %v9794
    %v9843 = vmul.f32 %v1675, %v9795
    %v9844 = vmul.f32 %v1679, %v9796
    %v9845 = vmul.f32 %v1683, %v9797
    %v9846 = vadd.f32 %v9830, 1e-06
    %v9847 = vadd.f32 %v9831, 1e-06
    %v9848 = vadd.f32 %v9832, 1e-06
    %v9849 = vadd.f32 %v9833, 1e-06
    %v9850 = vadd.f32 %v9834, 1e-06
    %v9851 = vadd.f32 %v9835, 1e-06
    %v9852 = vadd.f32 %v9836, 1e-06
    %v9853 = vadd.f32 %v9837, 1e-06
    %v9854 = vrsqrt.pop %v9846
    %v9855 = vrsqrt.pop %v9847
    %v9856 = vrsqrt.pop %v9848
    %v9857 = vrsqrt.pop %v9849
    %v9858 = vrsqrt.pop %v9850
    %v9859 = vrsqrt.pop %v9851
    %v9860 = vrsqrt.pop %v9852
    %v9861 = vrsqrt.pop %v9853
    %v9862 = vmul.f32 %v9838, %v9854
    %v9863 = vmul.f32 %v9839, %v9855
    %v9864 = vmul.f32 %v9840, %v9856
    %v9865 = vmul.f32 %v9841, %v9857
    %v9866 = vmul.f32 %v9842, %v9858
    %v9867 = vmul.f32 %v9843, %v9859
    %v9868 = vmul.f32 %v9844, %v9860
    %v9869 = vmul.f32 %v9845, %v9861
    %v9870 = vadd.f32 %v9862, %v1711
    %v9871 = vadd.f32 %v9863, %v1715
    %v9872 = vadd.f32 %v9864, %v1719
    %v9873 = vadd.f32 %v9865, %v1723
    %v9874 = vadd.f32 %v9866, %v1727
    %v9875 = vadd.f32 %v9867, %v1731
    %v9876 = vadd.f32 %v9868, %v1735
    %v9877 = vadd.f32 %v9869, %v1739
    %v9878 = vadd.f32 %v5867, %v9870
    %v9879 = vadd.f32 %v5868, %v9871
    %v9880 = vadd.f32 %v5869, %v9872
    %v9881 = vadd.f32 %v5870, %v9873
    %v9882 = vadd.f32 %v5871, %v9874
    %v9883 = vadd.f32 %v5872, %v9875
    %v9884 = vadd.f32 %v5873, %v9876
    %v9885 = vadd.f32 %v5874, %v9877
    %9888 = vrot.lane.b32.xlu0 %v9880, 8
    %v9889 = vpop.permute.xlu0 %9888
    %9890 = vrot.lane.b32.xlu0 %v9881, 8
    %v9891 = vpop.permute.xlu0 %9890
    %9896 = vrot.lane.b32.xlu0 %v9882, 16
    %v9897 = vpop.permute.xlu0 %9896
    %9898 = vrot.lane.b32.xlu0 %v9883, 16
    %v9899 = vpop.permute.xlu0 %9898
    %9904 = vrot.lane.b32.xlu0 %v9884, 24
    %v9905 = vpop.permute.xlu0 %9904
    %9906 = vrot.lane.b32.xlu0 %v9885, 24
    %v9907 = vpop.permute.xlu0 %9906
    %v9910 = vsel %vm565, %v9878, %v9889
    %v9911 = vsel %vm565, %v9879, %v9891
    %v9912 = vsel %vm4998, %v9910, %v9897
    %v9913 = vsel %vm4998, %v9911, %v9899
    %v9914 = vsel %vm5001, %v9912, %v9905
    %v9915 = vsel %vm5001, %v9913, %v9907
    %s9916 = scalar_lea.vmem [#allocation6], 8
    %9917 = vst.msk [vmem:[%s9916] sm:$0xff] %vm71, %v9914
    %9918 = vst.msk [vmem:[%s9916 + $0x10] sm:$0xff] %vm71, %v9915
    %v9919 = vld [vmem:[%s0] sm:$0xff]
    %v9920 = vld [vmem:[%s0 + $0x8] sm:$0xff]
    %v9921 = vld [vmem:[%s0 + $0x10] sm:$0xff]
    %v9922 = vld [vmem:[%s0 + $0x18] sm:$0xff]
    %v9923 = vld [vmem:[#allocation6] sm:$0xff]
    %v9924 = vld [vmem:[#allocation6 + $0x8] sm:$0xff]
    %v9925 = vld [vmem:[#allocation6 + $0x10] sm:$0xff]
    %v9926 = vld [vmem:[#allocation6 + $0x18] sm:$0xff]
    %v9927 = vsel %vm71, %v9923, 0.0
    %9928 = vadd.xlane.f32.xlu0 %v9927
    %v9929 = vpop.xlane.xlu0 %9928
    %v9930 = vsel %vm71, %v9924, 0.0
    %9931 = vadd.xlane.f32.xlu0 %v9930
    %v9932 = vpop.xlane.xlu0 %9931
    %v9933 = vsel %vm71, %v9925, 0.0
    %9934 = vadd.xlane.f32.xlu0 %v9933
    %v9935 = vpop.xlane.xlu0 %9934
    %v9936 = vsel %vm71, %v9926, 0.0
    %9937 = vadd.xlane.f32.xlu0 %v9936
    %v9938 = vpop.xlane.xlu0 %9937
    %v9939 = vmul.f32 %v9929, %v84
    %v9940 = vmul.f32 %v9932, %v84
    %v9941 = vmul.f32 %v9935, %v84
    %v9942 = vmul.f32 %v9938, %v84
    %v9943 = vsub.f32 %v9923, %v9939
    %v9944 = vsub.f32 %v9924, %v9940
    %v9945 = vsub.f32 %v9925, %v9941
    %v9946 = vsub.f32 %v9926, %v9942
    %v9947 = vmul.f32 %v9943, %v9943
    %v9948 = vmul.f32 %v9944, %v9944
    %v9949 = vmul.f32 %v9945, %v9945
    %v9950 = vmul.f32 %v9946, %v9946
    %v9951 = vsel %vm71, %v9947, 0.0
    %9952 = vadd.xlane.f32.xlu0 %v9951
    %v9953 = vpop.xlane.xlu0 %9952
    %v9954 = vsel %vm71, %v9948, 0.0
    %9955 = vadd.xlane.f32.xlu0 %v9954
    %v9956 = vpop.xlane.xlu0 %9955
    %v9957 = vsel %vm71, %v9949, 0.0
    %9958 = vadd.xlane.f32.xlu0 %v9957
    %v9959 = vpop.xlane.xlu0 %9958
    %v9960 = vsel %vm71, %v9950, 0.0
    %9961 = vadd.xlane.f32.xlu0 %v9960
    %v9962 = vpop.xlane.xlu0 %9961
    %v9963 = vmul.f32 %v9953, %v84
    %v9964 = vmul.f32 %v9956, %v84
    %v9965 = vmul.f32 %v9959, %v84
    %v9966 = vmul.f32 %v9962, %v84
    %v9967 = vadd.f32 %v9963, 1e-06
    %v9968 = vadd.f32 %v9964, 1e-06
    %v9969 = vadd.f32 %v9965, 1e-06
    %v9970 = vadd.f32 %v9966, 1e-06
    %v9971 = vrsqrt.pop %v9967
    %v9972 = vrsqrt.pop %v9968
    %v9973 = vrsqrt.pop %v9969
    %v9974 = vrsqrt.pop %v9970
    %v9975 = vmul.f32 %v9943, %v9971
    %v9976 = vmul.f32 %v9944, %v9972
    %v9977 = vmul.f32 %v9945, %v9973
    %v9978 = vmul.f32 %v9946, %v9974
    %v9979 = vld [vmem:[%s12] sm:$0x1]
    %v9981 = vlaneseq
    %v9982 = vshrl.u32 %v9981, 7
    %v9983 = vsub.s32 0, %v9982
    %v9984 = vrot.slane %v9979, %v9983
    %v9986 = vmul.f32 %v9975, %v9984
    %v9987 = vmul.f32 %v9976, %v9984
    %v9988 = vmul.f32 %v9977, %v9984
    %v9989 = vmul.f32 %v9978, %v9984
    %v9990 = vld [vmem:[%s13] sm:$0x1]
    %v9992 = vlaneseq
    %v9993 = vshrl.u32 %v9992, 7
    %v9994 = vsub.s32 0, %v9993
    %v9995 = vrot.slane %v9990, %v9994
    %v9997 = vadd.f32 %v9986, %v9995
    %v9998 = vadd.f32 %v9987, %v9995
    %v9999 = vadd.f32 %v9988, %v9995
    %v10000 = vadd.f32 %v9989, %v9995
    %v10001 = vld [vmem:[%s14] sm:$0xff]
    %v10002 = vld [vmem:[%s14 + $0x8] sm:$0xff]
    %v10003 = vld [vmem:[%s14 + $0x10] sm:$0xff]
    %v10004 = vld [vmem:[%s14 + $0x18] sm:$0xff]
    %v10006 = vsel %vm71, %v9997, 0
    %v10009 = vsel %vm71, %v9998, 0
    %v10012 = vsel %vm71, %v9999, 0
    %v10015 = vsel %vm71, %v10000, 0
    %10017 = vmatprep.subr.mxu0 0.0
    %10018 = vmatpush1.msra.mxu0 0.0
    %10019 = vmatprep.subr.mxu0 0.0
    %10020 = vmatpush1.msra.mxu0 0.0
    %10021 = vmatprep.subr.mxu0 0.0
    %10022 = vmatpush1.msra.mxu0 0.0
    %10023 = vmatprep.subr.mxu0 0.0
    %10024 = vmatpush1.msra.mxu0 0.0
    %10025 = vmatprep.subr.mxu0 0.0
    %10026 = vmatpush1.msra.mxu0 0.0
    %10027 = vmatprep.subr.mxu0 0.0
    %10028 = vmatpush1.msra.mxu0 0.0
    %10029 = vmatprep.subr.mxu0 0.0
    %10030 = vmatpush1.msra.mxu0 0.0
    %10031 = vmatprep.subr.mxu0 0.0
    %10032 = vmatpush1.msra.mxu0 0.0
    %10033 = vmatprep.subr.mxu0 0.0
    %10034 = vmatpush1.msra.mxu0 0.0
    %10035 = vmatprep.subr.mxu0 0.0
    %10036 = vmatpush1.msra.mxu0 0.0
    %10037 = vmatprep.subr.mxu0 0.0
    %10038 = vmatpush1.msra.mxu0 0.0
    %10039 = vmatprep.subr.mxu0 0.0
    %10040 = vmatpush1.msra.mxu0 0.0
    %10041 = vmatprep.subr.mxu0 0.0
    %10042 = vmatpush1.msra.mxu0 %v10004
    %10043 = vmatprep.subr.mxu0 0.0
    %10044 = vmatpush1.msra.mxu0 %v10003
    %10045 = vmatprep.subr.mxu0 0.0
    %10046 = vmatpush1.msra.mxu0 %v10002
    %10047 = vmatprep.subr.mxu0 0.0
    %10048 = vmatpush1.msra.mxu0 %v10001
    %10049 = vmatprep.subr.mxu0 0.0
    %10050 = vmatpush2.msra.mxu0 0.0
    %10051 = vmatprep.subr.mxu0 0.0
    %10052 = vmatpush2.msra.mxu0 0.0
    %10053 = vmatprep.subr.mxu0 0.0
    %10054 = vmatpush2.msra.mxu0 0.0
    %10055 = vmatprep.subr.mxu0 0.0
    %10056 = vmatpush2.msra.mxu0 0.0
    %10057 = vmatprep.subr.mxu0 0.0
    %10058 = vmatpush2.msra.mxu0 0.0
    %10059 = vmatprep.subr.mxu0 0.0
    %10060 = vmatpush2.msra.mxu0 0.0
    %10061 = vmatprep.subr.mxu0 0.0
    %10062 = vmatpush2.msra.mxu0 0.0
    %10063 = vmatprep.subr.mxu0 0.0
    %10064 = vmatpush2.msra.mxu0 0.0
    %10065 = vmatprep.subr.mxu0 0.0
    %10066 = vmatpush2.msra.mxu0 0.0
    %10067 = vmatprep.subr.mxu0 0.0
    %10068 = vmatpush2.msra.mxu0 0.0
    %10069 = vmatprep.subr.mxu0 0.0
    %10070 = vmatpush2.msra.mxu0 0.0
    %10071 = vmatprep.subr.mxu0 0.0
    %10072 = vmatpush2.msra.mxu0 0.0
    %10073 = vmatprep.subr.mxu0 0.0
    %10074 = vmatpush2.msra.mxu0 0.0
    %10075 = vmatprep.subr.mxu0 0.0
    %10076 = vmatpush2.msra.mxu0 0.0
    %10077 = vmatprep.subr.mxu0 0.0
    %10078 = vmatpush2.msra.mxu0 0.0
    %10079 = vmatprep.subr.mxu0 0.0
    %10080 = vmatpush2.msra.mxu0 0.0
    %10081 = vmatprep.mubr.f32.mxu0 0.0
    %10082 = vmatmul.mubr.f32.gmra.mxu0 %v10006
    %v10083 = vpop.f32.mrf.mxu0
    %v10084 = vadd.f32 0.0, %v10083
    %v10085 = vpop.f32.mrf.mxu0
    %10086 = vmatprep.mubr.f32.mxu0 0.0
    %10087 = vmatmul.mubr.f32.gmra.mxu0 %v10009
    %v10088 = vpop.f32.mrf.mxu0
    %v10089 = vadd.f32 0.0, %v10088
    %v10090 = vpop.f32.mrf.mxu0
    %10091 = vmatprep.mubr.f32.mxu0 0.0
    %10092 = vmatmul.mubr.f32.gmra.mxu0 %v10012
    %v10093 = vpop.f32.mrf.mxu0
    %v10094 = vadd.f32 0.0, %v10093
    %v10095 = vpop.f32.mrf.mxu0
    %10096 = vmatprep.mubr.f32.mxu0 0.0
    %10097 = vmatmul.mubr.f32.gmra.mxu0 %v10015
    %v10098 = vpop.f32.mrf.mxu0
    %v10099 = vadd.f32 0.0, %v10098
    %v10100 = vpop.f32.mrf.mxu0
    %10101 = vdwg.mxu0
    %v10102 = vadd.f32 %v9919, %v10084
    %v10103 = vadd.f32 %v9920, %v10089
    %v10104 = vadd.f32 %v9921, %v10094
    %v10105 = vadd.f32 %v9922, %v10099
    %v10106 = vmul.f32 %v10102, %v10102
    %v10107 = vmul.f32 %v10103, %v10103
    %v10108 = vmul.f32 %v10104, %v10104
    %v10109 = vmul.f32 %v10105, %v10105
    %v10110 = vsel %vm71, %v10106, 0.0
    %10111 = vadd.xlane.f32.xlu0 %v10110
    %v10112 = vpop.xlane.xlu0 %10111
    %v10113 = vsel %vm71, %v10107, 0.0
    %10114 = vadd.xlane.f32.xlu0 %v10113
    %v10115 = vpop.xlane.xlu0 %10114
    %v10116 = vsel %vm71, %v10108, 0.0
    %10117 = vadd.xlane.f32.xlu0 %v10116
    %v10118 = vpop.xlane.xlu0 %10117
    %v10119 = vsel %vm71, %v10109, 0.0
    %10120 = vadd.xlane.f32.xlu0 %v10119
    %v10121 = vpop.xlane.xlu0 %10120
    %v10122 = vmul.f32 %v10112, %v84
    %v10123 = vmul.f32 %v10115, %v84
    %v10124 = vmul.f32 %v10118, %v84
    %v10125 = vmul.f32 %v10121, %v84
    %v10126 = vadd.f32 %v10122, 1e-06
    %v10127 = vadd.f32 %v10123, 1e-06
    %v10128 = vadd.f32 %v10124, 1e-06
    %v10129 = vadd.f32 %v10125, 1e-06
    %v10130 = vrsqrt.pop %v10126
    %v10131 = vrsqrt.pop %v10127
    %v10132 = vrsqrt.pop %v10128
    %v10133 = vrsqrt.pop %v10129
    %v10134 = vmul.f32 %v10102, %v10130
    %v10135 = vmul.f32 %v10103, %v10131
    %v10136 = vmul.f32 %v10104, %v10132
    %v10137 = vmul.f32 %v10105, %v10133
    %v10138 = vld [vmem:[%s15] sm:$0x1]
    %v10140 = vlaneseq
    %v10141 = vshrl.u32 %v10140, 7
    %v10142 = vsub.s32 0, %v10141
    %v10143 = vrot.slane %v10138, %v10142
    %v10145 = vmul.f32 %v10134, %v10143
    %v10146 = vmul.f32 %v10135, %v10143
    %v10147 = vmul.f32 %v10136, %v10143
    %v10148 = vmul.f32 %v10137, %v10143
    %v10149 = vld [vmem:[%s16] sm:$0xff]
    %v10150 = vld [vmem:[%s16 + $0x8] sm:$0xff]
    %v10151 = vld [vmem:[%s16 + $0x10] sm:$0xff]
    %v10152 = vld [vmem:[%s16 + $0x18] sm:$0xff]
    %v10154 = vsel %vm71, %v10145, 0
    %v10157 = vsel %vm71, %v10146, 0
    %v10160 = vsel %vm71, %v10147, 0
    %v10163 = vsel %vm71, %v10148, 0
    %10165 = vmatprep.subr.mxu0 0.0
    %10166 = vmatpush1.msra.mxu0 0.0
    %10167 = vmatprep.subr.mxu0 0.0
    %10168 = vmatpush1.msra.mxu0 0.0
    %10169 = vmatprep.subr.mxu0 0.0
    %10170 = vmatpush1.msra.mxu0 0.0
    %10171 = vmatprep.subr.mxu0 0.0
    %10172 = vmatpush1.msra.mxu0 0.0
    %10173 = vmatprep.subr.mxu0 0.0
    %10174 = vmatpush1.msra.mxu0 0.0
    %10175 = vmatprep.subr.mxu0 0.0
    %10176 = vmatpush1.msra.mxu0 0.0
    %10177 = vmatprep.subr.mxu0 0.0
    %10178 = vmatpush1.msra.mxu0 0.0
    %10179 = vmatprep.subr.mxu0 0.0
    %10180 = vmatpush1.msra.mxu0 0.0
    %10181 = vmatprep.subr.mxu0 0.0
    %10182 = vmatpush1.msra.mxu0 0.0
    %10183 = vmatprep.subr.mxu0 0.0
    %10184 = vmatpush1.msra.mxu0 0.0
    %10185 = vmatprep.subr.mxu0 0.0
    %10186 = vmatpush1.msra.mxu0 0.0
    %10187 = vmatprep.subr.mxu0 0.0
    %10188 = vmatpush1.msra.mxu0 0.0
    %10189 = vmatprep.subr.mxu0 0.0
    %10190 = vmatpush1.msra.mxu0 %v10152
    %10191 = vmatprep.subr.mxu0 0.0
    %10192 = vmatpush1.msra.mxu0 %v10151
    %10193 = vmatprep.subr.mxu0 0.0
    %10194 = vmatpush1.msra.mxu0 %v10150
    %10195 = vmatprep.subr.mxu0 0.0
    %10196 = vmatpush1.msra.mxu0 %v10149
    %10197 = vmatprep.subr.mxu0 0.0
    %10198 = vmatpush2.msra.mxu0 0.0
    %10199 = vmatprep.subr.mxu0 0.0
    %10200 = vmatpush2.msra.mxu0 0.0
    %10201 = vmatprep.subr.mxu0 0.0
    %10202 = vmatpush2.msra.mxu0 0.0
    %10203 = vmatprep.subr.mxu0 0.0
    %10204 = vmatpush2.msra.mxu0 0.0
    %10205 = vmatprep.subr.mxu0 0.0
    %10206 = vmatpush2.msra.mxu0 0.0
    %10207 = vmatprep.subr.mxu0 0.0
    %10208 = vmatpush2.msra.mxu0 0.0
    %10209 = vmatprep.subr.mxu0 0.0
    %10210 = vmatpush2.msra.mxu0 0.0
    %10211 = vmatprep.subr.mxu0 0.0
    %10212 = vmatpush2.msra.mxu0 0.0
    %10213 = vmatprep.subr.mxu0 0.0
    %10214 = vmatpush2.msra.mxu0 0.0
    %10215 = vmatprep.subr.mxu0 0.0
    %10216 = vmatpush2.msra.mxu0 0.0
    %10217 = vmatprep.subr.mxu0 0.0
    %10218 = vmatpush2.msra.mxu0 0.0
    %10219 = vmatprep.subr.mxu0 0.0
    %10220 = vmatpush2.msra.mxu0 0.0
    %10221 = vmatprep.subr.mxu0 0.0
    %10222 = vmatpush2.msra.mxu0 0.0
    %10223 = vmatprep.subr.mxu0 0.0
    %10224 = vmatpush2.msra.mxu0 0.0
    %10225 = vmatprep.subr.mxu0 0.0
    %10226 = vmatpush2.msra.mxu0 0.0
    %10227 = vmatprep.subr.mxu0 0.0
    %10228 = vmatpush2.msra.mxu0 0.0
    %10229 = vmatprep.mubr.f32.mxu0 0.0
    %10230 = vmatmul.mubr.f32.gmra.mxu0 %v10154
    %v10231 = vpop.f32.mrf.mxu0
    %v10232 = vadd.f32 0.0, %v10231
    %v10233 = vpop.f32.mrf.mxu0
    %10234 = vmatprep.mubr.f32.mxu0 0.0
    %10235 = vmatmul.mubr.f32.gmra.mxu0 %v10157
    %v10236 = vpop.f32.mrf.mxu0
    %v10237 = vadd.f32 0.0, %v10236
    %v10238 = vpop.f32.mrf.mxu0
    %10239 = vmatprep.mubr.f32.mxu0 0.0
    %10240 = vmatmul.mubr.f32.gmra.mxu0 %v10160
    %v10241 = vpop.f32.mrf.mxu0
    %v10242 = vadd.f32 0.0, %v10241
    %v10243 = vpop.f32.mrf.mxu0
    %10244 = vmatprep.mubr.f32.mxu0 0.0
    %10245 = vmatmul.mubr.f32.gmra.mxu0 %v10163
    %v10246 = vpop.f32.mrf.mxu0
    %v10247 = vadd.f32 0.0, %v10246
    %v10248 = vpop.f32.mrf.mxu0
    %10249 = vdwg.mxu0
    %v10250 = vxor.u32 %v10232, 2147483648
    %v10251 = vxor.u32 %v10237, 2147483648
    %v10252 = vxor.u32 %v10242, 2147483648
    %v10253 = vxor.u32 %v10247, 2147483648
    %v10254 = vmul.f32 %v10250, 1.442695
    %v10255 = vpow.pop %v10254
    %v10256 = vmul.f32 %v10251, 1.442695
    %v10257 = vpow.pop %v10256
    %v10258 = vmul.f32 %v10252, 1.442695
    %v10259 = vpow.pop %v10258
    %v10260 = vmul.f32 %v10253, 1.442695
    %v10261 = vpow.pop %v10260
    %v10262 = vadd.f32 %v10255, 1.0
    %v10263 = vadd.f32 %v10257, 1.0
    %v10264 = vadd.f32 %v10259, 1.0
    %v10265 = vadd.f32 %v10261, 1.0
    %v10266 = vrcp.pop %v10262
    %v10267 = vmul.f32 1.0, %v10266
    %v10268 = vrcp.pop %v10263
    %v10269 = vmul.f32 1.0, %v10268
    %v10270 = vrcp.pop %v10264
    %v10271 = vmul.f32 1.0, %v10270
    %v10272 = vrcp.pop %v10265
    %v10273 = vmul.f32 1.0, %v10272
    %v10274 = vmul.f32 %v10232, %v10267
    %v10275 = vmul.f32 %v10237, %v10269
    %v10276 = vmul.f32 %v10242, %v10271
    %v10277 = vmul.f32 %v10247, %v10273
    %v10278 = vld [vmem:[%s17] sm:$0xff]
    %v10279 = vld [vmem:[%s17 + $0x8] sm:$0xff]
    %v10280 = vld [vmem:[%s17 + $0x10] sm:$0xff]
    %v10281 = vld [vmem:[%s17 + $0x18] sm:$0xff]
    %10282 = vmatprep.subr.mxu0 0.0
    %10283 = vmatpush1.msra.mxu0 0.0
    %10284 = vmatprep.subr.mxu0 0.0
    %10285 = vmatpush1.msra.mxu0 0.0
    %10286 = vmatprep.subr.mxu0 0.0
    %10287 = vmatpush1.msra.mxu0 0.0
    %10288 = vmatprep.subr.mxu0 0.0
    %10289 = vmatpush1.msra.mxu0 0.0
    %10290 = vmatprep.subr.mxu0 0.0
    %10291 = vmatpush1.msra.mxu0 0.0
    %10292 = vmatprep.subr.mxu0 0.0
    %10293 = vmatpush1.msra.mxu0 0.0
    %10294 = vmatprep.subr.mxu0 0.0
    %10295 = vmatpush1.msra.mxu0 0.0
    %10296 = vmatprep.subr.mxu0 0.0
    %10297 = vmatpush1.msra.mxu0 0.0
    %10298 = vmatprep.subr.mxu0 0.0
    %10299 = vmatpush1.msra.mxu0 0.0
    %10300 = vmatprep.subr.mxu0 0.0
    %10301 = vmatpush1.msra.mxu0 0.0
    %10302 = vmatprep.subr.mxu0 0.0
    %10303 = vmatpush1.msra.mxu0 0.0
    %10304 = vmatprep.subr.mxu0 0.0
    %10305 = vmatpush1.msra.mxu0 0.0
    %10306 = vmatprep.subr.mxu0 0.0
    %10307 = vmatpush1.msra.mxu0 %v10281
    %10308 = vmatprep.subr.mxu0 0.0
    %10309 = vmatpush1.msra.mxu0 %v10280
    %10310 = vmatprep.subr.mxu0 0.0
    %10311 = vmatpush1.msra.mxu0 %v10279
    %10312 = vmatprep.subr.mxu0 0.0
    %10313 = vmatpush1.msra.mxu0 %v10278
    %10314 = vmatprep.subr.mxu0 0.0
    %10315 = vmatpush2.msra.mxu0 0.0
    %10316 = vmatprep.subr.mxu0 0.0
    %10317 = vmatpush2.msra.mxu0 0.0
    %10318 = vmatprep.subr.mxu0 0.0
    %10319 = vmatpush2.msra.mxu0 0.0
    %10320 = vmatprep.subr.mxu0 0.0
    %10321 = vmatpush2.msra.mxu0 0.0
    %10322 = vmatprep.subr.mxu0 0.0
    %10323 = vmatpush2.msra.mxu0 0.0
    %10324 = vmatprep.subr.mxu0 0.0
    %10325 = vmatpush2.msra.mxu0 0.0
    %10326 = vmatprep.subr.mxu0 0.0
    %10327 = vmatpush2.msra.mxu0 0.0
    %10328 = vmatprep.subr.mxu0 0.0
    %10329 = vmatpush2.msra.mxu0 0.0
    %10330 = vmatprep.subr.mxu0 0.0
    %10331 = vmatpush2.msra.mxu0 0.0
    %10332 = vmatprep.subr.mxu0 0.0
    %10333 = vmatpush2.msra.mxu0 0.0
    %10334 = vmatprep.subr.mxu0 0.0
    %10335 = vmatpush2.msra.mxu0 0.0
    %10336 = vmatprep.subr.mxu0 0.0
    %10337 = vmatpush2.msra.mxu0 0.0
    %10338 = vmatprep.subr.mxu0 0.0
    %10339 = vmatpush2.msra.mxu0 0.0
    %10340 = vmatprep.subr.mxu0 0.0
    %10341 = vmatpush2.msra.mxu0 0.0
    %10342 = vmatprep.subr.mxu0 0.0
    %10343 = vmatpush2.msra.mxu0 0.0
    %10344 = vmatprep.subr.mxu0 0.0
    %10345 = vmatpush2.msra.mxu0 0.0
    %10346 = vmatprep.mubr.f32.mxu0 0.0
    %10347 = vmatmul.mubr.f32.gmra.mxu0 %v10154
    %v10348 = vpop.f32.mrf.mxu0
    %v10349 = vadd.f32 0.0, %v10348
    %v10350 = vpop.f32.mrf.mxu0
    %10351 = vmatprep.mubr.f32.mxu0 0.0
    %10352 = vmatmul.mubr.f32.gmra.mxu0 %v10157
    %v10353 = vpop.f32.mrf.mxu0
    %v10354 = vadd.f32 0.0, %v10353
    %v10355 = vpop.f32.mrf.mxu0
    %10356 = vmatprep.mubr.f32.mxu0 0.0
    %10357 = vmatmul.mubr.f32.gmra.mxu0 %v10160
    %v10358 = vpop.f32.mrf.mxu0
    %v10359 = vadd.f32 0.0, %v10358
    %v10360 = vpop.f32.mrf.mxu0
    %10361 = vmatprep.mubr.f32.mxu0 0.0
    %10362 = vmatmul.mubr.f32.gmra.mxu0 %v10163
    %v10363 = vpop.f32.mrf.mxu0
    %v10364 = vadd.f32 0.0, %v10363
    %v10365 = vpop.f32.mrf.mxu0
    %10366 = vdwg.mxu0
    %v10367 = vmul.f32 %v10274, %v10349
    %v10368 = vmul.f32 %v10275, %v10354
    %v10369 = vmul.f32 %v10276, %v10359
    %v10370 = vmul.f32 %v10277, %v10364
    %v10371 = vld [vmem:[%s18] sm:$0xff]
    %v10372 = vld [vmem:[%s18 + $0x8] sm:$0xff]
    %v10373 = vld [vmem:[%s18 + $0x10] sm:$0xff]
    %v10374 = vld [vmem:[%s18 + $0x18] sm:$0xff]
    %v10375 = vld [vmem:[%s18 + $0x20] sm:$0xff]
    %v10376 = vld [vmem:[%s18 + $0x28] sm:$0xff]
    %v10377 = vld [vmem:[%s18 + $0x30] sm:$0xff]
    %v10378 = vld [vmem:[%s18 + $0x38] sm:$0xff]
    %vm10379 = vcmask 523264
    %v10381 = vsel %vm10379, %v10367, 0
    %v10384 = vsel %vm10379, %v10368, 0
    %v10387 = vsel %vm10379, %v10369, 0
    %v10390 = vsel %vm10379, %v10370, 0
    %10392 = vmatprep.subr.mxu0 0.0
    %10393 = vmatpush1.msra.mxu0 0.0
    %10394 = vmatprep.subr.mxu0 0.0
    %10395 = vmatpush1.msra.mxu0 0.0
    %10396 = vmatprep.subr.mxu0 0.0
    %10397 = vmatpush1.msra.mxu0 0.0
    %10398 = vmatprep.subr.mxu0 0.0
    %10399 = vmatpush1.msra.mxu0 0.0
    %10400 = vmatprep.subr.mxu0 0.0
    %10401 = vmatpush1.msra.mxu0 0.0
    %10402 = vmatprep.subr.mxu0 0.0
    %10403 = vmatpush1.msra.mxu0 0.0
    %10404 = vmatprep.subr.mxu0 0.0
    %10405 = vmatpush1.msra.mxu0 0.0
    %10406 = vmatprep.subr.mxu0 0.0
    %10407 = vmatpush1.msra.mxu0 0.0
    %10408 = vmatprep.subr.mxu0 0.0
    %10409 = vmatpush1.msra.mxu0 %v10378
    %10410 = vmatprep.subr.mxu0 0.0
    %10411 = vmatpush1.msra.mxu0 %v10377
    %10412 = vmatprep.subr.mxu0 0.0
    %10413 = vmatpush1.msra.mxu0 %v10376
    %10414 = vmatprep.subr.mxu0 0.0
    %10415 = vmatpush1.msra.mxu0 %v10375
    %10416 = vmatprep.subr.mxu0 0.0
    %10417 = vmatpush1.msra.mxu0 %v10374
    %10418 = vmatprep.subr.mxu0 0.0
    %10419 = vmatpush1.msra.mxu0 %v10373
    %10420 = vmatprep.subr.mxu0 0.0
    %10421 = vmatpush1.msra.mxu0 %v10372
    %10422 = vmatprep.subr.mxu0 0.0
    %10423 = vmatpush1.msra.mxu0 %v10371
    %10424 = vmatprep.subr.mxu0 0.0
    %10425 = vmatpush2.msra.mxu0 0.0
    %10426 = vmatprep.subr.mxu0 0.0
    %10427 = vmatpush2.msra.mxu0 0.0
    %10428 = vmatprep.subr.mxu0 0.0
    %10429 = vmatpush2.msra.mxu0 0.0
    %10430 = vmatprep.subr.mxu0 0.0
    %10431 = vmatpush2.msra.mxu0 0.0
    %10432 = vmatprep.subr.mxu0 0.0
    %10433 = vmatpush2.msra.mxu0 0.0
    %10434 = vmatprep.subr.mxu0 0.0
    %10435 = vmatpush2.msra.mxu0 0.0
    %10436 = vmatprep.subr.mxu0 0.0
    %10437 = vmatpush2.msra.mxu0 0.0
    %10438 = vmatprep.subr.mxu0 0.0
    %10439 = vmatpush2.msra.mxu0 0.0
    %10440 = vmatprep.subr.mxu0 0.0
    %10441 = vmatpush2.msra.mxu0 0.0
    %10442 = vmatprep.subr.mxu0 0.0
    %10443 = vmatpush2.msra.mxu0 0.0
    %10444 = vmatprep.subr.mxu0 0.0
    %10445 = vmatpush2.msra.mxu0 0.0
    %10446 = vmatprep.subr.mxu0 0.0
    %10447 = vmatpush2.msra.mxu0 0.0
    %10448 = vmatprep.subr.mxu0 0.0
    %10449 = vmatpush2.msra.mxu0 0.0
    %10450 = vmatprep.subr.mxu0 0.0
    %10451 = vmatpush2.msra.mxu0 0.0
    %10452 = vmatprep.subr.mxu0 0.0
    %10453 = vmatpush2.msra.mxu0 0.0
    %10454 = vmatprep.subr.mxu0 0.0
    %10455 = vmatpush2.msra.mxu0 0.0
    %10456 = vmatprep.mubr.f32.mxu0 0.0
    %10457 = vmatmul.mubr.f32.gmra.mxu0 %v10381
    %v10458 = vpop.f32.mrf.mxu0
    %v10459 = vadd.f32 0.0, %v10458
    %v10460 = vpop.f32.mrf.mxu0
    %10461 = vmatprep.mubr.f32.mxu0 0.0
    %10462 = vmatmul.mubr.f32.gmra.mxu0 %v10384
    %v10463 = vpop.f32.mrf.mxu0
    %v10464 = vadd.f32 0.0, %v10463
    %v10465 = vpop.f32.mrf.mxu0
    %10466 = vmatprep.mubr.f32.mxu0 0.0
    %10467 = vmatmul.mubr.f32.gmra.mxu0 %v10387
    %v10468 = vpop.f32.mrf.mxu0
    %v10469 = vadd.f32 0.0, %v10468
    %v10470 = vpop.f32.mrf.mxu0
    %10471 = vmatprep.mubr.f32.mxu0 0.0
    %10472 = vmatmul.mubr.f32.gmra.mxu0 %v10390
    %v10473 = vpop.f32.mrf.mxu0
    %v10474 = vadd.f32 0.0, %v10473
    %v10475 = vpop.f32.mrf.mxu0
    %10476 = vdwg.mxu0
    %v10477 = vadd.f32 %v10102, %v10459
    %v10478 = vadd.f32 %v10103, %v10464
    %v10479 = vadd.f32 %v10104, %v10469
    %v10480 = vadd.f32 %v10105, %v10474
    %10481 = vst.msk [vmem:[#allocation7] sm:$0xff] %vm71, %v10477
    %10482 = vst.msk [vmem:[#allocation7 + $0x8] sm:$0xff] %vm71, %v10478
    %10483 = vst.msk [vmem:[#allocation7 + $0x10] sm:$0xff] %vm71, %v10479
    %10484 = vst.msk [vmem:[#allocation7 + $0x18] sm:$0xff] %vm71, %v10480
    // Predicated region
    $region78: #{ttt_block_forward.1} parent=1 // pred_check
      _
    $region79: #{ttt_block_forward.1} parent=1 // pred_check_branch
      %10486 = sbr.rel (0) target = $region81
    $region80: #{ttt_block_forward.1} parent=1 // pred_region
      %s10488 = ssub.s32 512, 512
      %10489 = vsyncadd [#allocation8], %s10488
      %s10490 = sshll.u32 [#allocation7], 4
      %s10491 = int_to_ptr.vmem [resolvable:$true] %s10490
      %10496 = dma.vmem_to_hbm [thread:$0]  %s10491, 512, %s19, [#allocation8], 128, 128, 8
    $region81: #{ttt_block_forward.1} parent=1 // pred_fallthru
      _
    // Predicated region
    $region82: #{ttt_block_forward.1} parent=1 // pred_check
      _
    $region83: #{ttt_block_forward.1} parent=1 // pred_check_branch
      %10498 = sbr.rel (0) target = $region85
    $region84: #{ttt_block_forward.1} parent=1 // pred_region
      %10499 = dma.done [#allocation8], 512
    $region85: #{ttt_block_forward.1} parent=1 // pred_fallthru
      _
    %10500 = vsyncpa [#allocation8], 1

</llo_original>
